<compile_context>
chip_gen: v7x
topology: tpu7x:2x2x1
jax: 0.10.0
libtpu: 0.0.40
codegen_flags: <defaults>
</compile_context>

<pallas_src>
import numpy as np

import jax
import jax.numpy as jnp
from jax.experimental import pallas as pl
from jax.experimental.pallas import tpu as pltpu


B_TILE = 8  # batch images per grid step (multiple of 8 for clean sublane tiling)


# -----------------------------------------------------------------------------
# Pallas kernels
# -----------------------------------------------------------------------------
def conv_block_kernel(p_ref, w_ref, b_ref, scale_ref, shift_ref, o_ref):
    """Fused conv (im2col matmul) + bias + ReLU + BatchNorm(eval) + 2x2 maxpool.

    p_ref:     (B, 4, M, K) bf16  phase-ordered im2col patches; phase p=dh*2+dw
               holds the patches of conv-output positions (2i+dh, 2j+dw).
    w_ref:     (K, C)       bf16  conv weight as matrix, rows in (kh, kw, ci) order
    b_ref:     (1, C)       f32   conv bias
    scale_ref: (1, C)       f32   gamma / sqrt(var + eps)
    shift_ref: (1, C)       f32   beta - mean * scale
    o_ref:     (B, M, C)          pooled output, row m = i*(W/2)+j, channels last
    """
    B, _, M, K = p_ref.shape
    C = w_ref.shape[1]

    p = p_ref[...].reshape(B * 4 * M, K)                      # 8-aligned collapse
    z = jnp.dot(p, w_ref[...], preferred_element_type=jnp.float32)  # (B*4*M, C)
    z = jnp.maximum(z + b_ref[...], 0.0)                      # bias + ReLU (f32)
    z = z * scale_ref[...] + shift_ref[...]                   # eval-mode BN affine
    z = z.reshape(B, 4, M, C)

    # 2x2 max-pool == elementwise max over the 4 window phases (VPU only).
    pooled = jnp.maximum(jnp.maximum(z[:, 0], z[:, 1]),
                         jnp.maximum(z[:, 2], z[:, 3]))       # (B, M, C)
    o_ref[...] = pooled.astype(o_ref.dtype)


def fc_kernel(x_ref, w1_ref, b1_ref, w2_ref, b2_ref, w3_ref, b3_ref, o_ref):
    """Linear(320,120)+ReLU -> Linear(120,60)+ReLU -> Linear(60,10) -> log_softmax.

    Dropout layers are eval-mode identity.  bf16 MXU operands, f32 accumulation.
    """
    x = x_ref[...].astype(jnp.bfloat16)                                  # (B, 320)
    h1 = jnp.dot(x, w1_ref[...], preferred_element_type=jnp.float32) + b1_ref[...]
    h1 = jnp.maximum(h1, 0.0).astype(jnp.bfloat16)
    h2 = jnp.dot(h1, w2_ref[...], preferred_element_type=jnp.float32) + b2_ref[...]
    h2 = jnp.maximum(h2, 0.0).astype(jnp.bfloat16)
    logits = jnp.dot(h2, w3_ref[...], preferred_element_type=jnp.float32) + b3_ref[...]
    m = jnp.max(logits, axis=-1, keepdims=True)
    s = logits - m
    o_ref[...] = s - jnp.log(jnp.sum(jnp.exp(s), axis=-1, keepdims=True))


# -----------------------------------------------------------------------------
# pallas_call wrappers
# -----------------------------------------------------------------------------
def conv_block(patches, w_mat, bias, scale, shift, out_dtype):
    Np, _, M, K = patches.shape
    C = w_mat.shape[1]
    grid = (Np // B_TILE,)
    return pl.pallas_call(
        conv_block_kernel,
        out_shape=jax.ShapeDtypeStruct((Np, M, C), out_dtype),
        grid=grid,
        in_specs=[
            pl.BlockSpec((B_TILE, 4, M, K), lambda n: (n, 0, 0, 0)),
            pl.BlockSpec((K, C), lambda n: (0, 0)),
            pl.BlockSpec((1, C), lambda n: (0, 0)),
            pl.BlockSpec((1, C), lambda n: (0, 0)),
            pl.BlockSpec((1, C), lambda n: (0, 0)),
        ],
        out_specs=pl.BlockSpec((B_TILE, M, C), lambda n: (n, 0, 0)),
        compiler_params=pltpu.CompilerParams(dimension_semantics=("parallel",)),
    )(patches, w_mat, bias, scale, shift)


def fc_stack(x, w1, b1, w2, b2, w3, b3):
    Np, D = x.shape
    grid = (Np // B_TILE,)
    return pl.pallas_call(
        fc_kernel,
        out_shape=jax.ShapeDtypeStruct((Np, 10), jnp.float32),
        grid=grid,
        in_specs=[
            pl.BlockSpec((B_TILE, D), lambda n: (n, 0)),
            pl.BlockSpec(w1.shape, lambda n: (0, 0)),
            pl.BlockSpec(b1.shape, lambda n: (0, 0)),
            pl.BlockSpec(w2.shape, lambda n: (0, 0)),
            pl.BlockSpec(b2.shape, lambda n: (0, 0)),
            pl.BlockSpec(w3.shape, lambda n: (0, 0)),
            pl.BlockSpec(b3.shape, lambda n: (0, 0)),
        ],
        out_specs=pl.BlockSpec((B_TILE, 10), lambda n: (n, 0)),
        compiler_params=pltpu.CompilerParams(dimension_semantics=("parallel",)),
    )(x, w1, b1, w2, b2, w3, b3)


# -----------------------------------------------------------------------------
# Plain-JAX glue: phase-ordered im2col (valid conv, stride 1, 5x5 kernel).
# -----------------------------------------------------------------------------
def phased_patches(x_nhwc, ksize):
    """x: (N, H, W, C) -> (N, 4, (Ho/2)*(Wo/2), ksize*ksize*C).

    Column order is (kh, kw, c).  Phase p = dh*2+dw contains the patches of
    conv-output positions (2i+dh, 2j+dw), row index m = i*(Wo/2)+j — so a 2x2
    max-pool of the conv output is an elementwise max over the phase axis.
    """
    N, H, W, C = x_nhwc.shape
    Ho, Wo = H - ksize + 1, W - ksize + 1
    cols = [x_nhwc[:, kh:kh + Ho, kw:kw + Wo, :]
            for kh in range(ksize) for kw in range(ksize)]
    p = jnp.stack(cols, axis=3)                               # (N, Ho, Wo, KK, C)
    K = ksize * ksize * C
    p = p.reshape(N, Ho // 2, 2, Wo // 2, 2, K)
    p = jnp.transpose(p, (0, 2, 4, 1, 3, 5))                  # (N, dh, dw, i, j, K)
    return p.reshape(N, 4, (Ho // 2) * (Wo // 2), K)


def conv_weight_to_matrix(w_oihw):
    """(Cout, Cin, KH, KW) -> (KH*KW*Cin, Cout) matching (kh, kw, c) patch order."""
    Cout, Cin, KH, KW = w_oihw.shape
    return jnp.transpose(w_oihw, (2, 3, 1, 0)).reshape(KH * KW * Cin, Cout)


def bn_fold(gamma, beta, mean, var, eps=1e-5):
    scale = gamma / jnp.sqrt(var + eps)
    shift = beta - mean * scale
    return (scale.reshape(1, -1).astype(jnp.float32),
            shift.reshape(1, -1).astype(jnp.float32))


# -----------------------------------------------------------------------------
# Full forward
# -----------------------------------------------------------------------------
@jax.jit
def custom_cnn_forward(x_nchw, params):
    N = x_nchw.shape[0]
    Npad = ((N + B_TILE - 1) // B_TILE) * B_TILE

    x = x_nchw[:, 0].astype(jnp.float32)                      # (N, 28, 28)
    x = jnp.pad(x, ((0, Npad - N), (0, 0), (0, 0)))

    # --- conv1 block: Conv2d(1,10,5) + ReLU + BN(10) + MaxPool2 (fused) ------
    p1 = phased_patches(x[..., None], 5).astype(jnp.bfloat16)  # (Npad, 4, 144, 25)
    z1 = conv_block(p1, params["w1m"], params["b1"],
                    params["scale1"], params["shift1"],
                    jnp.bfloat16)                              # (Npad, 144, 10)

    # --- conv2 block: Conv2d(10,20,5) + ReLU + BN(20) + MaxPool2 (fused) -----
    z1v = z1.reshape(Npad, 12, 12, 10)
    p2 = phased_patches(z1v, 5).astype(jnp.bfloat16)           # (Npad, 4, 16, 250)
    z2 = conv_block(p2, params["w2m"], params["b2"],
                    params["scale2"], params["shift2"],
                    jnp.float32)                               # (Npad, 16, 20)

    # flatten: rows are in (h, w) order with channels last; fc1 weight rows are
    # pre-permuted so this matches PyTorch's NCHW out.view(N, -1) flatten.
    flat = z2.reshape(Npad, 320)

    out = fc_stack(flat, params["fw1"], params["fb1"],
                   params["fw2"], params["fb2"],
                   params["fw3"], params["fb3"])               # (Npad, 10)
    return out[:N]


# -----------------------------------------------------------------------------
# Deterministic parameter initialization (shapes from CustomCNN.__init__),
# then conversion to kernel-friendly layouts.
# -----------------------------------------------------------------------------
def init_params(key):
    ks = jax.random.split(key, 18)
    k = iter(ks)

    def nrm(key_, shape, s):
        return s * jax.random.normal(key_, shape, jnp.float32)

    # PyTorch-layout parameters -------------------------------------------------
    w1 = nrm(next(k), (10, 1, 5, 5), 0.1);   b1 = nrm(next(k), (10,), 0.1)
    g1 = 1.0 + nrm(next(k), (10,), 0.1);     be1 = nrm(next(k), (10,), 0.1)
    m1 = nrm(next(k), (10,), 0.1);           v1 = 1.0 + jnp.abs(nrm(next(k), (10,), 0.1))

    w2 = nrm(next(k), (20, 10, 5, 5), 0.05); b2 = nrm(next(k), (20,), 0.1)
    g2 = 1.0 + nrm(next(k), (20,), 0.1);     be2 = nrm(next(k), (20,), 0.1)
    m2 = nrm(next(k), (20,), 0.1);           v2 = 1.0 + jnp.abs(nrm(next(k), (20,), 0.1))

    fc1_w = nrm(next(k), (120, 320), 0.05);  fc1_b = nrm(next(k), (120,), 0.05)
    fc2_w = nrm(next(k), (60, 120), 0.05);   fc2_b = nrm(next(k), (60,), 0.05)
    fc3_w = nrm(next(k), (10, 60), 0.05);    fc3_b = nrm(next(k), (10,), 0.05)

    # Kernel-friendly layouts ---------------------------------------------------
    scale1, shift1 = bn_fold(g1, be1, m1, v1)
    scale2, shift2 = bn_fold(g2, be2, m2, v2)

    # FC1 rows: PyTorch flatten index f = c*16 + pos  ->  ours g = pos*20 + c.
    g = np.arange(320)
    perm = (g % 20) * 16 + (g // 20)
    fw1 = fc1_w.T[perm]                                        # (320, 120)

    return dict(
        w1m=conv_weight_to_matrix(w1).astype(jnp.bfloat16),
        b1=b1.reshape(1, -1).astype(jnp.float32),
        scale1=scale1, shift1=shift1,
        w2m=conv_weight_to_matrix(w2).astype(jnp.bfloat16),
        b2=b2.reshape(1, -1).astype(jnp.float32),
        scale2=scale2, shift2=shift2,
        fw1=fw1.astype(jnp.bfloat16), fb1=fc1_b.reshape(1, -1).astype(jnp.float32),
        fw2=fc2_w.T.astype(jnp.bfloat16), fb2=fc2_b.reshape(1, -1).astype(jnp.float32),
        fw3=fc3_w.T.astype(jnp.bfloat16), fb3=fc3_b.reshape(1, -1).astype(jnp.float32),
    )


if __name__ == "__main__":
    key = jax.random.PRNGKey(0)
    k_param, k_x = jax.random.split(key)
    params = init_params(k_param)

    # MNIST-like input implied by the 320-dim flatten: (N, 1, 28, 28)
    x = jax.random.normal(k_x, (2, 1, 28, 28), jnp.float32)

    out = jax.block_until_ready(custom_cnn_forward(x, params))

    assert out.shape == (2, 10), out.shape
    # log_softmax rows should (approximately) exp-sum to 1
    assert jnp.allclose(jnp.sum(jnp.exp(out), axis=1), 1.0, atol=1e-3)
    print("KERNEL_OK")
</pallas_src>

<mosaic_0001>
module attributes {stable_mosaic.version = 11 : i64} {
  func.func @conv_block_kernel(%arg0: i32, %arg1: memref<8x4x144x25xbf16, #tpu.memory_space<vmem>>, %arg2: memref<25x10xbf16, #tpu.memory_space<vmem>>, %arg3: memref<1x10xf32, #tpu.memory_space<vmem>>, %arg4: memref<1x10xf32, #tpu.memory_space<vmem>>, %arg5: memref<1x10xf32, #tpu.memory_space<vmem>>, %arg6: memref<8x144x10xbf16, #tpu.memory_space<vmem>>) attributes {dimension_semantics = [#tpu.dimension_semantics<parallel>], iteration_bounds = array<i64: 1>, scalar_prefetch = 0 : i64, scratch_operands = 0 : i64, tpu.core_type = #tpu.core_type<tc>, window_params = [{transform_indices = @transform_0, window_bounds = array<i64: 8, 4, 144, 25>}, {pipeline_mode = #tpu.pipeline_mode<synchronous>, transform_indices = @transform_1, window_bounds = array<i64: 25, 10>}, {pipeline_mode = #tpu.pipeline_mode<synchronous>, transform_indices = @transform_2, window_bounds = array<i64: 1, 10>}, {pipeline_mode = #tpu.pipeline_mode<synchronous>, transform_indices = @transform_3, window_bounds = array<i64: 1, 10>}, {pipeline_mode = #tpu.pipeline_mode<synchronous>, transform_indices = @transform_4, window_bounds = array<i64: 1, 10>}, {transform_indices = @transform_5, window_bounds = array<i64: 8, 144, 10>}]} {
    %c0 = arith.constant 0 : index
    %c0_0 = arith.constant 0 : index
    %c0_1 = arith.constant 0 : index
    %c0_2 = arith.constant 0 : index
    %0 = vector.load %arg1[%c0, %c0_0, %c0_1, %c0_2] : memref<8x4x144x25xbf16, #tpu.memory_space<vmem>>, vector<8x4x144x25xbf16>
    %1 = vector.shape_cast %0 : vector<8x4x144x25xbf16> to vector<4608x25xbf16>
    %c0_3 = arith.constant 0 : index
    %c0_4 = arith.constant 0 : index
    %2 = vector.load %arg2[%c0_3, %c0_4] : memref<25x10xbf16, #tpu.memory_space<vmem>>, vector<25x10xbf16>
    %cst = arith.constant dense<0.000000e+00> : vector<4608x10xf32>
    %3 = tpu.matmul %1, %2, %cst {dimension_numbers = #tpu.dot_dimension_numbers<[1], [0], [0], [1], [0, 0, 1, 1], [], []>} : vector<4608x25xbf16>, vector<25x10xbf16>, vector<4608x10xf32> -> vector<4608x10xf32>
    %c0_5 = arith.constant 0 : index
    %c0_6 = arith.constant 0 : index
    %4 = vector.load %arg3[%c0_5, %c0_6] : memref<1x10xf32, #tpu.memory_space<vmem>>, vector<1x10xf32>
    %5 = vector.broadcast %4 : vector<1x10xf32> to vector<4608x10xf32>
    %6 = arith.addf %3, %5 : vector<4608x10xf32>
    %cst_7 = arith.constant 0.000000e+00 : f32
    %7 = vector.broadcast %cst_7 : f32 to vector<4608x10xf32>
    %8 = arith.maximumf %6, %7 : vector<4608x10xf32>
    %c0_8 = arith.constant 0 : index
    %c0_9 = arith.constant 0 : index
    %9 = vector.load %arg4[%c0_8, %c0_9] : memref<1x10xf32, #tpu.memory_space<vmem>>, vector<1x10xf32>
    %10 = vector.broadcast %9 : vector<1x10xf32> to vector<4608x10xf32>
    %11 = arith.mulf %8, %10 : vector<4608x10xf32>
    %c0_10 = arith.constant 0 : index
    %c0_11 = arith.constant 0 : index
    %12 = vector.load %arg5[%c0_10, %c0_11] : memref<1x10xf32, #tpu.memory_space<vmem>>, vector<1x10xf32>
    %13 = vector.broadcast %12 : vector<1x10xf32> to vector<4608x10xf32>
    %14 = arith.addf %11, %13 : vector<4608x10xf32>
    %15 = vector.shape_cast %14 : vector<4608x10xf32> to vector<8x4x144x10xf32>
    %16 = vector.extract_strided_slice %15 {offsets = [0, 0, 0, 0], sizes = [8, 1, 144, 10], strides = [1, 1, 1, 1]} : vector<8x4x144x10xf32> to vector<8x1x144x10xf32>
    %17 = vector.shape_cast %16 : vector<8x1x144x10xf32> to vector<8x144x10xf32>
    %18 = vector.extract_strided_slice %15 {offsets = [0, 1, 0, 0], sizes = [8, 1, 144, 10], strides = [1, 1, 1, 1]} : vector<8x4x144x10xf32> to vector<8x1x144x10xf32>
    %19 = vector.shape_cast %18 : vector<8x1x144x10xf32> to vector<8x144x10xf32>
    %20 = arith.maximumf %17, %19 : vector<8x144x10xf32>
    %21 = vector.extract_strided_slice %15 {offsets = [0, 2, 0, 0], sizes = [8, 1, 144, 10], strides = [1, 1, 1, 1]} : vector<8x4x144x10xf32> to vector<8x1x144x10xf32>
    %22 = vector.shape_cast %21 : vector<8x1x144x10xf32> to vector<8x144x10xf32>
    %23 = vector.extract_strided_slice %15 {offsets = [0, 3, 0, 0], sizes = [8, 1, 144, 10], strides = [1, 1, 1, 1]} : vector<8x4x144x10xf32> to vector<8x1x144x10xf32>
    %24 = vector.shape_cast %23 : vector<8x1x144x10xf32> to vector<8x144x10xf32>
    %25 = arith.maximumf %22, %24 : vector<8x144x10xf32>
    %26 = arith.maximumf %20, %25 : vector<8x144x10xf32>
    %27 = arith.truncf %26 : vector<8x144x10xf32> to vector<8x144x10xbf16>
    %c0_12 = arith.constant 0 : index
    %c0_13 = arith.constant 0 : index
    %c0_14 = arith.constant 0 : index
    %28 = vector.load %arg6[%c0_12, %c0_13, %c0_14] : memref<8x144x10xbf16, #tpu.memory_space<vmem>>, vector<8x144x10xbf16>
    tpu.vector_store %arg6[%c0_12, %c0_13, %c0_14], %27 {strides = array<i32>} : memref<8x144x10xbf16, #tpu.memory_space<vmem>>, vector<8x144x10xbf16>,
    return
  }
  func.func @transform_0(%arg0: i32) -> (i32, i32, i32, i32) {
    %c0_i32 = arith.constant 0 : i32
    %c0_i32_0 = arith.constant 0 : i32
    %c0_i32_1 = arith.constant 0 : i32
    %c0_i32_2 = arith.constant 0 : i32
    return %arg0, %c0_i32, %c0_i32_0, %c0_i32_1 : i32, i32, i32, i32
  }
  func.func @transform_1(%arg0: i32) -> (i32, i32) {
    %c0_i32 = arith.constant 0 : i32
    %c0_i32_0 = arith.constant 0 : i32
    %c0_i32_1 = arith.constant 0 : i32
    return %c0_i32, %c0_i32_0 : i32, i32
  }
  func.func @transform_2(%arg0: i32) -> (i32, i32) {
    %c0_i32 = arith.constant 0 : i32
    %c0_i32_0 = arith.constant 0 : i32
    %c0_i32_1 = arith.constant 0 : i32
    return %c0_i32, %c0_i32_0 : i32, i32
  }
  func.func @transform_3(%arg0: i32) -> (i32, i32) {
    %c0_i32 = arith.constant 0 : i32
    %c0_i32_0 = arith.constant 0 : i32
    %c0_i32_1 = arith.constant 0 : i32
    return %c0_i32, %c0_i32_0 : i32, i32
  }
  func.func @transform_4(%arg0: i32) -> (i32, i32) {
    %c0_i32 = arith.constant 0 : i32
    %c0_i32_0 = arith.constant 0 : i32
    %c0_i32_1 = arith.constant 0 : i32
    return %c0_i32, %c0_i32_0 : i32, i32
  }
  func.func @transform_5(%arg0: i32) -> (i32, i32, i32) {
    %c0_i32 = arith.constant 0 : i32
    %c0_i32_0 = arith.constant 0 : i32
    %c0_i32_1 = arith.constant 0 : i32
    return %arg0, %c0_i32, %c0_i32_0 : i32, i32, i32
  }
}

module attributes {stable_mosaic.version = 11 : i64} {
  func.func @conv_block_kernel(%arg0: i32, %arg1: memref<8x4x16x250xbf16, #tpu.memory_space<vmem>>, %arg2: memref<250x20xbf16, #tpu.memory_space<vmem>>, %arg3: memref<1x20xf32, #tpu.memory_space<vmem>>, %arg4: memref<1x20xf32, #tpu.memory_space<vmem>>, %arg5: memref<1x20xf32, #tpu.memory_space<vmem>>, %arg6: memref<8x16x20xf32, #tpu.memory_space<vmem>>) attributes {dimension_semantics = [#tpu.dimension_semantics<parallel>], iteration_bounds = array<i64: 1>, scalar_prefetch = 0 : i64, scratch_operands = 0 : i64, tpu.core_type = #tpu.core_type<tc>, window_params = [{transform_indices = @transform_0, window_bounds = array<i64: 8, 4, 16, 250>}, {pipeline_mode = #tpu.pipeline_mode<synchronous>, transform_indices = @transform_1, window_bounds = array<i64: 250, 20>}, {pipeline_mode = #tpu.pipeline_mode<synchronous>, transform_indices = @transform_2, window_bounds = array<i64: 1, 20>}, {pipeline_mode = #tpu.pipeline_mode<synchronous>, transform_indices = @transform_3, window_bounds = array<i64: 1, 20>}, {pipeline_mode = #tpu.pipeline_mode<synchronous>, transform_indices = @transform_4, window_bounds = array<i64: 1, 20>}, {transform_indices = @transform_5, window_bounds = array<i64: 8, 16, 20>}]} {
    %c0 = arith.constant 0 : index
    %c0_0 = arith.constant 0 : index
    %c0_1 = arith.constant 0 : index
    %c0_2 = arith.constant 0 : index
    %0 = vector.load %arg1[%c0, %c0_0, %c0_1, %c0_2] : memref<8x4x16x250xbf16, #tpu.memory_space<vmem>>, vector<8x4x16x250xbf16>
    %1 = vector.shape_cast %0 : vector<8x4x16x250xbf16> to vector<512x250xbf16>
    %c0_3 = arith.constant 0 : index
    %c0_4 = arith.constant 0 : index
    %2 = vector.load %arg2[%c0_3, %c0_4] : memref<250x20xbf16, #tpu.memory_space<vmem>>, vector<250x20xbf16>
    %cst = arith.constant dense<0.000000e+00> : vector<512x20xf32>
    %3 = tpu.matmul %1, %2, %cst {dimension_numbers = #tpu.dot_dimension_numbers<[1], [0], [0], [1], [0, 0, 1, 1], [], []>} : vector<512x250xbf16>, vector<250x20xbf16>, vector<512x20xf32> -> vector<512x20xf32>
    %c0_5 = arith.constant 0 : index
    %c0_6 = arith.constant 0 : index
    %4 = vector.load %arg3[%c0_5, %c0_6] : memref<1x20xf32, #tpu.memory_space<vmem>>, vector<1x20xf32>
    %5 = vector.broadcast %4 : vector<1x20xf32> to vector<512x20xf32>
    %6 = arith.addf %3, %5 : vector<512x20xf32>
    %cst_7 = arith.constant 0.000000e+00 : f32
    %7 = vector.broadcast %cst_7 : f32 to vector<512x20xf32>
    %8 = arith.maximumf %6, %7 : vector<512x20xf32>
    %c0_8 = arith.constant 0 : index
    %c0_9 = arith.constant 0 : index
    %9 = vector.load %arg4[%c0_8, %c0_9] : memref<1x20xf32, #tpu.memory_space<vmem>>, vector<1x20xf32>
    %10 = vector.broadcast %9 : vector<1x20xf32> to vector<512x20xf32>
    %11 = arith.mulf %8, %10 : vector<512x20xf32>
    %c0_10 = arith.constant 0 : index
    %c0_11 = arith.constant 0 : index
    %12 = vector.load %arg5[%c0_10, %c0_11] : memref<1x20xf32, #tpu.memory_space<vmem>>, vector<1x20xf32>
    %13 = vector.broadcast %12 : vector<1x20xf32> to vector<512x20xf32>
    %14 = arith.addf %11, %13 : vector<512x20xf32>
    %15 = vector.shape_cast %14 : vector<512x20xf32> to vector<8x4x16x20xf32>
    %16 = vector.extract_strided_slice %15 {offsets = [0, 0, 0, 0], sizes = [8, 1, 16, 20], strides = [1, 1, 1, 1]} : vector<8x4x16x20xf32> to vector<8x1x16x20xf32>
    %17 = vector.shape_cast %16 : vector<8x1x16x20xf32> to vector<8x16x20xf32>
    %18 = vector.extract_strided_slice %15 {offsets = [0, 1, 0, 0], sizes = [8, 1, 16, 20], strides = [1, 1, 1, 1]} : vector<8x4x16x20xf32> to vector<8x1x16x20xf32>
    %19 = vector.shape_cast %18 : vector<8x1x16x20xf32> to vector<8x16x20xf32>
    %20 = arith.maximumf %17, %19 : vector<8x16x20xf32>
    %21 = vector.extract_strided_slice %15 {offsets = [0, 2, 0, 0], sizes = [8, 1, 16, 20], strides = [1, 1, 1, 1]} : vector<8x4x16x20xf32> to vector<8x1x16x20xf32>
    %22 = vector.shape_cast %21 : vector<8x1x16x20xf32> to vector<8x16x20xf32>
    %23 = vector.extract_strided_slice %15 {offsets = [0, 3, 0, 0], sizes = [8, 1, 16, 20], strides = [1, 1, 1, 1]} : vector<8x4x16x20xf32> to vector<8x1x16x20xf32>
    %24 = vector.shape_cast %23 : vector<8x1x16x20xf32> to vector<8x16x20xf32>
    %25 = arith.maximumf %22, %24 : vector<8x16x20xf32>
    %26 = arith.maximumf %20, %25 : vector<8x16x20xf32>
    %c0_12 = arith.constant 0 : index
    %c0_13 = arith.constant 0 : index
    %c0_14 = arith.constant 0 : index
    %27 = vector.load %arg6[%c0_12, %c0_13, %c0_14] : memref<8x16x20xf32, #tpu.memory_space<vmem>>, vector<8x16x20xf32>
    tpu.vector_store %arg6[%c0_12, %c0_13, %c0_14], %26 {strides = array<i32>} : memref<8x16x20xf32, #tpu.memory_space<vmem>>, vector<8x16x20xf32>,
    return
  }
  func.func @transform_0(%arg0: i32) -> (i32, i32, i32, i32) {
    %c0_i32 = arith.constant 0 : i32
    %c0_i32_0 = arith.constant 0 : i32
    %c0_i32_1 = arith.constant 0 : i32
    %c0_i32_2 = arith.constant 0 : i32
    return %arg0, %c0_i32, %c0_i32_0, %c0_i32_1 : i32, i32, i32, i32
  }
  func.func @transform_1(%arg0: i32) -> (i32, i32) {
    %c0_i32 = arith.constant 0 : i32
    %c0_i32_0 = arith.constant 0 : i32
    %c0_i32_1 = arith.constant 0 : i32
    return %c0_i32, %c0_i32_0 : i32, i32
  }
  func.func @transform_2(%arg0: i32) -> (i32, i32) {
    %c0_i32 = arith.constant 0 : i32
    %c0_i32_0 = arith.constant 0 : i32
    %c0_i32_1 = arith.constant 0 : i32
    return %c0_i32, %c0_i32_0 : i32, i32
  }
  func.func @transform_3(%arg0: i32) -> (i32, i32) {
    %c0_i32 = arith.constant 0 : i32
    %c0_i32_0 = arith.constant 0 : i32
    %c0_i32_1 = arith.constant 0 : i32
    return %c0_i32, %c0_i32_0 : i32, i32
  }
  func.func @transform_4(%arg0: i32) -> (i32, i32) {
    %c0_i32 = arith.constant 0 : i32
    %c0_i32_0 = arith.constant 0 : i32
    %c0_i32_1 = arith.constant 0 : i32
    return %c0_i32, %c0_i32_0 : i32, i32
  }
  func.func @transform_5(%arg0: i32) -> (i32, i32, i32) {
    %c0_i32 = arith.constant 0 : i32
    %c0_i32_0 = arith.constant 0 : i32
    %c0_i32_1 = arith.constant 0 : i32
    return %arg0, %c0_i32, %c0_i32_0 : i32, i32, i32
  }
}

module attributes {stable_mosaic.version = 11 : i64} {
  func.func @fc_kernel(%arg0: i32, %arg1: memref<8x320xf32, #tpu.memory_space<vmem>>, %arg2: memref<320x120xbf16, #tpu.memory_space<vmem>>, %arg3: memref<1x120xf32, #tpu.memory_space<vmem>>, %arg4: memref<120x60xbf16, #tpu.memory_space<vmem>>, %arg5: memref<1x60xf32, #tpu.memory_space<vmem>>, %arg6: memref<60x10xbf16, #tpu.memory_space<vmem>>, %arg7: memref<1x10xf32, #tpu.memory_space<vmem>>, %arg8: memref<8x10xf32, #tpu.memory_space<vmem>>) attributes {dimension_semantics = [#tpu.dimension_semantics<parallel>], iteration_bounds = array<i64: 1>, scalar_prefetch = 0 : i64, scratch_operands = 0 : i64, tpu.core_type = #tpu.core_type<tc>, window_params = [{transform_indices = @transform_0, window_bounds = array<i64: 8, 320>}, {pipeline_mode = #tpu.pipeline_mode<synchronous>, transform_indices = @transform_1, window_bounds = array<i64: 320, 120>}, {pipeline_mode = #tpu.pipeline_mode<synchronous>, transform_indices = @transform_2, window_bounds = array<i64: 1, 120>}, {pipeline_mode = #tpu.pipeline_mode<synchronous>, transform_indices = @transform_3, window_bounds = array<i64: 120, 60>}, {pipeline_mode = #tpu.pipeline_mode<synchronous>, transform_indices = @transform_4, window_bounds = array<i64: 1, 60>}, {pipeline_mode = #tpu.pipeline_mode<synchronous>, transform_indices = @transform_5, window_bounds = array<i64: 60, 10>}, {pipeline_mode = #tpu.pipeline_mode<synchronous>, transform_indices = @transform_6, window_bounds = array<i64: 1, 10>}, {transform_indices = @transform_7, window_bounds = array<i64: 8, 10>}]} {
    %c0 = arith.constant 0 : index
    %c0_0 = arith.constant 0 : index
    %0 = vector.load %arg1[%c0, %c0_0] : memref<8x320xf32, #tpu.memory_space<vmem>>, vector<8x320xf32>
    %1 = arith.truncf %0 : vector<8x320xf32> to vector<8x320xbf16>
    %c0_1 = arith.constant 0 : index
    %c0_2 = arith.constant 0 : index
    %2 = vector.load %arg2[%c0_1, %c0_2] : memref<320x120xbf16, #tpu.memory_space<vmem>>, vector<320x120xbf16>
    %cst = arith.constant dense<0.000000e+00> : vector<8x120xf32>
    %3 = tpu.matmul %1, %2, %cst {dimension_numbers = #tpu.dot_dimension_numbers<[1], [0], [0], [1], [0, 0, 1, 1], [], []>} : vector<8x320xbf16>, vector<320x120xbf16>, vector<8x120xf32> -> vector<8x120xf32>
    %c0_3 = arith.constant 0 : index
    %c0_4 = arith.constant 0 : index
    %4 = vector.load %arg3[%c0_3, %c0_4] : memref<1x120xf32, #tpu.memory_space<vmem>>, vector<1x120xf32>
    %5 = vector.broadcast %4 : vector<1x120xf32> to vector<8x120xf32>
    %6 = arith.addf %3, %5 : vector<8x120xf32>
    %cst_5 = arith.constant 0.000000e+00 : f32
    %7 = vector.broadcast %cst_5 : f32 to vector<8x120xf32>
    %8 = arith.maximumf %6, %7 : vector<8x120xf32>
    %9 = arith.truncf %8 : vector<8x120xf32> to vector<8x120xbf16>
    %c0_6 = arith.constant 0 : index
    %c0_7 = arith.constant 0 : index
    %10 = vector.load %arg4[%c0_6, %c0_7] : memref<120x60xbf16, #tpu.memory_space<vmem>>, vector<120x60xbf16>
    %cst_8 = arith.constant dense<0.000000e+00> : vector<8x60xf32>
    %11 = tpu.matmul %9, %10, %cst_8 {dimension_numbers = #tpu.dot_dimension_numbers<[1], [0], [0], [1], [0, 0, 1, 1], [], []>} : vector<8x120xbf16>, vector<120x60xbf16>, vector<8x60xf32> -> vector<8x60xf32>
    %c0_9 = arith.constant 0 : index
    %c0_10 = arith.constant 0 : index
    %12 = vector.load %arg5[%c0_9, %c0_10] : memref<1x60xf32, #tpu.memory_space<vmem>>, vector<1x60xf32>
    %13 = vector.broadcast %12 : vector<1x60xf32> to vector<8x60xf32>
    %14 = arith.addf %11, %13 : vector<8x60xf32>
    %cst_11 = arith.constant 0.000000e+00 : f32
    %15 = vector.broadcast %cst_11 : f32 to vector<8x60xf32>
    %16 = arith.maximumf %14, %15 : vector<8x60xf32>
    %17 = arith.truncf %16 : vector<8x60xf32> to vector<8x60xbf16>
    %c0_12 = arith.constant 0 : index
    %c0_13 = arith.constant 0 : index
    %18 = vector.load %arg6[%c0_12, %c0_13] : memref<60x10xbf16, #tpu.memory_space<vmem>>, vector<60x10xbf16>
    %cst_14 = arith.constant dense<0.000000e+00> : vector<8x10xf32>
    %19 = tpu.matmul %17, %18, %cst_14 {dimension_numbers = #tpu.dot_dimension_numbers<[1], [0], [0], [1], [0, 0, 1, 1], [], []>} : vector<8x60xbf16>, vector<60x10xbf16>, vector<8x10xf32> -> vector<8x10xf32>
    %c0_15 = arith.constant 0 : index
    %c0_16 = arith.constant 0 : index
    %20 = vector.load %arg7[%c0_15, %c0_16] : memref<1x10xf32, #tpu.memory_space<vmem>>, vector<1x10xf32>
    %21 = vector.broadcast %20 : vector<1x10xf32> to vector<8x10xf32>
    %22 = arith.addf %19, %21 : vector<8x10xf32>
    %cst_17 = arith.constant dense<0xFF800000> : vector<8xf32>
    %23 = vector.multi_reduction <maximumf>, %22, %cst_17 [1] : vector<8x10xf32> to vector<8xf32>
    %24 = vector.shape_cast %23 : vector<8xf32> to vector<8x1xf32>
    %25 = vector.broadcast %24 : vector<8x1xf32> to vector<8x10xf32>
    %26 = arith.subf %22, %25 : vector<8x10xf32>
    %27 = math.exp %26 : vector<8x10xf32>
    %cst_18 = arith.constant dense<0.000000e+00> : vector<8xf32>
    %28 = vector.multi_reduction <add>, %27, %cst_18 [1] : vector<8x10xf32> to vector<8xf32>
    %29 = vector.shape_cast %28 : vector<8xf32> to vector<8x1xf32>
    %30 = math.log %29 : vector<8x1xf32>
    %31 = vector.broadcast %30 : vector<8x1xf32> to vector<8x10xf32>
    %32 = arith.subf %26, %31 : vector<8x10xf32>
    %c0_19 = arith.constant 0 : index
    %c0_20 = arith.constant 0 : index
    %33 = vector.load %arg8[%c0_19, %c0_20] : memref<8x10xf32, #tpu.memory_space<vmem>>, vector<8x10xf32>
    tpu.vector_store %arg8[%c0_19, %c0_20], %32 {strides = array<i32>} : memref<8x10xf32, #tpu.memory_space<vmem>>, vector<8x10xf32>,
    return
  }
  func.func @transform_0(%arg0: i32) -> (i32, i32) {
    %c0_i32 = arith.constant 0 : i32
    %c0_i32_0 = arith.constant 0 : i32
    return %arg0, %c0_i32 : i32, i32
  }
  func.func @transform_1(%arg0: i32) -> (i32, i32) {
    %c0_i32 = arith.constant 0 : i32
    %c0_i32_0 = arith.constant 0 : i32
    %c0_i32_1 = arith.constant 0 : i32
    return %c0_i32, %c0_i32_0 : i32, i32
  }
  func.func @transform_2(%arg0: i32) -> (i32, i32) {
    %c0_i32 = arith.constant 0 : i32
    %c0_i32_0 = arith.constant 0 : i32
    %c0_i32_1 = arith.constant 0 : i32
    return %c0_i32, %c0_i32_0 : i32, i32
  }
  func.func @transform_3(%arg0: i32) -> (i32, i32) {
    %c0_i32 = arith.constant 0 : i32
    %c0_i32_0 = arith.constant 0 : i32
    %c0_i32_1 = arith.constant 0 : i32
    return %c0_i32, %c0_i32_0 : i32, i32
  }
  func.func @transform_4(%arg0: i32) -> (i32, i32) {
    %c0_i32 = arith.constant 0 : i32
    %c0_i32_0 = arith.constant 0 : i32
    %c0_i32_1 = arith.constant 0 : i32
    return %c0_i32, %c0_i32_0 : i32, i32
  }
  func.func @transform_5(%arg0: i32) -> (i32, i32) {
    %c0_i32 = arith.constant 0 : i32
    %c0_i32_0 = arith.constant 0 : i32
    %c0_i32_1 = arith.constant 0 : i32
    return %c0_i32, %c0_i32_0 : i32, i32
  }
  func.func @transform_6(%arg0: i32) -> (i32, i32) {
    %c0_i32 = arith.constant 0 : i32
    %c0_i32_0 = arith.constant 0 : i32
    %c0_i32_1 = arith.constant 0 : i32
    return %c0_i32, %c0_i32_0 : i32, i32
  }
  func.func @transform_7(%arg0: i32) -> (i32, i32) {
    %c0_i32 = arith.constant 0 : i32
    %c0_i32_0 = arith.constant 0 : i32
    return %arg0, %c0_i32 : i32, i32
  }
}

</mosaic_0001>

<llo_original>
// kernel: custom_cnn_forward.3
$region0: #{custom_cnn_forward.3}
  #allocation0 [shape = 'u32[]', space=smem, size = 0x4, offset = 0x4, fixed_abs, tag = 'smem constant byte address 0x4 - core index']
  #allocation1 [shape = 'u32[144,128]{1,0:T(1,128)}', space=vmem, size = 0x12000, scoped, tag = 'internal scratch']
  %s0 = inlined_call_operand.vmem [shape: bf16[8,4,144,25], index: 0, kind: input, shape index: {}]
  %s1 = inlined_call_operand.vmem [shape: bf16[25,10], index: 1, kind: input, shape index: {}]
  %s2 = inlined_call_operand.vmem [shape: f32[1,10], index: 2, kind: input, shape index: {}]
  %s3 = inlined_call_operand.vmem [shape: f32[1,10], index: 3, kind: input, shape index: {}]
  %s4 = inlined_call_operand.vmem [shape: f32[1,10], index: 4, kind: input, shape index: {}]
  %s5 = inlined_call_operand.vmem [shape: bf16[8,144,10], index: 5, kind: output, shape index: {}]
  %s6 = sld [smem:[#allocation0]]
  $region30: #{custom_cnn_forward.3} parent=0
    _
  %s8 = ssub.s32 1, %s6
  %s9 = scalar_select 0, %s8, %s6
  // Predicated region
  $region2: #{custom_cnn_forward.3} parent=0 // pred_check
    _
  $region3: #{custom_cnn_forward.3} parent=0 // pred_check_branch
    %11 = sbr.rel (0) target = $region5
  $region4: #{custom_cnn_forward.3} parent=0 // pred_region
    _
  $region5: #{custom_cnn_forward.3} parent=0 // pred_fallthru
    _
  // Predicated region
  $region6: #{custom_cnn_forward.3} parent=0 // pred_check
    _
  $region7: #{custom_cnn_forward.3} parent=0 // pred_check_branch
    %13 = sbr.rel (0) target = $region9
  $region8: #{custom_cnn_forward.3} parent=0 // pred_region
    _
  $region9: #{custom_cnn_forward.3} parent=0 // pred_fallthru
    _
  // Predicated region
  $region10: #{custom_cnn_forward.3} parent=0 // pred_check
    _
  $region11: #{custom_cnn_forward.3} parent=0 // pred_check_branch
    %15 = sbr.rel (0) target = $region13
  $region12: #{custom_cnn_forward.3} parent=0 // pred_region
    _
  $region13: #{custom_cnn_forward.3} parent=0 // pred_fallthru
    _
  // Predicated region
  $region14: #{custom_cnn_forward.3} parent=0 // pred_check
    _
  $region15: #{custom_cnn_forward.3} parent=0 // pred_check_branch
    %17 = sbr.rel (0) target = $region17
  $region16: #{custom_cnn_forward.3} parent=0 // pred_region
    _
  $region17: #{custom_cnn_forward.3} parent=0 // pred_fallthru
    _
  // Predicated region
  $region18: #{custom_cnn_forward.3} parent=0 // pred_check
    _
  $region19: #{custom_cnn_forward.3} parent=0 // pred_check_branch
    %19 = sbr.rel (0) target = $region21
  $region20: #{custom_cnn_forward.3} parent=0 // pred_region
    _
  $region21: #{custom_cnn_forward.3} parent=0 // pred_fallthru
    _
  %v21 = vld [vmem:[%s0] sm:$0xf]
  %v22 = vld [vmem:[%s0 + $0x4] sm:$0xf]
  %v23 = vld [vmem:[%s0 + $0x8] sm:$0xf]
  %v24 = vld [vmem:[%s0 + $0xc] sm:$0xf]
  %v25 = vld [vmem:[%s0 + $0x10] sm:$0xf]
  %v26 = vld [vmem:[%s0 + $0x14] sm:$0xf]
  %v27 = vld [vmem:[%s0 + $0x18] sm:$0xf]
  %v28 = vld [vmem:[%s0 + $0x1c] sm:$0xf]
  %v29 = vld [vmem:[%s0 + $0x20] sm:$0xf]
  %v30 = vld [vmem:[%s0 + $0x24] sm:$0xf]
  %v31 = vld [vmem:[%s0 + $0x28] sm:$0xf]
  %v32 = vld [vmem:[%s0 + $0x2c] sm:$0xf]
  %v33 = vld [vmem:[%s0 + $0x30] sm:$0xf]
  %v34 = vld [vmem:[%s0 + $0x34] sm:$0xf]
  %v35 = vld [vmem:[%s0 + $0x38] sm:$0xf]
  %v36 = vld [vmem:[%s0 + $0x3c] sm:$0xf]
  %v37 = vld [vmem:[%s0 + $0x40] sm:$0xf]
  %v38 = vld [vmem:[%s0 + $0x44] sm:$0xf]
  %v39 = vld [vmem:[%s0 + $0x48] sm:$0xf]
  %v40 = vld [vmem:[%s0 + $0x4c] sm:$0xf]
  %v41 = vld [vmem:[%s0 + $0x50] sm:$0xf]
  %v42 = vld [vmem:[%s0 + $0x54] sm:$0xf]
  %v43 = vld [vmem:[%s0 + $0x58] sm:$0xf]
  %v44 = vld [vmem:[%s0 + $0x5c] sm:$0xf]
  %v45 = vld [vmem:[%s0 + $0x60] sm:$0xf]
  %v46 = vld [vmem:[%s0 + $0x64] sm:$0xf]
  %v47 = vld [vmem:[%s0 + $0x68] sm:$0xf]
  %v48 = vld [vmem:[%s0 + $0x6c] sm:$0xf]
  %v49 = vld [vmem:[%s0 + $0x70] sm:$0xf]
  %v50 = vld [vmem:[%s0 + $0x74] sm:$0xf]
  %v51 = vld [vmem:[%s0 + $0x78] sm:$0xf]
  %v52 = vld [vmem:[%s0 + $0x7c] sm:$0xf]
  %v53 = vld [vmem:[%s0 + $0x80] sm:$0xf]
  %v54 = vld [vmem:[%s0 + $0x84] sm:$0xf]
  %v55 = vld [vmem:[%s0 + $0x88] sm:$0xf]
  %v56 = vld [vmem:[%s0 + $0x8c] sm:$0xf]
  %v57 = vld [vmem:[%s0 + $0x90] sm:$0xf]
  %v58 = vld [vmem:[%s0 + $0x94] sm:$0xf]
  %v59 = vld [vmem:[%s0 + $0x98] sm:$0xf]
  %v60 = vld [vmem:[%s0 + $0x9c] sm:$0xf]
  %v61 = vld [vmem:[%s0 + $0xa0] sm:$0xf]
  %v62 = vld [vmem:[%s0 + $0xa4] sm:$0xf]
  %v63 = vld [vmem:[%s0 + $0xa8] sm:$0xf]
  %v64 = vld [vmem:[%s0 + $0xac] sm:$0xf]
  %v65 = vld [vmem:[%s0 + $0xb0] sm:$0xf]
  %v66 = vld [vmem:[%s0 + $0xb4] sm:$0xf]
  %v67 = vld [vmem:[%s0 + $0xb8] sm:$0xf]
  %v68 = vld [vmem:[%s0 + $0xbc] sm:$0xf]
  %v69 = vld [vmem:[%s0 + $0xc0] sm:$0xf]
  %v70 = vld [vmem:[%s0 + $0xc4] sm:$0xf]
  %v71 = vld [vmem:[%s0 + $0xc8] sm:$0xf]
  %v72 = vld [vmem:[%s0 + $0xcc] sm:$0xf]
  %v73 = vld [vmem:[%s0 + $0xd0] sm:$0xf]
  %v74 = vld [vmem:[%s0 + $0xd4] sm:$0xf]
  %v75 = vld [vmem:[%s0 + $0xd8] sm:$0xf]
  %v76 = vld [vmem:[%s0 + $0xdc] sm:$0xf]
  %v77 = vld [vmem:[%s0 + $0xe0] sm:$0xf]
  %v78 = vld [vmem:[%s0 + $0xe4] sm:$0xf]
  %v79 = vld [vmem:[%s0 + $0xe8] sm:$0xf]
  %v80 = vld [vmem:[%s0 + $0xec] sm:$0xf]
  %v81 = vld [vmem:[%s0 + $0xf0] sm:$0xf]
  %v82 = vld [vmem:[%s0 + $0xf4] sm:$0xf]
  %v83 = vld [vmem:[%s0 + $0xf8] sm:$0xf]
  %v84 = vld [vmem:[%s0 + $0xfc] sm:$0xf]
  %v85 = vld [vmem:[%s0 + $0x100] sm:$0xf]
  %v86 = vld [vmem:[%s0 + $0x104] sm:$0xf]
  %v87 = vld [vmem:[%s0 + $0x108] sm:$0xf]
  %v88 = vld [vmem:[%s0 + $0x10c] sm:$0xf]
  %v89 = vld [vmem:[%s0 + $0x110] sm:$0xf]
  %v90 = vld [vmem:[%s0 + $0x114] sm:$0xf]
  %v91 = vld [vmem:[%s0 + $0x118] sm:$0xf]
  %v92 = vld [vmem:[%s0 + $0x11c] sm:$0xf]
  %v93 = vld [vmem:[%s0 + $0x120] sm:$0xf]
  %v94 = vld [vmem:[%s0 + $0x124] sm:$0xf]
  %v95 = vld [vmem:[%s0 + $0x128] sm:$0xf]
  %v96 = vld [vmem:[%s0 + $0x12c] sm:$0xf]
  %v97 = vld [vmem:[%s0 + $0x130] sm:$0xf]
  %v98 = vld [vmem:[%s0 + $0x134] sm:$0xf]
  %v99 = vld [vmem:[%s0 + $0x138] sm:$0xf]
  %v100 = vld [vmem:[%s0 + $0x13c] sm:$0xf]
  %v101 = vld [vmem:[%s0 + $0x140] sm:$0xf]
  %v102 = vld [vmem:[%s0 + $0x144] sm:$0xf]
  %v103 = vld [vmem:[%s0 + $0x148] sm:$0xf]
  %v104 = vld [vmem:[%s0 + $0x14c] sm:$0xf]
  %v105 = vld [vmem:[%s0 + $0x150] sm:$0xf]
  %v106 = vld [vmem:[%s0 + $0x154] sm:$0xf]
  %v107 = vld [vmem:[%s0 + $0x158] sm:$0xf]
  %v108 = vld [vmem:[%s0 + $0x15c] sm:$0xf]
  %v109 = vld [vmem:[%s0 + $0x160] sm:$0xf]
  %v110 = vld [vmem:[%s0 + $0x164] sm:$0xf]
  %v111 = vld [vmem:[%s0 + $0x168] sm:$0xf]
  %v112 = vld [vmem:[%s0 + $0x16c] sm:$0xf]
  %v113 = vld [vmem:[%s0 + $0x170] sm:$0xf]
  %v114 = vld [vmem:[%s0 + $0x174] sm:$0xf]
  %v115 = vld [vmem:[%s0 + $0x178] sm:$0xf]
  %v116 = vld [vmem:[%s0 + $0x17c] sm:$0xf]
  %v117 = vld [vmem:[%s0 + $0x180] sm:$0xf]
  %v118 = vld [vmem:[%s0 + $0x184] sm:$0xf]
  %v119 = vld [vmem:[%s0 + $0x188] sm:$0xf]
  %v120 = vld [vmem:[%s0 + $0x18c] sm:$0xf]
  %v121 = vld [vmem:[%s0 + $0x190] sm:$0xf]
  %v122 = vld [vmem:[%s0 + $0x194] sm:$0xf]
  %v123 = vld [vmem:[%s0 + $0x198] sm:$0xf]
  %v124 = vld [vmem:[%s0 + $0x19c] sm:$0xf]
  %v125 = vld [vmem:[%s0 + $0x1a0] sm:$0xf]
  %v126 = vld [vmem:[%s0 + $0x1a4] sm:$0xf]
  %v127 = vld [vmem:[%s0 + $0x1a8] sm:$0xf]
  %v128 = vld [vmem:[%s0 + $0x1ac] sm:$0xf]
  %v129 = vld [vmem:[%s0 + $0x1b0] sm:$0xf]
  %v130 = vld [vmem:[%s0 + $0x1b4] sm:$0xf]
  %v131 = vld [vmem:[%s0 + $0x1b8] sm:$0xf]
  %v132 = vld [vmem:[%s0 + $0x1bc] sm:$0xf]
  %v133 = vld [vmem:[%s0 + $0x1c0] sm:$0xf]
  %v134 = vld [vmem:[%s0 + $0x1c4] sm:$0xf]
  %v135 = vld [vmem:[%s0 + $0x1c8] sm:$0xf]
  %v136 = vld [vmem:[%s0 + $0x1cc] sm:$0xf]
  %v137 = vld [vmem:[%s0 + $0x1d0] sm:$0xf]
  %v138 = vld [vmem:[%s0 + $0x1d4] sm:$0xf]
  %v139 = vld [vmem:[%s0 + $0x1d8] sm:$0xf]
  %v140 = vld [vmem:[%s0 + $0x1dc] sm:$0xf]
  %v141 = vld [vmem:[%s0 + $0x1e0] sm:$0xf]
  %v142 = vld [vmem:[%s0 + $0x1e4] sm:$0xf]
  %v143 = vld [vmem:[%s0 + $0x1e8] sm:$0xf]
  %v144 = vld [vmem:[%s0 + $0x1ec] sm:$0xf]
  %v145 = vld [vmem:[%s0 + $0x1f0] sm:$0xf]
  %v146 = vld [vmem:[%s0 + $0x1f4] sm:$0xf]
  %v147 = vld [vmem:[%s0 + $0x1f8] sm:$0xf]
  %v148 = vld [vmem:[%s0 + $0x1fc] sm:$0xf]
  %v149 = vld [vmem:[%s0 + $0x200] sm:$0xf]
  %v150 = vld [vmem:[%s0 + $0x204] sm:$0xf]
  %v151 = vld [vmem:[%s0 + $0x208] sm:$0xf]
  %v152 = vld [vmem:[%s0 + $0x20c] sm:$0xf]
  %v153 = vld [vmem:[%s0 + $0x210] sm:$0xf]
  %v154 = vld [vmem:[%s0 + $0x214] sm:$0xf]
  %v155 = vld [vmem:[%s0 + $0x218] sm:$0xf]
  %v156 = vld [vmem:[%s0 + $0x21c] sm:$0xf]
  %v157 = vld [vmem:[%s0 + $0x220] sm:$0xf]
  %v158 = vld [vmem:[%s0 + $0x224] sm:$0xf]
  %v159 = vld [vmem:[%s0 + $0x228] sm:$0xf]
  %v160 = vld [vmem:[%s0 + $0x22c] sm:$0xf]
  %v161 = vld [vmem:[%s0 + $0x230] sm:$0xf]
  %v162 = vld [vmem:[%s0 + $0x234] sm:$0xf]
  %v163 = vld [vmem:[%s0 + $0x238] sm:$0xf]
  %v164 = vld [vmem:[%s0 + $0x23c] sm:$0xf]
  %v165 = vld [vmem:[%s0 + $0x240] sm:$0xf]
  %v166 = vld [vmem:[%s0 + $0x244] sm:$0xf]
  %v167 = vld [vmem:[%s0 + $0x248] sm:$0xf]
  %v168 = vld [vmem:[%s0 + $0x24c] sm:$0xf]
  %v169 = vld [vmem:[%s0 + $0x250] sm:$0xf]
  %v170 = vld [vmem:[%s0 + $0x254] sm:$0xf]
  %v171 = vld [vmem:[%s0 + $0x258] sm:$0xf]
  %v172 = vld [vmem:[%s0 + $0x25c] sm:$0xf]
  %v173 = vld [vmem:[%s0 + $0x260] sm:$0xf]
  %v174 = vld [vmem:[%s0 + $0x264] sm:$0xf]
  %v175 = vld [vmem:[%s0 + $0x268] sm:$0xf]
  %v176 = vld [vmem:[%s0 + $0x26c] sm:$0xf]
  %v177 = vld [vmem:[%s0 + $0x270] sm:$0xf]
  %v178 = vld [vmem:[%s0 + $0x274] sm:$0xf]
  %v179 = vld [vmem:[%s0 + $0x278] sm:$0xf]
  %v180 = vld [vmem:[%s0 + $0x27c] sm:$0xf]
  %v181 = vld [vmem:[%s0 + $0x280] sm:$0xf]
  %v182 = vld [vmem:[%s0 + $0x284] sm:$0xf]
  %v183 = vld [vmem:[%s0 + $0x288] sm:$0xf]
  %v184 = vld [vmem:[%s0 + $0x28c] sm:$0xf]
  %v185 = vld [vmem:[%s0 + $0x290] sm:$0xf]
  %v186 = vld [vmem:[%s0 + $0x294] sm:$0xf]
  %v187 = vld [vmem:[%s0 + $0x298] sm:$0xf]
  %v188 = vld [vmem:[%s0 + $0x29c] sm:$0xf]
  %v189 = vld [vmem:[%s0 + $0x2a0] sm:$0xf]
  %v190 = vld [vmem:[%s0 + $0x2a4] sm:$0xf]
  %v191 = vld [vmem:[%s0 + $0x2a8] sm:$0xf]
  %v192 = vld [vmem:[%s0 + $0x2ac] sm:$0xf]
  %v193 = vld [vmem:[%s0 + $0x2b0] sm:$0xf]
  %v194 = vld [vmem:[%s0 + $0x2b4] sm:$0xf]
  %v195 = vld [vmem:[%s0 + $0x2b8] sm:$0xf]
  %v196 = vld [vmem:[%s0 + $0x2bc] sm:$0xf]
  %v197 = vld [vmem:[%s0 + $0x2c0] sm:$0xf]
  %v198 = vld [vmem:[%s0 + $0x2c4] sm:$0xf]
  %v199 = vld [vmem:[%s0 + $0x2c8] sm:$0xf]
  %v200 = vld [vmem:[%s0 + $0x2cc] sm:$0xf]
  %v201 = vld [vmem:[%s0 + $0x2d0] sm:$0xf]
  %v202 = vld [vmem:[%s0 + $0x2d4] sm:$0xf]
  %v203 = vld [vmem:[%s0 + $0x2d8] sm:$0xf]
  %v204 = vld [vmem:[%s0 + $0x2dc] sm:$0xf]
  %v205 = vld [vmem:[%s0 + $0x2e0] sm:$0xf]
  %v206 = vld [vmem:[%s0 + $0x2e4] sm:$0xf]
  %v207 = vld [vmem:[%s0 + $0x2e8] sm:$0xf]
  %v208 = vld [vmem:[%s0 + $0x2ec] sm:$0xf]
  %v209 = vld [vmem:[%s0 + $0x2f0] sm:$0xf]
  %v210 = vld [vmem:[%s0 + $0x2f4] sm:$0xf]
  %v211 = vld [vmem:[%s0 + $0x2f8] sm:$0xf]
  %v212 = vld [vmem:[%s0 + $0x2fc] sm:$0xf]
  %v213 = vld [vmem:[%s0 + $0x300] sm:$0xf]
  %v214 = vld [vmem:[%s0 + $0x304] sm:$0xf]
  %v215 = vld [vmem:[%s0 + $0x308] sm:$0xf]
  %v216 = vld [vmem:[%s0 + $0x30c] sm:$0xf]
  %v217 = vld [vmem:[%s0 + $0x310] sm:$0xf]
  %v218 = vld [vmem:[%s0 + $0x314] sm:$0xf]
  %v219 = vld [vmem:[%s0 + $0x318] sm:$0xf]
  %v220 = vld [vmem:[%s0 + $0x31c] sm:$0xf]
  %v221 = vld [vmem:[%s0 + $0x320] sm:$0xf]
  %v222 = vld [vmem:[%s0 + $0x324] sm:$0xf]
  %v223 = vld [vmem:[%s0 + $0x328] sm:$0xf]
  %v224 = vld [vmem:[%s0 + $0x32c] sm:$0xf]
  %v225 = vld [vmem:[%s0 + $0x330] sm:$0xf]
  %v226 = vld [vmem:[%s0 + $0x334] sm:$0xf]
  %v227 = vld [vmem:[%s0 + $0x338] sm:$0xf]
  %v228 = vld [vmem:[%s0 + $0x33c] sm:$0xf]
  %v229 = vld [vmem:[%s0 + $0x340] sm:$0xf]
  %v230 = vld [vmem:[%s0 + $0x344] sm:$0xf]
  %v231 = vld [vmem:[%s0 + $0x348] sm:$0xf]
  %v232 = vld [vmem:[%s0 + $0x34c] sm:$0xf]
  %v233 = vld [vmem:[%s0 + $0x350] sm:$0xf]
  %v234 = vld [vmem:[%s0 + $0x354] sm:$0xf]
  %v235 = vld [vmem:[%s0 + $0x358] sm:$0xf]
  %v236 = vld [vmem:[%s0 + $0x35c] sm:$0xf]
  %v237 = vld [vmem:[%s0 + $0x360] sm:$0xf]
  %v238 = vld [vmem:[%s0 + $0x364] sm:$0xf]
  %v239 = vld [vmem:[%s0 + $0x368] sm:$0xf]
  %v240 = vld [vmem:[%s0 + $0x36c] sm:$0xf]
  %v241 = vld [vmem:[%s0 + $0x370] sm:$0xf]
  %v242 = vld [vmem:[%s0 + $0x374] sm:$0xf]
  %v243 = vld [vmem:[%s0 + $0x378] sm:$0xf]
  %v244 = vld [vmem:[%s0 + $0x37c] sm:$0xf]
  %v245 = vld [vmem:[%s0 + $0x380] sm:$0xf]
  %v246 = vld [vmem:[%s0 + $0x384] sm:$0xf]
  %v247 = vld [vmem:[%s0 + $0x388] sm:$0xf]
  %v248 = vld [vmem:[%s0 + $0x38c] sm:$0xf]
  %v249 = vld [vmem:[%s0 + $0x390] sm:$0xf]
  %v250 = vld [vmem:[%s0 + $0x394] sm:$0xf]
  %v251 = vld [vmem:[%s0 + $0x398] sm:$0xf]
  %v252 = vld [vmem:[%s0 + $0x39c] sm:$0xf]
  %v253 = vld [vmem:[%s0 + $0x3a0] sm:$0xf]
  %v254 = vld [vmem:[%s0 + $0x3a4] sm:$0xf]
  %v255 = vld [vmem:[%s0 + $0x3a8] sm:$0xf]
  %v256 = vld [vmem:[%s0 + $0x3ac] sm:$0xf]
  %v257 = vld [vmem:[%s0 + $0x3b0] sm:$0xf]
  %v258 = vld [vmem:[%s0 + $0x3b4] sm:$0xf]
  %v259 = vld [vmem:[%s0 + $0x3b8] sm:$0xf]
  %v260 = vld [vmem:[%s0 + $0x3bc] sm:$0xf]
  %v261 = vld [vmem:[%s0 + $0x3c0] sm:$0xf]
  %v262 = vld [vmem:[%s0 + $0x3c4] sm:$0xf]
  %v263 = vld [vmem:[%s0 + $0x3c8] sm:$0xf]
  %v264 = vld [vmem:[%s0 + $0x3cc] sm:$0xf]
  %v265 = vld [vmem:[%s0 + $0x3d0] sm:$0xf]
  %v266 = vld [vmem:[%s0 + $0x3d4] sm:$0xf]
  %v267 = vld [vmem:[%s0 + $0x3d8] sm:$0xf]
  %v268 = vld [vmem:[%s0 + $0x3dc] sm:$0xf]
  %v269 = vld [vmem:[%s0 + $0x3e0] sm:$0xf]
  %v270 = vld [vmem:[%s0 + $0x3e4] sm:$0xf]
  %v271 = vld [vmem:[%s0 + $0x3e8] sm:$0xf]
  %v272 = vld [vmem:[%s0 + $0x3ec] sm:$0xf]
  %v273 = vld [vmem:[%s0 + $0x3f0] sm:$0xf]
  %v274 = vld [vmem:[%s0 + $0x3f4] sm:$0xf]
  %v275 = vld [vmem:[%s0 + $0x3f8] sm:$0xf]
  %v276 = vld [vmem:[%s0 + $0x3fc] sm:$0xf]
  %v277 = vld [vmem:[%s0 + $0x400] sm:$0xf]
  %v278 = vld [vmem:[%s0 + $0x404] sm:$0xf]
  %v279 = vld [vmem:[%s0 + $0x408] sm:$0xf]
  %v280 = vld [vmem:[%s0 + $0x40c] sm:$0xf]
  %v281 = vld [vmem:[%s0 + $0x410] sm:$0xf]
  %v282 = vld [vmem:[%s0 + $0x414] sm:$0xf]
  %v283 = vld [vmem:[%s0 + $0x418] sm:$0xf]
  %v284 = vld [vmem:[%s0 + $0x41c] sm:$0xf]
  %v285 = vld [vmem:[%s0 + $0x420] sm:$0xf]
  %v286 = vld [vmem:[%s0 + $0x424] sm:$0xf]
  %v287 = vld [vmem:[%s0 + $0x428] sm:$0xf]
  %v288 = vld [vmem:[%s0 + $0x42c] sm:$0xf]
  %v289 = vld [vmem:[%s0 + $0x430] sm:$0xf]
  %v290 = vld [vmem:[%s0 + $0x434] sm:$0xf]
  %v291 = vld [vmem:[%s0 + $0x438] sm:$0xf]
  %v292 = vld [vmem:[%s0 + $0x43c] sm:$0xf]
  %v293 = vld [vmem:[%s0 + $0x440] sm:$0xf]
  %v294 = vld [vmem:[%s0 + $0x444] sm:$0xf]
  %v295 = vld [vmem:[%s0 + $0x448] sm:$0xf]
  %v296 = vld [vmem:[%s0 + $0x44c] sm:$0xf]
  %v297 = vld [vmem:[%s0 + $0x450] sm:$0xf]
  %v298 = vld [vmem:[%s0 + $0x454] sm:$0xf]
  %v299 = vld [vmem:[%s0 + $0x458] sm:$0xf]
  %v300 = vld [vmem:[%s0 + $0x45c] sm:$0xf]
  %v301 = vld [vmem:[%s0 + $0x460] sm:$0xf]
  %v302 = vld [vmem:[%s0 + $0x464] sm:$0xf]
  %v303 = vld [vmem:[%s0 + $0x468] sm:$0xf]
  %v304 = vld [vmem:[%s0 + $0x46c] sm:$0xf]
  %v305 = vld [vmem:[%s0 + $0x470] sm:$0xf]
  %v306 = vld [vmem:[%s0 + $0x474] sm:$0xf]
  %v307 = vld [vmem:[%s0 + $0x478] sm:$0xf]
  %v308 = vld [vmem:[%s0 + $0x47c] sm:$0xf]
  %v309 = vld [vmem:[%s0 + $0x480] sm:$0xf]
  %v310 = vld [vmem:[%s0 + $0x484] sm:$0xf]
  %v311 = vld [vmem:[%s0 + $0x488] sm:$0xf]
  %v312 = vld [vmem:[%s0 + $0x48c] sm:$0xf]
  %v313 = vld [vmem:[%s0 + $0x490] sm:$0xf]
  %v314 = vld [vmem:[%s0 + $0x494] sm:$0xf]
  %v315 = vld [vmem:[%s0 + $0x498] sm:$0xf]
  %v316 = vld [vmem:[%s0 + $0x49c] sm:$0xf]
  %v317 = vld [vmem:[%s0 + $0x4a0] sm:$0xf]
  %v318 = vld [vmem:[%s0 + $0x4a4] sm:$0xf]
  %v319 = vld [vmem:[%s0 + $0x4a8] sm:$0xf]
  %v320 = vld [vmem:[%s0 + $0x4ac] sm:$0xf]
  %v321 = vld [vmem:[%s0 + $0x4b0] sm:$0xf]
  %v322 = vld [vmem:[%s0 + $0x4b4] sm:$0xf]
  %v323 = vld [vmem:[%s0 + $0x4b8] sm:$0xf]
  %v324 = vld [vmem:[%s0 + $0x4bc] sm:$0xf]
  %v325 = vld [vmem:[%s0 + $0x4c0] sm:$0xf]
  %v326 = vld [vmem:[%s0 + $0x4c4] sm:$0xf]
  %v327 = vld [vmem:[%s0 + $0x4c8] sm:$0xf]
  %v328 = vld [vmem:[%s0 + $0x4cc] sm:$0xf]
  %v329 = vld [vmem:[%s0 + $0x4d0] sm:$0xf]
  %v330 = vld [vmem:[%s0 + $0x4d4] sm:$0xf]
  %v331 = vld [vmem:[%s0 + $0x4d8] sm:$0xf]
  %v332 = vld [vmem:[%s0 + $0x4dc] sm:$0xf]
  %v333 = vld [vmem:[%s0 + $0x4e0] sm:$0xf]
  %v334 = vld [vmem:[%s0 + $0x4e4] sm:$0xf]
  %v335 = vld [vmem:[%s0 + $0x4e8] sm:$0xf]
  %v336 = vld [vmem:[%s0 + $0x4ec] sm:$0xf]
  %v337 = vld [vmem:[%s0 + $0x4f0] sm:$0xf]
  %v338 = vld [vmem:[%s0 + $0x4f4] sm:$0xf]
  %v339 = vld [vmem:[%s0 + $0x4f8] sm:$0xf]
  %v340 = vld [vmem:[%s0 + $0x4fc] sm:$0xf]
  %v341 = vld [vmem:[%s0 + $0x500] sm:$0xf]
  %v342 = vld [vmem:[%s0 + $0x504] sm:$0xf]
  %v343 = vld [vmem:[%s0 + $0x508] sm:$0xf]
  %v344 = vld [vmem:[%s0 + $0x50c] sm:$0xf]
  %v345 = vld [vmem:[%s0 + $0x510] sm:$0xf]
  %v346 = vld [vmem:[%s0 + $0x514] sm:$0xf]
  %v347 = vld [vmem:[%s0 + $0x518] sm:$0xf]
  %v348 = vld [vmem:[%s0 + $0x51c] sm:$0xf]
  %v349 = vld [vmem:[%s0 + $0x520] sm:$0xf]
  %v350 = vld [vmem:[%s0 + $0x524] sm:$0xf]
  %v351 = vld [vmem:[%s0 + $0x528] sm:$0xf]
  %v352 = vld [vmem:[%s0 + $0x52c] sm:$0xf]
  %v353 = vld [vmem:[%s0 + $0x530] sm:$0xf]
  %v354 = vld [vmem:[%s0 + $0x534] sm:$0xf]
  %v355 = vld [vmem:[%s0 + $0x538] sm:$0xf]
  %v356 = vld [vmem:[%s0 + $0x53c] sm:$0xf]
  %v357 = vld [vmem:[%s0 + $0x540] sm:$0xf]
  %v358 = vld [vmem:[%s0 + $0x544] sm:$0xf]
  %v359 = vld [vmem:[%s0 + $0x548] sm:$0xf]
  %v360 = vld [vmem:[%s0 + $0x54c] sm:$0xf]
  %v361 = vld [vmem:[%s0 + $0x550] sm:$0xf]
  %v362 = vld [vmem:[%s0 + $0x554] sm:$0xf]
  %v363 = vld [vmem:[%s0 + $0x558] sm:$0xf]
  %v364 = vld [vmem:[%s0 + $0x55c] sm:$0xf]
  %v365 = vld [vmem:[%s0 + $0x560] sm:$0xf]
  %v366 = vld [vmem:[%s0 + $0x564] sm:$0xf]
  %v367 = vld [vmem:[%s0 + $0x568] sm:$0xf]
  %v368 = vld [vmem:[%s0 + $0x56c] sm:$0xf]
  %v369 = vld [vmem:[%s0 + $0x570] sm:$0xf]
  %v370 = vld [vmem:[%s0 + $0x574] sm:$0xf]
  %v371 = vld [vmem:[%s0 + $0x578] sm:$0xf]
  %v372 = vld [vmem:[%s0 + $0x57c] sm:$0xf]
  %v373 = vld [vmem:[%s0 + $0x580] sm:$0xf]
  %v374 = vld [vmem:[%s0 + $0x584] sm:$0xf]
  %v375 = vld [vmem:[%s0 + $0x588] sm:$0xf]
  %v376 = vld [vmem:[%s0 + $0x58c] sm:$0xf]
  %v377 = vld [vmem:[%s0 + $0x590] sm:$0xf]
  %v378 = vld [vmem:[%s0 + $0x594] sm:$0xf]
  %v379 = vld [vmem:[%s0 + $0x598] sm:$0xf]
  %v380 = vld [vmem:[%s0 + $0x59c] sm:$0xf]
  %v381 = vld [vmem:[%s0 + $0x5a0] sm:$0xf]
  %v382 = vld [vmem:[%s0 + $0x5a4] sm:$0xf]
  %v383 = vld [vmem:[%s0 + $0x5a8] sm:$0xf]
  %v384 = vld [vmem:[%s0 + $0x5ac] sm:$0xf]
  %v385 = vld [vmem:[%s0 + $0x5b0] sm:$0xf]
  %v386 = vld [vmem:[%s0 + $0x5b4] sm:$0xf]
  %v387 = vld [vmem:[%s0 + $0x5b8] sm:$0xf]
  %v388 = vld [vmem:[%s0 + $0x5bc] sm:$0xf]
  %v389 = vld [vmem:[%s0 + $0x5c0] sm:$0xf]
  %v390 = vld [vmem:[%s0 + $0x5c4] sm:$0xf]
  %v391 = vld [vmem:[%s0 + $0x5c8] sm:$0xf]
  %v392 = vld [vmem:[%s0 + $0x5cc] sm:$0xf]
  %v393 = vld [vmem:[%s0 + $0x5d0] sm:$0xf]
  %v394 = vld [vmem:[%s0 + $0x5d4] sm:$0xf]
  %v395 = vld [vmem:[%s0 + $0x5d8] sm:$0xf]
  %v396 = vld [vmem:[%s0 + $0x5dc] sm:$0xf]
  %v397 = vld [vmem:[%s0 + $0x5e0] sm:$0xf]
  %v398 = vld [vmem:[%s0 + $0x5e4] sm:$0xf]
  %v399 = vld [vmem:[%s0 + $0x5e8] sm:$0xf]
  %v400 = vld [vmem:[%s0 + $0x5ec] sm:$0xf]
  %v401 = vld [vmem:[%s0 + $0x5f0] sm:$0xf]
  %v402 = vld [vmem:[%s0 + $0x5f4] sm:$0xf]
  %v403 = vld [vmem:[%s0 + $0x5f8] sm:$0xf]
  %v404 = vld [vmem:[%s0 + $0x5fc] sm:$0xf]
  %v405 = vld [vmem:[%s0 + $0x600] sm:$0xf]
  %v406 = vld [vmem:[%s0 + $0x604] sm:$0xf]
  %v407 = vld [vmem:[%s0 + $0x608] sm:$0xf]
  %v408 = vld [vmem:[%s0 + $0x60c] sm:$0xf]
  %v409 = vld [vmem:[%s0 + $0x610] sm:$0xf]
  %v410 = vld [vmem:[%s0 + $0x614] sm:$0xf]
  %v411 = vld [vmem:[%s0 + $0x618] sm:$0xf]
  %v412 = vld [vmem:[%s0 + $0x61c] sm:$0xf]
  %v413 = vld [vmem:[%s0 + $0x620] sm:$0xf]
  %v414 = vld [vmem:[%s0 + $0x624] sm:$0xf]
  %v415 = vld [vmem:[%s0 + $0x628] sm:$0xf]
  %v416 = vld [vmem:[%s0 + $0x62c] sm:$0xf]
  %v417 = vld [vmem:[%s0 + $0x630] sm:$0xf]
  %v418 = vld [vmem:[%s0 + $0x634] sm:$0xf]
  %v419 = vld [vmem:[%s0 + $0x638] sm:$0xf]
  %v420 = vld [vmem:[%s0 + $0x63c] sm:$0xf]
  %v421 = vld [vmem:[%s0 + $0x640] sm:$0xf]
  %v422 = vld [vmem:[%s0 + $0x644] sm:$0xf]
  %v423 = vld [vmem:[%s0 + $0x648] sm:$0xf]
  %v424 = vld [vmem:[%s0 + $0x64c] sm:$0xf]
  %v425 = vld [vmem:[%s0 + $0x650] sm:$0xf]
  %v426 = vld [vmem:[%s0 + $0x654] sm:$0xf]
  %v427 = vld [vmem:[%s0 + $0x658] sm:$0xf]
  %v428 = vld [vmem:[%s0 + $0x65c] sm:$0xf]
  %v429 = vld [vmem:[%s0 + $0x660] sm:$0xf]
  %v430 = vld [vmem:[%s0 + $0x664] sm:$0xf]
  %v431 = vld [vmem:[%s0 + $0x668] sm:$0xf]
  %v432 = vld [vmem:[%s0 + $0x66c] sm:$0xf]
  %v433 = vld [vmem:[%s0 + $0x670] sm:$0xf]
  %v434 = vld [vmem:[%s0 + $0x674] sm:$0xf]
  %v435 = vld [vmem:[%s0 + $0x678] sm:$0xf]
  %v436 = vld [vmem:[%s0 + $0x67c] sm:$0xf]
  %v437 = vld [vmem:[%s0 + $0x680] sm:$0xf]
  %v438 = vld [vmem:[%s0 + $0x684] sm:$0xf]
  %v439 = vld [vmem:[%s0 + $0x688] sm:$0xf]
  %v440 = vld [vmem:[%s0 + $0x68c] sm:$0xf]
  %v441 = vld [vmem:[%s0 + $0x690] sm:$0xf]
  %v442 = vld [vmem:[%s0 + $0x694] sm:$0xf]
  %v443 = vld [vmem:[%s0 + $0x698] sm:$0xf]
  %v444 = vld [vmem:[%s0 + $0x69c] sm:$0xf]
  %v445 = vld [vmem:[%s0 + $0x6a0] sm:$0xf]
  %v446 = vld [vmem:[%s0 + $0x6a4] sm:$0xf]
  %v447 = vld [vmem:[%s0 + $0x6a8] sm:$0xf]
  %v448 = vld [vmem:[%s0 + $0x6ac] sm:$0xf]
  %v449 = vld [vmem:[%s0 + $0x6b0] sm:$0xf]
  %v450 = vld [vmem:[%s0 + $0x6b4] sm:$0xf]
  %v451 = vld [vmem:[%s0 + $0x6b8] sm:$0xf]
  %v452 = vld [vmem:[%s0 + $0x6bc] sm:$0xf]
  %v453 = vld [vmem:[%s0 + $0x6c0] sm:$0xf]
  %v454 = vld [vmem:[%s0 + $0x6c4] sm:$0xf]
  %v455 = vld [vmem:[%s0 + $0x6c8] sm:$0xf]
  %v456 = vld [vmem:[%s0 + $0x6cc] sm:$0xf]
  %v457 = vld [vmem:[%s0 + $0x6d0] sm:$0xf]
  %v458 = vld [vmem:[%s0 + $0x6d4] sm:$0xf]
  %v459 = vld [vmem:[%s0 + $0x6d8] sm:$0xf]
  %v460 = vld [vmem:[%s0 + $0x6dc] sm:$0xf]
  %v461 = vld [vmem:[%s0 + $0x6e0] sm:$0xf]
  %v462 = vld [vmem:[%s0 + $0x6e4] sm:$0xf]
  %v463 = vld [vmem:[%s0 + $0x6e8] sm:$0xf]
  %v464 = vld [vmem:[%s0 + $0x6ec] sm:$0xf]
  %v465 = vld [vmem:[%s0 + $0x6f0] sm:$0xf]
  %v466 = vld [vmem:[%s0 + $0x6f4] sm:$0xf]
  %v467 = vld [vmem:[%s0 + $0x6f8] sm:$0xf]
  %v468 = vld [vmem:[%s0 + $0x6fc] sm:$0xf]
  %v469 = vld [vmem:[%s0 + $0x700] sm:$0xf]
  %v470 = vld [vmem:[%s0 + $0x704] sm:$0xf]
  %v471 = vld [vmem:[%s0 + $0x708] sm:$0xf]
  %v472 = vld [vmem:[%s0 + $0x70c] sm:$0xf]
  %v473 = vld [vmem:[%s0 + $0x710] sm:$0xf]
  %v474 = vld [vmem:[%s0 + $0x714] sm:$0xf]
  %v475 = vld [vmem:[%s0 + $0x718] sm:$0xf]
  %v476 = vld [vmem:[%s0 + $0x71c] sm:$0xf]
  %v477 = vld [vmem:[%s0 + $0x720] sm:$0xf]
  %v478 = vld [vmem:[%s0 + $0x724] sm:$0xf]
  %v479 = vld [vmem:[%s0 + $0x728] sm:$0xf]
  %v480 = vld [vmem:[%s0 + $0x72c] sm:$0xf]
  %v481 = vld [vmem:[%s0 + $0x730] sm:$0xf]
  %v482 = vld [vmem:[%s0 + $0x734] sm:$0xf]
  %v483 = vld [vmem:[%s0 + $0x738] sm:$0xf]
  %v484 = vld [vmem:[%s0 + $0x73c] sm:$0xf]
  %v485 = vld [vmem:[%s0 + $0x740] sm:$0xf]
  %v486 = vld [vmem:[%s0 + $0x744] sm:$0xf]
  %v487 = vld [vmem:[%s0 + $0x748] sm:$0xf]
  %v488 = vld [vmem:[%s0 + $0x74c] sm:$0xf]
  %v489 = vld [vmem:[%s0 + $0x750] sm:$0xf]
  %v490 = vld [vmem:[%s0 + $0x754] sm:$0xf]
  %v491 = vld [vmem:[%s0 + $0x758] sm:$0xf]
  %v492 = vld [vmem:[%s0 + $0x75c] sm:$0xf]
  %v493 = vld [vmem:[%s0 + $0x760] sm:$0xf]
  %v494 = vld [vmem:[%s0 + $0x764] sm:$0xf]
  %v495 = vld [vmem:[%s0 + $0x768] sm:$0xf]
  %v496 = vld [vmem:[%s0 + $0x76c] sm:$0xf]
  %v497 = vld [vmem:[%s0 + $0x770] sm:$0xf]
  %v498 = vld [vmem:[%s0 + $0x774] sm:$0xf]
  %v499 = vld [vmem:[%s0 + $0x778] sm:$0xf]
  %v500 = vld [vmem:[%s0 + $0x77c] sm:$0xf]
  %v501 = vld [vmem:[%s0 + $0x780] sm:$0xf]
  %v502 = vld [vmem:[%s0 + $0x784] sm:$0xf]
  %v503 = vld [vmem:[%s0 + $0x788] sm:$0xf]
  %v504 = vld [vmem:[%s0 + $0x78c] sm:$0xf]
  %v505 = vld [vmem:[%s0 + $0x790] sm:$0xf]
  %v506 = vld [vmem:[%s0 + $0x794] sm:$0xf]
  %v507 = vld [vmem:[%s0 + $0x798] sm:$0xf]
  %v508 = vld [vmem:[%s0 + $0x79c] sm:$0xf]
  %v509 = vld [vmem:[%s0 + $0x7a0] sm:$0xf]
  %v510 = vld [vmem:[%s0 + $0x7a4] sm:$0xf]
  %v511 = vld [vmem:[%s0 + $0x7a8] sm:$0xf]
  %v512 = vld [vmem:[%s0 + $0x7ac] sm:$0xf]
  %v513 = vld [vmem:[%s0 + $0x7b0] sm:$0xf]
  %v514 = vld [vmem:[%s0 + $0x7b4] sm:$0xf]
  %v515 = vld [vmem:[%s0 + $0x7b8] sm:$0xf]
  %v516 = vld [vmem:[%s0 + $0x7bc] sm:$0xf]
  %v517 = vld [vmem:[%s0 + $0x7c0] sm:$0xf]
  %v518 = vld [vmem:[%s0 + $0x7c4] sm:$0xf]
  %v519 = vld [vmem:[%s0 + $0x7c8] sm:$0xf]
  %v520 = vld [vmem:[%s0 + $0x7cc] sm:$0xf]
  %v521 = vld [vmem:[%s0 + $0x7d0] sm:$0xf]
  %v522 = vld [vmem:[%s0 + $0x7d4] sm:$0xf]
  %v523 = vld [vmem:[%s0 + $0x7d8] sm:$0xf]
  %v524 = vld [vmem:[%s0 + $0x7dc] sm:$0xf]
  %v525 = vld [vmem:[%s0 + $0x7e0] sm:$0xf]
  %v526 = vld [vmem:[%s0 + $0x7e4] sm:$0xf]
  %v527 = vld [vmem:[%s0 + $0x7e8] sm:$0xf]
  %v528 = vld [vmem:[%s0 + $0x7ec] sm:$0xf]
  %v529 = vld [vmem:[%s0 + $0x7f0] sm:$0xf]
  %v530 = vld [vmem:[%s0 + $0x7f4] sm:$0xf]
  %v531 = vld [vmem:[%s0 + $0x7f8] sm:$0xf]
  %v532 = vld [vmem:[%s0 + $0x7fc] sm:$0xf]
  %v533 = vld [vmem:[%s0 + $0x800] sm:$0xf]
  %v534 = vld [vmem:[%s0 + $0x804] sm:$0xf]
  %v535 = vld [vmem:[%s0 + $0x808] sm:$0xf]
  %v536 = vld [vmem:[%s0 + $0x80c] sm:$0xf]
  %v537 = vld [vmem:[%s0 + $0x810] sm:$0xf]
  %v538 = vld [vmem:[%s0 + $0x814] sm:$0xf]
  %v539 = vld [vmem:[%s0 + $0x818] sm:$0xf]
  %v540 = vld [vmem:[%s0 + $0x81c] sm:$0xf]
  %v541 = vld [vmem:[%s0 + $0x820] sm:$0xf]
  %v542 = vld [vmem:[%s0 + $0x824] sm:$0xf]
  %v543 = vld [vmem:[%s0 + $0x828] sm:$0xf]
  %v544 = vld [vmem:[%s0 + $0x82c] sm:$0xf]
  %v545 = vld [vmem:[%s0 + $0x830] sm:$0xf]
  %v546 = vld [vmem:[%s0 + $0x834] sm:$0xf]
  %v547 = vld [vmem:[%s0 + $0x838] sm:$0xf]
  %v548 = vld [vmem:[%s0 + $0x83c] sm:$0xf]
  %v549 = vld [vmem:[%s0 + $0x840] sm:$0xf]
  %v550 = vld [vmem:[%s0 + $0x844] sm:$0xf]
  %v551 = vld [vmem:[%s0 + $0x848] sm:$0xf]
  %v552 = vld [vmem:[%s0 + $0x84c] sm:$0xf]
  %v553 = vld [vmem:[%s0 + $0x850] sm:$0xf]
  %v554 = vld [vmem:[%s0 + $0x854] sm:$0xf]
  %v555 = vld [vmem:[%s0 + $0x858] sm:$0xf]
  %v556 = vld [vmem:[%s0 + $0x85c] sm:$0xf]
  %v557 = vld [vmem:[%s0 + $0x860] sm:$0xf]
  %v558 = vld [vmem:[%s0 + $0x864] sm:$0xf]
  %v559 = vld [vmem:[%s0 + $0x868] sm:$0xf]
  %v560 = vld [vmem:[%s0 + $0x86c] sm:$0xf]
  %v561 = vld [vmem:[%s0 + $0x870] sm:$0xf]
  %v562 = vld [vmem:[%s0 + $0x874] sm:$0xf]
  %v563 = vld [vmem:[%s0 + $0x878] sm:$0xf]
  %v564 = vld [vmem:[%s0 + $0x87c] sm:$0xf]
  %v565 = vld [vmem:[%s0 + $0x880] sm:$0xf]
  %v566 = vld [vmem:[%s0 + $0x884] sm:$0xf]
  %v567 = vld [vmem:[%s0 + $0x888] sm:$0xf]
  %v568 = vld [vmem:[%s0 + $0x88c] sm:$0xf]
  %v569 = vld [vmem:[%s0 + $0x890] sm:$0xf]
  %v570 = vld [vmem:[%s0 + $0x894] sm:$0xf]
  %v571 = vld [vmem:[%s0 + $0x898] sm:$0xf]
  %v572 = vld [vmem:[%s0 + $0x89c] sm:$0xf]
  %v573 = vld [vmem:[%s0 + $0x8a0] sm:$0xf]
  %v574 = vld [vmem:[%s0 + $0x8a4] sm:$0xf]
  %v575 = vld [vmem:[%s0 + $0x8a8] sm:$0xf]
  %v576 = vld [vmem:[%s0 + $0x8ac] sm:$0xf]
  %v577 = vld [vmem:[%s0 + $0x8b0] sm:$0xf]
  %v578 = vld [vmem:[%s0 + $0x8b4] sm:$0xf]
  %v579 = vld [vmem:[%s0 + $0x8b8] sm:$0xf]
  %v580 = vld [vmem:[%s0 + $0x8bc] sm:$0xf]
  %v581 = vld [vmem:[%s0 + $0x8c0] sm:$0xf]
  %v582 = vld [vmem:[%s0 + $0x8c4] sm:$0xf]
  %v583 = vld [vmem:[%s0 + $0x8c8] sm:$0xf]
  %v584 = vld [vmem:[%s0 + $0x8cc] sm:$0xf]
  %v585 = vld [vmem:[%s0 + $0x8d0] sm:$0xf]
  %v586 = vld [vmem:[%s0 + $0x8d4] sm:$0xf]
  %v587 = vld [vmem:[%s0 + $0x8d8] sm:$0xf]
  %v588 = vld [vmem:[%s0 + $0x8dc] sm:$0xf]
  %v589 = vld [vmem:[%s0 + $0x8e0] sm:$0xf]
  %v590 = vld [vmem:[%s0 + $0x8e4] sm:$0xf]
  %v591 = vld [vmem:[%s0 + $0x8e8] sm:$0xf]
  %v592 = vld [vmem:[%s0 + $0x8ec] sm:$0xf]
  %v593 = vld [vmem:[%s0 + $0x8f0] sm:$0xf]
  %v594 = vld [vmem:[%s0 + $0x8f4] sm:$0xf]
  %v595 = vld [vmem:[%s0 + $0x8f8] sm:$0xf]
  %v596 = vld [vmem:[%s0 + $0x8fc] sm:$0xf]
  %v597 = vld [vmem:[%s1] sm:$0xf]
  %v598 = vld [vmem:[%s1 + $0x4] sm:$0xf]
  %v599 = vld [vmem:[%s1 + $0x8] sm:$0xf]
  %v600 = vld [vmem:[%s1 + $0xc] sm:$0x1]
  %v601 = vld [vmem:[%s2] sm:$0x1]
  %v603 = vlaneseq
  %v604 = vshrl.u32 %v603, 7
  %v605 = vsub.s32 0, %v604
  %v606 = vrot.slane %v601, %v605
  %v1184 = vunpack.c.l.b16 %v21
  %v1185 = vunpack.c.l.b16 %v22
  %v1186 = vunpack.c.l.b16 %v23
  %v1187 = vunpack.c.l.b16 %v24
  %v1188 = vunpack.c.l.b16 %v25
  %v1189 = vunpack.c.l.b16 %v26
  %v1190 = vunpack.c.l.b16 %v27
  %v1191 = vunpack.c.l.b16 %v28
  %v1192 = vunpack.c.l.b16 %v29
  %v1193 = vunpack.c.l.b16 %v30
  %v1194 = vunpack.c.l.b16 %v31
  %v1195 = vunpack.c.l.b16 %v32
  %v1196 = vunpack.c.l.b16 %v33
  %v1197 = vunpack.c.l.b16 %v34
  %v1198 = vunpack.c.l.b16 %v35
  %v1199 = vunpack.c.l.b16 %v36
  %v1200 = vunpack.c.l.b16 %v37
  %v1201 = vunpack.c.l.b16 %v38
  %v1202 = vunpack.c.l.b16 %v39
  %v1203 = vunpack.c.l.b16 %v40
  %v1204 = vunpack.c.l.b16 %v41
  %v1205 = vunpack.c.l.b16 %v42
  %v1206 = vunpack.c.l.b16 %v43
  %v1207 = vunpack.c.l.b16 %v44
  %v1208 = vunpack.c.l.b16 %v45
  %v1209 = vunpack.c.l.b16 %v46
  %v1210 = vunpack.c.l.b16 %v47
  %v1211 = vunpack.c.l.b16 %v48
  %v1212 = vunpack.c.l.b16 %v49
  %v1213 = vunpack.c.l.b16 %v50
  %v1214 = vunpack.c.l.b16 %v51
  %v1215 = vunpack.c.l.b16 %v52
  %v1216 = vunpack.c.l.b16 %v53
  %v1217 = vunpack.c.l.b16 %v54
  %v1218 = vunpack.c.l.b16 %v55
  %v1219 = vunpack.c.l.b16 %v56
  %v1220 = vunpack.c.l.b16 %v57
  %v1221 = vunpack.c.l.b16 %v58
  %v1222 = vunpack.c.l.b16 %v59
  %v1223 = vunpack.c.l.b16 %v60
  %v1224 = vunpack.c.l.b16 %v61
  %v1225 = vunpack.c.l.b16 %v62
  %v1226 = vunpack.c.l.b16 %v63
  %v1227 = vunpack.c.l.b16 %v64
  %v1228 = vunpack.c.l.b16 %v65
  %v1229 = vunpack.c.l.b16 %v66
  %v1230 = vunpack.c.l.b16 %v67
  %v1231 = vunpack.c.l.b16 %v68
  %v1232 = vunpack.c.l.b16 %v69
  %v1233 = vunpack.c.l.b16 %v70
  %v1234 = vunpack.c.l.b16 %v71
  %v1235 = vunpack.c.l.b16 %v72
  %v1236 = vunpack.c.l.b16 %v73
  %v1237 = vunpack.c.l.b16 %v74
  %v1238 = vunpack.c.l.b16 %v75
  %v1239 = vunpack.c.l.b16 %v76
  %v1240 = vunpack.c.l.b16 %v77
  %v1241 = vunpack.c.l.b16 %v78
  %v1242 = vunpack.c.l.b16 %v79
  %v1243 = vunpack.c.l.b16 %v80
  %v1244 = vunpack.c.l.b16 %v81
  %v1245 = vunpack.c.l.b16 %v82
  %v1246 = vunpack.c.l.b16 %v83
  %v1247 = vunpack.c.l.b16 %v84
  %v1248 = vunpack.c.l.b16 %v85
  %v1249 = vunpack.c.l.b16 %v86
  %v1250 = vunpack.c.l.b16 %v87
  %v1251 = vunpack.c.l.b16 %v88
  %v1252 = vunpack.c.l.b16 %v89
  %v1253 = vunpack.c.l.b16 %v90
  %v1254 = vunpack.c.l.b16 %v91
  %v1255 = vunpack.c.l.b16 %v92
  %v1256 = vunpack.c.l.b16 %v93
  %v1257 = vunpack.c.l.b16 %v94
  %v1258 = vunpack.c.l.b16 %v95
  %v1259 = vunpack.c.l.b16 %v96
  %v1260 = vunpack.c.l.b16 %v97
  %v1261 = vunpack.c.l.b16 %v98
  %v1262 = vunpack.c.l.b16 %v99
  %v1263 = vunpack.c.l.b16 %v100
  %v1264 = vunpack.c.l.b16 %v101
  %v1265 = vunpack.c.l.b16 %v102
  %v1266 = vunpack.c.l.b16 %v103
  %v1267 = vunpack.c.l.b16 %v104
  %v1268 = vunpack.c.l.b16 %v105
  %v1269 = vunpack.c.l.b16 %v106
  %v1270 = vunpack.c.l.b16 %v107
  %v1271 = vunpack.c.l.b16 %v108
  %v1272 = vunpack.c.l.b16 %v109
  %v1273 = vunpack.c.l.b16 %v110
  %v1274 = vunpack.c.l.b16 %v111
  %v1275 = vunpack.c.l.b16 %v112
  %v1276 = vunpack.c.l.b16 %v113
  %v1277 = vunpack.c.l.b16 %v114
  %v1278 = vunpack.c.l.b16 %v115
  %v1279 = vunpack.c.l.b16 %v116
  %v1280 = vunpack.c.l.b16 %v117
  %v1281 = vunpack.c.l.b16 %v118
  %v1282 = vunpack.c.l.b16 %v119
  %v1283 = vunpack.c.l.b16 %v120
  %v1284 = vunpack.c.l.b16 %v121
  %v1285 = vunpack.c.l.b16 %v122
  %v1286 = vunpack.c.l.b16 %v123
  %v1287 = vunpack.c.l.b16 %v124
  %v1288 = vunpack.c.l.b16 %v125
  %v1289 = vunpack.c.l.b16 %v126
  %v1290 = vunpack.c.l.b16 %v127
  %v1291 = vunpack.c.l.b16 %v128
  %v1292 = vunpack.c.l.b16 %v129
  %v1293 = vunpack.c.l.b16 %v130
  %v1294 = vunpack.c.l.b16 %v131
  %v1295 = vunpack.c.l.b16 %v132
  %v1296 = vunpack.c.l.b16 %v133
  %v1297 = vunpack.c.l.b16 %v134
  %v1298 = vunpack.c.l.b16 %v135
  %v1299 = vunpack.c.l.b16 %v136
  %v1300 = vunpack.c.l.b16 %v137
  %v1301 = vunpack.c.l.b16 %v138
  %v1302 = vunpack.c.l.b16 %v139
  %v1303 = vunpack.c.l.b16 %v140
  %v1304 = vunpack.c.l.b16 %v141
  %v1305 = vunpack.c.l.b16 %v142
  %v1306 = vunpack.c.l.b16 %v143
  %v1307 = vunpack.c.l.b16 %v144
  %v1308 = vunpack.c.l.b16 %v145
  %v1309 = vunpack.c.l.b16 %v146
  %v1310 = vunpack.c.l.b16 %v147
  %v1311 = vunpack.c.l.b16 %v148
  %v1312 = vunpack.c.l.b16 %v149
  %v1313 = vunpack.c.l.b16 %v150
  %v1314 = vunpack.c.l.b16 %v151
  %v1315 = vunpack.c.l.b16 %v152
  %v1316 = vunpack.c.l.b16 %v153
  %v1317 = vunpack.c.l.b16 %v154
  %v1318 = vunpack.c.l.b16 %v155
  %v1319 = vunpack.c.l.b16 %v156
  %v1320 = vunpack.c.l.b16 %v157
  %v1321 = vunpack.c.l.b16 %v158
  %v1322 = vunpack.c.l.b16 %v159
  %v1323 = vunpack.c.l.b16 %v160
  %v1324 = vunpack.c.l.b16 %v161
  %v1325 = vunpack.c.l.b16 %v162
  %v1326 = vunpack.c.l.b16 %v163
  %v1327 = vunpack.c.l.b16 %v164
  %v1328 = vunpack.c.l.b16 %v165
  %v1329 = vunpack.c.l.b16 %v166
  %v1330 = vunpack.c.l.b16 %v167
  %v1331 = vunpack.c.l.b16 %v168
  %v1332 = vunpack.c.l.b16 %v169
  %v1333 = vunpack.c.l.b16 %v170
  %v1334 = vunpack.c.l.b16 %v171
  %v1335 = vunpack.c.l.b16 %v172
  %v1336 = vunpack.c.l.b16 %v173
  %v1337 = vunpack.c.l.b16 %v174
  %v1338 = vunpack.c.l.b16 %v175
  %v1339 = vunpack.c.l.b16 %v176
  %v1340 = vunpack.c.l.b16 %v177
  %v1341 = vunpack.c.l.b16 %v178
  %v1342 = vunpack.c.l.b16 %v179
  %v1343 = vunpack.c.l.b16 %v180
  %v1344 = vunpack.c.l.b16 %v181
  %v1345 = vunpack.c.l.b16 %v182
  %v1346 = vunpack.c.l.b16 %v183
  %v1347 = vunpack.c.l.b16 %v184
  %v1348 = vunpack.c.l.b16 %v185
  %v1349 = vunpack.c.l.b16 %v186
  %v1350 = vunpack.c.l.b16 %v187
  %v1351 = vunpack.c.l.b16 %v188
  %v1352 = vunpack.c.l.b16 %v189
  %v1353 = vunpack.c.l.b16 %v190
  %v1354 = vunpack.c.l.b16 %v191
  %v1355 = vunpack.c.l.b16 %v192
  %v1356 = vunpack.c.l.b16 %v193
  %v1357 = vunpack.c.l.b16 %v194
  %v1358 = vunpack.c.l.b16 %v195
  %v1359 = vunpack.c.l.b16 %v196
  %v1360 = vunpack.c.l.b16 %v197
  %v1361 = vunpack.c.l.b16 %v198
  %v1362 = vunpack.c.l.b16 %v199
  %v1363 = vunpack.c.l.b16 %v200
  %v1364 = vunpack.c.l.b16 %v201
  %v1365 = vunpack.c.l.b16 %v202
  %v1366 = vunpack.c.l.b16 %v203
  %v1367 = vunpack.c.l.b16 %v204
  %v1368 = vunpack.c.l.b16 %v205
  %v1369 = vunpack.c.l.b16 %v206
  %v1370 = vunpack.c.l.b16 %v207
  %v1371 = vunpack.c.l.b16 %v208
  %v1372 = vunpack.c.l.b16 %v209
  %v1373 = vunpack.c.l.b16 %v210
  %v1374 = vunpack.c.l.b16 %v211
  %v1375 = vunpack.c.l.b16 %v212
  %v1376 = vunpack.c.l.b16 %v213
  %v1377 = vunpack.c.l.b16 %v214
  %v1378 = vunpack.c.l.b16 %v215
  %v1379 = vunpack.c.l.b16 %v216
  %v1380 = vunpack.c.l.b16 %v217
  %v1381 = vunpack.c.l.b16 %v218
  %v1382 = vunpack.c.l.b16 %v219
  %v1383 = vunpack.c.l.b16 %v220
  %v1384 = vunpack.c.l.b16 %v221
  %v1385 = vunpack.c.l.b16 %v222
  %v1386 = vunpack.c.l.b16 %v223
  %v1387 = vunpack.c.l.b16 %v224
  %v1388 = vunpack.c.l.b16 %v225
  %v1389 = vunpack.c.l.b16 %v226
  %v1390 = vunpack.c.l.b16 %v227
  %v1391 = vunpack.c.l.b16 %v228
  %v1392 = vunpack.c.l.b16 %v229
  %v1393 = vunpack.c.l.b16 %v230
  %v1394 = vunpack.c.l.b16 %v231
  %v1395 = vunpack.c.l.b16 %v232
  %v1396 = vunpack.c.l.b16 %v233
  %v1397 = vunpack.c.l.b16 %v234
  %v1398 = vunpack.c.l.b16 %v235
  %v1399 = vunpack.c.l.b16 %v236
  %v1400 = vunpack.c.l.b16 %v237
  %v1401 = vunpack.c.l.b16 %v238
  %v1402 = vunpack.c.l.b16 %v239
  %v1403 = vunpack.c.l.b16 %v240
  %v1404 = vunpack.c.l.b16 %v241
  %v1405 = vunpack.c.l.b16 %v242
  %v1406 = vunpack.c.l.b16 %v243
  %v1407 = vunpack.c.l.b16 %v244
  %v1408 = vunpack.c.l.b16 %v245
  %v1409 = vunpack.c.l.b16 %v246
  %v1410 = vunpack.c.l.b16 %v247
  %v1411 = vunpack.c.l.b16 %v248
  %v1412 = vunpack.c.l.b16 %v249
  %v1413 = vunpack.c.l.b16 %v250
  %v1414 = vunpack.c.l.b16 %v251
  %v1415 = vunpack.c.l.b16 %v252
  %v1416 = vunpack.c.l.b16 %v253
  %v1417 = vunpack.c.l.b16 %v254
  %v1418 = vunpack.c.l.b16 %v255
  %v1419 = vunpack.c.l.b16 %v256
  %v1420 = vunpack.c.l.b16 %v257
  %v1421 = vunpack.c.l.b16 %v258
  %v1422 = vunpack.c.l.b16 %v259
  %v1423 = vunpack.c.l.b16 %v260
  %v1424 = vunpack.c.l.b16 %v261
  %v1425 = vunpack.c.l.b16 %v262
  %v1426 = vunpack.c.l.b16 %v263
  %v1427 = vunpack.c.l.b16 %v264
  %v1428 = vunpack.c.l.b16 %v265
  %v1429 = vunpack.c.l.b16 %v266
  %v1430 = vunpack.c.l.b16 %v267
  %v1431 = vunpack.c.l.b16 %v268
  %v1432 = vunpack.c.l.b16 %v269
  %v1433 = vunpack.c.l.b16 %v270
  %v1434 = vunpack.c.l.b16 %v271
  %v1435 = vunpack.c.l.b16 %v272
  %v1436 = vunpack.c.l.b16 %v273
  %v1437 = vunpack.c.l.b16 %v274
  %v1438 = vunpack.c.l.b16 %v275
  %v1439 = vunpack.c.l.b16 %v276
  %v1440 = vunpack.c.l.b16 %v277
  %v1441 = vunpack.c.l.b16 %v278
  %v1442 = vunpack.c.l.b16 %v279
  %v1443 = vunpack.c.l.b16 %v280
  %v1444 = vunpack.c.l.b16 %v281
  %v1445 = vunpack.c.l.b16 %v282
  %v1446 = vunpack.c.l.b16 %v283
  %v1447 = vunpack.c.l.b16 %v284
  %v1448 = vunpack.c.l.b16 %v285
  %v1449 = vunpack.c.l.b16 %v286
  %v1450 = vunpack.c.l.b16 %v287
  %v1451 = vunpack.c.l.b16 %v288
  %v1452 = vunpack.c.l.b16 %v289
  %v1453 = vunpack.c.l.b16 %v290
  %v1454 = vunpack.c.l.b16 %v291
  %v1455 = vunpack.c.l.b16 %v292
  %v1456 = vunpack.c.l.b16 %v293
  %v1457 = vunpack.c.l.b16 %v294
  %v1458 = vunpack.c.l.b16 %v295
  %v1459 = vunpack.c.l.b16 %v296
  %v1460 = vunpack.c.l.b16 %v297
  %v1461 = vunpack.c.l.b16 %v298
  %v1462 = vunpack.c.l.b16 %v299
  %v1463 = vunpack.c.l.b16 %v300
  %v1464 = vunpack.c.l.b16 %v301
  %v1465 = vunpack.c.l.b16 %v302
  %v1466 = vunpack.c.l.b16 %v303
  %v1467 = vunpack.c.l.b16 %v304
  %v1468 = vunpack.c.l.b16 %v305
  %v1469 = vunpack.c.l.b16 %v306
  %v1470 = vunpack.c.l.b16 %v307
  %v1471 = vunpack.c.l.b16 %v308
  %v1472 = vunpack.c.l.b16 %v309
  %v1473 = vunpack.c.l.b16 %v310
  %v1474 = vunpack.c.l.b16 %v311
  %v1475 = vunpack.c.l.b16 %v312
  %v1476 = vunpack.c.l.b16 %v313
  %v1477 = vunpack.c.l.b16 %v314
  %v1478 = vunpack.c.l.b16 %v315
  %v1479 = vunpack.c.l.b16 %v316
  %v1480 = vunpack.c.l.b16 %v317
  %v1481 = vunpack.c.l.b16 %v318
  %v1482 = vunpack.c.l.b16 %v319
  %v1483 = vunpack.c.l.b16 %v320
  %v1484 = vunpack.c.l.b16 %v321
  %v1485 = vunpack.c.l.b16 %v322
  %v1486 = vunpack.c.l.b16 %v323
  %v1487 = vunpack.c.l.b16 %v324
  %v1488 = vunpack.c.l.b16 %v325
  %v1489 = vunpack.c.l.b16 %v326
  %v1490 = vunpack.c.l.b16 %v327
  %v1491 = vunpack.c.l.b16 %v328
  %v1492 = vunpack.c.l.b16 %v329
  %v1493 = vunpack.c.l.b16 %v330
  %v1494 = vunpack.c.l.b16 %v331
  %v1495 = vunpack.c.l.b16 %v332
  %v1496 = vunpack.c.l.b16 %v333
  %v1497 = vunpack.c.l.b16 %v334
  %v1498 = vunpack.c.l.b16 %v335
  %v1499 = vunpack.c.l.b16 %v336
  %v1500 = vunpack.c.l.b16 %v337
  %v1501 = vunpack.c.l.b16 %v338
  %v1502 = vunpack.c.l.b16 %v339
  %v1503 = vunpack.c.l.b16 %v340
  %v1504 = vunpack.c.l.b16 %v341
  %v1505 = vunpack.c.l.b16 %v342
  %v1506 = vunpack.c.l.b16 %v343
  %v1507 = vunpack.c.l.b16 %v344
  %v1508 = vunpack.c.l.b16 %v345
  %v1509 = vunpack.c.l.b16 %v346
  %v1510 = vunpack.c.l.b16 %v347
  %v1511 = vunpack.c.l.b16 %v348
  %v1512 = vunpack.c.l.b16 %v349
  %v1513 = vunpack.c.l.b16 %v350
  %v1514 = vunpack.c.l.b16 %v351
  %v1515 = vunpack.c.l.b16 %v352
  %v1516 = vunpack.c.l.b16 %v353
  %v1517 = vunpack.c.l.b16 %v354
  %v1518 = vunpack.c.l.b16 %v355
  %v1519 = vunpack.c.l.b16 %v356
  %v1520 = vunpack.c.l.b16 %v357
  %v1521 = vunpack.c.l.b16 %v358
  %v1522 = vunpack.c.l.b16 %v359
  %v1523 = vunpack.c.l.b16 %v360
  %v1524 = vunpack.c.l.b16 %v361
  %v1525 = vunpack.c.l.b16 %v362
  %v1526 = vunpack.c.l.b16 %v363
  %v1527 = vunpack.c.l.b16 %v364
  %v1528 = vunpack.c.l.b16 %v365
  %v1529 = vunpack.c.l.b16 %v366
  %v1530 = vunpack.c.l.b16 %v367
  %v1531 = vunpack.c.l.b16 %v368
  %v1532 = vunpack.c.l.b16 %v369
  %v1533 = vunpack.c.l.b16 %v370
  %v1534 = vunpack.c.l.b16 %v371
  %v1535 = vunpack.c.l.b16 %v372
  %v1536 = vunpack.c.l.b16 %v373
  %v1537 = vunpack.c.l.b16 %v374
  %v1538 = vunpack.c.l.b16 %v375
  %v1539 = vunpack.c.l.b16 %v376
  %v1540 = vunpack.c.l.b16 %v377
  %v1541 = vunpack.c.l.b16 %v378
  %v1542 = vunpack.c.l.b16 %v379
  %v1543 = vunpack.c.l.b16 %v380
  %v1544 = vunpack.c.l.b16 %v381
  %v1545 = vunpack.c.l.b16 %v382
  %v1546 = vunpack.c.l.b16 %v383
  %v1547 = vunpack.c.l.b16 %v384
  %v1548 = vunpack.c.l.b16 %v385
  %v1549 = vunpack.c.l.b16 %v386
  %v1550 = vunpack.c.l.b16 %v387
  %v1551 = vunpack.c.l.b16 %v388
  %v1552 = vunpack.c.l.b16 %v389
  %v1553 = vunpack.c.l.b16 %v390
  %v1554 = vunpack.c.l.b16 %v391
  %v1555 = vunpack.c.l.b16 %v392
  %v1556 = vunpack.c.l.b16 %v393
  %v1557 = vunpack.c.l.b16 %v394
  %v1558 = vunpack.c.l.b16 %v395
  %v1559 = vunpack.c.l.b16 %v396
  %v1560 = vunpack.c.l.b16 %v397
  %v1561 = vunpack.c.l.b16 %v398
  %v1562 = vunpack.c.l.b16 %v399
  %v1563 = vunpack.c.l.b16 %v400
  %v1564 = vunpack.c.l.b16 %v401
  %v1565 = vunpack.c.l.b16 %v402
  %v1566 = vunpack.c.l.b16 %v403
  %v1567 = vunpack.c.l.b16 %v404
  %v1568 = vunpack.c.l.b16 %v405
  %v1569 = vunpack.c.l.b16 %v406
  %v1570 = vunpack.c.l.b16 %v407
  %v1571 = vunpack.c.l.b16 %v408
  %v1572 = vunpack.c.l.b16 %v409
  %v1573 = vunpack.c.l.b16 %v410
  %v1574 = vunpack.c.l.b16 %v411
  %v1575 = vunpack.c.l.b16 %v412
  %v1576 = vunpack.c.l.b16 %v413
  %v1577 = vunpack.c.l.b16 %v414
  %v1578 = vunpack.c.l.b16 %v415
  %v1579 = vunpack.c.l.b16 %v416
  %v1580 = vunpack.c.l.b16 %v417
  %v1581 = vunpack.c.l.b16 %v418
  %v1582 = vunpack.c.l.b16 %v419
  %v1583 = vunpack.c.l.b16 %v420
  %v1584 = vunpack.c.l.b16 %v421
  %v1585 = vunpack.c.l.b16 %v422
  %v1586 = vunpack.c.l.b16 %v423
  %v1587 = vunpack.c.l.b16 %v424
  %v1588 = vunpack.c.l.b16 %v425
  %v1589 = vunpack.c.l.b16 %v426
  %v1590 = vunpack.c.l.b16 %v427
  %v1591 = vunpack.c.l.b16 %v428
  %v1592 = vunpack.c.l.b16 %v429
  %v1593 = vunpack.c.l.b16 %v430
  %v1594 = vunpack.c.l.b16 %v431
  %v1595 = vunpack.c.l.b16 %v432
  %v1596 = vunpack.c.l.b16 %v433
  %v1597 = vunpack.c.l.b16 %v434
  %v1598 = vunpack.c.l.b16 %v435
  %v1599 = vunpack.c.l.b16 %v436
  %v1600 = vunpack.c.l.b16 %v437
  %v1601 = vunpack.c.l.b16 %v438
  %v1602 = vunpack.c.l.b16 %v439
  %v1603 = vunpack.c.l.b16 %v440
  %v1604 = vunpack.c.l.b16 %v441
  %v1605 = vunpack.c.l.b16 %v442
  %v1606 = vunpack.c.l.b16 %v443
  %v1607 = vunpack.c.l.b16 %v444
  %v1608 = vunpack.c.l.b16 %v445
  %v1609 = vunpack.c.l.b16 %v446
  %v1610 = vunpack.c.l.b16 %v447
  %v1611 = vunpack.c.l.b16 %v448
  %v1612 = vunpack.c.l.b16 %v449
  %v1613 = vunpack.c.l.b16 %v450
  %v1614 = vunpack.c.l.b16 %v451
  %v1615 = vunpack.c.l.b16 %v452
  %v1616 = vunpack.c.l.b16 %v453
  %v1617 = vunpack.c.l.b16 %v454
  %v1618 = vunpack.c.l.b16 %v455
  %v1619 = vunpack.c.l.b16 %v456
  %v1620 = vunpack.c.l.b16 %v457
  %v1621 = vunpack.c.l.b16 %v458
  %v1622 = vunpack.c.l.b16 %v459
  %v1623 = vunpack.c.l.b16 %v460
  %v1624 = vunpack.c.l.b16 %v461
  %v1625 = vunpack.c.l.b16 %v462
  %v1626 = vunpack.c.l.b16 %v463
  %v1627 = vunpack.c.l.b16 %v464
  %v1628 = vunpack.c.l.b16 %v465
  %v1629 = vunpack.c.l.b16 %v466
  %v1630 = vunpack.c.l.b16 %v467
  %v1631 = vunpack.c.l.b16 %v468
  %v1632 = vunpack.c.l.b16 %v469
  %v1633 = vunpack.c.l.b16 %v470
  %v1634 = vunpack.c.l.b16 %v471
  %v1635 = vunpack.c.l.b16 %v472
  %v1636 = vunpack.c.l.b16 %v473
  %v1637 = vunpack.c.l.b16 %v474
  %v1638 = vunpack.c.l.b16 %v475
  %v1639 = vunpack.c.l.b16 %v476
  %v1640 = vunpack.c.l.b16 %v477
  %v1641 = vunpack.c.l.b16 %v478
  %v1642 = vunpack.c.l.b16 %v479
  %v1643 = vunpack.c.l.b16 %v480
  %v1644 = vunpack.c.l.b16 %v481
  %v1645 = vunpack.c.l.b16 %v482
  %v1646 = vunpack.c.l.b16 %v483
  %v1647 = vunpack.c.l.b16 %v484
  %v1648 = vunpack.c.l.b16 %v485
  %v1649 = vunpack.c.l.b16 %v486
  %v1650 = vunpack.c.l.b16 %v487
  %v1651 = vunpack.c.l.b16 %v488
  %v1652 = vunpack.c.l.b16 %v489
  %v1653 = vunpack.c.l.b16 %v490
  %v1654 = vunpack.c.l.b16 %v491
  %v1655 = vunpack.c.l.b16 %v492
  %v1656 = vunpack.c.l.b16 %v493
  %v1657 = vunpack.c.l.b16 %v494
  %v1658 = vunpack.c.l.b16 %v495
  %v1659 = vunpack.c.l.b16 %v496
  %v1660 = vunpack.c.l.b16 %v497
  %v1661 = vunpack.c.l.b16 %v498
  %v1662 = vunpack.c.l.b16 %v499
  %v1663 = vunpack.c.l.b16 %v500
  %v1664 = vunpack.c.l.b16 %v501
  %v1665 = vunpack.c.l.b16 %v502
  %v1666 = vunpack.c.l.b16 %v503
  %v1667 = vunpack.c.l.b16 %v504
  %v1668 = vunpack.c.l.b16 %v505
  %v1669 = vunpack.c.l.b16 %v506
  %v1670 = vunpack.c.l.b16 %v507
  %v1671 = vunpack.c.l.b16 %v508
  %v1672 = vunpack.c.l.b16 %v509
  %v1673 = vunpack.c.l.b16 %v510
  %v1674 = vunpack.c.l.b16 %v511
  %v1675 = vunpack.c.l.b16 %v512
  %v1676 = vunpack.c.l.b16 %v513
  %v1677 = vunpack.c.l.b16 %v514
  %v1678 = vunpack.c.l.b16 %v515
  %v1679 = vunpack.c.l.b16 %v516
  %v1680 = vunpack.c.l.b16 %v517
  %v1681 = vunpack.c.l.b16 %v518
  %v1682 = vunpack.c.l.b16 %v519
  %v1683 = vunpack.c.l.b16 %v520
  %v1684 = vunpack.c.l.b16 %v521
  %v1685 = vunpack.c.l.b16 %v522
  %v1686 = vunpack.c.l.b16 %v523
  %v1687 = vunpack.c.l.b16 %v524
  %v1688 = vunpack.c.l.b16 %v525
  %v1689 = vunpack.c.l.b16 %v526
  %v1690 = vunpack.c.l.b16 %v527
  %v1691 = vunpack.c.l.b16 %v528
  %v1692 = vunpack.c.l.b16 %v529
  %v1693 = vunpack.c.l.b16 %v530
  %v1694 = vunpack.c.l.b16 %v531
  %v1695 = vunpack.c.l.b16 %v532
  %v1696 = vunpack.c.l.b16 %v533
  %v1697 = vunpack.c.l.b16 %v534
  %v1698 = vunpack.c.l.b16 %v535
  %v1699 = vunpack.c.l.b16 %v536
  %v1700 = vunpack.c.l.b16 %v537
  %v1701 = vunpack.c.l.b16 %v538
  %v1702 = vunpack.c.l.b16 %v539
  %v1703 = vunpack.c.l.b16 %v540
  %v1704 = vunpack.c.l.b16 %v541
  %v1705 = vunpack.c.l.b16 %v542
  %v1706 = vunpack.c.l.b16 %v543
  %v1707 = vunpack.c.l.b16 %v544
  %v1708 = vunpack.c.l.b16 %v545
  %v1709 = vunpack.c.l.b16 %v546
  %v1710 = vunpack.c.l.b16 %v547
  %v1711 = vunpack.c.l.b16 %v548
  %v1712 = vunpack.c.l.b16 %v549
  %v1713 = vunpack.c.l.b16 %v550
  %v1714 = vunpack.c.l.b16 %v551
  %v1715 = vunpack.c.l.b16 %v552
  %v1716 = vunpack.c.l.b16 %v553
  %v1717 = vunpack.c.l.b16 %v554
  %v1718 = vunpack.c.l.b16 %v555
  %v1719 = vunpack.c.l.b16 %v556
  %v1720 = vunpack.c.l.b16 %v557
  %v1721 = vunpack.c.l.b16 %v558
  %v1722 = vunpack.c.l.b16 %v559
  %v1723 = vunpack.c.l.b16 %v560
  %v1724 = vunpack.c.l.b16 %v561
  %v1725 = vunpack.c.l.b16 %v562
  %v1726 = vunpack.c.l.b16 %v563
  %v1727 = vunpack.c.l.b16 %v564
  %v1728 = vunpack.c.l.b16 %v565
  %v1729 = vunpack.c.l.b16 %v566
  %v1730 = vunpack.c.l.b16 %v567
  %v1731 = vunpack.c.l.b16 %v568
  %v1732 = vunpack.c.l.b16 %v569
  %v1733 = vunpack.c.l.b16 %v570
  %v1734 = vunpack.c.l.b16 %v571
  %v1735 = vunpack.c.l.b16 %v572
  %v1736 = vunpack.c.l.b16 %v573
  %v1737 = vunpack.c.l.b16 %v574
  %v1738 = vunpack.c.l.b16 %v575
  %v1739 = vunpack.c.l.b16 %v576
  %v1740 = vunpack.c.l.b16 %v577
  %v1741 = vunpack.c.l.b16 %v578
  %v1742 = vunpack.c.l.b16 %v579
  %v1743 = vunpack.c.l.b16 %v580
  %v1744 = vunpack.c.l.b16 %v581
  %v1745 = vunpack.c.l.b16 %v582
  %v1746 = vunpack.c.l.b16 %v583
  %v1747 = vunpack.c.l.b16 %v584
  %v1748 = vunpack.c.l.b16 %v585
  %v1749 = vunpack.c.l.b16 %v586
  %v1750 = vunpack.c.l.b16 %v587
  %v1751 = vunpack.c.l.b16 %v588
  %v1752 = vunpack.c.l.b16 %v589
  %v1753 = vunpack.c.l.b16 %v590
  %v1754 = vunpack.c.l.b16 %v591
  %v1755 = vunpack.c.l.b16 %v592
  %v1756 = vunpack.c.l.b16 %v593
  %v1757 = vunpack.c.l.b16 %v594
  %v1758 = vunpack.c.l.b16 %v595
  %v1759 = vunpack.c.l.b16 %v596
  %v1760 = vpack.c.b16 %v1185, %v1184
  %v1761 = vpack.c.b16 %v1187, %v1186
  %v1762 = vpack.c.b16 %v1189, %v1188
  %v1763 = vpack.c.b16 %v1191, %v1190
  %v1764 = vpack.c.b16 %v1193, %v1192
  %v1765 = vpack.c.b16 %v1195, %v1194
  %v1766 = vpack.c.b16 %v1197, %v1196
  %v1767 = vpack.c.b16 %v1199, %v1198
  %v1768 = vpack.c.b16 %v1201, %v1200
  %v1769 = vpack.c.b16 %v1203, %v1202
  %v1770 = vpack.c.b16 %v1205, %v1204
  %v1771 = vpack.c.b16 %v1207, %v1206
  %v1772 = vpack.c.b16 %v1209, %v1208
  %v1773 = vpack.c.b16 %v1211, %v1210
  %v1774 = vpack.c.b16 %v1213, %v1212
  %v1775 = vpack.c.b16 %v1215, %v1214
  %v1776 = vpack.c.b16 %v1217, %v1216
  %v1777 = vpack.c.b16 %v1219, %v1218
  %v1778 = vpack.c.b16 %v1221, %v1220
  %v1779 = vpack.c.b16 %v1223, %v1222
  %v1780 = vpack.c.b16 %v1225, %v1224
  %v1781 = vpack.c.b16 %v1227, %v1226
  %v1782 = vpack.c.b16 %v1229, %v1228
  %v1783 = vpack.c.b16 %v1231, %v1230
  %v1784 = vpack.c.b16 %v1233, %v1232
  %v1785 = vpack.c.b16 %v1235, %v1234
  %v1786 = vpack.c.b16 %v1237, %v1236
  %v1787 = vpack.c.b16 %v1239, %v1238
  %v1788 = vpack.c.b16 %v1241, %v1240
  %v1789 = vpack.c.b16 %v1243, %v1242
  %v1790 = vpack.c.b16 %v1245, %v1244
  %v1791 = vpack.c.b16 %v1247, %v1246
  %v1792 = vpack.c.b16 %v1249, %v1248
  %v1793 = vpack.c.b16 %v1251, %v1250
  %v1794 = vpack.c.b16 %v1253, %v1252
  %v1795 = vpack.c.b16 %v1255, %v1254
  %v1796 = vpack.c.b16 %v1257, %v1256
  %v1797 = vpack.c.b16 %v1259, %v1258
  %v1798 = vpack.c.b16 %v1261, %v1260
  %v1799 = vpack.c.b16 %v1263, %v1262
  %v1800 = vpack.c.b16 %v1265, %v1264
  %v1801 = vpack.c.b16 %v1267, %v1266
  %v1802 = vpack.c.b16 %v1269, %v1268
  %v1803 = vpack.c.b16 %v1271, %v1270
  %v1804 = vpack.c.b16 %v1273, %v1272
  %v1805 = vpack.c.b16 %v1275, %v1274
  %v1806 = vpack.c.b16 %v1277, %v1276
  %v1807 = vpack.c.b16 %v1279, %v1278
  %v1808 = vpack.c.b16 %v1281, %v1280
  %v1809 = vpack.c.b16 %v1283, %v1282
  %v1810 = vpack.c.b16 %v1285, %v1284
  %v1811 = vpack.c.b16 %v1287, %v1286
  %v1812 = vpack.c.b16 %v1289, %v1288
  %v1813 = vpack.c.b16 %v1291, %v1290
  %v1814 = vpack.c.b16 %v1293, %v1292
  %v1815 = vpack.c.b16 %v1295, %v1294
  %v1816 = vpack.c.b16 %v1297, %v1296
  %v1817 = vpack.c.b16 %v1299, %v1298
  %v1818 = vpack.c.b16 %v1301, %v1300
  %v1819 = vpack.c.b16 %v1303, %v1302
  %v1820 = vpack.c.b16 %v1305, %v1304
  %v1821 = vpack.c.b16 %v1307, %v1306
  %v1822 = vpack.c.b16 %v1309, %v1308
  %v1823 = vpack.c.b16 %v1311, %v1310
  %v1824 = vpack.c.b16 %v1313, %v1312
  %v1825 = vpack.c.b16 %v1315, %v1314
  %v1826 = vpack.c.b16 %v1317, %v1316
  %v1827 = vpack.c.b16 %v1319, %v1318
  %v1828 = vpack.c.b16 %v1321, %v1320
  %v1829 = vpack.c.b16 %v1323, %v1322
  %v1830 = vpack.c.b16 %v1325, %v1324
  %v1831 = vpack.c.b16 %v1327, %v1326
  %v1832 = vpack.c.b16 %v1329, %v1328
  %v1833 = vpack.c.b16 %v1331, %v1330
  %v1834 = vpack.c.b16 %v1333, %v1332
  %v1835 = vpack.c.b16 %v1335, %v1334
  %v1836 = vpack.c.b16 %v1337, %v1336
  %v1837 = vpack.c.b16 %v1339, %v1338
  %v1838 = vpack.c.b16 %v1341, %v1340
  %v1839 = vpack.c.b16 %v1343, %v1342
  %v1840 = vpack.c.b16 %v1345, %v1344
  %v1841 = vpack.c.b16 %v1347, %v1346
  %v1842 = vpack.c.b16 %v1349, %v1348
  %v1843 = vpack.c.b16 %v1351, %v1350
  %v1844 = vpack.c.b16 %v1353, %v1352
  %v1845 = vpack.c.b16 %v1355, %v1354
  %v1846 = vpack.c.b16 %v1357, %v1356
  %v1847 = vpack.c.b16 %v1359, %v1358
  %v1848 = vpack.c.b16 %v1361, %v1360
  %v1849 = vpack.c.b16 %v1363, %v1362
  %v1850 = vpack.c.b16 %v1365, %v1364
  %v1851 = vpack.c.b16 %v1367, %v1366
  %v1852 = vpack.c.b16 %v1369, %v1368
  %v1853 = vpack.c.b16 %v1371, %v1370
  %v1854 = vpack.c.b16 %v1373, %v1372
  %v1855 = vpack.c.b16 %v1375, %v1374
  %v1856 = vpack.c.b16 %v1377, %v1376
  %v1857 = vpack.c.b16 %v1379, %v1378
  %v1858 = vpack.c.b16 %v1381, %v1380
  %v1859 = vpack.c.b16 %v1383, %v1382
  %v1860 = vpack.c.b16 %v1385, %v1384
  %v1861 = vpack.c.b16 %v1387, %v1386
  %v1862 = vpack.c.b16 %v1389, %v1388
  %v1863 = vpack.c.b16 %v1391, %v1390
  %v1864 = vpack.c.b16 %v1393, %v1392
  %v1865 = vpack.c.b16 %v1395, %v1394
  %v1866 = vpack.c.b16 %v1397, %v1396
  %v1867 = vpack.c.b16 %v1399, %v1398
  %v1868 = vpack.c.b16 %v1401, %v1400
  %v1869 = vpack.c.b16 %v1403, %v1402
  %v1870 = vpack.c.b16 %v1405, %v1404
  %v1871 = vpack.c.b16 %v1407, %v1406
  %v1872 = vpack.c.b16 %v1409, %v1408
  %v1873 = vpack.c.b16 %v1411, %v1410
  %v1874 = vpack.c.b16 %v1413, %v1412
  %v1875 = vpack.c.b16 %v1415, %v1414
  %v1876 = vpack.c.b16 %v1417, %v1416
  %v1877 = vpack.c.b16 %v1419, %v1418
  %v1878 = vpack.c.b16 %v1421, %v1420
  %v1879 = vpack.c.b16 %v1423, %v1422
  %v1880 = vpack.c.b16 %v1425, %v1424
  %v1881 = vpack.c.b16 %v1427, %v1426
  %v1882 = vpack.c.b16 %v1429, %v1428
  %v1883 = vpack.c.b16 %v1431, %v1430
  %v1884 = vpack.c.b16 %v1433, %v1432
  %v1885 = vpack.c.b16 %v1435, %v1434
  %v1886 = vpack.c.b16 %v1437, %v1436
  %v1887 = vpack.c.b16 %v1439, %v1438
  %v1888 = vpack.c.b16 %v1441, %v1440
  %v1889 = vpack.c.b16 %v1443, %v1442
  %v1890 = vpack.c.b16 %v1445, %v1444
  %v1891 = vpack.c.b16 %v1447, %v1446
  %v1892 = vpack.c.b16 %v1449, %v1448
  %v1893 = vpack.c.b16 %v1451, %v1450
  %v1894 = vpack.c.b16 %v1453, %v1452
  %v1895 = vpack.c.b16 %v1455, %v1454
  %v1896 = vpack.c.b16 %v1457, %v1456
  %v1897 = vpack.c.b16 %v1459, %v1458
  %v1898 = vpack.c.b16 %v1461, %v1460
  %v1899 = vpack.c.b16 %v1463, %v1462
  %v1900 = vpack.c.b16 %v1465, %v1464
  %v1901 = vpack.c.b16 %v1467, %v1466
  %v1902 = vpack.c.b16 %v1469, %v1468
  %v1903 = vpack.c.b16 %v1471, %v1470
  %v1904 = vpack.c.b16 %v1473, %v1472
  %v1905 = vpack.c.b16 %v1475, %v1474
  %v1906 = vpack.c.b16 %v1477, %v1476
  %v1907 = vpack.c.b16 %v1479, %v1478
  %v1908 = vpack.c.b16 %v1481, %v1480
  %v1909 = vpack.c.b16 %v1483, %v1482
  %v1910 = vpack.c.b16 %v1485, %v1484
  %v1911 = vpack.c.b16 %v1487, %v1486
  %v1912 = vpack.c.b16 %v1489, %v1488
  %v1913 = vpack.c.b16 %v1491, %v1490
  %v1914 = vpack.c.b16 %v1493, %v1492
  %v1915 = vpack.c.b16 %v1495, %v1494
  %v1916 = vpack.c.b16 %v1497, %v1496
  %v1917 = vpack.c.b16 %v1499, %v1498
  %v1918 = vpack.c.b16 %v1501, %v1500
  %v1919 = vpack.c.b16 %v1503, %v1502
  %v1920 = vpack.c.b16 %v1505, %v1504
  %v1921 = vpack.c.b16 %v1507, %v1506
  %v1922 = vpack.c.b16 %v1509, %v1508
  %v1923 = vpack.c.b16 %v1511, %v1510
  %v1924 = vpack.c.b16 %v1513, %v1512
  %v1925 = vpack.c.b16 %v1515, %v1514
  %v1926 = vpack.c.b16 %v1517, %v1516
  %v1927 = vpack.c.b16 %v1519, %v1518
  %v1928 = vpack.c.b16 %v1521, %v1520
  %v1929 = vpack.c.b16 %v1523, %v1522
  %v1930 = vpack.c.b16 %v1525, %v1524
  %v1931 = vpack.c.b16 %v1527, %v1526
  %v1932 = vpack.c.b16 %v1529, %v1528
  %v1933 = vpack.c.b16 %v1531, %v1530
  %v1934 = vpack.c.b16 %v1533, %v1532
  %v1935 = vpack.c.b16 %v1535, %v1534
  %v1936 = vpack.c.b16 %v1537, %v1536
  %v1937 = vpack.c.b16 %v1539, %v1538
  %v1938 = vpack.c.b16 %v1541, %v1540
  %v1939 = vpack.c.b16 %v1543, %v1542
  %v1940 = vpack.c.b16 %v1545, %v1544
  %v1941 = vpack.c.b16 %v1547, %v1546
  %v1942 = vpack.c.b16 %v1549, %v1548
  %v1943 = vpack.c.b16 %v1551, %v1550
  %v1944 = vpack.c.b16 %v1553, %v1552
  %v1945 = vpack.c.b16 %v1555, %v1554
  %v1946 = vpack.c.b16 %v1557, %v1556
  %v1947 = vpack.c.b16 %v1559, %v1558
  %v1948 = vpack.c.b16 %v1561, %v1560
  %v1949 = vpack.c.b16 %v1563, %v1562
  %v1950 = vpack.c.b16 %v1565, %v1564
  %v1951 = vpack.c.b16 %v1567, %v1566
  %v1952 = vpack.c.b16 %v1569, %v1568
  %v1953 = vpack.c.b16 %v1571, %v1570
  %v1954 = vpack.c.b16 %v1573, %v1572
  %v1955 = vpack.c.b16 %v1575, %v1574
  %v1956 = vpack.c.b16 %v1577, %v1576
  %v1957 = vpack.c.b16 %v1579, %v1578
  %v1958 = vpack.c.b16 %v1581, %v1580
  %v1959 = vpack.c.b16 %v1583, %v1582
  %v1960 = vpack.c.b16 %v1585, %v1584
  %v1961 = vpack.c.b16 %v1587, %v1586
  %v1962 = vpack.c.b16 %v1589, %v1588
  %v1963 = vpack.c.b16 %v1591, %v1590
  %v1964 = vpack.c.b16 %v1593, %v1592
  %v1965 = vpack.c.b16 %v1595, %v1594
  %v1966 = vpack.c.b16 %v1597, %v1596
  %v1967 = vpack.c.b16 %v1599, %v1598
  %v1968 = vpack.c.b16 %v1601, %v1600
  %v1969 = vpack.c.b16 %v1603, %v1602
  %v1970 = vpack.c.b16 %v1605, %v1604
  %v1971 = vpack.c.b16 %v1607, %v1606
  %v1972 = vpack.c.b16 %v1609, %v1608
  %v1973 = vpack.c.b16 %v1611, %v1610
  %v1974 = vpack.c.b16 %v1613, %v1612
  %v1975 = vpack.c.b16 %v1615, %v1614
  %v1976 = vpack.c.b16 %v1617, %v1616
  %v1977 = vpack.c.b16 %v1619, %v1618
  %v1978 = vpack.c.b16 %v1621, %v1620
  %v1979 = vpack.c.b16 %v1623, %v1622
  %v1980 = vpack.c.b16 %v1625, %v1624
  %v1981 = vpack.c.b16 %v1627, %v1626
  %v1982 = vpack.c.b16 %v1629, %v1628
  %v1983 = vpack.c.b16 %v1631, %v1630
  %v1984 = vpack.c.b16 %v1633, %v1632
  %v1985 = vpack.c.b16 %v1635, %v1634
  %v1986 = vpack.c.b16 %v1637, %v1636
  %v1987 = vpack.c.b16 %v1639, %v1638
  %v1988 = vpack.c.b16 %v1641, %v1640
  %v1989 = vpack.c.b16 %v1643, %v1642
  %v1990 = vpack.c.b16 %v1645, %v1644
  %v1991 = vpack.c.b16 %v1647, %v1646
  %v1992 = vpack.c.b16 %v1649, %v1648
  %v1993 = vpack.c.b16 %v1651, %v1650
  %v1994 = vpack.c.b16 %v1653, %v1652
  %v1995 = vpack.c.b16 %v1655, %v1654
  %v1996 = vpack.c.b16 %v1657, %v1656
  %v1997 = vpack.c.b16 %v1659, %v1658
  %v1998 = vpack.c.b16 %v1661, %v1660
  %v1999 = vpack.c.b16 %v1663, %v1662
  %v2000 = vpack.c.b16 %v1665, %v1664
  %v2001 = vpack.c.b16 %v1667, %v1666
  %v2002 = vpack.c.b16 %v1669, %v1668
  %v2003 = vpack.c.b16 %v1671, %v1670
  %v2004 = vpack.c.b16 %v1673, %v1672
  %v2005 = vpack.c.b16 %v1675, %v1674
  %v2006 = vpack.c.b16 %v1677, %v1676
  %v2007 = vpack.c.b16 %v1679, %v1678
  %v2008 = vpack.c.b16 %v1681, %v1680
  %v2009 = vpack.c.b16 %v1683, %v1682
  %v2010 = vpack.c.b16 %v1685, %v1684
  %v2011 = vpack.c.b16 %v1687, %v1686
  %v2012 = vpack.c.b16 %v1689, %v1688
  %v2013 = vpack.c.b16 %v1691, %v1690
  %v2014 = vpack.c.b16 %v1693, %v1692
  %v2015 = vpack.c.b16 %v1695, %v1694
  %v2016 = vpack.c.b16 %v1697, %v1696
  %v2017 = vpack.c.b16 %v1699, %v1698
  %v2018 = vpack.c.b16 %v1701, %v1700
  %v2019 = vpack.c.b16 %v1703, %v1702
  %v2020 = vpack.c.b16 %v1705, %v1704
  %v2021 = vpack.c.b16 %v1707, %v1706
  %v2022 = vpack.c.b16 %v1709, %v1708
  %v2023 = vpack.c.b16 %v1711, %v1710
  %v2024 = vpack.c.b16 %v1713, %v1712
  %v2025 = vpack.c.b16 %v1715, %v1714
  %v2026 = vpack.c.b16 %v1717, %v1716
  %v2027 = vpack.c.b16 %v1719, %v1718
  %v2028 = vpack.c.b16 %v1721, %v1720
  %v2029 = vpack.c.b16 %v1723, %v1722
  %v2030 = vpack.c.b16 %v1725, %v1724
  %v2031 = vpack.c.b16 %v1727, %v1726
  %v2032 = vpack.c.b16 %v1729, %v1728
  %v2033 = vpack.c.b16 %v1731, %v1730
  %v2034 = vpack.c.b16 %v1733, %v1732
  %v2035 = vpack.c.b16 %v1735, %v1734
  %v2036 = vpack.c.b16 %v1737, %v1736
  %v2037 = vpack.c.b16 %v1739, %v1738
  %v2038 = vpack.c.b16 %v1741, %v1740
  %v2039 = vpack.c.b16 %v1743, %v1742
  %v2040 = vpack.c.b16 %v1745, %v1744
  %v2041 = vpack.c.b16 %v1747, %v1746
  %v2042 = vpack.c.b16 %v1749, %v1748
  %v2043 = vpack.c.b16 %v1751, %v1750
  %v2044 = vpack.c.b16 %v1753, %v1752
  %v2045 = vpack.c.b16 %v1755, %v1754
  %v2046 = vpack.c.b16 %v1757, %v1756
  %v2047 = vpack.c.b16 %v1759, %v1758
  %v2052 = vunpack.c.l.b16 %v597
  %v2053 = vunpack.c.l.b16 %v598
  %v2054 = vunpack.c.l.b16 %v599
  %v2055 = vunpack.c.l.b16 %v600
  %v2056 = vpack.c.b16 %v2053, %v2052
  %v2057 = vpack.c.b16 %v2055, %v2054
  %vm2059 = vcmask 203776
  %v2061 = vsel %vm2059, %v1760, 0
  %v2064 = vsel %vm2059, %v1761, 0
  %v2067 = vsel %vm2059, %v1762, 0
  %v2070 = vsel %vm2059, %v1763, 0
  %v2073 = vsel %vm2059, %v1764, 0
  %v2076 = vsel %vm2059, %v1765, 0
  %v2079 = vsel %vm2059, %v1766, 0
  %v2082 = vsel %vm2059, %v1767, 0
  %v2085 = vsel %vm2059, %v1768, 0
  %v2088 = vsel %vm2059, %v1769, 0
  %v2091 = vsel %vm2059, %v1770, 0
  %v2094 = vsel %vm2059, %v1771, 0
  %v2097 = vsel %vm2059, %v1772, 0
  %v2100 = vsel %vm2059, %v1773, 0
  %v2103 = vsel %vm2059, %v1774, 0
  %v2106 = vsel %vm2059, %v1775, 0
  %v2109 = vsel %vm2059, %v1776, 0
  %v2112 = vsel %vm2059, %v1777, 0
  %v2115 = vsel %vm2059, %v1778, 0
  %v2118 = vsel %vm2059, %v1779, 0
  %v2121 = vsel %vm2059, %v1780, 0
  %v2124 = vsel %vm2059, %v1781, 0
  %v2127 = vsel %vm2059, %v1782, 0
  %v2130 = vsel %vm2059, %v1783, 0
  %v2133 = vsel %vm2059, %v1784, 0
  %v2136 = vsel %vm2059, %v1785, 0
  %v2139 = vsel %vm2059, %v1786, 0
  %v2142 = vsel %vm2059, %v1787, 0
  %v2145 = vsel %vm2059, %v1788, 0
  %v2148 = vsel %vm2059, %v1789, 0
  %v2151 = vsel %vm2059, %v1790, 0
  %v2154 = vsel %vm2059, %v1791, 0
  %v2157 = vsel %vm2059, %v1792, 0
  %v2160 = vsel %vm2059, %v1793, 0
  %v2163 = vsel %vm2059, %v1794, 0
  %v2166 = vsel %vm2059, %v1795, 0
  %v2169 = vsel %vm2059, %v1796, 0
  %v2172 = vsel %vm2059, %v1797, 0
  %v2175 = vsel %vm2059, %v1798, 0
  %v2178 = vsel %vm2059, %v1799, 0
  %v2181 = vsel %vm2059, %v1800, 0
  %v2184 = vsel %vm2059, %v1801, 0
  %v2187 = vsel %vm2059, %v1802, 0
  %v2190 = vsel %vm2059, %v1803, 0
  %v2193 = vsel %vm2059, %v1804, 0
  %v2196 = vsel %vm2059, %v1805, 0
  %v2199 = vsel %vm2059, %v1806, 0
  %v2202 = vsel %vm2059, %v1807, 0
  %v2205 = vsel %vm2059, %v1808, 0
  %v2208 = vsel %vm2059, %v1809, 0
  %v2211 = vsel %vm2059, %v1810, 0
  %v2214 = vsel %vm2059, %v1811, 0
  %v2217 = vsel %vm2059, %v1812, 0
  %v2220 = vsel %vm2059, %v1813, 0
  %v2223 = vsel %vm2059, %v1814, 0
  %v2226 = vsel %vm2059, %v1815, 0
  %v2229 = vsel %vm2059, %v1816, 0
  %v2232 = vsel %vm2059, %v1817, 0
  %v2235 = vsel %vm2059, %v1818, 0
  %v2238 = vsel %vm2059, %v1819, 0
  %v2241 = vsel %vm2059, %v1820, 0
  %v2244 = vsel %vm2059, %v1821, 0
  %v2247 = vsel %vm2059, %v1822, 0
  %v2250 = vsel %vm2059, %v1823, 0
  %v2253 = vsel %vm2059, %v1824, 0
  %v2256 = vsel %vm2059, %v1825, 0
  %v2259 = vsel %vm2059, %v1826, 0
  %v2262 = vsel %vm2059, %v1827, 0
  %v2265 = vsel %vm2059, %v1828, 0
  %v2268 = vsel %vm2059, %v1829, 0
  %v2271 = vsel %vm2059, %v1830, 0
  %v2274 = vsel %vm2059, %v1831, 0
  %v2277 = vsel %vm2059, %v1832, 0
  %v2280 = vsel %vm2059, %v1833, 0
  %v2283 = vsel %vm2059, %v1834, 0
  %v2286 = vsel %vm2059, %v1835, 0
  %v2289 = vsel %vm2059, %v1836, 0
  %v2292 = vsel %vm2059, %v1837, 0
  %v2295 = vsel %vm2059, %v1838, 0
  %v2298 = vsel %vm2059, %v1839, 0
  %v2301 = vsel %vm2059, %v1840, 0
  %v2304 = vsel %vm2059, %v1841, 0
  %v2307 = vsel %vm2059, %v1842, 0
  %v2310 = vsel %vm2059, %v1843, 0
  %v2313 = vsel %vm2059, %v1844, 0
  %v2316 = vsel %vm2059, %v1845, 0
  %v2319 = vsel %vm2059, %v1846, 0
  %v2322 = vsel %vm2059, %v1847, 0
  %v2325 = vsel %vm2059, %v1848, 0
  %v2328 = vsel %vm2059, %v1849, 0
  %v2331 = vsel %vm2059, %v1850, 0
  %v2334 = vsel %vm2059, %v1851, 0
  %v2337 = vsel %vm2059, %v1852, 0
  %v2340 = vsel %vm2059, %v1853, 0
  %v2343 = vsel %vm2059, %v1854, 0
  %v2346 = vsel %vm2059, %v1855, 0
  %v2349 = vsel %vm2059, %v1856, 0
  %v2352 = vsel %vm2059, %v1857, 0
  %v2355 = vsel %vm2059, %v1858, 0
  %v2358 = vsel %vm2059, %v1859, 0
  %v2361 = vsel %vm2059, %v1860, 0
  %v2364 = vsel %vm2059, %v1861, 0
  %v2367 = vsel %vm2059, %v1862, 0
  %v2370 = vsel %vm2059, %v1863, 0
  %v2373 = vsel %vm2059, %v1864, 0
  %v2376 = vsel %vm2059, %v1865, 0
  %v2379 = vsel %vm2059, %v1866, 0
  %v2382 = vsel %vm2059, %v1867, 0
  %v2385 = vsel %vm2059, %v1868, 0
  %v2388 = vsel %vm2059, %v1869, 0
  %v2391 = vsel %vm2059, %v1870, 0
  %v2394 = vsel %vm2059, %v1871, 0
  %v2397 = vsel %vm2059, %v1872, 0
  %v2400 = vsel %vm2059, %v1873, 0
  %v2403 = vsel %vm2059, %v1874, 0
  %v2406 = vsel %vm2059, %v1875, 0
  %v2409 = vsel %vm2059, %v1876, 0
  %v2412 = vsel %vm2059, %v1877, 0
  %v2415 = vsel %vm2059, %v1878, 0
  %v2418 = vsel %vm2059, %v1879, 0
  %v2421 = vsel %vm2059, %v1880, 0
  %v2424 = vsel %vm2059, %v1881, 0
  %v2427 = vsel %vm2059, %v1882, 0
  %v2430 = vsel %vm2059, %v1883, 0
  %v2433 = vsel %vm2059, %v1884, 0
  %v2436 = vsel %vm2059, %v1885, 0
  %v2439 = vsel %vm2059, %v1886, 0
  %v2442 = vsel %vm2059, %v1887, 0
  %v2445 = vsel %vm2059, %v1888, 0
  %v2448 = vsel %vm2059, %v1889, 0
  %v2451 = vsel %vm2059, %v1890, 0
  %v2454 = vsel %vm2059, %v1891, 0
  %v2457 = vsel %vm2059, %v1892, 0
  %v2460 = vsel %vm2059, %v1893, 0
  %v2463 = vsel %vm2059, %v1894, 0
  %v2466 = vsel %vm2059, %v1895, 0
  %v2469 = vsel %vm2059, %v1896, 0
  %v2472 = vsel %vm2059, %v1897, 0
  %v2475 = vsel %vm2059, %v1898, 0
  %v2478 = vsel %vm2059, %v1899, 0
  %v2481 = vsel %vm2059, %v1900, 0
  %v2484 = vsel %vm2059, %v1901, 0
  %v2487 = vsel %vm2059, %v1902, 0
  %v2490 = vsel %vm2059, %v1903, 0
  %v2493 = vsel %vm2059, %v1904, 0
  %v2496 = vsel %vm2059, %v1905, 0
  %v2499 = vsel %vm2059, %v1906, 0
  %v2502 = vsel %vm2059, %v1907, 0
  %v2505 = vsel %vm2059, %v1908, 0
  %v2508 = vsel %vm2059, %v1909, 0
  %v2511 = vsel %vm2059, %v1910, 0
  %v2514 = vsel %vm2059, %v1911, 0
  %v2517 = vsel %vm2059, %v1912, 0
  %v2520 = vsel %vm2059, %v1913, 0
  %v2523 = vsel %vm2059, %v1914, 0
  %v2526 = vsel %vm2059, %v1915, 0
  %v2529 = vsel %vm2059, %v1916, 0
  %v2532 = vsel %vm2059, %v1917, 0
  %v2535 = vsel %vm2059, %v1918, 0
  %v2538 = vsel %vm2059, %v1919, 0
  %v2541 = vsel %vm2059, %v1920, 0
  %v2544 = vsel %vm2059, %v1921, 0
  %v2547 = vsel %vm2059, %v1922, 0
  %v2550 = vsel %vm2059, %v1923, 0
  %v2553 = vsel %vm2059, %v1924, 0
  %v2556 = vsel %vm2059, %v1925, 0
  %v2559 = vsel %vm2059, %v1926, 0
  %v2562 = vsel %vm2059, %v1927, 0
  %v2565 = vsel %vm2059, %v1928, 0
  %v2568 = vsel %vm2059, %v1929, 0
  %v2571 = vsel %vm2059, %v1930, 0
  %v2574 = vsel %vm2059, %v1931, 0
  %v2577 = vsel %vm2059, %v1932, 0
  %v2580 = vsel %vm2059, %v1933, 0
  %v2583 = vsel %vm2059, %v1934, 0
  %v2586 = vsel %vm2059, %v1935, 0
  %v2589 = vsel %vm2059, %v1936, 0
  %v2592 = vsel %vm2059, %v1937, 0
  %v2595 = vsel %vm2059, %v1938, 0
  %v2598 = vsel %vm2059, %v1939, 0
  %v2601 = vsel %vm2059, %v1940, 0
  %v2604 = vsel %vm2059, %v1941, 0
  %v2607 = vsel %vm2059, %v1942, 0
  %v2610 = vsel %vm2059, %v1943, 0
  %v2613 = vsel %vm2059, %v1944, 0
  %v2616 = vsel %vm2059, %v1945, 0
  %v2619 = vsel %vm2059, %v1946, 0
  %v2622 = vsel %vm2059, %v1947, 0
  %v2625 = vsel %vm2059, %v1948, 0
  %v2628 = vsel %vm2059, %v1949, 0
  %v2631 = vsel %vm2059, %v1950, 0
  %v2634 = vsel %vm2059, %v1951, 0
  %v2637 = vsel %vm2059, %v1952, 0
  %v2640 = vsel %vm2059, %v1953, 0
  %v2643 = vsel %vm2059, %v1954, 0
  %v2646 = vsel %vm2059, %v1955, 0
  %v2649 = vsel %vm2059, %v1956, 0
  %v2652 = vsel %vm2059, %v1957, 0
  %v2655 = vsel %vm2059, %v1958, 0
  %v2658 = vsel %vm2059, %v1959, 0
  %v2661 = vsel %vm2059, %v1960, 0
  %v2664 = vsel %vm2059, %v1961, 0
  %v2667 = vsel %vm2059, %v1962, 0
  %v2670 = vsel %vm2059, %v1963, 0
  %v2673 = vsel %vm2059, %v1964, 0
  %v2676 = vsel %vm2059, %v1965, 0
  %v2679 = vsel %vm2059, %v1966, 0
  %v2682 = vsel %vm2059, %v1967, 0
  %v2685 = vsel %vm2059, %v1968, 0
  %v2688 = vsel %vm2059, %v1969, 0
  %v2691 = vsel %vm2059, %v1970, 0
  %v2694 = vsel %vm2059, %v1971, 0
  %v2697 = vsel %vm2059, %v1972, 0
  %v2700 = vsel %vm2059, %v1973, 0
  %v2703 = vsel %vm2059, %v1974, 0
  %v2706 = vsel %vm2059, %v1975, 0
  %v2709 = vsel %vm2059, %v1976, 0
  %v2712 = vsel %vm2059, %v1977, 0
  %v2715 = vsel %vm2059, %v1978, 0
  %v2718 = vsel %vm2059, %v1979, 0
  %v2721 = vsel %vm2059, %v1980, 0
  %v2724 = vsel %vm2059, %v1981, 0
  %v2727 = vsel %vm2059, %v1982, 0
  %v2730 = vsel %vm2059, %v1983, 0
  %v2733 = vsel %vm2059, %v1984, 0
  %v2736 = vsel %vm2059, %v1985, 0
  %v2739 = vsel %vm2059, %v1986, 0
  %v2742 = vsel %vm2059, %v1987, 0
  %v2745 = vsel %vm2059, %v1988, 0
  %v2748 = vsel %vm2059, %v1989, 0
  %v2751 = vsel %vm2059, %v1990, 0
  %v2754 = vsel %vm2059, %v1991, 0
  %v2757 = vsel %vm2059, %v1992, 0
  %v2760 = vsel %vm2059, %v1993, 0
  %v2763 = vsel %vm2059, %v1994, 0
  %v2766 = vsel %vm2059, %v1995, 0
  %v2769 = vsel %vm2059, %v1996, 0
  %v2772 = vsel %vm2059, %v1997, 0
  %v2775 = vsel %vm2059, %v1998, 0
  %v2778 = vsel %vm2059, %v1999, 0
  %v2781 = vsel %vm2059, %v2000, 0
  %v2784 = vsel %vm2059, %v2001, 0
  %v2787 = vsel %vm2059, %v2002, 0
  %v2790 = vsel %vm2059, %v2003, 0
  %v2793 = vsel %vm2059, %v2004, 0
  %v2796 = vsel %vm2059, %v2005, 0
  %v2799 = vsel %vm2059, %v2006, 0
  %v2802 = vsel %vm2059, %v2007, 0
  %v2805 = vsel %vm2059, %v2008, 0
  %v2808 = vsel %vm2059, %v2009, 0
  %v2811 = vsel %vm2059, %v2010, 0
  %v2814 = vsel %vm2059, %v2011, 0
  %v2817 = vsel %vm2059, %v2012, 0
  %v2820 = vsel %vm2059, %v2013, 0
  %v2823 = vsel %vm2059, %v2014, 0
  %v2826 = vsel %vm2059, %v2015, 0
  %v2829 = vsel %vm2059, %v2016, 0
  %v2832 = vsel %vm2059, %v2017, 0
  %v2835 = vsel %vm2059, %v2018, 0
  %v2838 = vsel %vm2059, %v2019, 0
  %v2841 = vsel %vm2059, %v2020, 0
  %v2844 = vsel %vm2059, %v2021, 0
  %v2847 = vsel %vm2059, %v2022, 0
  %v2850 = vsel %vm2059, %v2023, 0
  %v2853 = vsel %vm2059, %v2024, 0
  %v2856 = vsel %vm2059, %v2025, 0
  %v2859 = vsel %vm2059, %v2026, 0
  %v2862 = vsel %vm2059, %v2027, 0
  %v2865 = vsel %vm2059, %v2028, 0
  %v2868 = vsel %vm2059, %v2029, 0
  %v2871 = vsel %vm2059, %v2030, 0
  %v2874 = vsel %vm2059, %v2031, 0
  %v2877 = vsel %vm2059, %v2032, 0
  %v2880 = vsel %vm2059, %v2033, 0
  %v2883 = vsel %vm2059, %v2034, 0
  %v2886 = vsel %vm2059, %v2035, 0
  %v2889 = vsel %vm2059, %v2036, 0
  %v2892 = vsel %vm2059, %v2037, 0
  %v2895 = vsel %vm2059, %v2038, 0
  %v2898 = vsel %vm2059, %v2039, 0
  %v2901 = vsel %vm2059, %v2040, 0
  %v2904 = vsel %vm2059, %v2041, 0
  %v2907 = vsel %vm2059, %v2042, 0
  %v2910 = vsel %vm2059, %v2043, 0
  %v2913 = vsel %vm2059, %v2044, 0
  %v2916 = vsel %vm2059, %v2045, 0
  %v2919 = vsel %vm2059, %v2046, 0
  %v2922 = vsel %vm2059, %v2047, 0
  %vm2924 = vcmask 1043456
  %vm2925 = vcmask 1044480
  %v2926 = vsel %vm2924, 4294967295, 65535
  %v2927 = vsel %vm2925, %v2926, 0
  %v2929 = vand.u32 %v2057, %v2927
  %2931 = vmatprep.subr.bf16.mxu0 0
  %2932 = vmatpush1.bf16.msra.mxu0 %v2056
  %2933 = vmatprep.subr.bf16.mxu0 0
  %2934 = vmatpush1.bf16.msra.mxu0 %v2929
  %2935 = vmatprep.subr.bf16.mxu0 0
  %2936 = vmatpush1.bf16.msra.mxu0 0
  %2937 = vmatprep.subr.bf16.mxu0 0
  %2938 = vmatpush1.bf16.msra.mxu0 0
  %2939 = vmatprep.subr.bf16.mxu0 0
  %2940 = vmatpush1.bf16.msra.mxu0 0
  %2941 = vmatprep.subr.bf16.mxu0 0
  %2942 = vmatpush1.bf16.msra.mxu0 0
  %2943 = vmatprep.subr.bf16.mxu0 0
  %2944 = vmatpush1.bf16.msra.mxu0 0
  %2945 = vmatprep.subr.bf16.mxu0 0
  %2946 = vmatpush1.bf16.msra.mxu0 0
  %2947 = vmatprep.subr.bf16.mxu0 0
  %2948 = vmatpush1.bf16.msra.mxu0 0
  %2949 = vmatprep.subr.bf16.mxu0 0
  %2950 = vmatpush1.bf16.msra.mxu0 0
  %2951 = vmatprep.subr.bf16.mxu0 0
  %2952 = vmatpush1.bf16.msra.mxu0 0
  %2953 = vmatprep.subr.bf16.mxu0 0
  %2954 = vmatpush1.bf16.msra.mxu0 0
  %2955 = vmatprep.subr.bf16.mxu0 0
  %2956 = vmatpush1.bf16.msra.mxu0 0
  %2957 = vmatprep.subr.bf16.mxu0 0
  %2958 = vmatpush1.bf16.msra.mxu0 0
  %2959 = vmatprep.subr.bf16.mxu0 0
  %2960 = vmatpush1.bf16.msra.mxu0 0
  %2961 = vmatprep.subr.bf16.mxu0 0
  %2962 = vmatpush1.bf16.msra.mxu0 0
  %2963 = vmatprep.mubr.bf16.mxu0 0
  %2964 = vmatmul.mubr.bf16.gmra.mrb[0].mxu0 %v2061
  %v2965 = vpop.f32.mrb[0].mxu0
  %v2966 = vadd.f32 %v606, %v2965
  %v2967 = vpop.f32.mrb[0].mxu0
  %v2968 = vpop.f32.mrb[0].mxu0
  %v2969 = vadd.f32 %v606, %v2968
  %v2970 = vpop.f32.mrb[0].mxu0
  %2971 = vmatprep.mubr.bf16.mxu0 0
  %2972 = vmatmul.mubr.bf16.gmra.mrb[0].mxu0 %v2064
  %v2973 = vpop.f32.mrb[0].mxu0
  %v2974 = vadd.f32 %v606, %v2973
  %v2975 = vpop.f32.mrb[0].mxu0
  %v2976 = vpop.f32.mrb[0].mxu0
  %v2977 = vadd.f32 %v606, %v2976
  %v2978 = vpop.f32.mrb[0].mxu0
  %2979 = vmatprep.mubr.bf16.mxu0 0
  %2980 = vmatmul.mubr.bf16.gmra.mrb[0].mxu0 %v2067
  %v2981 = vpop.f32.mrb[0].mxu0
  %v2982 = vadd.f32 %v606, %v2981
  %v2983 = vpop.f32.mrb[0].mxu0
  %v2984 = vpop.f32.mrb[0].mxu0
  %v2985 = vadd.f32 %v606, %v2984
  %v2986 = vpop.f32.mrb[0].mxu0
  %2987 = vmatprep.mubr.bf16.mxu0 0
  %2988 = vmatmul.mubr.bf16.gmra.mrb[0].mxu0 %v2070
  %v2989 = vpop.f32.mrb[0].mxu0
  %v2990 = vadd.f32 %v606, %v2989
  %v2991 = vpop.f32.mrb[0].mxu0
  %v2992 = vpop.f32.mrb[0].mxu0
  %v2993 = vadd.f32 %v606, %v2992
  %v2994 = vpop.f32.mrb[0].mxu0
  %2995 = vmatprep.mubr.bf16.mxu0 0
  %2996 = vmatmul.mubr.bf16.gmra.mrb[0].mxu0 %v2073
  %v2997 = vpop.f32.mrb[0].mxu0
  %v2998 = vadd.f32 %v606, %v2997
  %v2999 = vpop.f32.mrb[0].mxu0
  %v3000 = vpop.f32.mrb[0].mxu0
  %v3001 = vadd.f32 %v606, %v3000
  %v3002 = vpop.f32.mrb[0].mxu0
  %3003 = vmatprep.mubr.bf16.mxu0 0
  %3004 = vmatmul.mubr.bf16.gmra.mrb[0].mxu0 %v2076
  %v3005 = vpop.f32.mrb[0].mxu0
  %v3006 = vadd.f32 %v606, %v3005
  %v3007 = vpop.f32.mrb[0].mxu0
  %v3008 = vpop.f32.mrb[0].mxu0
  %v3009 = vadd.f32 %v606, %v3008
  %v3010 = vpop.f32.mrb[0].mxu0
  %3011 = vmatprep.mubr.bf16.mxu0 0
  %3012 = vmatmul.mubr.bf16.gmra.mrb[0].mxu0 %v2079
  %v3013 = vpop.f32.mrb[0].mxu0
  %v3014 = vadd.f32 %v606, %v3013
  %v3015 = vpop.f32.mrb[0].mxu0
  %v3016 = vpop.f32.mrb[0].mxu0
  %v3017 = vadd.f32 %v606, %v3016
  %v3018 = vpop.f32.mrb[0].mxu0
  %3019 = vmatprep.mubr.bf16.mxu0 0
  %3020 = vmatmul.mubr.bf16.gmra.mrb[0].mxu0 %v2082
  %v3021 = vpop.f32.mrb[0].mxu0
  %v3022 = vadd.f32 %v606, %v3021
  %v3023 = vpop.f32.mrb[0].mxu0
  %v3024 = vpop.f32.mrb[0].mxu0
  %v3025 = vadd.f32 %v606, %v3024
  %v3026 = vpop.f32.mrb[0].mxu0
  %3027 = vmatprep.mubr.bf16.mxu0 0
  %3028 = vmatmul.mubr.bf16.gmra.mrb[0].mxu0 %v2085
  %v3029 = vpop.f32.mrb[0].mxu0
  %v3030 = vadd.f32 %v606, %v3029
  %v3031 = vpop.f32.mrb[0].mxu0
  %v3032 = vpop.f32.mrb[0].mxu0
  %v3033 = vadd.f32 %v606, %v3032
  %v3034 = vpop.f32.mrb[0].mxu0
  %3035 = vmatprep.mubr.bf16.mxu0 0
  %3036 = vmatmul.mubr.bf16.gmra.mrb[0].mxu0 %v2088
  %v3037 = vpop.f32.mrb[0].mxu0
  %v3038 = vadd.f32 %v606, %v3037
  %v3039 = vpop.f32.mrb[0].mxu0
  %v3040 = vpop.f32.mrb[0].mxu0
  %v3041 = vadd.f32 %v606, %v3040
  %v3042 = vpop.f32.mrb[0].mxu0
  %3043 = vmatprep.mubr.bf16.mxu0 0
  %3044 = vmatmul.mubr.bf16.gmra.mrb[0].mxu0 %v2091
  %v3045 = vpop.f32.mrb[0].mxu0
  %v3046 = vadd.f32 %v606, %v3045
  %v3047 = vpop.f32.mrb[0].mxu0
  %v3048 = vpop.f32.mrb[0].mxu0
  %v3049 = vadd.f32 %v606, %v3048
  %v3050 = vpop.f32.mrb[0].mxu0
  %3051 = vmatprep.mubr.bf16.mxu0 0
  %3052 = vmatmul.mubr.bf16.gmra.mrb[0].mxu0 %v2094
  %v3053 = vpop.f32.mrb[0].mxu0
  %v3054 = vadd.f32 %v606, %v3053
  %v3055 = vpop.f32.mrb[0].mxu0
  %v3056 = vpop.f32.mrb[0].mxu0
  %v3057 = vadd.f32 %v606, %v3056
  %v3058 = vpop.f32.mrb[0].mxu0
  %3059 = vmatprep.mubr.bf16.mxu0 0
  %3060 = vmatmul.mubr.bf16.gmra.mrb[0].mxu0 %v2097
  %v3061 = vpop.f32.mrb[0].mxu0
  %v3062 = vadd.f32 %v606, %v3061
  %v3063 = vpop.f32.mrb[0].mxu0
  %v3064 = vpop.f32.mrb[0].mxu0
  %v3065 = vadd.f32 %v606, %v3064
  %v3066 = vpop.f32.mrb[0].mxu0
  %3067 = vmatprep.mubr.bf16.mxu0 0
  %3068 = vmatmul.mubr.bf16.gmra.mrb[0].mxu0 %v2100
  %v3069 = vpop.f32.mrb[0].mxu0
  %v3070 = vadd.f32 %v606, %v3069
  %v3071 = vpop.f32.mrb[0].mxu0
  %v3072 = vpop.f32.mrb[0].mxu0
  %v3073 = vadd.f32 %v606, %v3072
  %v3074 = vpop.f32.mrb[0].mxu0
  %3075 = vmatprep.mubr.bf16.mxu0 0
  %3076 = vmatmul.mubr.bf16.gmra.mrb[0].mxu0 %v2103
  %v3077 = vpop.f32.mrb[0].mxu0
  %v3078 = vadd.f32 %v606, %v3077
  %v3079 = vpop.f32.mrb[0].mxu0
  %v3080 = vpop.f32.mrb[0].mxu0
  %v3081 = vadd.f32 %v606, %v3080
  %v3082 = vpop.f32.mrb[0].mxu0
  %3083 = vmatprep.mubr.bf16.mxu0 0
  %3084 = vmatmul.mubr.bf16.gmra.mrb[0].mxu0 %v2106
  %v3085 = vpop.f32.mrb[0].mxu0
  %v3086 = vadd.f32 %v606, %v3085
  %v3087 = vpop.f32.mrb[0].mxu0
  %v3088 = vpop.f32.mrb[0].mxu0
  %v3089 = vadd.f32 %v606, %v3088
  %v3090 = vpop.f32.mrb[0].mxu0
  %3091 = vmatprep.mubr.bf16.mxu0 0
  %3092 = vmatmul.mubr.bf16.gmra.mrb[0].mxu0 %v2109
  %v3093 = vpop.f32.mrb[0].mxu0
  %v3094 = vadd.f32 %v606, %v3093
  %v3095 = vpop.f32.mrb[0].mxu0
  %v3096 = vpop.f32.mrb[0].mxu0
  %v3097 = vadd.f32 %v606, %v3096
  %v3098 = vpop.f32.mrb[0].mxu0
  %3099 = vmatprep.mubr.bf16.mxu0 0
  %3100 = vmatmul.mubr.bf16.gmra.mrb[0].mxu0 %v2112
  %v3101 = vpop.f32.mrb[0].mxu0
  %v3102 = vadd.f32 %v606, %v3101
  %v3103 = vpop.f32.mrb[0].mxu0
  %v3104 = vpop.f32.mrb[0].mxu0
  %v3105 = vadd.f32 %v606, %v3104
  %v3106 = vpop.f32.mrb[0].mxu0
  %3107 = vmatprep.mubr.bf16.mxu0 0
  %3108 = vmatmul.mubr.bf16.gmra.mrb[0].mxu0 %v2115
  %v3109 = vpop.f32.mrb[0].mxu0
  %v3110 = vadd.f32 %v606, %v3109
  %v3111 = vpop.f32.mrb[0].mxu0
  %v3112 = vpop.f32.mrb[0].mxu0
  %v3113 = vadd.f32 %v606, %v3112
  %v3114 = vpop.f32.mrb[0].mxu0
  %3115 = vmatprep.mubr.bf16.mxu0 0
  %3116 = vmatmul.mubr.bf16.gmra.mrb[0].mxu0 %v2118
  %v3117 = vpop.f32.mrb[0].mxu0
  %v3118 = vadd.f32 %v606, %v3117
  %v3119 = vpop.f32.mrb[0].mxu0
  %v3120 = vpop.f32.mrb[0].mxu0
  %v3121 = vadd.f32 %v606, %v3120
  %v3122 = vpop.f32.mrb[0].mxu0
  %3123 = vmatprep.mubr.bf16.mxu0 0
  %3124 = vmatmul.mubr.bf16.gmra.mrb[0].mxu0 %v2121
  %v3125 = vpop.f32.mrb[0].mxu0
  %v3126 = vadd.f32 %v606, %v3125
  %v3127 = vpop.f32.mrb[0].mxu0
  %v3128 = vpop.f32.mrb[0].mxu0
  %v3129 = vadd.f32 %v606, %v3128
  %v3130 = vpop.f32.mrb[0].mxu0
  %3131 = vmatprep.mubr.bf16.mxu0 0
  %3132 = vmatmul.mubr.bf16.gmra.mrb[0].mxu0 %v2124
  %v3133 = vpop.f32.mrb[0].mxu0
  %v3134 = vadd.f32 %v606, %v3133
  %v3135 = vpop.f32.mrb[0].mxu0
  %v3136 = vpop.f32.mrb[0].mxu0
  %v3137 = vadd.f32 %v606, %v3136
  %v3138 = vpop.f32.mrb[0].mxu0
  %3139 = vmatprep.mubr.bf16.mxu0 0
  %3140 = vmatmul.mubr.bf16.gmra.mrb[0].mxu0 %v2127
  %v3141 = vpop.f32.mrb[0].mxu0
  %v3142 = vadd.f32 %v606, %v3141
  %v3143 = vpop.f32.mrb[0].mxu0
  %v3144 = vpop.f32.mrb[0].mxu0
  %v3145 = vadd.f32 %v606, %v3144
  %v3146 = vpop.f32.mrb[0].mxu0
  %3147 = vmatprep.mubr.bf16.mxu0 0
  %3148 = vmatmul.mubr.bf16.gmra.mrb[0].mxu0 %v2130
  %v3149 = vpop.f32.mrb[0].mxu0
  %v3150 = vadd.f32 %v606, %v3149
  %v3151 = vpop.f32.mrb[0].mxu0
  %v3152 = vpop.f32.mrb[0].mxu0
  %v3153 = vadd.f32 %v606, %v3152
  %v3154 = vpop.f32.mrb[0].mxu0
  %3155 = vmatprep.mubr.bf16.mxu0 0
  %3156 = vmatmul.mubr.bf16.gmra.mrb[0].mxu0 %v2133
  %v3157 = vpop.f32.mrb[0].mxu0
  %v3158 = vadd.f32 %v606, %v3157
  %v3159 = vpop.f32.mrb[0].mxu0
  %v3160 = vpop.f32.mrb[0].mxu0
  %v3161 = vadd.f32 %v606, %v3160
  %v3162 = vpop.f32.mrb[0].mxu0
  %3163 = vmatprep.mubr.bf16.mxu0 0
  %3164 = vmatmul.mubr.bf16.gmra.mrb[0].mxu0 %v2136
  %v3165 = vpop.f32.mrb[0].mxu0
  %v3166 = vadd.f32 %v606, %v3165
  %v3167 = vpop.f32.mrb[0].mxu0
  %v3168 = vpop.f32.mrb[0].mxu0
  %v3169 = vadd.f32 %v606, %v3168
  %v3170 = vpop.f32.mrb[0].mxu0
  %3171 = vmatprep.mubr.bf16.mxu0 0
  %3172 = vmatmul.mubr.bf16.gmra.mrb[0].mxu0 %v2139
  %v3173 = vpop.f32.mrb[0].mxu0
  %v3174 = vadd.f32 %v606, %v3173
  %v3175 = vpop.f32.mrb[0].mxu0
  %v3176 = vpop.f32.mrb[0].mxu0
  %v3177 = vadd.f32 %v606, %v3176
  %v3178 = vpop.f32.mrb[0].mxu0
  %3179 = vmatprep.mubr.bf16.mxu0 0
  %3180 = vmatmul.mubr.bf16.gmra.mrb[0].mxu0 %v2142
  %v3181 = vpop.f32.mrb[0].mxu0
  %v3182 = vadd.f32 %v606, %v3181
  %v3183 = vpop.f32.mrb[0].mxu0
  %v3184 = vpop.f32.mrb[0].mxu0
  %v3185 = vadd.f32 %v606, %v3184
  %v3186 = vpop.f32.mrb[0].mxu0
  %3187 = vmatprep.mubr.bf16.mxu0 0
  %3188 = vmatmul.mubr.bf16.gmra.mrb[0].mxu0 %v2145
  %v3189 = vpop.f32.mrb[0].mxu0
  %v3190 = vadd.f32 %v606, %v3189
  %v3191 = vpop.f32.mrb[0].mxu0
  %v3192 = vpop.f32.mrb[0].mxu0
  %v3193 = vadd.f32 %v606, %v3192
  %v3194 = vpop.f32.mrb[0].mxu0
  %3195 = vmatprep.mubr.bf16.mxu0 0
  %3196 = vmatmul.mubr.bf16.gmra.mrb[0].mxu0 %v2148
  %v3197 = vpop.f32.mrb[0].mxu0
  %v3198 = vadd.f32 %v606, %v3197
  %v3199 = vpop.f32.mrb[0].mxu0
  %v3200 = vpop.f32.mrb[0].mxu0
  %v3201 = vadd.f32 %v606, %v3200
  %v3202 = vpop.f32.mrb[0].mxu0
  %3203 = vmatprep.mubr.bf16.mxu0 0
  %3204 = vmatmul.mubr.bf16.gmra.mrb[0].mxu0 %v2151
  %v3205 = vpop.f32.mrb[0].mxu0
  %v3206 = vadd.f32 %v606, %v3205
  %v3207 = vpop.f32.mrb[0].mxu0
  %v3208 = vpop.f32.mrb[0].mxu0
  %v3209 = vadd.f32 %v606, %v3208
  %v3210 = vpop.f32.mrb[0].mxu0
  %3211 = vmatprep.mubr.bf16.mxu0 0
  %3212 = vmatmul.mubr.bf16.gmra.mrb[0].mxu0 %v2154
  %v3213 = vpop.f32.mrb[0].mxu0
  %v3214 = vadd.f32 %v606, %v3213
  %v3215 = vpop.f32.mrb[0].mxu0
  %v3216 = vpop.f32.mrb[0].mxu0
  %v3217 = vadd.f32 %v606, %v3216
  %v3218 = vpop.f32.mrb[0].mxu0
  %3219 = vmatprep.mubr.bf16.mxu0 0
  %3220 = vmatmul.mubr.bf16.gmra.mrb[0].mxu0 %v2157
  %v3221 = vpop.f32.mrb[0].mxu0
  %v3222 = vadd.f32 %v606, %v3221
  %v3223 = vpop.f32.mrb[0].mxu0
  %v3224 = vpop.f32.mrb[0].mxu0
  %v3225 = vadd.f32 %v606, %v3224
  %v3226 = vpop.f32.mrb[0].mxu0
  %3227 = vmatprep.mubr.bf16.mxu0 0
  %3228 = vmatmul.mubr.bf16.gmra.mrb[0].mxu0 %v2160
  %v3229 = vpop.f32.mrb[0].mxu0
  %v3230 = vadd.f32 %v606, %v3229
  %v3231 = vpop.f32.mrb[0].mxu0
  %v3232 = vpop.f32.mrb[0].mxu0
  %v3233 = vadd.f32 %v606, %v3232
  %v3234 = vpop.f32.mrb[0].mxu0
  %3235 = vmatprep.mubr.bf16.mxu0 0
  %3236 = vmatmul.mubr.bf16.gmra.mrb[0].mxu0 %v2163
  %v3237 = vpop.f32.mrb[0].mxu0
  %v3238 = vadd.f32 %v606, %v3237
  %v3239 = vpop.f32.mrb[0].mxu0
  %v3240 = vpop.f32.mrb[0].mxu0
  %v3241 = vadd.f32 %v606, %v3240
  %v3242 = vpop.f32.mrb[0].mxu0
  %3243 = vmatprep.mubr.bf16.mxu0 0
  %3244 = vmatmul.mubr.bf16.gmra.mrb[0].mxu0 %v2166
  %v3245 = vpop.f32.mrb[0].mxu0
  %v3246 = vadd.f32 %v606, %v3245
  %v3247 = vpop.f32.mrb[0].mxu0
  %v3248 = vpop.f32.mrb[0].mxu0
  %v3249 = vadd.f32 %v606, %v3248
  %v3250 = vpop.f32.mrb[0].mxu0
  %3251 = vmatprep.mubr.bf16.mxu0 0
  %3252 = vmatmul.mubr.bf16.gmra.mrb[0].mxu0 %v2169
  %v3253 = vpop.f32.mrb[0].mxu0
  %v3254 = vadd.f32 %v606, %v3253
  %v3255 = vpop.f32.mrb[0].mxu0
  %v3256 = vpop.f32.mrb[0].mxu0
  %v3257 = vadd.f32 %v606, %v3256
  %v3258 = vpop.f32.mrb[0].mxu0
  %3259 = vmatprep.mubr.bf16.mxu0 0
  %3260 = vmatmul.mubr.bf16.gmra.mrb[0].mxu0 %v2172
  %v3261 = vpop.f32.mrb[0].mxu0
  %v3262 = vadd.f32 %v606, %v3261
  %v3263 = vpop.f32.mrb[0].mxu0
  %v3264 = vpop.f32.mrb[0].mxu0
  %v3265 = vadd.f32 %v606, %v3264
  %v3266 = vpop.f32.mrb[0].mxu0
  %3267 = vmatprep.mubr.bf16.mxu0 0
  %3268 = vmatmul.mubr.bf16.gmra.mrb[0].mxu0 %v2175
  %v3269 = vpop.f32.mrb[0].mxu0
  %v3270 = vadd.f32 %v606, %v3269
  %v3271 = vpop.f32.mrb[0].mxu0
  %v3272 = vpop.f32.mrb[0].mxu0
  %v3273 = vadd.f32 %v606, %v3272
  %v3274 = vpop.f32.mrb[0].mxu0
  %3275 = vmatprep.mubr.bf16.mxu0 0
  %3276 = vmatmul.mubr.bf16.gmra.mrb[0].mxu0 %v2178
  %v3277 = vpop.f32.mrb[0].mxu0
  %v3278 = vadd.f32 %v606, %v3277
  %v3279 = vpop.f32.mrb[0].mxu0
  %v3280 = vpop.f32.mrb[0].mxu0
  %v3281 = vadd.f32 %v606, %v3280
  %v3282 = vpop.f32.mrb[0].mxu0
  %3283 = vmatprep.mubr.bf16.mxu0 0
  %3284 = vmatmul.mubr.bf16.gmra.mrb[0].mxu0 %v2181
  %v3285 = vpop.f32.mrb[0].mxu0
  %v3286 = vadd.f32 %v606, %v3285
  %v3287 = vpop.f32.mrb[0].mxu0
  %v3288 = vpop.f32.mrb[0].mxu0
  %v3289 = vadd.f32 %v606, %v3288
  %v3290 = vpop.f32.mrb[0].mxu0
  %3291 = vmatprep.mubr.bf16.mxu0 0
  %3292 = vmatmul.mubr.bf16.gmra.mrb[0].mxu0 %v2184
  %v3293 = vpop.f32.mrb[0].mxu0
  %v3294 = vadd.f32 %v606, %v3293
  %v3295 = vpop.f32.mrb[0].mxu0
  %v3296 = vpop.f32.mrb[0].mxu0
  %v3297 = vadd.f32 %v606, %v3296
  %v3298 = vpop.f32.mrb[0].mxu0
  %3299 = vmatprep.mubr.bf16.mxu0 0
  %3300 = vmatmul.mubr.bf16.gmra.mrb[0].mxu0 %v2187
  %v3301 = vpop.f32.mrb[0].mxu0
  %v3302 = vadd.f32 %v606, %v3301
  %v3303 = vpop.f32.mrb[0].mxu0
  %v3304 = vpop.f32.mrb[0].mxu0
  %v3305 = vadd.f32 %v606, %v3304
  %v3306 = vpop.f32.mrb[0].mxu0
  %3307 = vmatprep.mubr.bf16.mxu0 0
  %3308 = vmatmul.mubr.bf16.gmra.mrb[0].mxu0 %v2190
  %v3309 = vpop.f32.mrb[0].mxu0
  %v3310 = vadd.f32 %v606, %v3309
  %v3311 = vpop.f32.mrb[0].mxu0
  %v3312 = vpop.f32.mrb[0].mxu0
  %v3313 = vadd.f32 %v606, %v3312
  %v3314 = vpop.f32.mrb[0].mxu0
  %3315 = vmatprep.mubr.bf16.mxu0 0
  %3316 = vmatmul.mubr.bf16.gmra.mrb[0].mxu0 %v2193
  %v3317 = vpop.f32.mrb[0].mxu0
  %v3318 = vadd.f32 %v606, %v3317
  %v3319 = vpop.f32.mrb[0].mxu0
  %v3320 = vpop.f32.mrb[0].mxu0
  %v3321 = vadd.f32 %v606, %v3320
  %v3322 = vpop.f32.mrb[0].mxu0
  %3323 = vmatprep.mubr.bf16.mxu0 0
  %3324 = vmatmul.mubr.bf16.gmra.mrb[0].mxu0 %v2196
  %v3325 = vpop.f32.mrb[0].mxu0
  %v3326 = vadd.f32 %v606, %v3325
  %v3327 = vpop.f32.mrb[0].mxu0
  %v3328 = vpop.f32.mrb[0].mxu0
  %v3329 = vadd.f32 %v606, %v3328
  %v3330 = vpop.f32.mrb[0].mxu0
  %3331 = vmatprep.mubr.bf16.mxu0 0
  %3332 = vmatmul.mubr.bf16.gmra.mrb[0].mxu0 %v2199
  %v3333 = vpop.f32.mrb[0].mxu0
  %v3334 = vadd.f32 %v606, %v3333
  %v3335 = vpop.f32.mrb[0].mxu0
  %v3336 = vpop.f32.mrb[0].mxu0
  %v3337 = vadd.f32 %v606, %v3336
  %v3338 = vpop.f32.mrb[0].mxu0
  %3339 = vmatprep.mubr.bf16.mxu0 0
  %3340 = vmatmul.mubr.bf16.gmra.mrb[0].mxu0 %v2202
  %v3341 = vpop.f32.mrb[0].mxu0
  %v3342 = vadd.f32 %v606, %v3341
  %v3343 = vpop.f32.mrb[0].mxu0
  %v3344 = vpop.f32.mrb[0].mxu0
  %v3345 = vadd.f32 %v606, %v3344
  %v3346 = vpop.f32.mrb[0].mxu0
  %3347 = vmatprep.mubr.bf16.mxu0 0
  %3348 = vmatmul.mubr.bf16.gmra.mrb[0].mxu0 %v2205
  %v3349 = vpop.f32.mrb[0].mxu0
  %v3350 = vadd.f32 %v606, %v3349
  %v3351 = vpop.f32.mrb[0].mxu0
  %v3352 = vpop.f32.mrb[0].mxu0
  %v3353 = vadd.f32 %v606, %v3352
  %v3354 = vpop.f32.mrb[0].mxu0
  %3355 = vmatprep.mubr.bf16.mxu0 0
  %3356 = vmatmul.mubr.bf16.gmra.mrb[0].mxu0 %v2208
  %v3357 = vpop.f32.mrb[0].mxu0
  %v3358 = vadd.f32 %v606, %v3357
  %v3359 = vpop.f32.mrb[0].mxu0
  %v3360 = vpop.f32.mrb[0].mxu0
  %v3361 = vadd.f32 %v606, %v3360
  %v3362 = vpop.f32.mrb[0].mxu0
  %3363 = vmatprep.mubr.bf16.mxu0 0
  %3364 = vmatmul.mubr.bf16.gmra.mrb[0].mxu0 %v2211
  %v3365 = vpop.f32.mrb[0].mxu0
  %v3366 = vadd.f32 %v606, %v3365
  %v3367 = vpop.f32.mrb[0].mxu0
  %v3368 = vpop.f32.mrb[0].mxu0
  %v3369 = vadd.f32 %v606, %v3368
  %v3370 = vpop.f32.mrb[0].mxu0
  %3371 = vmatprep.mubr.bf16.mxu0 0
  %3372 = vmatmul.mubr.bf16.gmra.mrb[0].mxu0 %v2214
  %v3373 = vpop.f32.mrb[0].mxu0
  %v3374 = vadd.f32 %v606, %v3373
  %v3375 = vpop.f32.mrb[0].mxu0
  %v3376 = vpop.f32.mrb[0].mxu0
  %v3377 = vadd.f32 %v606, %v3376
  %v3378 = vpop.f32.mrb[0].mxu0
  %3379 = vmatprep.mubr.bf16.mxu0 0
  %3380 = vmatmul.mubr.bf16.gmra.mrb[0].mxu0 %v2217
  %v3381 = vpop.f32.mrb[0].mxu0
  %v3382 = vadd.f32 %v606, %v3381
  %v3383 = vpop.f32.mrb[0].mxu0
  %v3384 = vpop.f32.mrb[0].mxu0
  %v3385 = vadd.f32 %v606, %v3384
  %v3386 = vpop.f32.mrb[0].mxu0
  %3387 = vmatprep.mubr.bf16.mxu0 0
  %3388 = vmatmul.mubr.bf16.gmra.mrb[0].mxu0 %v2220
  %v3389 = vpop.f32.mrb[0].mxu0
  %v3390 = vadd.f32 %v606, %v3389
  %v3391 = vpop.f32.mrb[0].mxu0
  %v3392 = vpop.f32.mrb[0].mxu0
  %v3393 = vadd.f32 %v606, %v3392
  %v3394 = vpop.f32.mrb[0].mxu0
  %3395 = vmatprep.mubr.bf16.mxu0 0
  %3396 = vmatmul.mubr.bf16.gmra.mrb[0].mxu0 %v2223
  %v3397 = vpop.f32.mrb[0].mxu0
  %v3398 = vadd.f32 %v606, %v3397
  %v3399 = vpop.f32.mrb[0].mxu0
  %v3400 = vpop.f32.mrb[0].mxu0
  %v3401 = vadd.f32 %v606, %v3400
  %v3402 = vpop.f32.mrb[0].mxu0
  %3403 = vmatprep.mubr.bf16.mxu0 0
  %3404 = vmatmul.mubr.bf16.gmra.mrb[0].mxu0 %v2226
  %v3405 = vpop.f32.mrb[0].mxu0
  %v3406 = vadd.f32 %v606, %v3405
  %v3407 = vpop.f32.mrb[0].mxu0
  %v3408 = vpop.f32.mrb[0].mxu0
  %v3409 = vadd.f32 %v606, %v3408
  %v3410 = vpop.f32.mrb[0].mxu0
  %3411 = vmatprep.mubr.bf16.mxu0 0
  %3412 = vmatmul.mubr.bf16.gmra.mrb[0].mxu0 %v2229
  %v3413 = vpop.f32.mrb[0].mxu0
  %v3414 = vadd.f32 %v606, %v3413
  %v3415 = vpop.f32.mrb[0].mxu0
  %v3416 = vpop.f32.mrb[0].mxu0
  %v3417 = vadd.f32 %v606, %v3416
  %v3418 = vpop.f32.mrb[0].mxu0
  %3419 = vmatprep.mubr.bf16.mxu0 0
  %3420 = vmatmul.mubr.bf16.gmra.mrb[0].mxu0 %v2232
  %v3421 = vpop.f32.mrb[0].mxu0
  %v3422 = vadd.f32 %v606, %v3421
  %v3423 = vpop.f32.mrb[0].mxu0
  %v3424 = vpop.f32.mrb[0].mxu0
  %v3425 = vadd.f32 %v606, %v3424
  %v3426 = vpop.f32.mrb[0].mxu0
  %3427 = vmatprep.mubr.bf16.mxu0 0
  %3428 = vmatmul.mubr.bf16.gmra.mrb[0].mxu0 %v2235
  %v3429 = vpop.f32.mrb[0].mxu0
  %v3430 = vadd.f32 %v606, %v3429
  %v3431 = vpop.f32.mrb[0].mxu0
  %v3432 = vpop.f32.mrb[0].mxu0
  %v3433 = vadd.f32 %v606, %v3432
  %v3434 = vpop.f32.mrb[0].mxu0
  %3435 = vmatprep.mubr.bf16.mxu0 0
  %3436 = vmatmul.mubr.bf16.gmra.mrb[0].mxu0 %v2238
  %v3437 = vpop.f32.mrb[0].mxu0
  %v3438 = vadd.f32 %v606, %v3437
  %v3439 = vpop.f32.mrb[0].mxu0
  %v3440 = vpop.f32.mrb[0].mxu0
  %v3441 = vadd.f32 %v606, %v3440
  %v3442 = vpop.f32.mrb[0].mxu0
  %3443 = vmatprep.mubr.bf16.mxu0 0
  %3444 = vmatmul.mubr.bf16.gmra.mrb[0].mxu0 %v2241
  %v3445 = vpop.f32.mrb[0].mxu0
  %v3446 = vadd.f32 %v606, %v3445
  %v3447 = vpop.f32.mrb[0].mxu0
  %v3448 = vpop.f32.mrb[0].mxu0
  %v3449 = vadd.f32 %v606, %v3448
  %v3450 = vpop.f32.mrb[0].mxu0
  %3451 = vmatprep.mubr.bf16.mxu0 0
  %3452 = vmatmul.mubr.bf16.gmra.mrb[0].mxu0 %v2244
  %v3453 = vpop.f32.mrb[0].mxu0
  %v3454 = vadd.f32 %v606, %v3453
  %v3455 = vpop.f32.mrb[0].mxu0
  %v3456 = vpop.f32.mrb[0].mxu0
  %v3457 = vadd.f32 %v606, %v3456
  %v3458 = vpop.f32.mrb[0].mxu0
  %3459 = vmatprep.mubr.bf16.mxu0 0
  %3460 = vmatmul.mubr.bf16.gmra.mrb[0].mxu0 %v2247
  %v3461 = vpop.f32.mrb[0].mxu0
  %v3462 = vadd.f32 %v606, %v3461
  %v3463 = vpop.f32.mrb[0].mxu0
  %v3464 = vpop.f32.mrb[0].mxu0
  %v3465 = vadd.f32 %v606, %v3464
  %v3466 = vpop.f32.mrb[0].mxu0
  %3467 = vmatprep.mubr.bf16.mxu0 0
  %3468 = vmatmul.mubr.bf16.gmra.mrb[0].mxu0 %v2250
  %v3469 = vpop.f32.mrb[0].mxu0
  %v3470 = vadd.f32 %v606, %v3469
  %v3471 = vpop.f32.mrb[0].mxu0
  %v3472 = vpop.f32.mrb[0].mxu0
  %v3473 = vadd.f32 %v606, %v3472
  %v3474 = vpop.f32.mrb[0].mxu0
  %3475 = vmatprep.mubr.bf16.mxu0 0
  %3476 = vmatmul.mubr.bf16.gmra.mrb[0].mxu0 %v2253
  %v3477 = vpop.f32.mrb[0].mxu0
  %v3478 = vadd.f32 %v606, %v3477
  %v3479 = vpop.f32.mrb[0].mxu0
  %v3480 = vpop.f32.mrb[0].mxu0
  %v3481 = vadd.f32 %v606, %v3480
  %v3482 = vpop.f32.mrb[0].mxu0
  %3483 = vmatprep.mubr.bf16.mxu0 0
  %3484 = vmatmul.mubr.bf16.gmra.mrb[0].mxu0 %v2256
  %v3485 = vpop.f32.mrb[0].mxu0
  %v3486 = vadd.f32 %v606, %v3485
  %v3487 = vpop.f32.mrb[0].mxu0
  %v3488 = vpop.f32.mrb[0].mxu0
  %v3489 = vadd.f32 %v606, %v3488
  %v3490 = vpop.f32.mrb[0].mxu0
  %3491 = vmatprep.mubr.bf16.mxu0 0
  %3492 = vmatmul.mubr.bf16.gmra.mrb[0].mxu0 %v2259
  %v3493 = vpop.f32.mrb[0].mxu0
  %v3494 = vadd.f32 %v606, %v3493
  %v3495 = vpop.f32.mrb[0].mxu0
  %v3496 = vpop.f32.mrb[0].mxu0
  %v3497 = vadd.f32 %v606, %v3496
  %v3498 = vpop.f32.mrb[0].mxu0
  %3499 = vmatprep.mubr.bf16.mxu0 0
  %3500 = vmatmul.mubr.bf16.gmra.mrb[0].mxu0 %v2262
  %v3501 = vpop.f32.mrb[0].mxu0
  %v3502 = vadd.f32 %v606, %v3501
  %v3503 = vpop.f32.mrb[0].mxu0
  %v3504 = vpop.f32.mrb[0].mxu0
  %v3505 = vadd.f32 %v606, %v3504
  %v3506 = vpop.f32.mrb[0].mxu0
  %3507 = vmatprep.mubr.bf16.mxu0 0
  %3508 = vmatmul.mubr.bf16.gmra.mrb[0].mxu0 %v2265
  %v3509 = vpop.f32.mrb[0].mxu0
  %v3510 = vadd.f32 %v606, %v3509
  %v3511 = vpop.f32.mrb[0].mxu0
  %v3512 = vpop.f32.mrb[0].mxu0
  %v3513 = vadd.f32 %v606, %v3512
  %v3514 = vpop.f32.mrb[0].mxu0
  %3515 = vmatprep.mubr.bf16.mxu0 0
  %3516 = vmatmul.mubr.bf16.gmra.mrb[0].mxu0 %v2268
  %v3517 = vpop.f32.mrb[0].mxu0
  %v3518 = vadd.f32 %v606, %v3517
  %v3519 = vpop.f32.mrb[0].mxu0
  %v3520 = vpop.f32.mrb[0].mxu0
  %v3521 = vadd.f32 %v606, %v3520
  %v3522 = vpop.f32.mrb[0].mxu0
  %3523 = vmatprep.mubr.bf16.mxu0 0
  %3524 = vmatmul.mubr.bf16.gmra.mrb[0].mxu0 %v2271
  %v3525 = vpop.f32.mrb[0].mxu0
  %v3526 = vadd.f32 %v606, %v3525
  %v3527 = vpop.f32.mrb[0].mxu0
  %v3528 = vpop.f32.mrb[0].mxu0
  %v3529 = vadd.f32 %v606, %v3528
  %v3530 = vpop.f32.mrb[0].mxu0
  %3531 = vmatprep.mubr.bf16.mxu0 0
  %3532 = vmatmul.mubr.bf16.gmra.mrb[0].mxu0 %v2274
  %v3533 = vpop.f32.mrb[0].mxu0
  %v3534 = vadd.f32 %v606, %v3533
  %v3535 = vpop.f32.mrb[0].mxu0
  %v3536 = vpop.f32.mrb[0].mxu0
  %v3537 = vadd.f32 %v606, %v3536
  %v3538 = vpop.f32.mrb[0].mxu0
  %3539 = vmatprep.mubr.bf16.mxu0 0
  %3540 = vmatmul.mubr.bf16.gmra.mrb[0].mxu0 %v2277
  %v3541 = vpop.f32.mrb[0].mxu0
  %v3542 = vadd.f32 %v606, %v3541
  %v3543 = vpop.f32.mrb[0].mxu0
  %v3544 = vpop.f32.mrb[0].mxu0
  %v3545 = vadd.f32 %v606, %v3544
  %v3546 = vpop.f32.mrb[0].mxu0
  %3547 = vmatprep.mubr.bf16.mxu0 0
  %3548 = vmatmul.mubr.bf16.gmra.mrb[0].mxu0 %v2280
  %v3549 = vpop.f32.mrb[0].mxu0
  %v3550 = vadd.f32 %v606, %v3549
  %v3551 = vpop.f32.mrb[0].mxu0
  %v3552 = vpop.f32.mrb[0].mxu0
  %v3553 = vadd.f32 %v606, %v3552
  %v3554 = vpop.f32.mrb[0].mxu0
  %3555 = vmatprep.mubr.bf16.mxu0 0
  %3556 = vmatmul.mubr.bf16.gmra.mrb[0].mxu0 %v2283
  %v3557 = vpop.f32.mrb[0].mxu0
  %v3558 = vadd.f32 %v606, %v3557
  %v3559 = vpop.f32.mrb[0].mxu0
  %v3560 = vpop.f32.mrb[0].mxu0
  %v3561 = vadd.f32 %v606, %v3560
  %v3562 = vpop.f32.mrb[0].mxu0
  %3563 = vmatprep.mubr.bf16.mxu0 0
  %3564 = vmatmul.mubr.bf16.gmra.mrb[0].mxu0 %v2286
  %v3565 = vpop.f32.mrb[0].mxu0
  %v3566 = vadd.f32 %v606, %v3565
  %v3567 = vpop.f32.mrb[0].mxu0
  %v3568 = vpop.f32.mrb[0].mxu0
  %v3569 = vadd.f32 %v606, %v3568
  %v3570 = vpop.f32.mrb[0].mxu0
  %3571 = vmatprep.mubr.bf16.mxu0 0
  %3572 = vmatmul.mubr.bf16.gmra.mrb[0].mxu0 %v2289
  %v3573 = vpop.f32.mrb[0].mxu0
  %v3574 = vadd.f32 %v606, %v3573
  %v3575 = vpop.f32.mrb[0].mxu0
  %v3576 = vpop.f32.mrb[0].mxu0
  %v3577 = vadd.f32 %v606, %v3576
  %v3578 = vpop.f32.mrb[0].mxu0
  %3579 = vmatprep.mubr.bf16.mxu0 0
  %3580 = vmatmul.mubr.bf16.gmra.mrb[0].mxu0 %v2292
  %v3581 = vpop.f32.mrb[0].mxu0
  %v3582 = vadd.f32 %v606, %v3581
  %v3583 = vpop.f32.mrb[0].mxu0
  %v3584 = vpop.f32.mrb[0].mxu0
  %v3585 = vadd.f32 %v606, %v3584
  %v3586 = vpop.f32.mrb[0].mxu0
  %3587 = vmatprep.mubr.bf16.mxu0 0
  %3588 = vmatmul.mubr.bf16.gmra.mrb[0].mxu0 %v2295
  %v3589 = vpop.f32.mrb[0].mxu0
  %v3590 = vadd.f32 %v606, %v3589
  %v3591 = vpop.f32.mrb[0].mxu0
  %v3592 = vpop.f32.mrb[0].mxu0
  %v3593 = vadd.f32 %v606, %v3592
  %v3594 = vpop.f32.mrb[0].mxu0
  %3595 = vmatprep.mubr.bf16.mxu0 0
  %3596 = vmatmul.mubr.bf16.gmra.mrb[0].mxu0 %v2298
  %v3597 = vpop.f32.mrb[0].mxu0
  %v3598 = vadd.f32 %v606, %v3597
  %v3599 = vpop.f32.mrb[0].mxu0
  %v3600 = vpop.f32.mrb[0].mxu0
  %v3601 = vadd.f32 %v606, %v3600
  %v3602 = vpop.f32.mrb[0].mxu0
  %3603 = vmatprep.mubr.bf16.mxu0 0
  %3604 = vmatmul.mubr.bf16.gmra.mrb[0].mxu0 %v2301
  %v3605 = vpop.f32.mrb[0].mxu0
  %v3606 = vadd.f32 %v606, %v3605
  %v3607 = vpop.f32.mrb[0].mxu0
  %v3608 = vpop.f32.mrb[0].mxu0
  %v3609 = vadd.f32 %v606, %v3608
  %v3610 = vpop.f32.mrb[0].mxu0
  %3611 = vmatprep.mubr.bf16.mxu0 0
  %3612 = vmatmul.mubr.bf16.gmra.mrb[0].mxu0 %v2304
  %v3613 = vpop.f32.mrb[0].mxu0
  %v3614 = vadd.f32 %v606, %v3613
  %v3615 = vpop.f32.mrb[0].mxu0
  %v3616 = vpop.f32.mrb[0].mxu0
  %v3617 = vadd.f32 %v606, %v3616
  %v3618 = vpop.f32.mrb[0].mxu0
  %3619 = vmatprep.mubr.bf16.mxu0 0
  %3620 = vmatmul.mubr.bf16.gmra.mrb[0].mxu0 %v2307
  %v3621 = vpop.f32.mrb[0].mxu0
  %v3622 = vadd.f32 %v606, %v3621
  %v3623 = vpop.f32.mrb[0].mxu0
  %v3624 = vpop.f32.mrb[0].mxu0
  %v3625 = vadd.f32 %v606, %v3624
  %v3626 = vpop.f32.mrb[0].mxu0
  %3627 = vmatprep.mubr.bf16.mxu0 0
  %3628 = vmatmul.mubr.bf16.gmra.mrb[0].mxu0 %v2310
  %v3629 = vpop.f32.mrb[0].mxu0
  %v3630 = vadd.f32 %v606, %v3629
  %v3631 = vpop.f32.mrb[0].mxu0
  %v3632 = vpop.f32.mrb[0].mxu0
  %v3633 = vadd.f32 %v606, %v3632
  %v3634 = vpop.f32.mrb[0].mxu0
  %3635 = vmatprep.mubr.bf16.mxu0 0
  %3636 = vmatmul.mubr.bf16.gmra.mrb[0].mxu0 %v2313
  %v3637 = vpop.f32.mrb[0].mxu0
  %v3638 = vadd.f32 %v606, %v3637
  %v3639 = vpop.f32.mrb[0].mxu0
  %v3640 = vpop.f32.mrb[0].mxu0
  %v3641 = vadd.f32 %v606, %v3640
  %v3642 = vpop.f32.mrb[0].mxu0
  %3643 = vmatprep.mubr.bf16.mxu0 0
  %3644 = vmatmul.mubr.bf16.gmra.mrb[0].mxu0 %v2316
  %v3645 = vpop.f32.mrb[0].mxu0
  %v3646 = vadd.f32 %v606, %v3645
  %v3647 = vpop.f32.mrb[0].mxu0
  %v3648 = vpop.f32.mrb[0].mxu0
  %v3649 = vadd.f32 %v606, %v3648
  %v3650 = vpop.f32.mrb[0].mxu0
  %3651 = vmatprep.mubr.bf16.mxu0 0
  %3652 = vmatmul.mubr.bf16.gmra.mrb[0].mxu0 %v2319
  %v3653 = vpop.f32.mrb[0].mxu0
  %v3654 = vadd.f32 %v606, %v3653
  %v3655 = vpop.f32.mrb[0].mxu0
  %v3656 = vpop.f32.mrb[0].mxu0
  %v3657 = vadd.f32 %v606, %v3656
  %v3658 = vpop.f32.mrb[0].mxu0
  %3659 = vmatprep.mubr.bf16.mxu0 0
  %3660 = vmatmul.mubr.bf16.gmra.mrb[0].mxu0 %v2322
  %v3661 = vpop.f32.mrb[0].mxu0
  %v3662 = vadd.f32 %v606, %v3661
  %v3663 = vpop.f32.mrb[0].mxu0
  %v3664 = vpop.f32.mrb[0].mxu0
  %v3665 = vadd.f32 %v606, %v3664
  %v3666 = vpop.f32.mrb[0].mxu0
  %3667 = vmatprep.mubr.bf16.mxu0 0
  %3668 = vmatmul.mubr.bf16.gmra.mrb[0].mxu0 %v2325
  %v3669 = vpop.f32.mrb[0].mxu0
  %v3670 = vadd.f32 %v606, %v3669
  %v3671 = vpop.f32.mrb[0].mxu0
  %v3672 = vpop.f32.mrb[0].mxu0
  %v3673 = vadd.f32 %v606, %v3672
  %v3674 = vpop.f32.mrb[0].mxu0
  %3675 = vmatprep.mubr.bf16.mxu0 0
  %3676 = vmatmul.mubr.bf16.gmra.mrb[0].mxu0 %v2328
  %v3677 = vpop.f32.mrb[0].mxu0
  %v3678 = vadd.f32 %v606, %v3677
  %v3679 = vpop.f32.mrb[0].mxu0
  %v3680 = vpop.f32.mrb[0].mxu0
  %v3681 = vadd.f32 %v606, %v3680
  %v3682 = vpop.f32.mrb[0].mxu0
  %3683 = vmatprep.mubr.bf16.mxu0 0
  %3684 = vmatmul.mubr.bf16.gmra.mrb[0].mxu0 %v2331
  %v3685 = vpop.f32.mrb[0].mxu0
  %v3686 = vadd.f32 %v606, %v3685
  %v3687 = vpop.f32.mrb[0].mxu0
  %v3688 = vpop.f32.mrb[0].mxu0
  %v3689 = vadd.f32 %v606, %v3688
  %v3690 = vpop.f32.mrb[0].mxu0
  %3691 = vmatprep.mubr.bf16.mxu0 0
  %3692 = vmatmul.mubr.bf16.gmra.mrb[0].mxu0 %v2334
  %v3693 = vpop.f32.mrb[0].mxu0
  %v3694 = vadd.f32 %v606, %v3693
  %v3695 = vpop.f32.mrb[0].mxu0
  %v3696 = vpop.f32.mrb[0].mxu0
  %v3697 = vadd.f32 %v606, %v3696
  %v3698 = vpop.f32.mrb[0].mxu0
  %3699 = vmatprep.mubr.bf16.mxu0 0
  %3700 = vmatmul.mubr.bf16.gmra.mrb[0].mxu0 %v2337
  %v3701 = vpop.f32.mrb[0].mxu0
  %v3702 = vadd.f32 %v606, %v3701
  %v3703 = vpop.f32.mrb[0].mxu0
  %v3704 = vpop.f32.mrb[0].mxu0
  %v3705 = vadd.f32 %v606, %v3704
  %v3706 = vpop.f32.mrb[0].mxu0
  %3707 = vmatprep.mubr.bf16.mxu0 0
  %3708 = vmatmul.mubr.bf16.gmra.mrb[0].mxu0 %v2340
  %v3709 = vpop.f32.mrb[0].mxu0
  %v3710 = vadd.f32 %v606, %v3709
  %v3711 = vpop.f32.mrb[0].mxu0
  %v3712 = vpop.f32.mrb[0].mxu0
  %v3713 = vadd.f32 %v606, %v3712
  %v3714 = vpop.f32.mrb[0].mxu0
  %3715 = vmatprep.mubr.bf16.mxu0 0
  %3716 = vmatmul.mubr.bf16.gmra.mrb[0].mxu0 %v2343
  %v3717 = vpop.f32.mrb[0].mxu0
  %v3718 = vadd.f32 %v606, %v3717
  %v3719 = vpop.f32.mrb[0].mxu0
  %v3720 = vpop.f32.mrb[0].mxu0
  %v3721 = vadd.f32 %v606, %v3720
  %v3722 = vpop.f32.mrb[0].mxu0
  %3723 = vmatprep.mubr.bf16.mxu0 0
  %3724 = vmatmul.mubr.bf16.gmra.mrb[0].mxu0 %v2346
  %v3725 = vpop.f32.mrb[0].mxu0
  %v3726 = vadd.f32 %v606, %v3725
  %v3727 = vpop.f32.mrb[0].mxu0
  %v3728 = vpop.f32.mrb[0].mxu0
  %v3729 = vadd.f32 %v606, %v3728
  %v3730 = vpop.f32.mrb[0].mxu0
  %3731 = vmatprep.mubr.bf16.mxu0 0
  %3732 = vmatmul.mubr.bf16.gmra.mrb[0].mxu0 %v2349
  %v3733 = vpop.f32.mrb[0].mxu0
  %v3734 = vadd.f32 %v606, %v3733
  %v3735 = vpop.f32.mrb[0].mxu0
  %v3736 = vpop.f32.mrb[0].mxu0
  %v3737 = vadd.f32 %v606, %v3736
  %v3738 = vpop.f32.mrb[0].mxu0
  %3739 = vmatprep.mubr.bf16.mxu0 0
  %3740 = vmatmul.mubr.bf16.gmra.mrb[0].mxu0 %v2352
  %v3741 = vpop.f32.mrb[0].mxu0
  %v3742 = vadd.f32 %v606, %v3741
  %v3743 = vpop.f32.mrb[0].mxu0
  %v3744 = vpop.f32.mrb[0].mxu0
  %v3745 = vadd.f32 %v606, %v3744
  %v3746 = vpop.f32.mrb[0].mxu0
  %3747 = vmatprep.mubr.bf16.mxu0 0
  %3748 = vmatmul.mubr.bf16.gmra.mrb[0].mxu0 %v2355
  %v3749 = vpop.f32.mrb[0].mxu0
  %v3750 = vadd.f32 %v606, %v3749
  %v3751 = vpop.f32.mrb[0].mxu0
  %v3752 = vpop.f32.mrb[0].mxu0
  %v3753 = vadd.f32 %v606, %v3752
  %v3754 = vpop.f32.mrb[0].mxu0
  %3755 = vmatprep.mubr.bf16.mxu0 0
  %3756 = vmatmul.mubr.bf16.gmra.mrb[0].mxu0 %v2358
  %v3757 = vpop.f32.mrb[0].mxu0
  %v3758 = vadd.f32 %v606, %v3757
  %v3759 = vpop.f32.mrb[0].mxu0
  %v3760 = vpop.f32.mrb[0].mxu0
  %v3761 = vadd.f32 %v606, %v3760
  %v3762 = vpop.f32.mrb[0].mxu0
  %3763 = vmatprep.mubr.bf16.mxu0 0
  %3764 = vmatmul.mubr.bf16.gmra.mrb[0].mxu0 %v2361
  %v3765 = vpop.f32.mrb[0].mxu0
  %v3766 = vadd.f32 %v606, %v3765
  %v3767 = vpop.f32.mrb[0].mxu0
  %v3768 = vpop.f32.mrb[0].mxu0
  %v3769 = vadd.f32 %v606, %v3768
  %v3770 = vpop.f32.mrb[0].mxu0
  %3771 = vmatprep.mubr.bf16.mxu0 0
  %3772 = vmatmul.mubr.bf16.gmra.mrb[0].mxu0 %v2364
  %v3773 = vpop.f32.mrb[0].mxu0
  %v3774 = vadd.f32 %v606, %v3773
  %v3775 = vpop.f32.mrb[0].mxu0
  %v3776 = vpop.f32.mrb[0].mxu0
  %v3777 = vadd.f32 %v606, %v3776
  %v3778 = vpop.f32.mrb[0].mxu0
  %3779 = vmatprep.mubr.bf16.mxu0 0
  %3780 = vmatmul.mubr.bf16.gmra.mrb[0].mxu0 %v2367
  %v3781 = vpop.f32.mrb[0].mxu0
  %v3782 = vadd.f32 %v606, %v3781
  %v3783 = vpop.f32.mrb[0].mxu0
  %v3784 = vpop.f32.mrb[0].mxu0
  %v3785 = vadd.f32 %v606, %v3784
  %v3786 = vpop.f32.mrb[0].mxu0
  %3787 = vmatprep.mubr.bf16.mxu0 0
  %3788 = vmatmul.mubr.bf16.gmra.mrb[0].mxu0 %v2370
  %v3789 = vpop.f32.mrb[0].mxu0
  %v3790 = vadd.f32 %v606, %v3789
  %v3791 = vpop.f32.mrb[0].mxu0
  %v3792 = vpop.f32.mrb[0].mxu0
  %v3793 = vadd.f32 %v606, %v3792
  %v3794 = vpop.f32.mrb[0].mxu0
  %3795 = vmatprep.mubr.bf16.mxu0 0
  %3796 = vmatmul.mubr.bf16.gmra.mrb[0].mxu0 %v2373
  %v3797 = vpop.f32.mrb[0].mxu0
  %v3798 = vadd.f32 %v606, %v3797
  %v3799 = vpop.f32.mrb[0].mxu0
  %v3800 = vpop.f32.mrb[0].mxu0
  %v3801 = vadd.f32 %v606, %v3800
  %v3802 = vpop.f32.mrb[0].mxu0
  %3803 = vmatprep.mubr.bf16.mxu0 0
  %3804 = vmatmul.mubr.bf16.gmra.mrb[0].mxu0 %v2376
  %v3805 = vpop.f32.mrb[0].mxu0
  %v3806 = vadd.f32 %v606, %v3805
  %v3807 = vpop.f32.mrb[0].mxu0
  %v3808 = vpop.f32.mrb[0].mxu0
  %v3809 = vadd.f32 %v606, %v3808
  %v3810 = vpop.f32.mrb[0].mxu0
  %3811 = vmatprep.mubr.bf16.mxu0 0
  %3812 = vmatmul.mubr.bf16.gmra.mrb[0].mxu0 %v2379
  %v3813 = vpop.f32.mrb[0].mxu0
  %v3814 = vadd.f32 %v606, %v3813
  %v3815 = vpop.f32.mrb[0].mxu0
  %v3816 = vpop.f32.mrb[0].mxu0
  %v3817 = vadd.f32 %v606, %v3816
  %v3818 = vpop.f32.mrb[0].mxu0
  %3819 = vmatprep.mubr.bf16.mxu0 0
  %3820 = vmatmul.mubr.bf16.gmra.mrb[0].mxu0 %v2382
  %v3821 = vpop.f32.mrb[0].mxu0
  %v3822 = vadd.f32 %v606, %v3821
  %v3823 = vpop.f32.mrb[0].mxu0
  %v3824 = vpop.f32.mrb[0].mxu0
  %v3825 = vadd.f32 %v606, %v3824
  %v3826 = vpop.f32.mrb[0].mxu0
  %3827 = vmatprep.mubr.bf16.mxu0 0
  %3828 = vmatmul.mubr.bf16.gmra.mrb[0].mxu0 %v2385
  %v3829 = vpop.f32.mrb[0].mxu0
  %v3830 = vadd.f32 %v606, %v3829
  %v3831 = vpop.f32.mrb[0].mxu0
  %v3832 = vpop.f32.mrb[0].mxu0
  %v3833 = vadd.f32 %v606, %v3832
  %v3834 = vpop.f32.mrb[0].mxu0
  %3835 = vmatprep.mubr.bf16.mxu0 0
  %3836 = vmatmul.mubr.bf16.gmra.mrb[0].mxu0 %v2388
  %v3837 = vpop.f32.mrb[0].mxu0
  %v3838 = vadd.f32 %v606, %v3837
  %v3839 = vpop.f32.mrb[0].mxu0
  %v3840 = vpop.f32.mrb[0].mxu0
  %v3841 = vadd.f32 %v606, %v3840
  %v3842 = vpop.f32.mrb[0].mxu0
  %3843 = vmatprep.mubr.bf16.mxu0 0
  %3844 = vmatmul.mubr.bf16.gmra.mrb[0].mxu0 %v2391
  %v3845 = vpop.f32.mrb[0].mxu0
  %v3846 = vadd.f32 %v606, %v3845
  %v3847 = vpop.f32.mrb[0].mxu0
  %v3848 = vpop.f32.mrb[0].mxu0
  %v3849 = vadd.f32 %v606, %v3848
  %v3850 = vpop.f32.mrb[0].mxu0
  %3851 = vmatprep.mubr.bf16.mxu0 0
  %3852 = vmatmul.mubr.bf16.gmra.mrb[0].mxu0 %v2394
  %v3853 = vpop.f32.mrb[0].mxu0
  %v3854 = vadd.f32 %v606, %v3853
  %v3855 = vpop.f32.mrb[0].mxu0
  %v3856 = vpop.f32.mrb[0].mxu0
  %v3857 = vadd.f32 %v606, %v3856
  %v3858 = vpop.f32.mrb[0].mxu0
  %3859 = vmatprep.mubr.bf16.mxu0 0
  %3860 = vmatmul.mubr.bf16.gmra.mrb[0].mxu0 %v2397
  %v3861 = vpop.f32.mrb[0].mxu0
  %v3862 = vadd.f32 %v606, %v3861
  %v3863 = vpop.f32.mrb[0].mxu0
  %v3864 = vpop.f32.mrb[0].mxu0
  %v3865 = vadd.f32 %v606, %v3864
  %v3866 = vpop.f32.mrb[0].mxu0
  %3867 = vmatprep.mubr.bf16.mxu0 0
  %3868 = vmatmul.mubr.bf16.gmra.mrb[0].mxu0 %v2400
  %v3869 = vpop.f32.mrb[0].mxu0
  %v3870 = vadd.f32 %v606, %v3869
  %v3871 = vpop.f32.mrb[0].mxu0
  %v3872 = vpop.f32.mrb[0].mxu0
  %v3873 = vadd.f32 %v606, %v3872
  %v3874 = vpop.f32.mrb[0].mxu0
  %3875 = vmatprep.mubr.bf16.mxu0 0
  %3876 = vmatmul.mubr.bf16.gmra.mrb[0].mxu0 %v2403
  %v3877 = vpop.f32.mrb[0].mxu0
  %v3878 = vadd.f32 %v606, %v3877
  %v3879 = vpop.f32.mrb[0].mxu0
  %v3880 = vpop.f32.mrb[0].mxu0
  %v3881 = vadd.f32 %v606, %v3880
  %v3882 = vpop.f32.mrb[0].mxu0
  %3883 = vmatprep.mubr.bf16.mxu0 0
  %3884 = vmatmul.mubr.bf16.gmra.mrb[0].mxu0 %v2406
  %v3885 = vpop.f32.mrb[0].mxu0
  %v3886 = vadd.f32 %v606, %v3885
  %v3887 = vpop.f32.mrb[0].mxu0
  %v3888 = vpop.f32.mrb[0].mxu0
  %v3889 = vadd.f32 %v606, %v3888
  %v3890 = vpop.f32.mrb[0].mxu0
  %3891 = vmatprep.mubr.bf16.mxu0 0
  %3892 = vmatmul.mubr.bf16.gmra.mrb[0].mxu0 %v2409
  %v3893 = vpop.f32.mrb[0].mxu0
  %v3894 = vadd.f32 %v606, %v3893
  %v3895 = vpop.f32.mrb[0].mxu0
  %v3896 = vpop.f32.mrb[0].mxu0
  %v3897 = vadd.f32 %v606, %v3896
  %v3898 = vpop.f32.mrb[0].mxu0
  %3899 = vmatprep.mubr.bf16.mxu0 0
  %3900 = vmatmul.mubr.bf16.gmra.mrb[0].mxu0 %v2412
  %v3901 = vpop.f32.mrb[0].mxu0
  %v3902 = vadd.f32 %v606, %v3901
  %v3903 = vpop.f32.mrb[0].mxu0
  %v3904 = vpop.f32.mrb[0].mxu0
  %v3905 = vadd.f32 %v606, %v3904
  %v3906 = vpop.f32.mrb[0].mxu0
  %3907 = vmatprep.mubr.bf16.mxu0 0
  %3908 = vmatmul.mubr.bf16.gmra.mrb[0].mxu0 %v2415
  %v3909 = vpop.f32.mrb[0].mxu0
  %v3910 = vadd.f32 %v606, %v3909
  %v3911 = vpop.f32.mrb[0].mxu0
  %v3912 = vpop.f32.mrb[0].mxu0
  %v3913 = vadd.f32 %v606, %v3912
  %v3914 = vpop.f32.mrb[0].mxu0
  %3915 = vmatprep.mubr.bf16.mxu0 0
  %3916 = vmatmul.mubr.bf16.gmra.mrb[0].mxu0 %v2418
  %v3917 = vpop.f32.mrb[0].mxu0
  %v3918 = vadd.f32 %v606, %v3917
  %v3919 = vpop.f32.mrb[0].mxu0
  %v3920 = vpop.f32.mrb[0].mxu0
  %v3921 = vadd.f32 %v606, %v3920
  %v3922 = vpop.f32.mrb[0].mxu0
  %3923 = vmatprep.mubr.bf16.mxu0 0
  %3924 = vmatmul.mubr.bf16.gmra.mrb[0].mxu0 %v2421
  %v3925 = vpop.f32.mrb[0].mxu0
  %v3926 = vadd.f32 %v606, %v3925
  %v3927 = vpop.f32.mrb[0].mxu0
  %v3928 = vpop.f32.mrb[0].mxu0
  %v3929 = vadd.f32 %v606, %v3928
  %v3930 = vpop.f32.mrb[0].mxu0
  %3931 = vmatprep.mubr.bf16.mxu0 0
  %3932 = vmatmul.mubr.bf16.gmra.mrb[0].mxu0 %v2424
  %v3933 = vpop.f32.mrb[0].mxu0
  %v3934 = vadd.f32 %v606, %v3933
  %v3935 = vpop.f32.mrb[0].mxu0
  %v3936 = vpop.f32.mrb[0].mxu0
  %v3937 = vadd.f32 %v606, %v3936
  %v3938 = vpop.f32.mrb[0].mxu0
  %3939 = vmatprep.mubr.bf16.mxu0 0
  %3940 = vmatmul.mubr.bf16.gmra.mrb[0].mxu0 %v2427
  %v3941 = vpop.f32.mrb[0].mxu0
  %v3942 = vadd.f32 %v606, %v3941
  %v3943 = vpop.f32.mrb[0].mxu0
  %v3944 = vpop.f32.mrb[0].mxu0
  %v3945 = vadd.f32 %v606, %v3944
  %v3946 = vpop.f32.mrb[0].mxu0
  %3947 = vmatprep.mubr.bf16.mxu0 0
  %3948 = vmatmul.mubr.bf16.gmra.mrb[0].mxu0 %v2430
  %v3949 = vpop.f32.mrb[0].mxu0
  %v3950 = vadd.f32 %v606, %v3949
  %v3951 = vpop.f32.mrb[0].mxu0
  %v3952 = vpop.f32.mrb[0].mxu0
  %v3953 = vadd.f32 %v606, %v3952
  %v3954 = vpop.f32.mrb[0].mxu0
  %3955 = vmatprep.mubr.bf16.mxu0 0
  %3956 = vmatmul.mubr.bf16.gmra.mrb[0].mxu0 %v2433
  %v3957 = vpop.f32.mrb[0].mxu0
  %v3958 = vadd.f32 %v606, %v3957
  %v3959 = vpop.f32.mrb[0].mxu0
  %v3960 = vpop.f32.mrb[0].mxu0
  %v3961 = vadd.f32 %v606, %v3960
  %v3962 = vpop.f32.mrb[0].mxu0
  %3963 = vmatprep.mubr.bf16.mxu0 0
  %3964 = vmatmul.mubr.bf16.gmra.mrb[0].mxu0 %v2436
  %v3965 = vpop.f32.mrb[0].mxu0
  %v3966 = vadd.f32 %v606, %v3965
  %v3967 = vpop.f32.mrb[0].mxu0
  %v3968 = vpop.f32.mrb[0].mxu0
  %v3969 = vadd.f32 %v606, %v3968
  %v3970 = vpop.f32.mrb[0].mxu0
  %3971 = vmatprep.mubr.bf16.mxu0 0
  %3972 = vmatmul.mubr.bf16.gmra.mrb[0].mxu0 %v2439
  %v3973 = vpop.f32.mrb[0].mxu0
  %v3974 = vadd.f32 %v606, %v3973
  %v3975 = vpop.f32.mrb[0].mxu0
  %v3976 = vpop.f32.mrb[0].mxu0
  %v3977 = vadd.f32 %v606, %v3976
  %v3978 = vpop.f32.mrb[0].mxu0
  %3979 = vmatprep.mubr.bf16.mxu0 0
  %3980 = vmatmul.mubr.bf16.gmra.mrb[0].mxu0 %v2442
  %v3981 = vpop.f32.mrb[0].mxu0
  %v3982 = vadd.f32 %v606, %v3981
  %v3983 = vpop.f32.mrb[0].mxu0
  %v3984 = vpop.f32.mrb[0].mxu0
  %v3985 = vadd.f32 %v606, %v3984
  %v3986 = vpop.f32.mrb[0].mxu0
  %3987 = vmatprep.mubr.bf16.mxu0 0
  %3988 = vmatmul.mubr.bf16.gmra.mrb[0].mxu0 %v2445
  %v3989 = vpop.f32.mrb[0].mxu0
  %v3990 = vadd.f32 %v606, %v3989
  %v3991 = vpop.f32.mrb[0].mxu0
  %v3992 = vpop.f32.mrb[0].mxu0
  %v3993 = vadd.f32 %v606, %v3992
  %v3994 = vpop.f32.mrb[0].mxu0
  %3995 = vmatprep.mubr.bf16.mxu0 0
  %3996 = vmatmul.mubr.bf16.gmra.mrb[0].mxu0 %v2448
  %v3997 = vpop.f32.mrb[0].mxu0
  %v3998 = vadd.f32 %v606, %v3997
  %v3999 = vpop.f32.mrb[0].mxu0
  %v4000 = vpop.f32.mrb[0].mxu0
  %v4001 = vadd.f32 %v606, %v4000
  %v4002 = vpop.f32.mrb[0].mxu0
  %4003 = vmatprep.mubr.bf16.mxu0 0
  %4004 = vmatmul.mubr.bf16.gmra.mrb[0].mxu0 %v2451
  %v4005 = vpop.f32.mrb[0].mxu0
  %v4006 = vadd.f32 %v606, %v4005
  %v4007 = vpop.f32.mrb[0].mxu0
  %v4008 = vpop.f32.mrb[0].mxu0
  %v4009 = vadd.f32 %v606, %v4008
  %v4010 = vpop.f32.mrb[0].mxu0
  %4011 = vmatprep.mubr.bf16.mxu0 0
  %4012 = vmatmul.mubr.bf16.gmra.mrb[0].mxu0 %v2454
  %v4013 = vpop.f32.mrb[0].mxu0
  %v4014 = vadd.f32 %v606, %v4013
  %v4015 = vpop.f32.mrb[0].mxu0
  %v4016 = vpop.f32.mrb[0].mxu0
  %v4017 = vadd.f32 %v606, %v4016
  %v4018 = vpop.f32.mrb[0].mxu0
  %4019 = vmatprep.mubr.bf16.mxu0 0
  %4020 = vmatmul.mubr.bf16.gmra.mrb[0].mxu0 %v2457
  %v4021 = vpop.f32.mrb[0].mxu0
  %v4022 = vadd.f32 %v606, %v4021
  %v4023 = vpop.f32.mrb[0].mxu0
  %v4024 = vpop.f32.mrb[0].mxu0
  %v4025 = vadd.f32 %v606, %v4024
  %v4026 = vpop.f32.mrb[0].mxu0
  %4027 = vmatprep.mubr.bf16.mxu0 0
  %4028 = vmatmul.mubr.bf16.gmra.mrb[0].mxu0 %v2460
  %v4029 = vpop.f32.mrb[0].mxu0
  %v4030 = vadd.f32 %v606, %v4029
  %v4031 = vpop.f32.mrb[0].mxu0
  %v4032 = vpop.f32.mrb[0].mxu0
  %v4033 = vadd.f32 %v606, %v4032
  %v4034 = vpop.f32.mrb[0].mxu0
  %4035 = vmatprep.mubr.bf16.mxu0 0
  %4036 = vmatmul.mubr.bf16.gmra.mrb[0].mxu0 %v2463
  %v4037 = vpop.f32.mrb[0].mxu0
  %v4038 = vadd.f32 %v606, %v4037
  %v4039 = vpop.f32.mrb[0].mxu0
  %v4040 = vpop.f32.mrb[0].mxu0
  %v4041 = vadd.f32 %v606, %v4040
  %v4042 = vpop.f32.mrb[0].mxu0
  %4043 = vmatprep.mubr.bf16.mxu0 0
  %4044 = vmatmul.mubr.bf16.gmra.mrb[0].mxu0 %v2466
  %v4045 = vpop.f32.mrb[0].mxu0
  %v4046 = vadd.f32 %v606, %v4045
  %v4047 = vpop.f32.mrb[0].mxu0
  %v4048 = vpop.f32.mrb[0].mxu0
  %v4049 = vadd.f32 %v606, %v4048
  %v4050 = vpop.f32.mrb[0].mxu0
  %4051 = vmatprep.mubr.bf16.mxu0 0
  %4052 = vmatmul.mubr.bf16.gmra.mrb[0].mxu0 %v2469
  %v4053 = vpop.f32.mrb[0].mxu0
  %v4054 = vadd.f32 %v606, %v4053
  %v4055 = vpop.f32.mrb[0].mxu0
  %v4056 = vpop.f32.mrb[0].mxu0
  %v4057 = vadd.f32 %v606, %v4056
  %v4058 = vpop.f32.mrb[0].mxu0
  %4059 = vmatprep.mubr.bf16.mxu0 0
  %4060 = vmatmul.mubr.bf16.gmra.mrb[0].mxu0 %v2472
  %v4061 = vpop.f32.mrb[0].mxu0
  %v4062 = vadd.f32 %v606, %v4061
  %v4063 = vpop.f32.mrb[0].mxu0
  %v4064 = vpop.f32.mrb[0].mxu0
  %v4065 = vadd.f32 %v606, %v4064
  %v4066 = vpop.f32.mrb[0].mxu0
  %4067 = vmatprep.mubr.bf16.mxu0 0
  %4068 = vmatmul.mubr.bf16.gmra.mrb[0].mxu0 %v2475
  %v4069 = vpop.f32.mrb[0].mxu0
  %v4070 = vadd.f32 %v606, %v4069
  %v4071 = vpop.f32.mrb[0].mxu0
  %v4072 = vpop.f32.mrb[0].mxu0
  %v4073 = vadd.f32 %v606, %v4072
  %v4074 = vpop.f32.mrb[0].mxu0
  %4075 = vmatprep.mubr.bf16.mxu0 0
  %4076 = vmatmul.mubr.bf16.gmra.mrb[0].mxu0 %v2478
  %v4077 = vpop.f32.mrb[0].mxu0
  %v4078 = vadd.f32 %v606, %v4077
  %v4079 = vpop.f32.mrb[0].mxu0
  %v4080 = vpop.f32.mrb[0].mxu0
  %v4081 = vadd.f32 %v606, %v4080
  %v4082 = vpop.f32.mrb[0].mxu0
  %4083 = vmatprep.mubr.bf16.mxu0 0
  %4084 = vmatmul.mubr.bf16.gmra.mrb[0].mxu0 %v2481
  %v4085 = vpop.f32.mrb[0].mxu0
  %v4086 = vadd.f32 %v606, %v4085
  %v4087 = vpop.f32.mrb[0].mxu0
  %v4088 = vpop.f32.mrb[0].mxu0
  %v4089 = vadd.f32 %v606, %v4088
  %v4090 = vpop.f32.mrb[0].mxu0
  %4091 = vmatprep.mubr.bf16.mxu0 0
  %4092 = vmatmul.mubr.bf16.gmra.mrb[0].mxu0 %v2484
  %v4093 = vpop.f32.mrb[0].mxu0
  %v4094 = vadd.f32 %v606, %v4093
  %v4095 = vpop.f32.mrb[0].mxu0
  %v4096 = vpop.f32.mrb[0].mxu0
  %v4097 = vadd.f32 %v606, %v4096
  %v4098 = vpop.f32.mrb[0].mxu0
  %4099 = vmatprep.mubr.bf16.mxu0 0
  %4100 = vmatmul.mubr.bf16.gmra.mrb[0].mxu0 %v2487
  %v4101 = vpop.f32.mrb[0].mxu0
  %v4102 = vadd.f32 %v606, %v4101
  %v4103 = vpop.f32.mrb[0].mxu0
  %v4104 = vpop.f32.mrb[0].mxu0
  %v4105 = vadd.f32 %v606, %v4104
  %v4106 = vpop.f32.mrb[0].mxu0
  %4107 = vmatprep.mubr.bf16.mxu0 0
  %4108 = vmatmul.mubr.bf16.gmra.mrb[0].mxu0 %v2490
  %v4109 = vpop.f32.mrb[0].mxu0
  %v4110 = vadd.f32 %v606, %v4109
  %v4111 = vpop.f32.mrb[0].mxu0
  %v4112 = vpop.f32.mrb[0].mxu0
  %v4113 = vadd.f32 %v606, %v4112
  %v4114 = vpop.f32.mrb[0].mxu0
  %4115 = vmatprep.mubr.bf16.mxu0 0
  %4116 = vmatmul.mubr.bf16.gmra.mrb[0].mxu0 %v2493
  %v4117 = vpop.f32.mrb[0].mxu0
  %v4118 = vadd.f32 %v606, %v4117
  %v4119 = vpop.f32.mrb[0].mxu0
  %v4120 = vpop.f32.mrb[0].mxu0
  %v4121 = vadd.f32 %v606, %v4120
  %v4122 = vpop.f32.mrb[0].mxu0
  %4123 = vmatprep.mubr.bf16.mxu0 0
  %4124 = vmatmul.mubr.bf16.gmra.mrb[0].mxu0 %v2496
  %v4125 = vpop.f32.mrb[0].mxu0
  %v4126 = vadd.f32 %v606, %v4125
  %v4127 = vpop.f32.mrb[0].mxu0
  %v4128 = vpop.f32.mrb[0].mxu0
  %v4129 = vadd.f32 %v606, %v4128
  %v4130 = vpop.f32.mrb[0].mxu0
  %4131 = vmatprep.mubr.bf16.mxu0 0
  %4132 = vmatmul.mubr.bf16.gmra.mrb[0].mxu0 %v2499
  %v4133 = vpop.f32.mrb[0].mxu0
  %v4134 = vadd.f32 %v606, %v4133
  %v4135 = vpop.f32.mrb[0].mxu0
  %v4136 = vpop.f32.mrb[0].mxu0
  %v4137 = vadd.f32 %v606, %v4136
  %v4138 = vpop.f32.mrb[0].mxu0
  %4139 = vmatprep.mubr.bf16.mxu0 0
  %4140 = vmatmul.mubr.bf16.gmra.mrb[0].mxu0 %v2502
  %v4141 = vpop.f32.mrb[0].mxu0
  %v4142 = vadd.f32 %v606, %v4141
  %v4143 = vpop.f32.mrb[0].mxu0
  %v4144 = vpop.f32.mrb[0].mxu0
  %v4145 = vadd.f32 %v606, %v4144
  %v4146 = vpop.f32.mrb[0].mxu0
  %4147 = vmatprep.mubr.bf16.mxu0 0
  %4148 = vmatmul.mubr.bf16.gmra.mrb[0].mxu0 %v2505
  %v4149 = vpop.f32.mrb[0].mxu0
  %v4150 = vadd.f32 %v606, %v4149
  %v4151 = vpop.f32.mrb[0].mxu0
  %v4152 = vpop.f32.mrb[0].mxu0
  %v4153 = vadd.f32 %v606, %v4152
  %v4154 = vpop.f32.mrb[0].mxu0
  %4155 = vmatprep.mubr.bf16.mxu0 0
  %4156 = vmatmul.mubr.bf16.gmra.mrb[0].mxu0 %v2508
  %v4157 = vpop.f32.mrb[0].mxu0
  %v4158 = vadd.f32 %v606, %v4157
  %v4159 = vpop.f32.mrb[0].mxu0
  %v4160 = vpop.f32.mrb[0].mxu0
  %v4161 = vadd.f32 %v606, %v4160
  %v4162 = vpop.f32.mrb[0].mxu0
  %4163 = vmatprep.mubr.bf16.mxu0 0
  %4164 = vmatmul.mubr.bf16.gmra.mrb[0].mxu0 %v2511
  %v4165 = vpop.f32.mrb[0].mxu0
  %v4166 = vadd.f32 %v606, %v4165
  %v4167 = vpop.f32.mrb[0].mxu0
  %v4168 = vpop.f32.mrb[0].mxu0
  %v4169 = vadd.f32 %v606, %v4168
  %v4170 = vpop.f32.mrb[0].mxu0
  %4171 = vmatprep.mubr.bf16.mxu0 0
  %4172 = vmatmul.mubr.bf16.gmra.mrb[0].mxu0 %v2514
  %v4173 = vpop.f32.mrb[0].mxu0
  %v4174 = vadd.f32 %v606, %v4173
  %v4175 = vpop.f32.mrb[0].mxu0
  %v4176 = vpop.f32.mrb[0].mxu0
  %v4177 = vadd.f32 %v606, %v4176
  %v4178 = vpop.f32.mrb[0].mxu0
  %4179 = vmatprep.mubr.bf16.mxu0 0
  %4180 = vmatmul.mubr.bf16.gmra.mrb[0].mxu0 %v2517
  %v4181 = vpop.f32.mrb[0].mxu0
  %v4182 = vadd.f32 %v606, %v4181
  %v4183 = vpop.f32.mrb[0].mxu0
  %v4184 = vpop.f32.mrb[0].mxu0
  %v4185 = vadd.f32 %v606, %v4184
  %v4186 = vpop.f32.mrb[0].mxu0
  %4187 = vmatprep.mubr.bf16.mxu0 0
  %4188 = vmatmul.mubr.bf16.gmra.mrb[0].mxu0 %v2520
  %v4189 = vpop.f32.mrb[0].mxu0
  %v4190 = vadd.f32 %v606, %v4189
  %v4191 = vpop.f32.mrb[0].mxu0
  %v4192 = vpop.f32.mrb[0].mxu0
  %v4193 = vadd.f32 %v606, %v4192
  %v4194 = vpop.f32.mrb[0].mxu0
  %4195 = vmatprep.mubr.bf16.mxu0 0
  %4196 = vmatmul.mubr.bf16.gmra.mrb[0].mxu0 %v2523
  %v4197 = vpop.f32.mrb[0].mxu0
  %v4198 = vadd.f32 %v606, %v4197
  %v4199 = vpop.f32.mrb[0].mxu0
  %v4200 = vpop.f32.mrb[0].mxu0
  %v4201 = vadd.f32 %v606, %v4200
  %v4202 = vpop.f32.mrb[0].mxu0
  %4203 = vmatprep.mubr.bf16.mxu0 0
  %4204 = vmatmul.mubr.bf16.gmra.mrb[0].mxu0 %v2526
  %v4205 = vpop.f32.mrb[0].mxu0
  %v4206 = vadd.f32 %v606, %v4205
  %v4207 = vpop.f32.mrb[0].mxu0
  %v4208 = vpop.f32.mrb[0].mxu0
  %v4209 = vadd.f32 %v606, %v4208
  %v4210 = vpop.f32.mrb[0].mxu0
  %4211 = vmatprep.mubr.bf16.mxu0 0
  %4212 = vmatmul.mubr.bf16.gmra.mrb[0].mxu0 %v2529
  %v4213 = vpop.f32.mrb[0].mxu0
  %v4214 = vadd.f32 %v606, %v4213
  %v4215 = vpop.f32.mrb[0].mxu0
  %v4216 = vpop.f32.mrb[0].mxu0
  %v4217 = vadd.f32 %v606, %v4216
  %v4218 = vpop.f32.mrb[0].mxu0
  %4219 = vmatprep.mubr.bf16.mxu0 0
  %4220 = vmatmul.mubr.bf16.gmra.mrb[0].mxu0 %v2532
  %v4221 = vpop.f32.mrb[0].mxu0
  %v4222 = vadd.f32 %v606, %v4221
  %v4223 = vpop.f32.mrb[0].mxu0
  %v4224 = vpop.f32.mrb[0].mxu0
  %v4225 = vadd.f32 %v606, %v4224
  %v4226 = vpop.f32.mrb[0].mxu0
  %4227 = vmatprep.mubr.bf16.mxu0 0
  %4228 = vmatmul.mubr.bf16.gmra.mrb[0].mxu0 %v2535
  %v4229 = vpop.f32.mrb[0].mxu0
  %v4230 = vadd.f32 %v606, %v4229
  %v4231 = vpop.f32.mrb[0].mxu0
  %v4232 = vpop.f32.mrb[0].mxu0
  %v4233 = vadd.f32 %v606, %v4232
  %v4234 = vpop.f32.mrb[0].mxu0
  %4235 = vmatprep.mubr.bf16.mxu0 0
  %4236 = vmatmul.mubr.bf16.gmra.mrb[0].mxu0 %v2538
  %v4237 = vpop.f32.mrb[0].mxu0
  %v4238 = vadd.f32 %v606, %v4237
  %v4239 = vpop.f32.mrb[0].mxu0
  %v4240 = vpop.f32.mrb[0].mxu0
  %v4241 = vadd.f32 %v606, %v4240
  %v4242 = vpop.f32.mrb[0].mxu0
  %4243 = vmatprep.mubr.bf16.mxu0 0
  %4244 = vmatmul.mubr.bf16.gmra.mrb[0].mxu0 %v2541
  %v4245 = vpop.f32.mrb[0].mxu0
  %v4246 = vadd.f32 %v606, %v4245
  %v4247 = vpop.f32.mrb[0].mxu0
  %v4248 = vpop.f32.mrb[0].mxu0
  %v4249 = vadd.f32 %v606, %v4248
  %v4250 = vpop.f32.mrb[0].mxu0
  %4251 = vmatprep.mubr.bf16.mxu0 0
  %4252 = vmatmul.mubr.bf16.gmra.mrb[0].mxu0 %v2544
  %v4253 = vpop.f32.mrb[0].mxu0
  %v4254 = vadd.f32 %v606, %v4253
  %v4255 = vpop.f32.mrb[0].mxu0
  %v4256 = vpop.f32.mrb[0].mxu0
  %v4257 = vadd.f32 %v606, %v4256
  %v4258 = vpop.f32.mrb[0].mxu0
  %4259 = vmatprep.mubr.bf16.mxu0 0
  %4260 = vmatmul.mubr.bf16.gmra.mrb[0].mxu0 %v2547
  %v4261 = vpop.f32.mrb[0].mxu0
  %v4262 = vadd.f32 %v606, %v4261
  %v4263 = vpop.f32.mrb[0].mxu0
  %v4264 = vpop.f32.mrb[0].mxu0
  %v4265 = vadd.f32 %v606, %v4264
  %v4266 = vpop.f32.mrb[0].mxu0
  %4267 = vmatprep.mubr.bf16.mxu0 0
  %4268 = vmatmul.mubr.bf16.gmra.mrb[0].mxu0 %v2550
  %v4269 = vpop.f32.mrb[0].mxu0
  %v4270 = vadd.f32 %v606, %v4269
  %v4271 = vpop.f32.mrb[0].mxu0
  %v4272 = vpop.f32.mrb[0].mxu0
  %v4273 = vadd.f32 %v606, %v4272
  %v4274 = vpop.f32.mrb[0].mxu0
  %4275 = vmatprep.mubr.bf16.mxu0 0
  %4276 = vmatmul.mubr.bf16.gmra.mrb[0].mxu0 %v2553
  %v4277 = vpop.f32.mrb[0].mxu0
  %v4278 = vadd.f32 %v606, %v4277
  %v4279 = vpop.f32.mrb[0].mxu0
  %v4280 = vpop.f32.mrb[0].mxu0
  %v4281 = vadd.f32 %v606, %v4280
  %v4282 = vpop.f32.mrb[0].mxu0
  %4283 = vmatprep.mubr.bf16.mxu0 0
  %4284 = vmatmul.mubr.bf16.gmra.mrb[0].mxu0 %v2556
  %v4285 = vpop.f32.mrb[0].mxu0
  %v4286 = vadd.f32 %v606, %v4285
  %v4287 = vpop.f32.mrb[0].mxu0
  %v4288 = vpop.f32.mrb[0].mxu0
  %v4289 = vadd.f32 %v606, %v4288
  %v4290 = vpop.f32.mrb[0].mxu0
  %4291 = vmatprep.mubr.bf16.mxu0 0
  %4292 = vmatmul.mubr.bf16.gmra.mrb[0].mxu0 %v2559
  %v4293 = vpop.f32.mrb[0].mxu0
  %v4294 = vadd.f32 %v606, %v4293
  %v4295 = vpop.f32.mrb[0].mxu0
  %v4296 = vpop.f32.mrb[0].mxu0
  %v4297 = vadd.f32 %v606, %v4296
  %v4298 = vpop.f32.mrb[0].mxu0
  %4299 = vmatprep.mubr.bf16.mxu0 0
  %4300 = vmatmul.mubr.bf16.gmra.mrb[0].mxu0 %v2562
  %v4301 = vpop.f32.mrb[0].mxu0
  %v4302 = vadd.f32 %v606, %v4301
  %v4303 = vpop.f32.mrb[0].mxu0
  %v4304 = vpop.f32.mrb[0].mxu0
  %v4305 = vadd.f32 %v606, %v4304
  %v4306 = vpop.f32.mrb[0].mxu0
  %4307 = vmatprep.mubr.bf16.mxu0 0
  %4308 = vmatmul.mubr.bf16.gmra.mrb[0].mxu0 %v2565
  %v4309 = vpop.f32.mrb[0].mxu0
  %v4310 = vadd.f32 %v606, %v4309
  %v4311 = vpop.f32.mrb[0].mxu0
  %v4312 = vpop.f32.mrb[0].mxu0
  %v4313 = vadd.f32 %v606, %v4312
  %v4314 = vpop.f32.mrb[0].mxu0
  %4315 = vmatprep.mubr.bf16.mxu0 0
  %4316 = vmatmul.mubr.bf16.gmra.mrb[0].mxu0 %v2568
  %v4317 = vpop.f32.mrb[0].mxu0
  %v4318 = vadd.f32 %v606, %v4317
  %v4319 = vpop.f32.mrb[0].mxu0
  %v4320 = vpop.f32.mrb[0].mxu0
  %v4321 = vadd.f32 %v606, %v4320
  %v4322 = vpop.f32.mrb[0].mxu0
  %4323 = vmatprep.mubr.bf16.mxu0 0
  %4324 = vmatmul.mubr.bf16.gmra.mrb[0].mxu0 %v2571
  %v4325 = vpop.f32.mrb[0].mxu0
  %v4326 = vadd.f32 %v606, %v4325
  %v4327 = vpop.f32.mrb[0].mxu0
  %v4328 = vpop.f32.mrb[0].mxu0
  %v4329 = vadd.f32 %v606, %v4328
  %v4330 = vpop.f32.mrb[0].mxu0
  %4331 = vmatprep.mubr.bf16.mxu0 0
  %4332 = vmatmul.mubr.bf16.gmra.mrb[0].mxu0 %v2574
  %v4333 = vpop.f32.mrb[0].mxu0
  %v4334 = vadd.f32 %v606, %v4333
  %v4335 = vpop.f32.mrb[0].mxu0
  %v4336 = vpop.f32.mrb[0].mxu0
  %v4337 = vadd.f32 %v606, %v4336
  %v4338 = vpop.f32.mrb[0].mxu0
  %4339 = vmatprep.mubr.bf16.mxu0 0
  %4340 = vmatmul.mubr.bf16.gmra.mrb[0].mxu0 %v2577
  %v4341 = vpop.f32.mrb[0].mxu0
  %v4342 = vadd.f32 %v606, %v4341
  %v4343 = vpop.f32.mrb[0].mxu0
  %v4344 = vpop.f32.mrb[0].mxu0
  %v4345 = vadd.f32 %v606, %v4344
  %v4346 = vpop.f32.mrb[0].mxu0
  %4347 = vmatprep.mubr.bf16.mxu0 0
  %4348 = vmatmul.mubr.bf16.gmra.mrb[0].mxu0 %v2580
  %v4349 = vpop.f32.mrb[0].mxu0
  %v4350 = vadd.f32 %v606, %v4349
  %v4351 = vpop.f32.mrb[0].mxu0
  %v4352 = vpop.f32.mrb[0].mxu0
  %v4353 = vadd.f32 %v606, %v4352
  %v4354 = vpop.f32.mrb[0].mxu0
  %4355 = vmatprep.mubr.bf16.mxu0 0
  %4356 = vmatmul.mubr.bf16.gmra.mrb[0].mxu0 %v2583
  %v4357 = vpop.f32.mrb[0].mxu0
  %v4358 = vadd.f32 %v606, %v4357
  %v4359 = vpop.f32.mrb[0].mxu0
  %v4360 = vpop.f32.mrb[0].mxu0
  %v4361 = vadd.f32 %v606, %v4360
  %v4362 = vpop.f32.mrb[0].mxu0
  %4363 = vmatprep.mubr.bf16.mxu0 0
  %4364 = vmatmul.mubr.bf16.gmra.mrb[0].mxu0 %v2586
  %v4365 = vpop.f32.mrb[0].mxu0
  %v4366 = vadd.f32 %v606, %v4365
  %v4367 = vpop.f32.mrb[0].mxu0
  %v4368 = vpop.f32.mrb[0].mxu0
  %v4369 = vadd.f32 %v606, %v4368
  %v4370 = vpop.f32.mrb[0].mxu0
  %4371 = vmatprep.mubr.bf16.mxu0 0
  %4372 = vmatmul.mubr.bf16.gmra.mrb[0].mxu0 %v2589
  %v4373 = vpop.f32.mrb[0].mxu0
  %v4374 = vadd.f32 %v606, %v4373
  %v4375 = vpop.f32.mrb[0].mxu0
  %v4376 = vpop.f32.mrb[0].mxu0
  %v4377 = vadd.f32 %v606, %v4376
  %v4378 = vpop.f32.mrb[0].mxu0
  %4379 = vmatprep.mubr.bf16.mxu0 0
  %4380 = vmatmul.mubr.bf16.gmra.mrb[0].mxu0 %v2592
  %v4381 = vpop.f32.mrb[0].mxu0
  %v4382 = vadd.f32 %v606, %v4381
  %v4383 = vpop.f32.mrb[0].mxu0
  %v4384 = vpop.f32.mrb[0].mxu0
  %v4385 = vadd.f32 %v606, %v4384
  %v4386 = vpop.f32.mrb[0].mxu0
  %4387 = vmatprep.mubr.bf16.mxu0 0
  %4388 = vmatmul.mubr.bf16.gmra.mrb[0].mxu0 %v2595
  %v4389 = vpop.f32.mrb[0].mxu0
  %v4390 = vadd.f32 %v606, %v4389
  %v4391 = vpop.f32.mrb[0].mxu0
  %v4392 = vpop.f32.mrb[0].mxu0
  %v4393 = vadd.f32 %v606, %v4392
  %v4394 = vpop.f32.mrb[0].mxu0
  %4395 = vmatprep.mubr.bf16.mxu0 0
  %4396 = vmatmul.mubr.bf16.gmra.mrb[0].mxu0 %v2598
  %v4397 = vpop.f32.mrb[0].mxu0
  %v4398 = vadd.f32 %v606, %v4397
  %v4399 = vpop.f32.mrb[0].mxu0
  %v4400 = vpop.f32.mrb[0].mxu0
  %v4401 = vadd.f32 %v606, %v4400
  %v4402 = vpop.f32.mrb[0].mxu0
  %4403 = vmatprep.mubr.bf16.mxu0 0
  %4404 = vmatmul.mubr.bf16.gmra.mrb[0].mxu0 %v2601
  %v4405 = vpop.f32.mrb[0].mxu0
  %v4406 = vadd.f32 %v606, %v4405
  %v4407 = vpop.f32.mrb[0].mxu0
  %v4408 = vpop.f32.mrb[0].mxu0
  %v4409 = vadd.f32 %v606, %v4408
  %v4410 = vpop.f32.mrb[0].mxu0
  %4411 = vmatprep.mubr.bf16.mxu0 0
  %4412 = vmatmul.mubr.bf16.gmra.mrb[0].mxu0 %v2604
  %v4413 = vpop.f32.mrb[0].mxu0
  %v4414 = vadd.f32 %v606, %v4413
  %v4415 = vpop.f32.mrb[0].mxu0
  %v4416 = vpop.f32.mrb[0].mxu0
  %v4417 = vadd.f32 %v606, %v4416
  %v4418 = vpop.f32.mrb[0].mxu0
  %4419 = vmatprep.mubr.bf16.mxu0 0
  %4420 = vmatmul.mubr.bf16.gmra.mrb[0].mxu0 %v2607
  %v4421 = vpop.f32.mrb[0].mxu0
  %v4422 = vadd.f32 %v606, %v4421
  %v4423 = vpop.f32.mrb[0].mxu0
  %v4424 = vpop.f32.mrb[0].mxu0
  %v4425 = vadd.f32 %v606, %v4424
  %v4426 = vpop.f32.mrb[0].mxu0
  %4427 = vmatprep.mubr.bf16.mxu0 0
  %4428 = vmatmul.mubr.bf16.gmra.mrb[0].mxu0 %v2610
  %v4429 = vpop.f32.mrb[0].mxu0
  %v4430 = vadd.f32 %v606, %v4429
  %v4431 = vpop.f32.mrb[0].mxu0
  %v4432 = vpop.f32.mrb[0].mxu0
  %v4433 = vadd.f32 %v606, %v4432
  %v4434 = vpop.f32.mrb[0].mxu0
  %4435 = vmatprep.mubr.bf16.mxu0 0
  %4436 = vmatmul.mubr.bf16.gmra.mrb[0].mxu0 %v2613
  %v4437 = vpop.f32.mrb[0].mxu0
  %v4438 = vadd.f32 %v606, %v4437
  %v4439 = vpop.f32.mrb[0].mxu0
  %v4440 = vpop.f32.mrb[0].mxu0
  %v4441 = vadd.f32 %v606, %v4440
  %v4442 = vpop.f32.mrb[0].mxu0
  %4443 = vmatprep.mubr.bf16.mxu0 0
  %4444 = vmatmul.mubr.bf16.gmra.mrb[0].mxu0 %v2616
  %v4445 = vpop.f32.mrb[0].mxu0
  %v4446 = vadd.f32 %v606, %v4445
  %v4447 = vpop.f32.mrb[0].mxu0
  %v4448 = vpop.f32.mrb[0].mxu0
  %v4449 = vadd.f32 %v606, %v4448
  %v4450 = vpop.f32.mrb[0].mxu0
  %4451 = vmatprep.mubr.bf16.mxu0 0
  %4452 = vmatmul.mubr.bf16.gmra.mrb[0].mxu0 %v2619
  %v4453 = vpop.f32.mrb[0].mxu0
  %v4454 = vadd.f32 %v606, %v4453
  %v4455 = vpop.f32.mrb[0].mxu0
  %v4456 = vpop.f32.mrb[0].mxu0
  %v4457 = vadd.f32 %v606, %v4456
  %v4458 = vpop.f32.mrb[0].mxu0
  %4459 = vmatprep.mubr.bf16.mxu0 0
  %4460 = vmatmul.mubr.bf16.gmra.mrb[0].mxu0 %v2622
  %v4461 = vpop.f32.mrb[0].mxu0
  %v4462 = vadd.f32 %v606, %v4461
  %v4463 = vpop.f32.mrb[0].mxu0
  %v4464 = vpop.f32.mrb[0].mxu0
  %v4465 = vadd.f32 %v606, %v4464
  %v4466 = vpop.f32.mrb[0].mxu0
  %4467 = vmatprep.mubr.bf16.mxu0 0
  %4468 = vmatmul.mubr.bf16.gmra.mrb[0].mxu0 %v2625
  %v4469 = vpop.f32.mrb[0].mxu0
  %v4470 = vadd.f32 %v606, %v4469
  %v4471 = vpop.f32.mrb[0].mxu0
  %v4472 = vpop.f32.mrb[0].mxu0
  %v4473 = vadd.f32 %v606, %v4472
  %v4474 = vpop.f32.mrb[0].mxu0
  %4475 = vmatprep.mubr.bf16.mxu0 0
  %4476 = vmatmul.mubr.bf16.gmra.mrb[0].mxu0 %v2628
  %v4477 = vpop.f32.mrb[0].mxu0
  %v4478 = vadd.f32 %v606, %v4477
  %v4479 = vpop.f32.mrb[0].mxu0
  %v4480 = vpop.f32.mrb[0].mxu0
  %v4481 = vadd.f32 %v606, %v4480
  %v4482 = vpop.f32.mrb[0].mxu0
  %4483 = vmatprep.mubr.bf16.mxu0 0
  %4484 = vmatmul.mubr.bf16.gmra.mrb[0].mxu0 %v2631
  %v4485 = vpop.f32.mrb[0].mxu0
  %v4486 = vadd.f32 %v606, %v4485
  %v4487 = vpop.f32.mrb[0].mxu0
  %v4488 = vpop.f32.mrb[0].mxu0
  %v4489 = vadd.f32 %v606, %v4488
  %v4490 = vpop.f32.mrb[0].mxu0
  %4491 = vmatprep.mubr.bf16.mxu0 0
  %4492 = vmatmul.mubr.bf16.gmra.mrb[0].mxu0 %v2634
  %v4493 = vpop.f32.mrb[0].mxu0
  %v4494 = vadd.f32 %v606, %v4493
  %v4495 = vpop.f32.mrb[0].mxu0
  %v4496 = vpop.f32.mrb[0].mxu0
  %v4497 = vadd.f32 %v606, %v4496
  %v4498 = vpop.f32.mrb[0].mxu0
  %4499 = vmatprep.mubr.bf16.mxu0 0
  %4500 = vmatmul.mubr.bf16.gmra.mrb[0].mxu0 %v2637
  %v4501 = vpop.f32.mrb[0].mxu0
  %v4502 = vadd.f32 %v606, %v4501
  %v4503 = vpop.f32.mrb[0].mxu0
  %v4504 = vpop.f32.mrb[0].mxu0
  %v4505 = vadd.f32 %v606, %v4504
  %v4506 = vpop.f32.mrb[0].mxu0
  %4507 = vmatprep.mubr.bf16.mxu0 0
  %4508 = vmatmul.mubr.bf16.gmra.mrb[0].mxu0 %v2640
  %v4509 = vpop.f32.mrb[0].mxu0
  %v4510 = vadd.f32 %v606, %v4509
  %v4511 = vpop.f32.mrb[0].mxu0
  %v4512 = vpop.f32.mrb[0].mxu0
  %v4513 = vadd.f32 %v606, %v4512
  %v4514 = vpop.f32.mrb[0].mxu0
  %4515 = vmatprep.mubr.bf16.mxu0 0
  %4516 = vmatmul.mubr.bf16.gmra.mrb[0].mxu0 %v2643
  %v4517 = vpop.f32.mrb[0].mxu0
  %v4518 = vadd.f32 %v606, %v4517
  %v4519 = vpop.f32.mrb[0].mxu0
  %v4520 = vpop.f32.mrb[0].mxu0
  %v4521 = vadd.f32 %v606, %v4520
  %v4522 = vpop.f32.mrb[0].mxu0
  %4523 = vmatprep.mubr.bf16.mxu0 0
  %4524 = vmatmul.mubr.bf16.gmra.mrb[0].mxu0 %v2646
  %v4525 = vpop.f32.mrb[0].mxu0
  %v4526 = vadd.f32 %v606, %v4525
  %v4527 = vpop.f32.mrb[0].mxu0
  %v4528 = vpop.f32.mrb[0].mxu0
  %v4529 = vadd.f32 %v606, %v4528
  %v4530 = vpop.f32.mrb[0].mxu0
  %4531 = vmatprep.mubr.bf16.mxu0 0
  %4532 = vmatmul.mubr.bf16.gmra.mrb[0].mxu0 %v2649
  %v4533 = vpop.f32.mrb[0].mxu0
  %v4534 = vadd.f32 %v606, %v4533
  %v4535 = vpop.f32.mrb[0].mxu0
  %v4536 = vpop.f32.mrb[0].mxu0
  %v4537 = vadd.f32 %v606, %v4536
  %v4538 = vpop.f32.mrb[0].mxu0
  %4539 = vmatprep.mubr.bf16.mxu0 0
  %4540 = vmatmul.mubr.bf16.gmra.mrb[0].mxu0 %v2652
  %v4541 = vpop.f32.mrb[0].mxu0
  %v4542 = vadd.f32 %v606, %v4541
  %v4543 = vpop.f32.mrb[0].mxu0
  %v4544 = vpop.f32.mrb[0].mxu0
  %v4545 = vadd.f32 %v606, %v4544
  %v4546 = vpop.f32.mrb[0].mxu0
  %4547 = vmatprep.mubr.bf16.mxu0 0
  %4548 = vmatmul.mubr.bf16.gmra.mrb[0].mxu0 %v2655
  %v4549 = vpop.f32.mrb[0].mxu0
  %v4550 = vadd.f32 %v606, %v4549
  %v4551 = vpop.f32.mrb[0].mxu0
  %v4552 = vpop.f32.mrb[0].mxu0
  %v4553 = vadd.f32 %v606, %v4552
  %v4554 = vpop.f32.mrb[0].mxu0
  %4555 = vmatprep.mubr.bf16.mxu0 0
  %4556 = vmatmul.mubr.bf16.gmra.mrb[0].mxu0 %v2658
  %v4557 = vpop.f32.mrb[0].mxu0
  %v4558 = vadd.f32 %v606, %v4557
  %v4559 = vpop.f32.mrb[0].mxu0
  %v4560 = vpop.f32.mrb[0].mxu0
  %v4561 = vadd.f32 %v606, %v4560
  %v4562 = vpop.f32.mrb[0].mxu0
  %4563 = vmatprep.mubr.bf16.mxu0 0
  %4564 = vmatmul.mubr.bf16.gmra.mrb[0].mxu0 %v2661
  %v4565 = vpop.f32.mrb[0].mxu0
  %v4566 = vadd.f32 %v606, %v4565
  %v4567 = vpop.f32.mrb[0].mxu0
  %v4568 = vpop.f32.mrb[0].mxu0
  %v4569 = vadd.f32 %v606, %v4568
  %v4570 = vpop.f32.mrb[0].mxu0
  %4571 = vmatprep.mubr.bf16.mxu0 0
  %4572 = vmatmul.mubr.bf16.gmra.mrb[0].mxu0 %v2664
  %v4573 = vpop.f32.mrb[0].mxu0
  %v4574 = vadd.f32 %v606, %v4573
  %v4575 = vpop.f32.mrb[0].mxu0
  %v4576 = vpop.f32.mrb[0].mxu0
  %v4577 = vadd.f32 %v606, %v4576
  %v4578 = vpop.f32.mrb[0].mxu0
  %4579 = vmatprep.mubr.bf16.mxu0 0
  %4580 = vmatmul.mubr.bf16.gmra.mrb[0].mxu0 %v2667
  %v4581 = vpop.f32.mrb[0].mxu0
  %v4582 = vadd.f32 %v606, %v4581
  %v4583 = vpop.f32.mrb[0].mxu0
  %v4584 = vpop.f32.mrb[0].mxu0
  %v4585 = vadd.f32 %v606, %v4584
  %v4586 = vpop.f32.mrb[0].mxu0
  %4587 = vmatprep.mubr.bf16.mxu0 0
  %4588 = vmatmul.mubr.bf16.gmra.mrb[0].mxu0 %v2670
  %v4589 = vpop.f32.mrb[0].mxu0
  %v4590 = vadd.f32 %v606, %v4589
  %v4591 = vpop.f32.mrb[0].mxu0
  %v4592 = vpop.f32.mrb[0].mxu0
  %v4593 = vadd.f32 %v606, %v4592
  %v4594 = vpop.f32.mrb[0].mxu0
  %4595 = vmatprep.mubr.bf16.mxu0 0
  %4596 = vmatmul.mubr.bf16.gmra.mrb[0].mxu0 %v2673
  %v4597 = vpop.f32.mrb[0].mxu0
  %v4598 = vadd.f32 %v606, %v4597
  %v4599 = vpop.f32.mrb[0].mxu0
  %v4600 = vpop.f32.mrb[0].mxu0
  %v4601 = vadd.f32 %v606, %v4600
  %v4602 = vpop.f32.mrb[0].mxu0
  %4603 = vmatprep.mubr.bf16.mxu0 0
  %4604 = vmatmul.mubr.bf16.gmra.mrb[0].mxu0 %v2676
  %v4605 = vpop.f32.mrb[0].mxu0
  %v4606 = vadd.f32 %v606, %v4605
  %v4607 = vpop.f32.mrb[0].mxu0
  %v4608 = vpop.f32.mrb[0].mxu0
  %v4609 = vadd.f32 %v606, %v4608
  %v4610 = vpop.f32.mrb[0].mxu0
  %4611 = vmatprep.mubr.bf16.mxu0 0
  %4612 = vmatmul.mubr.bf16.gmra.mrb[0].mxu0 %v2679
  %v4613 = vpop.f32.mrb[0].mxu0
  %v4614 = vadd.f32 %v606, %v4613
  %v4615 = vpop.f32.mrb[0].mxu0
  %v4616 = vpop.f32.mrb[0].mxu0
  %v4617 = vadd.f32 %v606, %v4616
  %v4618 = vpop.f32.mrb[0].mxu0
  %4619 = vmatprep.mubr.bf16.mxu0 0
  %4620 = vmatmul.mubr.bf16.gmra.mrb[0].mxu0 %v2682
  %v4621 = vpop.f32.mrb[0].mxu0
  %v4622 = vadd.f32 %v606, %v4621
  %v4623 = vpop.f32.mrb[0].mxu0
  %v4624 = vpop.f32.mrb[0].mxu0
  %v4625 = vadd.f32 %v606, %v4624
  %v4626 = vpop.f32.mrb[0].mxu0
  %4627 = vmatprep.mubr.bf16.mxu0 0
  %4628 = vmatmul.mubr.bf16.gmra.mrb[0].mxu0 %v2685
  %v4629 = vpop.f32.mrb[0].mxu0
  %v4630 = vadd.f32 %v606, %v4629
  %v4631 = vpop.f32.mrb[0].mxu0
  %v4632 = vpop.f32.mrb[0].mxu0
  %v4633 = vadd.f32 %v606, %v4632
  %v4634 = vpop.f32.mrb[0].mxu0
  %4635 = vmatprep.mubr.bf16.mxu0 0
  %4636 = vmatmul.mubr.bf16.gmra.mrb[0].mxu0 %v2688
  %v4637 = vpop.f32.mrb[0].mxu0
  %v4638 = vadd.f32 %v606, %v4637
  %v4639 = vpop.f32.mrb[0].mxu0
  %v4640 = vpop.f32.mrb[0].mxu0
  %v4641 = vadd.f32 %v606, %v4640
  %v4642 = vpop.f32.mrb[0].mxu0
  %4643 = vmatprep.mubr.bf16.mxu0 0
  %4644 = vmatmul.mubr.bf16.gmra.mrb[0].mxu0 %v2691
  %v4645 = vpop.f32.mrb[0].mxu0
  %v4646 = vadd.f32 %v606, %v4645
  %v4647 = vpop.f32.mrb[0].mxu0
  %v4648 = vpop.f32.mrb[0].mxu0
  %v4649 = vadd.f32 %v606, %v4648
  %v4650 = vpop.f32.mrb[0].mxu0
  %4651 = vmatprep.mubr.bf16.mxu0 0
  %4652 = vmatmul.mubr.bf16.gmra.mrb[0].mxu0 %v2694
  %v4653 = vpop.f32.mrb[0].mxu0
  %v4654 = vadd.f32 %v606, %v4653
  %v4655 = vpop.f32.mrb[0].mxu0
  %v4656 = vpop.f32.mrb[0].mxu0
  %v4657 = vadd.f32 %v606, %v4656
  %v4658 = vpop.f32.mrb[0].mxu0
  %4659 = vmatprep.mubr.bf16.mxu0 0
  %4660 = vmatmul.mubr.bf16.gmra.mrb[0].mxu0 %v2697
  %v4661 = vpop.f32.mrb[0].mxu0
  %v4662 = vadd.f32 %v606, %v4661
  %v4663 = vpop.f32.mrb[0].mxu0
  %v4664 = vpop.f32.mrb[0].mxu0
  %v4665 = vadd.f32 %v606, %v4664
  %v4666 = vpop.f32.mrb[0].mxu0
  %4667 = vmatprep.mubr.bf16.mxu0 0
  %4668 = vmatmul.mubr.bf16.gmra.mrb[0].mxu0 %v2700
  %v4669 = vpop.f32.mrb[0].mxu0
  %v4670 = vadd.f32 %v606, %v4669
  %v4671 = vpop.f32.mrb[0].mxu0
  %v4672 = vpop.f32.mrb[0].mxu0
  %v4673 = vadd.f32 %v606, %v4672
  %v4674 = vpop.f32.mrb[0].mxu0
  %4675 = vmatprep.mubr.bf16.mxu0 0
  %4676 = vmatmul.mubr.bf16.gmra.mrb[0].mxu0 %v2703
  %v4677 = vpop.f32.mrb[0].mxu0
  %v4678 = vadd.f32 %v606, %v4677
  %v4679 = vpop.f32.mrb[0].mxu0
  %v4680 = vpop.f32.mrb[0].mxu0
  %v4681 = vadd.f32 %v606, %v4680
  %v4682 = vpop.f32.mrb[0].mxu0
  %4683 = vmatprep.mubr.bf16.mxu0 0
  %4684 = vmatmul.mubr.bf16.gmra.mrb[0].mxu0 %v2706
  %v4685 = vpop.f32.mrb[0].mxu0
  %v4686 = vadd.f32 %v606, %v4685
  %v4687 = vpop.f32.mrb[0].mxu0
  %v4688 = vpop.f32.mrb[0].mxu0
  %v4689 = vadd.f32 %v606, %v4688
  %v4690 = vpop.f32.mrb[0].mxu0
  %4691 = vmatprep.mubr.bf16.mxu0 0
  %4692 = vmatmul.mubr.bf16.gmra.mrb[0].mxu0 %v2709
  %v4693 = vpop.f32.mrb[0].mxu0
  %v4694 = vadd.f32 %v606, %v4693
  %v4695 = vpop.f32.mrb[0].mxu0
  %v4696 = vpop.f32.mrb[0].mxu0
  %v4697 = vadd.f32 %v606, %v4696
  %v4698 = vpop.f32.mrb[0].mxu0
  %4699 = vmatprep.mubr.bf16.mxu0 0
  %4700 = vmatmul.mubr.bf16.gmra.mrb[0].mxu0 %v2712
  %v4701 = vpop.f32.mrb[0].mxu0
  %v4702 = vadd.f32 %v606, %v4701
  %v4703 = vpop.f32.mrb[0].mxu0
  %v4704 = vpop.f32.mrb[0].mxu0
  %v4705 = vadd.f32 %v606, %v4704
  %v4706 = vpop.f32.mrb[0].mxu0
  %4707 = vmatprep.mubr.bf16.mxu0 0
  %4708 = vmatmul.mubr.bf16.gmra.mrb[0].mxu0 %v2715
  %v4709 = vpop.f32.mrb[0].mxu0
  %v4710 = vadd.f32 %v606, %v4709
  %v4711 = vpop.f32.mrb[0].mxu0
  %v4712 = vpop.f32.mrb[0].mxu0
  %v4713 = vadd.f32 %v606, %v4712
  %v4714 = vpop.f32.mrb[0].mxu0
  %4715 = vmatprep.mubr.bf16.mxu0 0
  %4716 = vmatmul.mubr.bf16.gmra.mrb[0].mxu0 %v2718
  %v4717 = vpop.f32.mrb[0].mxu0
  %v4718 = vadd.f32 %v606, %v4717
  %v4719 = vpop.f32.mrb[0].mxu0
  %v4720 = vpop.f32.mrb[0].mxu0
  %v4721 = vadd.f32 %v606, %v4720
  %v4722 = vpop.f32.mrb[0].mxu0
  %4723 = vmatprep.mubr.bf16.mxu0 0
  %4724 = vmatmul.mubr.bf16.gmra.mrb[0].mxu0 %v2721
  %v4725 = vpop.f32.mrb[0].mxu0
  %v4726 = vadd.f32 %v606, %v4725
  %v4727 = vpop.f32.mrb[0].mxu0
  %v4728 = vpop.f32.mrb[0].mxu0
  %v4729 = vadd.f32 %v606, %v4728
  %v4730 = vpop.f32.mrb[0].mxu0
  %4731 = vmatprep.mubr.bf16.mxu0 0
  %4732 = vmatmul.mubr.bf16.gmra.mrb[0].mxu0 %v2724
  %v4733 = vpop.f32.mrb[0].mxu0
  %v4734 = vadd.f32 %v606, %v4733
  %v4735 = vpop.f32.mrb[0].mxu0
  %v4736 = vpop.f32.mrb[0].mxu0
  %v4737 = vadd.f32 %v606, %v4736
  %v4738 = vpop.f32.mrb[0].mxu0
  %4739 = vmatprep.mubr.bf16.mxu0 0
  %4740 = vmatmul.mubr.bf16.gmra.mrb[0].mxu0 %v2727
  %v4741 = vpop.f32.mrb[0].mxu0
  %v4742 = vadd.f32 %v606, %v4741
  %v4743 = vpop.f32.mrb[0].mxu0
  %v4744 = vpop.f32.mrb[0].mxu0
  %v4745 = vadd.f32 %v606, %v4744
  %v4746 = vpop.f32.mrb[0].mxu0
  %4747 = vmatprep.mubr.bf16.mxu0 0
  %4748 = vmatmul.mubr.bf16.gmra.mrb[0].mxu0 %v2730
  %v4749 = vpop.f32.mrb[0].mxu0
  %v4750 = vadd.f32 %v606, %v4749
  %v4751 = vpop.f32.mrb[0].mxu0
  %v4752 = vpop.f32.mrb[0].mxu0
  %v4753 = vadd.f32 %v606, %v4752
  %v4754 = vpop.f32.mrb[0].mxu0
  %4755 = vmatprep.mubr.bf16.mxu0 0
  %4756 = vmatmul.mubr.bf16.gmra.mrb[0].mxu0 %v2733
  %v4757 = vpop.f32.mrb[0].mxu0
  %v4758 = vadd.f32 %v606, %v4757
  %v4759 = vpop.f32.mrb[0].mxu0
  %v4760 = vpop.f32.mrb[0].mxu0
  %v4761 = vadd.f32 %v606, %v4760
  %v4762 = vpop.f32.mrb[0].mxu0
  %4763 = vmatprep.mubr.bf16.mxu0 0
  %4764 = vmatmul.mubr.bf16.gmra.mrb[0].mxu0 %v2736
  %v4765 = vpop.f32.mrb[0].mxu0
  %v4766 = vadd.f32 %v606, %v4765
  %v4767 = vpop.f32.mrb[0].mxu0
  %v4768 = vpop.f32.mrb[0].mxu0
  %v4769 = vadd.f32 %v606, %v4768
  %v4770 = vpop.f32.mrb[0].mxu0
  %4771 = vmatprep.mubr.bf16.mxu0 0
  %4772 = vmatmul.mubr.bf16.gmra.mrb[0].mxu0 %v2739
  %v4773 = vpop.f32.mrb[0].mxu0
  %v4774 = vadd.f32 %v606, %v4773
  %v4775 = vpop.f32.mrb[0].mxu0
  %v4776 = vpop.f32.mrb[0].mxu0
  %v4777 = vadd.f32 %v606, %v4776
  %v4778 = vpop.f32.mrb[0].mxu0
  %4779 = vmatprep.mubr.bf16.mxu0 0
  %4780 = vmatmul.mubr.bf16.gmra.mrb[0].mxu0 %v2742
  %v4781 = vpop.f32.mrb[0].mxu0
  %v4782 = vadd.f32 %v606, %v4781
  %v4783 = vpop.f32.mrb[0].mxu0
  %v4784 = vpop.f32.mrb[0].mxu0
  %v4785 = vadd.f32 %v606, %v4784
  %v4786 = vpop.f32.mrb[0].mxu0
  %4787 = vmatprep.mubr.bf16.mxu0 0
  %4788 = vmatmul.mubr.bf16.gmra.mrb[0].mxu0 %v2745
  %v4789 = vpop.f32.mrb[0].mxu0
  %v4790 = vadd.f32 %v606, %v4789
  %v4791 = vpop.f32.mrb[0].mxu0
  %v4792 = vpop.f32.mrb[0].mxu0
  %v4793 = vadd.f32 %v606, %v4792
  %v4794 = vpop.f32.mrb[0].mxu0
  %4795 = vmatprep.mubr.bf16.mxu0 0
  %4796 = vmatmul.mubr.bf16.gmra.mrb[0].mxu0 %v2748
  %v4797 = vpop.f32.mrb[0].mxu0
  %v4798 = vadd.f32 %v606, %v4797
  %v4799 = vpop.f32.mrb[0].mxu0
  %v4800 = vpop.f32.mrb[0].mxu0
  %v4801 = vadd.f32 %v606, %v4800
  %v4802 = vpop.f32.mrb[0].mxu0
  %4803 = vmatprep.mubr.bf16.mxu0 0
  %4804 = vmatmul.mubr.bf16.gmra.mrb[0].mxu0 %v2751
  %v4805 = vpop.f32.mrb[0].mxu0
  %v4806 = vadd.f32 %v606, %v4805
  %v4807 = vpop.f32.mrb[0].mxu0
  %v4808 = vpop.f32.mrb[0].mxu0
  %v4809 = vadd.f32 %v606, %v4808
  %v4810 = vpop.f32.mrb[0].mxu0
  %4811 = vmatprep.mubr.bf16.mxu0 0
  %4812 = vmatmul.mubr.bf16.gmra.mrb[0].mxu0 %v2754
  %v4813 = vpop.f32.mrb[0].mxu0
  %v4814 = vadd.f32 %v606, %v4813
  %v4815 = vpop.f32.mrb[0].mxu0
  %v4816 = vpop.f32.mrb[0].mxu0
  %v4817 = vadd.f32 %v606, %v4816
  %v4818 = vpop.f32.mrb[0].mxu0
  %4819 = vmatprep.mubr.bf16.mxu0 0
  %4820 = vmatmul.mubr.bf16.gmra.mrb[0].mxu0 %v2757
  %v4821 = vpop.f32.mrb[0].mxu0
  %v4822 = vadd.f32 %v606, %v4821
  %v4823 = vpop.f32.mrb[0].mxu0
  %v4824 = vpop.f32.mrb[0].mxu0
  %v4825 = vadd.f32 %v606, %v4824
  %v4826 = vpop.f32.mrb[0].mxu0
  %4827 = vmatprep.mubr.bf16.mxu0 0
  %4828 = vmatmul.mubr.bf16.gmra.mrb[0].mxu0 %v2760
  %v4829 = vpop.f32.mrb[0].mxu0
  %v4830 = vadd.f32 %v606, %v4829
  %v4831 = vpop.f32.mrb[0].mxu0
  %v4832 = vpop.f32.mrb[0].mxu0
  %v4833 = vadd.f32 %v606, %v4832
  %v4834 = vpop.f32.mrb[0].mxu0
  %4835 = vmatprep.mubr.bf16.mxu0 0
  %4836 = vmatmul.mubr.bf16.gmra.mrb[0].mxu0 %v2763
  %v4837 = vpop.f32.mrb[0].mxu0
  %v4838 = vadd.f32 %v606, %v4837
  %v4839 = vpop.f32.mrb[0].mxu0
  %v4840 = vpop.f32.mrb[0].mxu0
  %v4841 = vadd.f32 %v606, %v4840
  %v4842 = vpop.f32.mrb[0].mxu0
  %4843 = vmatprep.mubr.bf16.mxu0 0
  %4844 = vmatmul.mubr.bf16.gmra.mrb[0].mxu0 %v2766
  %v4845 = vpop.f32.mrb[0].mxu0
  %v4846 = vadd.f32 %v606, %v4845
  %v4847 = vpop.f32.mrb[0].mxu0
  %v4848 = vpop.f32.mrb[0].mxu0
  %v4849 = vadd.f32 %v606, %v4848
  %v4850 = vpop.f32.mrb[0].mxu0
  %4851 = vmatprep.mubr.bf16.mxu0 0
  %4852 = vmatmul.mubr.bf16.gmra.mrb[0].mxu0 %v2769
  %v4853 = vpop.f32.mrb[0].mxu0
  %v4854 = vadd.f32 %v606, %v4853
  %v4855 = vpop.f32.mrb[0].mxu0
  %v4856 = vpop.f32.mrb[0].mxu0
  %v4857 = vadd.f32 %v606, %v4856
  %v4858 = vpop.f32.mrb[0].mxu0
  %4859 = vmatprep.mubr.bf16.mxu0 0
  %4860 = vmatmul.mubr.bf16.gmra.mrb[0].mxu0 %v2772
  %v4861 = vpop.f32.mrb[0].mxu0
  %v4862 = vadd.f32 %v606, %v4861
  %v4863 = vpop.f32.mrb[0].mxu0
  %v4864 = vpop.f32.mrb[0].mxu0
  %v4865 = vadd.f32 %v606, %v4864
  %v4866 = vpop.f32.mrb[0].mxu0
  %4867 = vmatprep.mubr.bf16.mxu0 0
  %4868 = vmatmul.mubr.bf16.gmra.mrb[0].mxu0 %v2775
  %v4869 = vpop.f32.mrb[0].mxu0
  %v4870 = vadd.f32 %v606, %v4869
  %v4871 = vpop.f32.mrb[0].mxu0
  %v4872 = vpop.f32.mrb[0].mxu0
  %v4873 = vadd.f32 %v606, %v4872
  %v4874 = vpop.f32.mrb[0].mxu0
  %4875 = vmatprep.mubr.bf16.mxu0 0
  %4876 = vmatmul.mubr.bf16.gmra.mrb[0].mxu0 %v2778
  %v4877 = vpop.f32.mrb[0].mxu0
  %v4878 = vadd.f32 %v606, %v4877
  %v4879 = vpop.f32.mrb[0].mxu0
  %v4880 = vpop.f32.mrb[0].mxu0
  %v4881 = vadd.f32 %v606, %v4880
  %v4882 = vpop.f32.mrb[0].mxu0
  %4883 = vmatprep.mubr.bf16.mxu0 0
  %4884 = vmatmul.mubr.bf16.gmra.mrb[0].mxu0 %v2781
  %v4885 = vpop.f32.mrb[0].mxu0
  %v4886 = vadd.f32 %v606, %v4885
  %v4887 = vpop.f32.mrb[0].mxu0
  %v4888 = vpop.f32.mrb[0].mxu0
  %v4889 = vadd.f32 %v606, %v4888
  %v4890 = vpop.f32.mrb[0].mxu0
  %4891 = vmatprep.mubr.bf16.mxu0 0
  %4892 = vmatmul.mubr.bf16.gmra.mrb[0].mxu0 %v2784
  %v4893 = vpop.f32.mrb[0].mxu0
  %v4894 = vadd.f32 %v606, %v4893
  %v4895 = vpop.f32.mrb[0].mxu0
  %v4896 = vpop.f32.mrb[0].mxu0
  %v4897 = vadd.f32 %v606, %v4896
  %v4898 = vpop.f32.mrb[0].mxu0
  %4899 = vmatprep.mubr.bf16.mxu0 0
  %4900 = vmatmul.mubr.bf16.gmra.mrb[0].mxu0 %v2787
  %v4901 = vpop.f32.mrb[0].mxu0
  %v4902 = vadd.f32 %v606, %v4901
  %v4903 = vpop.f32.mrb[0].mxu0
  %v4904 = vpop.f32.mrb[0].mxu0
  %v4905 = vadd.f32 %v606, %v4904
  %v4906 = vpop.f32.mrb[0].mxu0
  %4907 = vmatprep.mubr.bf16.mxu0 0
  %4908 = vmatmul.mubr.bf16.gmra.mrb[0].mxu0 %v2790
  %v4909 = vpop.f32.mrb[0].mxu0
  %v4910 = vadd.f32 %v606, %v4909
  %v4911 = vpop.f32.mrb[0].mxu0
  %v4912 = vpop.f32.mrb[0].mxu0
  %v4913 = vadd.f32 %v606, %v4912
  %v4914 = vpop.f32.mrb[0].mxu0
  %4915 = vmatprep.mubr.bf16.mxu0 0
  %4916 = vmatmul.mubr.bf16.gmra.mrb[0].mxu0 %v2793
  %v4917 = vpop.f32.mrb[0].mxu0
  %v4918 = vadd.f32 %v606, %v4917
  %v4919 = vpop.f32.mrb[0].mxu0
  %v4920 = vpop.f32.mrb[0].mxu0
  %v4921 = vadd.f32 %v606, %v4920
  %v4922 = vpop.f32.mrb[0].mxu0
  %4923 = vmatprep.mubr.bf16.mxu0 0
  %4924 = vmatmul.mubr.bf16.gmra.mrb[0].mxu0 %v2796
  %v4925 = vpop.f32.mrb[0].mxu0
  %v4926 = vadd.f32 %v606, %v4925
  %v4927 = vpop.f32.mrb[0].mxu0
  %v4928 = vpop.f32.mrb[0].mxu0
  %v4929 = vadd.f32 %v606, %v4928
  %v4930 = vpop.f32.mrb[0].mxu0
  %4931 = vmatprep.mubr.bf16.mxu0 0
  %4932 = vmatmul.mubr.bf16.gmra.mrb[0].mxu0 %v2799
  %v4933 = vpop.f32.mrb[0].mxu0
  %v4934 = vadd.f32 %v606, %v4933
  %v4935 = vpop.f32.mrb[0].mxu0
  %v4936 = vpop.f32.mrb[0].mxu0
  %v4937 = vadd.f32 %v606, %v4936
  %v4938 = vpop.f32.mrb[0].mxu0
  %4939 = vmatprep.mubr.bf16.mxu0 0
  %4940 = vmatmul.mubr.bf16.gmra.mrb[0].mxu0 %v2802
  %v4941 = vpop.f32.mrb[0].mxu0
  %v4942 = vadd.f32 %v606, %v4941
  %v4943 = vpop.f32.mrb[0].mxu0
  %v4944 = vpop.f32.mrb[0].mxu0
  %v4945 = vadd.f32 %v606, %v4944
  %v4946 = vpop.f32.mrb[0].mxu0
  %4947 = vmatprep.mubr.bf16.mxu0 0
  %4948 = vmatmul.mubr.bf16.gmra.mrb[0].mxu0 %v2805
  %v4949 = vpop.f32.mrb[0].mxu0
  %v4950 = vadd.f32 %v606, %v4949
  %v4951 = vpop.f32.mrb[0].mxu0
  %v4952 = vpop.f32.mrb[0].mxu0
  %v4953 = vadd.f32 %v606, %v4952
  %v4954 = vpop.f32.mrb[0].mxu0
  %4955 = vmatprep.mubr.bf16.mxu0 0
  %4956 = vmatmul.mubr.bf16.gmra.mrb[0].mxu0 %v2808
  %v4957 = vpop.f32.mrb[0].mxu0
  %v4958 = vadd.f32 %v606, %v4957
  %v4959 = vpop.f32.mrb[0].mxu0
  %v4960 = vpop.f32.mrb[0].mxu0
  %v4961 = vadd.f32 %v606, %v4960
  %v4962 = vpop.f32.mrb[0].mxu0
  %4963 = vmatprep.mubr.bf16.mxu0 0
  %4964 = vmatmul.mubr.bf16.gmra.mrb[0].mxu0 %v2811
  %v4965 = vpop.f32.mrb[0].mxu0
  %v4966 = vadd.f32 %v606, %v4965
  %v4967 = vpop.f32.mrb[0].mxu0
  %v4968 = vpop.f32.mrb[0].mxu0
  %v4969 = vadd.f32 %v606, %v4968
  %v4970 = vpop.f32.mrb[0].mxu0
  %4971 = vmatprep.mubr.bf16.mxu0 0
  %4972 = vmatmul.mubr.bf16.gmra.mrb[0].mxu0 %v2814
  %v4973 = vpop.f32.mrb[0].mxu0
  %v4974 = vadd.f32 %v606, %v4973
  %v4975 = vpop.f32.mrb[0].mxu0
  %v4976 = vpop.f32.mrb[0].mxu0
  %v4977 = vadd.f32 %v606, %v4976
  %v4978 = vpop.f32.mrb[0].mxu0
  %4979 = vmatprep.mubr.bf16.mxu0 0
  %4980 = vmatmul.mubr.bf16.gmra.mrb[0].mxu0 %v2817
  %v4981 = vpop.f32.mrb[0].mxu0
  %v4982 = vadd.f32 %v606, %v4981
  %v4983 = vpop.f32.mrb[0].mxu0
  %v4984 = vpop.f32.mrb[0].mxu0
  %v4985 = vadd.f32 %v606, %v4984
  %v4986 = vpop.f32.mrb[0].mxu0
  %4987 = vmatprep.mubr.bf16.mxu0 0
  %4988 = vmatmul.mubr.bf16.gmra.mrb[0].mxu0 %v2820
  %v4989 = vpop.f32.mrb[0].mxu0
  %v4990 = vadd.f32 %v606, %v4989
  %v4991 = vpop.f32.mrb[0].mxu0
  %v4992 = vpop.f32.mrb[0].mxu0
  %v4993 = vadd.f32 %v606, %v4992
  %v4994 = vpop.f32.mrb[0].mxu0
  %4995 = vmatprep.mubr.bf16.mxu0 0
  %4996 = vmatmul.mubr.bf16.gmra.mrb[0].mxu0 %v2823
  %v4997 = vpop.f32.mrb[0].mxu0
  %v4998 = vadd.f32 %v606, %v4997
  %v4999 = vpop.f32.mrb[0].mxu0
  %v5000 = vpop.f32.mrb[0].mxu0
  %v5001 = vadd.f32 %v606, %v5000
  %v5002 = vpop.f32.mrb[0].mxu0
  %5003 = vmatprep.mubr.bf16.mxu0 0
  %5004 = vmatmul.mubr.bf16.gmra.mrb[0].mxu0 %v2826
  %v5005 = vpop.f32.mrb[0].mxu0
  %v5006 = vadd.f32 %v606, %v5005
  %v5007 = vpop.f32.mrb[0].mxu0
  %v5008 = vpop.f32.mrb[0].mxu0
  %v5009 = vadd.f32 %v606, %v5008
  %v5010 = vpop.f32.mrb[0].mxu0
  %5011 = vmatprep.mubr.bf16.mxu0 0
  %5012 = vmatmul.mubr.bf16.gmra.mrb[0].mxu0 %v2829
  %v5013 = vpop.f32.mrb[0].mxu0
  %v5014 = vadd.f32 %v606, %v5013
  %v5015 = vpop.f32.mrb[0].mxu0
  %v5016 = vpop.f32.mrb[0].mxu0
  %v5017 = vadd.f32 %v606, %v5016
  %v5018 = vpop.f32.mrb[0].mxu0
  %5019 = vmatprep.mubr.bf16.mxu0 0
  %5020 = vmatmul.mubr.bf16.gmra.mrb[0].mxu0 %v2832
  %v5021 = vpop.f32.mrb[0].mxu0
  %v5022 = vadd.f32 %v606, %v5021
  %v5023 = vpop.f32.mrb[0].mxu0
  %v5024 = vpop.f32.mrb[0].mxu0
  %v5025 = vadd.f32 %v606, %v5024
  %v5026 = vpop.f32.mrb[0].mxu0
  %5027 = vmatprep.mubr.bf16.mxu0 0
  %5028 = vmatmul.mubr.bf16.gmra.mrb[0].mxu0 %v2835
  %v5029 = vpop.f32.mrb[0].mxu0
  %v5030 = vadd.f32 %v606, %v5029
  %v5031 = vpop.f32.mrb[0].mxu0
  %v5032 = vpop.f32.mrb[0].mxu0
  %v5033 = vadd.f32 %v606, %v5032
  %v5034 = vpop.f32.mrb[0].mxu0
  %5035 = vmatprep.mubr.bf16.mxu0 0
  %5036 = vmatmul.mubr.bf16.gmra.mrb[0].mxu0 %v2838
  %v5037 = vpop.f32.mrb[0].mxu0
  %v5038 = vadd.f32 %v606, %v5037
  %v5039 = vpop.f32.mrb[0].mxu0
  %v5040 = vpop.f32.mrb[0].mxu0
  %v5041 = vadd.f32 %v606, %v5040
  %v5042 = vpop.f32.mrb[0].mxu0
  %5043 = vmatprep.mubr.bf16.mxu0 0
  %5044 = vmatmul.mubr.bf16.gmra.mrb[0].mxu0 %v2841
  %v5045 = vpop.f32.mrb[0].mxu0
  %v5046 = vadd.f32 %v606, %v5045
  %v5047 = vpop.f32.mrb[0].mxu0
  %v5048 = vpop.f32.mrb[0].mxu0
  %v5049 = vadd.f32 %v606, %v5048
  %v5050 = vpop.f32.mrb[0].mxu0
  %5051 = vmatprep.mubr.bf16.mxu0 0
  %5052 = vmatmul.mubr.bf16.gmra.mrb[0].mxu0 %v2844
  %v5053 = vpop.f32.mrb[0].mxu0
  %v5054 = vadd.f32 %v606, %v5053
  %v5055 = vpop.f32.mrb[0].mxu0
  %v5056 = vpop.f32.mrb[0].mxu0
  %v5057 = vadd.f32 %v606, %v5056
  %v5058 = vpop.f32.mrb[0].mxu0
  %5059 = vmatprep.mubr.bf16.mxu0 0
  %5060 = vmatmul.mubr.bf16.gmra.mrb[0].mxu0 %v2847
  %v5061 = vpop.f32.mrb[0].mxu0
  %v5062 = vadd.f32 %v606, %v5061
  %v5063 = vpop.f32.mrb[0].mxu0
  %v5064 = vpop.f32.mrb[0].mxu0
  %v5065 = vadd.f32 %v606, %v5064
  %v5066 = vpop.f32.mrb[0].mxu0
  %5067 = vmatprep.mubr.bf16.mxu0 0
  %5068 = vmatmul.mubr.bf16.gmra.mrb[0].mxu0 %v2850
  %v5069 = vpop.f32.mrb[0].mxu0
  %v5070 = vadd.f32 %v606, %v5069
  %v5071 = vpop.f32.mrb[0].mxu0
  %v5072 = vpop.f32.mrb[0].mxu0
  %v5073 = vadd.f32 %v606, %v5072
  %v5074 = vpop.f32.mrb[0].mxu0
  %5075 = vmatprep.mubr.bf16.mxu0 0
  %5076 = vmatmul.mubr.bf16.gmra.mrb[0].mxu0 %v2853
  %v5077 = vpop.f32.mrb[0].mxu0
  %v5078 = vadd.f32 %v606, %v5077
  %v5079 = vpop.f32.mrb[0].mxu0
  %v5080 = vpop.f32.mrb[0].mxu0
  %v5081 = vadd.f32 %v606, %v5080
  %v5082 = vpop.f32.mrb[0].mxu0
  %5083 = vmatprep.mubr.bf16.mxu0 0
  %5084 = vmatmul.mubr.bf16.gmra.mrb[0].mxu0 %v2856
  %v5085 = vpop.f32.mrb[0].mxu0
  %v5086 = vadd.f32 %v606, %v5085
  %v5087 = vpop.f32.mrb[0].mxu0
  %v5088 = vpop.f32.mrb[0].mxu0
  %v5089 = vadd.f32 %v606, %v5088
  %v5090 = vpop.f32.mrb[0].mxu0
  %5091 = vmatprep.mubr.bf16.mxu0 0
  %5092 = vmatmul.mubr.bf16.gmra.mrb[0].mxu0 %v2859
  %v5093 = vpop.f32.mrb[0].mxu0
  %v5094 = vadd.f32 %v606, %v5093
  %v5095 = vpop.f32.mrb[0].mxu0
  %v5096 = vpop.f32.mrb[0].mxu0
  %v5097 = vadd.f32 %v606, %v5096
  %v5098 = vpop.f32.mrb[0].mxu0
  %5099 = vmatprep.mubr.bf16.mxu0 0
  %5100 = vmatmul.mubr.bf16.gmra.mrb[0].mxu0 %v2862
  %v5101 = vpop.f32.mrb[0].mxu0
  %v5102 = vadd.f32 %v606, %v5101
  %v5103 = vpop.f32.mrb[0].mxu0
  %v5104 = vpop.f32.mrb[0].mxu0
  %v5105 = vadd.f32 %v606, %v5104
  %v5106 = vpop.f32.mrb[0].mxu0
  %5107 = vmatprep.mubr.bf16.mxu0 0
  %5108 = vmatmul.mubr.bf16.gmra.mrb[0].mxu0 %v2865
  %v5109 = vpop.f32.mrb[0].mxu0
  %v5110 = vadd.f32 %v606, %v5109
  %v5111 = vpop.f32.mrb[0].mxu0
  %v5112 = vpop.f32.mrb[0].mxu0
  %v5113 = vadd.f32 %v606, %v5112
  %v5114 = vpop.f32.mrb[0].mxu0
  %5115 = vmatprep.mubr.bf16.mxu0 0
  %5116 = vmatmul.mubr.bf16.gmra.mrb[0].mxu0 %v2868
  %v5117 = vpop.f32.mrb[0].mxu0
  %v5118 = vadd.f32 %v606, %v5117
  %v5119 = vpop.f32.mrb[0].mxu0
  %v5120 = vpop.f32.mrb[0].mxu0
  %v5121 = vadd.f32 %v606, %v5120
  %v5122 = vpop.f32.mrb[0].mxu0
  %5123 = vmatprep.mubr.bf16.mxu0 0
  %5124 = vmatmul.mubr.bf16.gmra.mrb[0].mxu0 %v2871
  %v5125 = vpop.f32.mrb[0].mxu0
  %v5126 = vadd.f32 %v606, %v5125
  %v5127 = vpop.f32.mrb[0].mxu0
  %v5128 = vpop.f32.mrb[0].mxu0
  %v5129 = vadd.f32 %v606, %v5128
  %v5130 = vpop.f32.mrb[0].mxu0
  %5131 = vmatprep.mubr.bf16.mxu0 0
  %5132 = vmatmul.mubr.bf16.gmra.mrb[0].mxu0 %v2874
  %v5133 = vpop.f32.mrb[0].mxu0
  %v5134 = vadd.f32 %v606, %v5133
  %v5135 = vpop.f32.mrb[0].mxu0
  %v5136 = vpop.f32.mrb[0].mxu0
  %v5137 = vadd.f32 %v606, %v5136
  %v5138 = vpop.f32.mrb[0].mxu0
  %5139 = vmatprep.mubr.bf16.mxu0 0
  %5140 = vmatmul.mubr.bf16.gmra.mrb[0].mxu0 %v2877
  %v5141 = vpop.f32.mrb[0].mxu0
  %v5142 = vadd.f32 %v606, %v5141
  %v5143 = vpop.f32.mrb[0].mxu0
  %v5144 = vpop.f32.mrb[0].mxu0
  %v5145 = vadd.f32 %v606, %v5144
  %v5146 = vpop.f32.mrb[0].mxu0
  %5147 = vmatprep.mubr.bf16.mxu0 0
  %5148 = vmatmul.mubr.bf16.gmra.mrb[0].mxu0 %v2880
  %v5149 = vpop.f32.mrb[0].mxu0
  %v5150 = vadd.f32 %v606, %v5149
  %v5151 = vpop.f32.mrb[0].mxu0
  %v5152 = vpop.f32.mrb[0].mxu0
  %v5153 = vadd.f32 %v606, %v5152
  %v5154 = vpop.f32.mrb[0].mxu0
  %5155 = vmatprep.mubr.bf16.mxu0 0
  %5156 = vmatmul.mubr.bf16.gmra.mrb[0].mxu0 %v2883
  %v5157 = vpop.f32.mrb[0].mxu0
  %v5158 = vadd.f32 %v606, %v5157
  %v5159 = vpop.f32.mrb[0].mxu0
  %v5160 = vpop.f32.mrb[0].mxu0
  %v5161 = vadd.f32 %v606, %v5160
  %v5162 = vpop.f32.mrb[0].mxu0
  %5163 = vmatprep.mubr.bf16.mxu0 0
  %5164 = vmatmul.mubr.bf16.gmra.mrb[0].mxu0 %v2886
  %v5165 = vpop.f32.mrb[0].mxu0
  %v5166 = vadd.f32 %v606, %v5165
  %v5167 = vpop.f32.mrb[0].mxu0
  %v5168 = vpop.f32.mrb[0].mxu0
  %v5169 = vadd.f32 %v606, %v5168
  %v5170 = vpop.f32.mrb[0].mxu0
  %5171 = vmatprep.mubr.bf16.mxu0 0
  %5172 = vmatmul.mubr.bf16.gmra.mrb[0].mxu0 %v2889
  %v5173 = vpop.f32.mrb[0].mxu0
  %v5174 = vadd.f32 %v606, %v5173
  %v5175 = vpop.f32.mrb[0].mxu0
  %v5176 = vpop.f32.mrb[0].mxu0
  %v5177 = vadd.f32 %v606, %v5176
  %v5178 = vpop.f32.mrb[0].mxu0
  %5179 = vmatprep.mubr.bf16.mxu0 0
  %5180 = vmatmul.mubr.bf16.gmra.mrb[0].mxu0 %v2892
  %v5181 = vpop.f32.mrb[0].mxu0
  %v5182 = vadd.f32 %v606, %v5181
  %v5183 = vpop.f32.mrb[0].mxu0
  %v5184 = vpop.f32.mrb[0].mxu0
  %v5185 = vadd.f32 %v606, %v5184
  %v5186 = vpop.f32.mrb[0].mxu0
  %5187 = vmatprep.mubr.bf16.mxu0 0
  %5188 = vmatmul.mubr.bf16.gmra.mrb[0].mxu0 %v2895
  %v5189 = vpop.f32.mrb[0].mxu0
  %v5190 = vadd.f32 %v606, %v5189
  %v5191 = vpop.f32.mrb[0].mxu0
  %v5192 = vpop.f32.mrb[0].mxu0
  %v5193 = vadd.f32 %v606, %v5192
  %v5194 = vpop.f32.mrb[0].mxu0
  %5195 = vmatprep.mubr.bf16.mxu0 0
  %5196 = vmatmul.mubr.bf16.gmra.mrb[0].mxu0 %v2898
  %v5197 = vpop.f32.mrb[0].mxu0
  %v5198 = vadd.f32 %v606, %v5197
  %v5199 = vpop.f32.mrb[0].mxu0
  %v5200 = vpop.f32.mrb[0].mxu0
  %v5201 = vadd.f32 %v606, %v5200
  %v5202 = vpop.f32.mrb[0].mxu0
  %5203 = vmatprep.mubr.bf16.mxu0 0
  %5204 = vmatmul.mubr.bf16.gmra.mrb[0].mxu0 %v2901
  %v5205 = vpop.f32.mrb[0].mxu0
  %v5206 = vadd.f32 %v606, %v5205
  %v5207 = vpop.f32.mrb[0].mxu0
  %v5208 = vpop.f32.mrb[0].mxu0
  %v5209 = vadd.f32 %v606, %v5208
  %v5210 = vpop.f32.mrb[0].mxu0
  %5211 = vmatprep.mubr.bf16.mxu0 0
  %5212 = vmatmul.mubr.bf16.gmra.mrb[0].mxu0 %v2904
  %v5213 = vpop.f32.mrb[0].mxu0
  %v5214 = vadd.f32 %v606, %v5213
  %v5215 = vpop.f32.mrb[0].mxu0
  %v5216 = vpop.f32.mrb[0].mxu0
  %v5217 = vadd.f32 %v606, %v5216
  %v5218 = vpop.f32.mrb[0].mxu0
  %5219 = vmatprep.mubr.bf16.mxu0 0
  %5220 = vmatmul.mubr.bf16.gmra.mrb[0].mxu0 %v2907
  %v5221 = vpop.f32.mrb[0].mxu0
  %v5222 = vadd.f32 %v606, %v5221
  %v5223 = vpop.f32.mrb[0].mxu0
  %v5224 = vpop.f32.mrb[0].mxu0
  %v5225 = vadd.f32 %v606, %v5224
  %v5226 = vpop.f32.mrb[0].mxu0
  %5227 = vmatprep.mubr.bf16.mxu0 0
  %5228 = vmatmul.mubr.bf16.gmra.mrb[0].mxu0 %v2910
  %v5229 = vpop.f32.mrb[0].mxu0
  %v5230 = vadd.f32 %v606, %v5229
  %v5231 = vpop.f32.mrb[0].mxu0
  %v5232 = vpop.f32.mrb[0].mxu0
  %v5233 = vadd.f32 %v606, %v5232
  %v5234 = vpop.f32.mrb[0].mxu0
  %5235 = vmatprep.mubr.bf16.mxu0 0
  %5236 = vmatmul.mubr.bf16.gmra.mrb[0].mxu0 %v2913
  %v5237 = vpop.f32.mrb[0].mxu0
  %v5238 = vadd.f32 %v606, %v5237
  %v5239 = vpop.f32.mrb[0].mxu0
  %v5240 = vpop.f32.mrb[0].mxu0
  %v5241 = vadd.f32 %v606, %v5240
  %v5242 = vpop.f32.mrb[0].mxu0
  %5243 = vmatprep.mubr.bf16.mxu0 0
  %5244 = vmatmul.mubr.bf16.gmra.mrb[0].mxu0 %v2916
  %v5245 = vpop.f32.mrb[0].mxu0
  %v5246 = vadd.f32 %v606, %v5245
  %v5247 = vpop.f32.mrb[0].mxu0
  %v5248 = vpop.f32.mrb[0].mxu0
  %v5249 = vadd.f32 %v606, %v5248
  %v5250 = vpop.f32.mrb[0].mxu0
  %5251 = vmatprep.mubr.bf16.mxu0 0
  %5252 = vmatmul.mubr.bf16.gmra.mrb[0].mxu0 %v2919
  %v5253 = vpop.f32.mrb[0].mxu0
  %v5254 = vadd.f32 %v606, %v5253
  %v5255 = vpop.f32.mrb[0].mxu0
  %v5256 = vpop.f32.mrb[0].mxu0
  %v5257 = vadd.f32 %v606, %v5256
  %v5258 = vpop.f32.mrb[0].mxu0
  %5259 = vmatprep.mubr.bf16.mxu0 0
  %5260 = vmatmul.mubr.bf16.gmra.mrb[0].mxu0 %v2922
  %v5261 = vpop.f32.mrb[0].mxu0
  %v5262 = vadd.f32 %v606, %v5261
  %v5263 = vpop.f32.mrb[0].mxu0
  %v5264 = vpop.f32.mrb[0].mxu0
  %v5265 = vadd.f32 %v606, %v5264
  %v5266 = vpop.f32.mrb[0].mxu0
  %5267 = vdwg.mxu0
  %v5268 = vmax.f32 %v2966, 0.0
  %v5269 = vmax.f32 %v2969, 0.0
  %v5270 = vmax.f32 %v2974, 0.0
  %v5271 = vmax.f32 %v2977, 0.0
  %v5272 = vmax.f32 %v2982, 0.0
  %v5273 = vmax.f32 %v2985, 0.0
  %v5274 = vmax.f32 %v2990, 0.0
  %v5275 = vmax.f32 %v2993, 0.0
  %v5276 = vmax.f32 %v2998, 0.0
  %v5277 = vmax.f32 %v3001, 0.0
  %v5278 = vmax.f32 %v3006, 0.0
  %v5279 = vmax.f32 %v3009, 0.0
  %v5280 = vmax.f32 %v3014, 0.0
  %v5281 = vmax.f32 %v3017, 0.0
  %v5282 = vmax.f32 %v3022, 0.0
  %v5283 = vmax.f32 %v3025, 0.0
  %v5284 = vmax.f32 %v3030, 0.0
  %v5285 = vmax.f32 %v3033, 0.0
  %v5286 = vmax.f32 %v3038, 0.0
  %v5287 = vmax.f32 %v3041, 0.0
  %v5288 = vmax.f32 %v3046, 0.0
  %v5289 = vmax.f32 %v3049, 0.0
  %v5290 = vmax.f32 %v3054, 0.0
  %v5291 = vmax.f32 %v3057, 0.0
  %v5292 = vmax.f32 %v3062, 0.0
  %v5293 = vmax.f32 %v3065, 0.0
  %v5294 = vmax.f32 %v3070, 0.0
  %v5295 = vmax.f32 %v3073, 0.0
  %v5296 = vmax.f32 %v3078, 0.0
  %v5297 = vmax.f32 %v3081, 0.0
  %v5298 = vmax.f32 %v3086, 0.0
  %v5299 = vmax.f32 %v3089, 0.0
  %v5300 = vmax.f32 %v3094, 0.0
  %v5301 = vmax.f32 %v3097, 0.0
  %v5302 = vmax.f32 %v3102, 0.0
  %v5303 = vmax.f32 %v3105, 0.0
  %v5304 = vmax.f32 %v3110, 0.0
  %v5305 = vmax.f32 %v3113, 0.0
  %v5306 = vmax.f32 %v3118, 0.0
  %v5307 = vmax.f32 %v3121, 0.0
  %v5308 = vmax.f32 %v3126, 0.0
  %v5309 = vmax.f32 %v3129, 0.0
  %v5310 = vmax.f32 %v3134, 0.0
  %v5311 = vmax.f32 %v3137, 0.0
  %v5312 = vmax.f32 %v3142, 0.0
  %v5313 = vmax.f32 %v3145, 0.0
  %v5314 = vmax.f32 %v3150, 0.0
  %v5315 = vmax.f32 %v3153, 0.0
  %v5316 = vmax.f32 %v3158, 0.0
  %v5317 = vmax.f32 %v3161, 0.0
  %v5318 = vmax.f32 %v3166, 0.0
  %v5319 = vmax.f32 %v3169, 0.0
  %v5320 = vmax.f32 %v3174, 0.0
  %v5321 = vmax.f32 %v3177, 0.0
  %v5322 = vmax.f32 %v3182, 0.0
  %v5323 = vmax.f32 %v3185, 0.0
  %v5324 = vmax.f32 %v3190, 0.0
  %v5325 = vmax.f32 %v3193, 0.0
  %v5326 = vmax.f32 %v3198, 0.0
  %v5327 = vmax.f32 %v3201, 0.0
  %v5328 = vmax.f32 %v3206, 0.0
  %v5329 = vmax.f32 %v3209, 0.0
  %v5330 = vmax.f32 %v3214, 0.0
  %v5331 = vmax.f32 %v3217, 0.0
  %v5332 = vmax.f32 %v3222, 0.0
  %v5333 = vmax.f32 %v3225, 0.0
  %v5334 = vmax.f32 %v3230, 0.0
  %v5335 = vmax.f32 %v3233, 0.0
  %v5336 = vmax.f32 %v3238, 0.0
  %v5337 = vmax.f32 %v3241, 0.0
  %v5338 = vmax.f32 %v3246, 0.0
  %v5339 = vmax.f32 %v3249, 0.0
  %v5340 = vmax.f32 %v3254, 0.0
  %v5341 = vmax.f32 %v3257, 0.0
  %v5342 = vmax.f32 %v3262, 0.0
  %v5343 = vmax.f32 %v3265, 0.0
  %v5344 = vmax.f32 %v3270, 0.0
  %v5345 = vmax.f32 %v3273, 0.0
  %v5346 = vmax.f32 %v3278, 0.0
  %v5347 = vmax.f32 %v3281, 0.0
  %v5348 = vmax.f32 %v3286, 0.0
  %v5349 = vmax.f32 %v3289, 0.0
  %v5350 = vmax.f32 %v3294, 0.0
  %v5351 = vmax.f32 %v3297, 0.0
  %v5352 = vmax.f32 %v3302, 0.0
  %v5353 = vmax.f32 %v3305, 0.0
  %v5354 = vmax.f32 %v3310, 0.0
  %v5355 = vmax.f32 %v3313, 0.0
  %v5356 = vmax.f32 %v3318, 0.0
  %v5357 = vmax.f32 %v3321, 0.0
  %v5358 = vmax.f32 %v3326, 0.0
  %v5359 = vmax.f32 %v3329, 0.0
  %v5360 = vmax.f32 %v3334, 0.0
  %v5361 = vmax.f32 %v3337, 0.0
  %v5362 = vmax.f32 %v3342, 0.0
  %v5363 = vmax.f32 %v3345, 0.0
  %v5364 = vmax.f32 %v3350, 0.0
  %v5365 = vmax.f32 %v3353, 0.0
  %v5366 = vmax.f32 %v3358, 0.0
  %v5367 = vmax.f32 %v3361, 0.0
  %v5368 = vmax.f32 %v3366, 0.0
  %v5369 = vmax.f32 %v3369, 0.0
  %v5370 = vmax.f32 %v3374, 0.0
  %v5371 = vmax.f32 %v3377, 0.0
  %v5372 = vmax.f32 %v3382, 0.0
  %v5373 = vmax.f32 %v3385, 0.0
  %v5374 = vmax.f32 %v3390, 0.0
  %v5375 = vmax.f32 %v3393, 0.0
  %v5376 = vmax.f32 %v3398, 0.0
  %v5377 = vmax.f32 %v3401, 0.0
  %v5378 = vmax.f32 %v3406, 0.0
  %v5379 = vmax.f32 %v3409, 0.0
  %v5380 = vmax.f32 %v3414, 0.0
  %v5381 = vmax.f32 %v3417, 0.0
  %v5382 = vmax.f32 %v3422, 0.0
  %v5383 = vmax.f32 %v3425, 0.0
  %v5384 = vmax.f32 %v3430, 0.0
  %v5385 = vmax.f32 %v3433, 0.0
  %v5386 = vmax.f32 %v3438, 0.0
  %v5387 = vmax.f32 %v3441, 0.0
  %v5388 = vmax.f32 %v3446, 0.0
  %v5389 = vmax.f32 %v3449, 0.0
  %v5390 = vmax.f32 %v3454, 0.0
  %v5391 = vmax.f32 %v3457, 0.0
  %v5392 = vmax.f32 %v3462, 0.0
  %v5393 = vmax.f32 %v3465, 0.0
  %v5394 = vmax.f32 %v3470, 0.0
  %v5395 = vmax.f32 %v3473, 0.0
  %v5396 = vmax.f32 %v3478, 0.0
  %v5397 = vmax.f32 %v3481, 0.0
  %v5398 = vmax.f32 %v3486, 0.0
  %v5399 = vmax.f32 %v3489, 0.0
  %v5400 = vmax.f32 %v3494, 0.0
  %v5401 = vmax.f32 %v3497, 0.0
  %v5402 = vmax.f32 %v3502, 0.0
  %v5403 = vmax.f32 %v3505, 0.0
  %v5404 = vmax.f32 %v3510, 0.0
  %v5405 = vmax.f32 %v3513, 0.0
  %v5406 = vmax.f32 %v3518, 0.0
  %v5407 = vmax.f32 %v3521, 0.0
  %v5408 = vmax.f32 %v3526, 0.0
  %v5409 = vmax.f32 %v3529, 0.0
  %v5410 = vmax.f32 %v3534, 0.0
  %v5411 = vmax.f32 %v3537, 0.0
  %v5412 = vmax.f32 %v3542, 0.0
  %v5413 = vmax.f32 %v3545, 0.0
  %v5414 = vmax.f32 %v3550, 0.0
  %v5415 = vmax.f32 %v3553, 0.0
  %v5416 = vmax.f32 %v3558, 0.0
  %v5417 = vmax.f32 %v3561, 0.0
  %v5418 = vmax.f32 %v3566, 0.0
  %v5419 = vmax.f32 %v3569, 0.0
  %v5420 = vmax.f32 %v3574, 0.0
  %v5421 = vmax.f32 %v3577, 0.0
  %v5422 = vmax.f32 %v3582, 0.0
  %v5423 = vmax.f32 %v3585, 0.0
  %v5424 = vmax.f32 %v3590, 0.0
  %v5425 = vmax.f32 %v3593, 0.0
  %v5426 = vmax.f32 %v3598, 0.0
  %v5427 = vmax.f32 %v3601, 0.0
  %v5428 = vmax.f32 %v3606, 0.0
  %v5429 = vmax.f32 %v3609, 0.0
  %v5430 = vmax.f32 %v3614, 0.0
  %v5431 = vmax.f32 %v3617, 0.0
  %v5432 = vmax.f32 %v3622, 0.0
  %v5433 = vmax.f32 %v3625, 0.0
  %v5434 = vmax.f32 %v3630, 0.0
  %v5435 = vmax.f32 %v3633, 0.0
  %v5436 = vmax.f32 %v3638, 0.0
  %v5437 = vmax.f32 %v3641, 0.0
  %v5438 = vmax.f32 %v3646, 0.0
  %v5439 = vmax.f32 %v3649, 0.0
  %v5440 = vmax.f32 %v3654, 0.0
  %v5441 = vmax.f32 %v3657, 0.0
  %v5442 = vmax.f32 %v3662, 0.0
  %v5443 = vmax.f32 %v3665, 0.0
  %v5444 = vmax.f32 %v3670, 0.0
  %v5445 = vmax.f32 %v3673, 0.0
  %v5446 = vmax.f32 %v3678, 0.0
  %v5447 = vmax.f32 %v3681, 0.0
  %v5448 = vmax.f32 %v3686, 0.0
  %v5449 = vmax.f32 %v3689, 0.0
  %v5450 = vmax.f32 %v3694, 0.0
  %v5451 = vmax.f32 %v3697, 0.0
  %v5452 = vmax.f32 %v3702, 0.0
  %v5453 = vmax.f32 %v3705, 0.0
  %v5454 = vmax.f32 %v3710, 0.0
  %v5455 = vmax.f32 %v3713, 0.0
  %v5456 = vmax.f32 %v3718, 0.0
  %v5457 = vmax.f32 %v3721, 0.0
  %v5458 = vmax.f32 %v3726, 0.0
  %v5459 = vmax.f32 %v3729, 0.0
  %v5460 = vmax.f32 %v3734, 0.0
  %v5461 = vmax.f32 %v3737, 0.0
  %v5462 = vmax.f32 %v3742, 0.0
  %v5463 = vmax.f32 %v3745, 0.0
  %v5464 = vmax.f32 %v3750, 0.0
  %v5465 = vmax.f32 %v3753, 0.0
  %v5466 = vmax.f32 %v3758, 0.0
  %v5467 = vmax.f32 %v3761, 0.0
  %v5468 = vmax.f32 %v3766, 0.0
  %v5469 = vmax.f32 %v3769, 0.0
  %v5470 = vmax.f32 %v3774, 0.0
  %v5471 = vmax.f32 %v3777, 0.0
  %v5472 = vmax.f32 %v3782, 0.0
  %v5473 = vmax.f32 %v3785, 0.0
  %v5474 = vmax.f32 %v3790, 0.0
  %v5475 = vmax.f32 %v3793, 0.0
  %v5476 = vmax.f32 %v3798, 0.0
  %v5477 = vmax.f32 %v3801, 0.0
  %v5478 = vmax.f32 %v3806, 0.0
  %v5479 = vmax.f32 %v3809, 0.0
  %v5480 = vmax.f32 %v3814, 0.0
  %v5481 = vmax.f32 %v3817, 0.0
  %v5482 = vmax.f32 %v3822, 0.0
  %v5483 = vmax.f32 %v3825, 0.0
  %v5484 = vmax.f32 %v3830, 0.0
  %v5485 = vmax.f32 %v3833, 0.0
  %v5486 = vmax.f32 %v3838, 0.0
  %v5487 = vmax.f32 %v3841, 0.0
  %v5488 = vmax.f32 %v3846, 0.0
  %v5489 = vmax.f32 %v3849, 0.0
  %v5490 = vmax.f32 %v3854, 0.0
  %v5491 = vmax.f32 %v3857, 0.0
  %v5492 = vmax.f32 %v3862, 0.0
  %v5493 = vmax.f32 %v3865, 0.0
  %v5494 = vmax.f32 %v3870, 0.0
  %v5495 = vmax.f32 %v3873, 0.0
  %v5496 = vmax.f32 %v3878, 0.0
  %v5497 = vmax.f32 %v3881, 0.0
  %v5498 = vmax.f32 %v3886, 0.0
  %v5499 = vmax.f32 %v3889, 0.0
  %v5500 = vmax.f32 %v3894, 0.0
  %v5501 = vmax.f32 %v3897, 0.0
  %v5502 = vmax.f32 %v3902, 0.0
  %v5503 = vmax.f32 %v3905, 0.0
  %v5504 = vmax.f32 %v3910, 0.0
  %v5505 = vmax.f32 %v3913, 0.0
  %v5506 = vmax.f32 %v3918, 0.0
  %v5507 = vmax.f32 %v3921, 0.0
  %v5508 = vmax.f32 %v3926, 0.0
  %v5509 = vmax.f32 %v3929, 0.0
  %v5510 = vmax.f32 %v3934, 0.0
  %v5511 = vmax.f32 %v3937, 0.0
  %v5512 = vmax.f32 %v3942, 0.0
  %v5513 = vmax.f32 %v3945, 0.0
  %v5514 = vmax.f32 %v3950, 0.0
  %v5515 = vmax.f32 %v3953, 0.0
  %v5516 = vmax.f32 %v3958, 0.0
  %v5517 = vmax.f32 %v3961, 0.0
  %v5518 = vmax.f32 %v3966, 0.0
  %v5519 = vmax.f32 %v3969, 0.0
  %v5520 = vmax.f32 %v3974, 0.0
  %v5521 = vmax.f32 %v3977, 0.0
  %v5522 = vmax.f32 %v3982, 0.0
  %v5523 = vmax.f32 %v3985, 0.0
  %v5524 = vmax.f32 %v3990, 0.0
  %v5525 = vmax.f32 %v3993, 0.0
  %v5526 = vmax.f32 %v3998, 0.0
  %v5527 = vmax.f32 %v4001, 0.0
  %v5528 = vmax.f32 %v4006, 0.0
  %v5529 = vmax.f32 %v4009, 0.0
  %v5530 = vmax.f32 %v4014, 0.0
  %v5531 = vmax.f32 %v4017, 0.0
  %v5532 = vmax.f32 %v4022, 0.0
  %v5533 = vmax.f32 %v4025, 0.0
  %v5534 = vmax.f32 %v4030, 0.0
  %v5535 = vmax.f32 %v4033, 0.0
  %v5536 = vmax.f32 %v4038, 0.0
  %v5537 = vmax.f32 %v4041, 0.0
  %v5538 = vmax.f32 %v4046, 0.0
  %v5539 = vmax.f32 %v4049, 0.0
  %v5540 = vmax.f32 %v4054, 0.0
  %v5541 = vmax.f32 %v4057, 0.0
  %v5542 = vmax.f32 %v4062, 0.0
  %v5543 = vmax.f32 %v4065, 0.0
  %v5544 = vmax.f32 %v4070, 0.0
  %v5545 = vmax.f32 %v4073, 0.0
  %v5546 = vmax.f32 %v4078, 0.0
  %v5547 = vmax.f32 %v4081, 0.0
  %v5548 = vmax.f32 %v4086, 0.0
  %v5549 = vmax.f32 %v4089, 0.0
  %v5550 = vmax.f32 %v4094, 0.0
  %v5551 = vmax.f32 %v4097, 0.0
  %v5552 = vmax.f32 %v4102, 0.0
  %v5553 = vmax.f32 %v4105, 0.0
  %v5554 = vmax.f32 %v4110, 0.0
  %v5555 = vmax.f32 %v4113, 0.0
  %v5556 = vmax.f32 %v4118, 0.0
  %v5557 = vmax.f32 %v4121, 0.0
  %v5558 = vmax.f32 %v4126, 0.0
  %v5559 = vmax.f32 %v4129, 0.0
  %v5560 = vmax.f32 %v4134, 0.0
  %v5561 = vmax.f32 %v4137, 0.0
  %v5562 = vmax.f32 %v4142, 0.0
  %v5563 = vmax.f32 %v4145, 0.0
  %v5564 = vmax.f32 %v4150, 0.0
  %v5565 = vmax.f32 %v4153, 0.0
  %v5566 = vmax.f32 %v4158, 0.0
  %v5567 = vmax.f32 %v4161, 0.0
  %v5568 = vmax.f32 %v4166, 0.0
  %v5569 = vmax.f32 %v4169, 0.0
  %v5570 = vmax.f32 %v4174, 0.0
  %v5571 = vmax.f32 %v4177, 0.0
  %v5572 = vmax.f32 %v4182, 0.0
  %v5573 = vmax.f32 %v4185, 0.0
  %v5574 = vmax.f32 %v4190, 0.0
  %v5575 = vmax.f32 %v4193, 0.0
  %v5576 = vmax.f32 %v4198, 0.0
  %v5577 = vmax.f32 %v4201, 0.0
  %v5578 = vmax.f32 %v4206, 0.0
  %v5579 = vmax.f32 %v4209, 0.0
  %v5580 = vmax.f32 %v4214, 0.0
  %v5581 = vmax.f32 %v4217, 0.0
  %v5582 = vmax.f32 %v4222, 0.0
  %v5583 = vmax.f32 %v4225, 0.0
  %v5584 = vmax.f32 %v4230, 0.0
  %v5585 = vmax.f32 %v4233, 0.0
  %v5586 = vmax.f32 %v4238, 0.0
  %v5587 = vmax.f32 %v4241, 0.0
  %v5588 = vmax.f32 %v4246, 0.0
  %v5589 = vmax.f32 %v4249, 0.0
  %v5590 = vmax.f32 %v4254, 0.0
  %v5591 = vmax.f32 %v4257, 0.0
  %v5592 = vmax.f32 %v4262, 0.0
  %v5593 = vmax.f32 %v4265, 0.0
  %v5594 = vmax.f32 %v4270, 0.0
  %v5595 = vmax.f32 %v4273, 0.0
  %v5596 = vmax.f32 %v4278, 0.0
  %v5597 = vmax.f32 %v4281, 0.0
  %v5598 = vmax.f32 %v4286, 0.0
  %v5599 = vmax.f32 %v4289, 0.0
  %v5600 = vmax.f32 %v4294, 0.0
  %v5601 = vmax.f32 %v4297, 0.0
  %v5602 = vmax.f32 %v4302, 0.0
  %v5603 = vmax.f32 %v4305, 0.0
  %v5604 = vmax.f32 %v4310, 0.0
  %v5605 = vmax.f32 %v4313, 0.0
  %v5606 = vmax.f32 %v4318, 0.0
  %v5607 = vmax.f32 %v4321, 0.0
  %v5608 = vmax.f32 %v4326, 0.0
  %v5609 = vmax.f32 %v4329, 0.0
  %v5610 = vmax.f32 %v4334, 0.0
  %v5611 = vmax.f32 %v4337, 0.0
  %v5612 = vmax.f32 %v4342, 0.0
  %v5613 = vmax.f32 %v4345, 0.0
  %v5614 = vmax.f32 %v4350, 0.0
  %v5615 = vmax.f32 %v4353, 0.0
  %v5616 = vmax.f32 %v4358, 0.0
  %v5617 = vmax.f32 %v4361, 0.0
  %v5618 = vmax.f32 %v4366, 0.0
  %v5619 = vmax.f32 %v4369, 0.0
  %v5620 = vmax.f32 %v4374, 0.0
  %v5621 = vmax.f32 %v4377, 0.0
  %v5622 = vmax.f32 %v4382, 0.0
  %v5623 = vmax.f32 %v4385, 0.0
  %v5624 = vmax.f32 %v4390, 0.0
  %v5625 = vmax.f32 %v4393, 0.0
  %v5626 = vmax.f32 %v4398, 0.0
  %v5627 = vmax.f32 %v4401, 0.0
  %v5628 = vmax.f32 %v4406, 0.0
  %v5629 = vmax.f32 %v4409, 0.0
  %v5630 = vmax.f32 %v4414, 0.0
  %v5631 = vmax.f32 %v4417, 0.0
  %v5632 = vmax.f32 %v4422, 0.0
  %v5633 = vmax.f32 %v4425, 0.0
  %v5634 = vmax.f32 %v4430, 0.0
  %v5635 = vmax.f32 %v4433, 0.0
  %v5636 = vmax.f32 %v4438, 0.0
  %v5637 = vmax.f32 %v4441, 0.0
  %v5638 = vmax.f32 %v4446, 0.0
  %v5639 = vmax.f32 %v4449, 0.0
  %v5640 = vmax.f32 %v4454, 0.0
  %v5641 = vmax.f32 %v4457, 0.0
  %v5642 = vmax.f32 %v4462, 0.0
  %v5643 = vmax.f32 %v4465, 0.0
  %v5644 = vmax.f32 %v4470, 0.0
  %v5645 = vmax.f32 %v4473, 0.0
  %v5646 = vmax.f32 %v4478, 0.0
  %v5647 = vmax.f32 %v4481, 0.0
  %v5648 = vmax.f32 %v4486, 0.0
  %v5649 = vmax.f32 %v4489, 0.0
  %v5650 = vmax.f32 %v4494, 0.0
  %v5651 = vmax.f32 %v4497, 0.0
  %v5652 = vmax.f32 %v4502, 0.0
  %v5653 = vmax.f32 %v4505, 0.0
  %v5654 = vmax.f32 %v4510, 0.0
  %v5655 = vmax.f32 %v4513, 0.0
  %v5656 = vmax.f32 %v4518, 0.0
  %v5657 = vmax.f32 %v4521, 0.0
  %v5658 = vmax.f32 %v4526, 0.0
  %v5659 = vmax.f32 %v4529, 0.0
  %v5660 = vmax.f32 %v4534, 0.0
  %v5661 = vmax.f32 %v4537, 0.0
  %v5662 = vmax.f32 %v4542, 0.0
  %v5663 = vmax.f32 %v4545, 0.0
  %v5664 = vmax.f32 %v4550, 0.0
  %v5665 = vmax.f32 %v4553, 0.0
  %v5666 = vmax.f32 %v4558, 0.0
  %v5667 = vmax.f32 %v4561, 0.0
  %v5668 = vmax.f32 %v4566, 0.0
  %v5669 = vmax.f32 %v4569, 0.0
  %v5670 = vmax.f32 %v4574, 0.0
  %v5671 = vmax.f32 %v4577, 0.0
  %v5672 = vmax.f32 %v4582, 0.0
  %v5673 = vmax.f32 %v4585, 0.0
  %v5674 = vmax.f32 %v4590, 0.0
  %v5675 = vmax.f32 %v4593, 0.0
  %v5676 = vmax.f32 %v4598, 0.0
  %v5677 = vmax.f32 %v4601, 0.0
  %v5678 = vmax.f32 %v4606, 0.0
  %v5679 = vmax.f32 %v4609, 0.0
  %v5680 = vmax.f32 %v4614, 0.0
  %v5681 = vmax.f32 %v4617, 0.0
  %v5682 = vmax.f32 %v4622, 0.0
  %v5683 = vmax.f32 %v4625, 0.0
  %v5684 = vmax.f32 %v4630, 0.0
  %v5685 = vmax.f32 %v4633, 0.0
  %v5686 = vmax.f32 %v4638, 0.0
  %v5687 = vmax.f32 %v4641, 0.0
  %v5688 = vmax.f32 %v4646, 0.0
  %v5689 = vmax.f32 %v4649, 0.0
  %v5690 = vmax.f32 %v4654, 0.0
  %v5691 = vmax.f32 %v4657, 0.0
  %v5692 = vmax.f32 %v4662, 0.0
  %v5693 = vmax.f32 %v4665, 0.0
  %v5694 = vmax.f32 %v4670, 0.0
  %v5695 = vmax.f32 %v4673, 0.0
  %v5696 = vmax.f32 %v4678, 0.0
  %v5697 = vmax.f32 %v4681, 0.0
  %v5698 = vmax.f32 %v4686, 0.0
  %v5699 = vmax.f32 %v4689, 0.0
  %v5700 = vmax.f32 %v4694, 0.0
  %v5701 = vmax.f32 %v4697, 0.0
  %v5702 = vmax.f32 %v4702, 0.0
  %v5703 = vmax.f32 %v4705, 0.0
  %v5704 = vmax.f32 %v4710, 0.0
  %v5705 = vmax.f32 %v4713, 0.0
  %v5706 = vmax.f32 %v4718, 0.0
  %v5707 = vmax.f32 %v4721, 0.0
  %v5708 = vmax.f32 %v4726, 0.0
  %v5709 = vmax.f32 %v4729, 0.0
  %v5710 = vmax.f32 %v4734, 0.0
  %v5711 = vmax.f32 %v4737, 0.0
  %v5712 = vmax.f32 %v4742, 0.0
  %v5713 = vmax.f32 %v4745, 0.0
  %v5714 = vmax.f32 %v4750, 0.0
  %v5715 = vmax.f32 %v4753, 0.0
  %v5716 = vmax.f32 %v4758, 0.0
  %v5717 = vmax.f32 %v4761, 0.0
  %v5718 = vmax.f32 %v4766, 0.0
  %v5719 = vmax.f32 %v4769, 0.0
  %v5720 = vmax.f32 %v4774, 0.0
  %v5721 = vmax.f32 %v4777, 0.0
  %v5722 = vmax.f32 %v4782, 0.0
  %v5723 = vmax.f32 %v4785, 0.0
  %v5724 = vmax.f32 %v4790, 0.0
  %v5725 = vmax.f32 %v4793, 0.0
  %v5726 = vmax.f32 %v4798, 0.0
  %v5727 = vmax.f32 %v4801, 0.0
  %v5728 = vmax.f32 %v4806, 0.0
  %v5729 = vmax.f32 %v4809, 0.0
  %v5730 = vmax.f32 %v4814, 0.0
  %v5731 = vmax.f32 %v4817, 0.0
  %v5732 = vmax.f32 %v4822, 0.0
  %v5733 = vmax.f32 %v4825, 0.0
  %v5734 = vmax.f32 %v4830, 0.0
  %v5735 = vmax.f32 %v4833, 0.0
  %v5736 = vmax.f32 %v4838, 0.0
  %v5737 = vmax.f32 %v4841, 0.0
  %v5738 = vmax.f32 %v4846, 0.0
  %v5739 = vmax.f32 %v4849, 0.0
  %v5740 = vmax.f32 %v4854, 0.0
  %v5741 = vmax.f32 %v4857, 0.0
  %v5742 = vmax.f32 %v4862, 0.0
  %v5743 = vmax.f32 %v4865, 0.0
  %v5744 = vmax.f32 %v4870, 0.0
  %v5745 = vmax.f32 %v4873, 0.0
  %v5746 = vmax.f32 %v4878, 0.0
  %v5747 = vmax.f32 %v4881, 0.0
  %v5748 = vmax.f32 %v4886, 0.0
  %v5749 = vmax.f32 %v4889, 0.0
  %v5750 = vmax.f32 %v4894, 0.0
  %v5751 = vmax.f32 %v4897, 0.0
  %v5752 = vmax.f32 %v4902, 0.0
  %v5753 = vmax.f32 %v4905, 0.0
  %v5754 = vmax.f32 %v4910, 0.0
  %v5755 = vmax.f32 %v4913, 0.0
  %v5756 = vmax.f32 %v4918, 0.0
  %v5757 = vmax.f32 %v4921, 0.0
  %v5758 = vmax.f32 %v4926, 0.0
  %v5759 = vmax.f32 %v4929, 0.0
  %v5760 = vmax.f32 %v4934, 0.0
  %v5761 = vmax.f32 %v4937, 0.0
  %v5762 = vmax.f32 %v4942, 0.0
  %v5763 = vmax.f32 %v4945, 0.0
  %v5764 = vmax.f32 %v4950, 0.0
  %v5765 = vmax.f32 %v4953, 0.0
  %v5766 = vmax.f32 %v4958, 0.0
  %v5767 = vmax.f32 %v4961, 0.0
  %v5768 = vmax.f32 %v4966, 0.0
  %v5769 = vmax.f32 %v4969, 0.0
  %v5770 = vmax.f32 %v4974, 0.0
  %v5771 = vmax.f32 %v4977, 0.0
  %v5772 = vmax.f32 %v4982, 0.0
  %v5773 = vmax.f32 %v4985, 0.0
  %v5774 = vmax.f32 %v4990, 0.0
  %v5775 = vmax.f32 %v4993, 0.0
  %v5776 = vmax.f32 %v4998, 0.0
  %v5777 = vmax.f32 %v5001, 0.0
  %v5778 = vmax.f32 %v5006, 0.0
  %v5779 = vmax.f32 %v5009, 0.0
  %v5780 = vmax.f32 %v5014, 0.0
  %v5781 = vmax.f32 %v5017, 0.0
  %v5782 = vmax.f32 %v5022, 0.0
  %v5783 = vmax.f32 %v5025, 0.0
  %v5784 = vmax.f32 %v5030, 0.0
  %v5785 = vmax.f32 %v5033, 0.0
  %v5786 = vmax.f32 %v5038, 0.0
  %v5787 = vmax.f32 %v5041, 0.0
  %v5788 = vmax.f32 %v5046, 0.0
  %v5789 = vmax.f32 %v5049, 0.0
  %v5790 = vmax.f32 %v5054, 0.0
  %v5791 = vmax.f32 %v5057, 0.0
  %v5792 = vmax.f32 %v5062, 0.0
  %v5793 = vmax.f32 %v5065, 0.0
  %v5794 = vmax.f32 %v5070, 0.0
  %v5795 = vmax.f32 %v5073, 0.0
  %v5796 = vmax.f32 %v5078, 0.0
  %v5797 = vmax.f32 %v5081, 0.0
  %v5798 = vmax.f32 %v5086, 0.0
  %v5799 = vmax.f32 %v5089, 0.0
  %v5800 = vmax.f32 %v5094, 0.0
  %v5801 = vmax.f32 %v5097, 0.0
  %v5802 = vmax.f32 %v5102, 0.0
  %v5803 = vmax.f32 %v5105, 0.0
  %v5804 = vmax.f32 %v5110, 0.0
  %v5805 = vmax.f32 %v5113, 0.0
  %v5806 = vmax.f32 %v5118, 0.0
  %v5807 = vmax.f32 %v5121, 0.0
  %v5808 = vmax.f32 %v5126, 0.0
  %v5809 = vmax.f32 %v5129, 0.0
  %v5810 = vmax.f32 %v5134, 0.0
  %v5811 = vmax.f32 %v5137, 0.0
  %v5812 = vmax.f32 %v5142, 0.0
  %v5813 = vmax.f32 %v5145, 0.0
  %v5814 = vmax.f32 %v5150, 0.0
  %v5815 = vmax.f32 %v5153, 0.0
  %v5816 = vmax.f32 %v5158, 0.0
  %v5817 = vmax.f32 %v5161, 0.0
  %v5818 = vmax.f32 %v5166, 0.0
  %v5819 = vmax.f32 %v5169, 0.0
  %v5820 = vmax.f32 %v5174, 0.0
  %v5821 = vmax.f32 %v5177, 0.0
  %v5822 = vmax.f32 %v5182, 0.0
  %v5823 = vmax.f32 %v5185, 0.0
  %v5824 = vmax.f32 %v5190, 0.0
  %v5825 = vmax.f32 %v5193, 0.0
  %v5826 = vmax.f32 %v5198, 0.0
  %v5827 = vmax.f32 %v5201, 0.0
  %v5828 = vmax.f32 %v5206, 0.0
  %v5829 = vmax.f32 %v5209, 0.0
  %v5830 = vmax.f32 %v5214, 0.0
  %v5831 = vmax.f32 %v5217, 0.0
  %v5832 = vmax.f32 %v5222, 0.0
  %v5833 = vmax.f32 %v5225, 0.0
  %v5834 = vmax.f32 %v5230, 0.0
  %v5835 = vmax.f32 %v5233, 0.0
  %v5836 = vmax.f32 %v5238, 0.0
  %v5837 = vmax.f32 %v5241, 0.0
  %v5838 = vmax.f32 %v5246, 0.0
  %v5839 = vmax.f32 %v5249, 0.0
  %v5840 = vmax.f32 %v5254, 0.0
  %v5841 = vmax.f32 %v5257, 0.0
  %v5842 = vmax.f32 %v5262, 0.0
  %v5843 = vmax.f32 %v5265, 0.0
  %v5844 = vld [vmem:[%s3] sm:$0x1]
  %v5846 = vlaneseq
  %v5847 = vshrl.u32 %v5846, 7
  %v5848 = vsub.s32 0, %v5847
  %v5849 = vrot.slane %v5844, %v5848
  %v5851 = vmul.f32 %v5268, %v5849
  %v5852 = vmul.f32 %v5269, %v5849
  %v5853 = vmul.f32 %v5270, %v5849
  %v5854 = vmul.f32 %v5271, %v5849
  %v5855 = vmul.f32 %v5272, %v5849
  %v5856 = vmul.f32 %v5273, %v5849
  %v5857 = vmul.f32 %v5274, %v5849
  %v5858 = vmul.f32 %v5275, %v5849
  %v5859 = vmul.f32 %v5276, %v5849
  %v5860 = vmul.f32 %v5277, %v5849
  %v5861 = vmul.f32 %v5278, %v5849
  %v5862 = vmul.f32 %v5279, %v5849
  %v5863 = vmul.f32 %v5280, %v5849
  %v5864 = vmul.f32 %v5281, %v5849
  %v5865 = vmul.f32 %v5282, %v5849
  %v5866 = vmul.f32 %v5283, %v5849
  %v5867 = vmul.f32 %v5284, %v5849
  %v5868 = vmul.f32 %v5285, %v5849
  %v5869 = vmul.f32 %v5286, %v5849
  %v5870 = vmul.f32 %v5287, %v5849
  %v5871 = vmul.f32 %v5288, %v5849
  %v5872 = vmul.f32 %v5289, %v5849
  %v5873 = vmul.f32 %v5290, %v5849
  %v5874 = vmul.f32 %v5291, %v5849
  %v5875 = vmul.f32 %v5292, %v5849
  %v5876 = vmul.f32 %v5293, %v5849
  %v5877 = vmul.f32 %v5294, %v5849
  %v5878 = vmul.f32 %v5295, %v5849
  %v5879 = vmul.f32 %v5296, %v5849
  %v5880 = vmul.f32 %v5297, %v5849
  %v5881 = vmul.f32 %v5298, %v5849
  %v5882 = vmul.f32 %v5299, %v5849
  %v5883 = vmul.f32 %v5300, %v5849
  %v5884 = vmul.f32 %v5301, %v5849
  %v5885 = vmul.f32 %v5302, %v5849
  %v5886 = vmul.f32 %v5303, %v5849
  %v5887 = vmul.f32 %v5304, %v5849
  %v5888 = vmul.f32 %v5305, %v5849
  %v5889 = vmul.f32 %v5306, %v5849
  %v5890 = vmul.f32 %v5307, %v5849
  %v5891 = vmul.f32 %v5308, %v5849
  %v5892 = vmul.f32 %v5309, %v5849
  %v5893 = vmul.f32 %v5310, %v5849
  %v5894 = vmul.f32 %v5311, %v5849
  %v5895 = vmul.f32 %v5312, %v5849
  %v5896 = vmul.f32 %v5313, %v5849
  %v5897 = vmul.f32 %v5314, %v5849
  %v5898 = vmul.f32 %v5315, %v5849
  %v5899 = vmul.f32 %v5316, %v5849
  %v5900 = vmul.f32 %v5317, %v5849
  %v5901 = vmul.f32 %v5318, %v5849
  %v5902 = vmul.f32 %v5319, %v5849
  %v5903 = vmul.f32 %v5320, %v5849
  %v5904 = vmul.f32 %v5321, %v5849
  %v5905 = vmul.f32 %v5322, %v5849
  %v5906 = vmul.f32 %v5323, %v5849
  %v5907 = vmul.f32 %v5324, %v5849
  %v5908 = vmul.f32 %v5325, %v5849
  %v5909 = vmul.f32 %v5326, %v5849
  %v5910 = vmul.f32 %v5327, %v5849
  %v5911 = vmul.f32 %v5328, %v5849
  %v5912 = vmul.f32 %v5329, %v5849
  %v5913 = vmul.f32 %v5330, %v5849
  %v5914 = vmul.f32 %v5331, %v5849
  %v5915 = vmul.f32 %v5332, %v5849
  %v5916 = vmul.f32 %v5333, %v5849
  %v5917 = vmul.f32 %v5334, %v5849
  %v5918 = vmul.f32 %v5335, %v5849
  %v5919 = vmul.f32 %v5336, %v5849
  %v5920 = vmul.f32 %v5337, %v5849
  %v5921 = vmul.f32 %v5338, %v5849
  %v5922 = vmul.f32 %v5339, %v5849
  %v5923 = vmul.f32 %v5340, %v5849
  %v5924 = vmul.f32 %v5341, %v5849
  %v5925 = vmul.f32 %v5342, %v5849
  %v5926 = vmul.f32 %v5343, %v5849
  %v5927 = vmul.f32 %v5344, %v5849
  %v5928 = vmul.f32 %v5345, %v5849
  %v5929 = vmul.f32 %v5346, %v5849
  %v5930 = vmul.f32 %v5347, %v5849
  %v5931 = vmul.f32 %v5348, %v5849
  %v5932 = vmul.f32 %v5349, %v5849
  %v5933 = vmul.f32 %v5350, %v5849
  %v5934 = vmul.f32 %v5351, %v5849
  %v5935 = vmul.f32 %v5352, %v5849
  %v5936 = vmul.f32 %v5353, %v5849
  %v5937 = vmul.f32 %v5354, %v5849
  %v5938 = vmul.f32 %v5355, %v5849
  %v5939 = vmul.f32 %v5356, %v5849
  %v5940 = vmul.f32 %v5357, %v5849
  %v5941 = vmul.f32 %v5358, %v5849
  %v5942 = vmul.f32 %v5359, %v5849
  %v5943 = vmul.f32 %v5360, %v5849
  %v5944 = vmul.f32 %v5361, %v5849
  %v5945 = vmul.f32 %v5362, %v5849
  %v5946 = vmul.f32 %v5363, %v5849
  %v5947 = vmul.f32 %v5364, %v5849
  %v5948 = vmul.f32 %v5365, %v5849
  %v5949 = vmul.f32 %v5366, %v5849
  %v5950 = vmul.f32 %v5367, %v5849
  %v5951 = vmul.f32 %v5368, %v5849
  %v5952 = vmul.f32 %v5369, %v5849
  %v5953 = vmul.f32 %v5370, %v5849
  %v5954 = vmul.f32 %v5371, %v5849
  %v5955 = vmul.f32 %v5372, %v5849
  %v5956 = vmul.f32 %v5373, %v5849
  %v5957 = vmul.f32 %v5374, %v5849
  %v5958 = vmul.f32 %v5375, %v5849
  %v5959 = vmul.f32 %v5376, %v5849
  %v5960 = vmul.f32 %v5377, %v5849
  %v5961 = vmul.f32 %v5378, %v5849
  %v5962 = vmul.f32 %v5379, %v5849
  %v5963 = vmul.f32 %v5380, %v5849
  %v5964 = vmul.f32 %v5381, %v5849
  %v5965 = vmul.f32 %v5382, %v5849
  %v5966 = vmul.f32 %v5383, %v5849
  %v5967 = vmul.f32 %v5384, %v5849
  %v5968 = vmul.f32 %v5385, %v5849
  %v5969 = vmul.f32 %v5386, %v5849
  %v5970 = vmul.f32 %v5387, %v5849
  %v5971 = vmul.f32 %v5388, %v5849
  %v5972 = vmul.f32 %v5389, %v5849
  %v5973 = vmul.f32 %v5390, %v5849
  %v5974 = vmul.f32 %v5391, %v5849
  %v5975 = vmul.f32 %v5392, %v5849
  %v5976 = vmul.f32 %v5393, %v5849
  %v5977 = vmul.f32 %v5394, %v5849
  %v5978 = vmul.f32 %v5395, %v5849
  %v5979 = vmul.f32 %v5396, %v5849
  %v5980 = vmul.f32 %v5397, %v5849
  %v5981 = vmul.f32 %v5398, %v5849
  %v5982 = vmul.f32 %v5399, %v5849
  %v5983 = vmul.f32 %v5400, %v5849
  %v5984 = vmul.f32 %v5401, %v5849
  %v5985 = vmul.f32 %v5402, %v5849
  %v5986 = vmul.f32 %v5403, %v5849
  %v5987 = vmul.f32 %v5404, %v5849
  %v5988 = vmul.f32 %v5405, %v5849
  %v5989 = vmul.f32 %v5406, %v5849
  %v5990 = vmul.f32 %v5407, %v5849
  %v5991 = vmul.f32 %v5408, %v5849
  %v5992 = vmul.f32 %v5409, %v5849
  %v5993 = vmul.f32 %v5410, %v5849
  %v5994 = vmul.f32 %v5411, %v5849
  %v5995 = vmul.f32 %v5412, %v5849
  %v5996 = vmul.f32 %v5413, %v5849
  %v5997 = vmul.f32 %v5414, %v5849
  %v5998 = vmul.f32 %v5415, %v5849
  %v5999 = vmul.f32 %v5416, %v5849
  %v6000 = vmul.f32 %v5417, %v5849
  %v6001 = vmul.f32 %v5418, %v5849
  %v6002 = vmul.f32 %v5419, %v5849
  %v6003 = vmul.f32 %v5420, %v5849
  %v6004 = vmul.f32 %v5421, %v5849
  %v6005 = vmul.f32 %v5422, %v5849
  %v6006 = vmul.f32 %v5423, %v5849
  %v6007 = vmul.f32 %v5424, %v5849
  %v6008 = vmul.f32 %v5425, %v5849
  %v6009 = vmul.f32 %v5426, %v5849
  %v6010 = vmul.f32 %v5427, %v5849
  %v6011 = vmul.f32 %v5428, %v5849
  %v6012 = vmul.f32 %v5429, %v5849
  %v6013 = vmul.f32 %v5430, %v5849
  %v6014 = vmul.f32 %v5431, %v5849
  %v6015 = vmul.f32 %v5432, %v5849
  %v6016 = vmul.f32 %v5433, %v5849
  %v6017 = vmul.f32 %v5434, %v5849
  %v6018 = vmul.f32 %v5435, %v5849
  %v6019 = vmul.f32 %v5436, %v5849
  %v6020 = vmul.f32 %v5437, %v5849
  %v6021 = vmul.f32 %v5438, %v5849
  %v6022 = vmul.f32 %v5439, %v5849
  %v6023 = vmul.f32 %v5440, %v5849
  %v6024 = vmul.f32 %v5441, %v5849
  %v6025 = vmul.f32 %v5442, %v5849
  %v6026 = vmul.f32 %v5443, %v5849
  %v6027 = vmul.f32 %v5444, %v5849
  %v6028 = vmul.f32 %v5445, %v5849
  %v6029 = vmul.f32 %v5446, %v5849
  %v6030 = vmul.f32 %v5447, %v5849
  %v6031 = vmul.f32 %v5448, %v5849
  %v6032 = vmul.f32 %v5449, %v5849
  %v6033 = vmul.f32 %v5450, %v5849
  %v6034 = vmul.f32 %v5451, %v5849
  %v6035 = vmul.f32 %v5452, %v5849
  %v6036 = vmul.f32 %v5453, %v5849
  %v6037 = vmul.f32 %v5454, %v5849
  %v6038 = vmul.f32 %v5455, %v5849
  %v6039 = vmul.f32 %v5456, %v5849
  %v6040 = vmul.f32 %v5457, %v5849
  %v6041 = vmul.f32 %v5458, %v5849
  %v6042 = vmul.f32 %v5459, %v5849
  %v6043 = vmul.f32 %v5460, %v5849
  %v6044 = vmul.f32 %v5461, %v5849
  %v6045 = vmul.f32 %v5462, %v5849
  %v6046 = vmul.f32 %v5463, %v5849
  %v6047 = vmul.f32 %v5464, %v5849
  %v6048 = vmul.f32 %v5465, %v5849
  %v6049 = vmul.f32 %v5466, %v5849
  %v6050 = vmul.f32 %v5467, %v5849
  %v6051 = vmul.f32 %v5468, %v5849
  %v6052 = vmul.f32 %v5469, %v5849
  %v6053 = vmul.f32 %v5470, %v5849
  %v6054 = vmul.f32 %v5471, %v5849
  %v6055 = vmul.f32 %v5472, %v5849
  %v6056 = vmul.f32 %v5473, %v5849
  %v6057 = vmul.f32 %v5474, %v5849
  %v6058 = vmul.f32 %v5475, %v5849
  %v6059 = vmul.f32 %v5476, %v5849
  %v6060 = vmul.f32 %v5477, %v5849
  %v6061 = vmul.f32 %v5478, %v5849
  %v6062 = vmul.f32 %v5479, %v5849
  %v6063 = vmul.f32 %v5480, %v5849
  %v6064 = vmul.f32 %v5481, %v5849
  %v6065 = vmul.f32 %v5482, %v5849
  %v6066 = vmul.f32 %v5483, %v5849
  %v6067 = vmul.f32 %v5484, %v5849
  %v6068 = vmul.f32 %v5485, %v5849
  %v6069 = vmul.f32 %v5486, %v5849
  %v6070 = vmul.f32 %v5487, %v5849
  %v6071 = vmul.f32 %v5488, %v5849
  %v6072 = vmul.f32 %v5489, %v5849
  %v6073 = vmul.f32 %v5490, %v5849
  %v6074 = vmul.f32 %v5491, %v5849
  %v6075 = vmul.f32 %v5492, %v5849
  %v6076 = vmul.f32 %v5493, %v5849
  %v6077 = vmul.f32 %v5494, %v5849
  %v6078 = vmul.f32 %v5495, %v5849
  %v6079 = vmul.f32 %v5496, %v5849
  %v6080 = vmul.f32 %v5497, %v5849
  %v6081 = vmul.f32 %v5498, %v5849
  %v6082 = vmul.f32 %v5499, %v5849
  %v6083 = vmul.f32 %v5500, %v5849
  %v6084 = vmul.f32 %v5501, %v5849
  %v6085 = vmul.f32 %v5502, %v5849
  %v6086 = vmul.f32 %v5503, %v5849
  %v6087 = vmul.f32 %v5504, %v5849
  %v6088 = vmul.f32 %v5505, %v5849
  %v6089 = vmul.f32 %v5506, %v5849
  %v6090 = vmul.f32 %v5507, %v5849
  %v6091 = vmul.f32 %v5508, %v5849
  %v6092 = vmul.f32 %v5509, %v5849
  %v6093 = vmul.f32 %v5510, %v5849
  %v6094 = vmul.f32 %v5511, %v5849
  %v6095 = vmul.f32 %v5512, %v5849
  %v6096 = vmul.f32 %v5513, %v5849
  %v6097 = vmul.f32 %v5514, %v5849
  %v6098 = vmul.f32 %v5515, %v5849
  %v6099 = vmul.f32 %v5516, %v5849
  %v6100 = vmul.f32 %v5517, %v5849
  %v6101 = vmul.f32 %v5518, %v5849
  %v6102 = vmul.f32 %v5519, %v5849
  %v6103 = vmul.f32 %v5520, %v5849
  %v6104 = vmul.f32 %v5521, %v5849
  %v6105 = vmul.f32 %v5522, %v5849
  %v6106 = vmul.f32 %v5523, %v5849
  %v6107 = vmul.f32 %v5524, %v5849
  %v6108 = vmul.f32 %v5525, %v5849
  %v6109 = vmul.f32 %v5526, %v5849
  %v6110 = vmul.f32 %v5527, %v5849
  %v6111 = vmul.f32 %v5528, %v5849
  %v6112 = vmul.f32 %v5529, %v5849
  %v6113 = vmul.f32 %v5530, %v5849
  %v6114 = vmul.f32 %v5531, %v5849
  %v6115 = vmul.f32 %v5532, %v5849
  %v6116 = vmul.f32 %v5533, %v5849
  %v6117 = vmul.f32 %v5534, %v5849
  %v6118 = vmul.f32 %v5535, %v5849
  %v6119 = vmul.f32 %v5536, %v5849
  %v6120 = vmul.f32 %v5537, %v5849
  %v6121 = vmul.f32 %v5538, %v5849
  %v6122 = vmul.f32 %v5539, %v5849
  %v6123 = vmul.f32 %v5540, %v5849
  %v6124 = vmul.f32 %v5541, %v5849
  %v6125 = vmul.f32 %v5542, %v5849
  %v6126 = vmul.f32 %v5543, %v5849
  %v6127 = vmul.f32 %v5544, %v5849
  %v6128 = vmul.f32 %v5545, %v5849
  %v6129 = vmul.f32 %v5546, %v5849
  %v6130 = vmul.f32 %v5547, %v5849
  %v6131 = vmul.f32 %v5548, %v5849
  %v6132 = vmul.f32 %v5549, %v5849
  %v6133 = vmul.f32 %v5550, %v5849
  %v6134 = vmul.f32 %v5551, %v5849
  %v6135 = vmul.f32 %v5552, %v5849
  %v6136 = vmul.f32 %v5553, %v5849
  %v6137 = vmul.f32 %v5554, %v5849
  %v6138 = vmul.f32 %v5555, %v5849
  %v6139 = vmul.f32 %v5556, %v5849
  %v6140 = vmul.f32 %v5557, %v5849
  %v6141 = vmul.f32 %v5558, %v5849
  %v6142 = vmul.f32 %v5559, %v5849
  %v6143 = vmul.f32 %v5560, %v5849
  %v6144 = vmul.f32 %v5561, %v5849
  %v6145 = vmul.f32 %v5562, %v5849
  %v6146 = vmul.f32 %v5563, %v5849
  %v6147 = vmul.f32 %v5564, %v5849
  %v6148 = vmul.f32 %v5565, %v5849
  %v6149 = vmul.f32 %v5566, %v5849
  %v6150 = vmul.f32 %v5567, %v5849
  %v6151 = vmul.f32 %v5568, %v5849
  %v6152 = vmul.f32 %v5569, %v5849
  %v6153 = vmul.f32 %v5570, %v5849
  %v6154 = vmul.f32 %v5571, %v5849
  %v6155 = vmul.f32 %v5572, %v5849
  %v6156 = vmul.f32 %v5573, %v5849
  %v6157 = vmul.f32 %v5574, %v5849
  %v6158 = vmul.f32 %v5575, %v5849
  %v6159 = vmul.f32 %v5576, %v5849
  %v6160 = vmul.f32 %v5577, %v5849
  %v6161 = vmul.f32 %v5578, %v5849
  %v6162 = vmul.f32 %v5579, %v5849
  %v6163 = vmul.f32 %v5580, %v5849
  %v6164 = vmul.f32 %v5581, %v5849
  %v6165 = vmul.f32 %v5582, %v5849
  %v6166 = vmul.f32 %v5583, %v5849
  %v6167 = vmul.f32 %v5584, %v5849
  %v6168 = vmul.f32 %v5585, %v5849
  %v6169 = vmul.f32 %v5586, %v5849
  %v6170 = vmul.f32 %v5587, %v5849
  %v6171 = vmul.f32 %v5588, %v5849
  %v6172 = vmul.f32 %v5589, %v5849
  %v6173 = vmul.f32 %v5590, %v5849
  %v6174 = vmul.f32 %v5591, %v5849
  %v6175 = vmul.f32 %v5592, %v5849
  %v6176 = vmul.f32 %v5593, %v5849
  %v6177 = vmul.f32 %v5594, %v5849
  %v6178 = vmul.f32 %v5595, %v5849
  %v6179 = vmul.f32 %v5596, %v5849
  %v6180 = vmul.f32 %v5597, %v5849
  %v6181 = vmul.f32 %v5598, %v5849
  %v6182 = vmul.f32 %v5599, %v5849
  %v6183 = vmul.f32 %v5600, %v5849
  %v6184 = vmul.f32 %v5601, %v5849
  %v6185 = vmul.f32 %v5602, %v5849
  %v6186 = vmul.f32 %v5603, %v5849
  %v6187 = vmul.f32 %v5604, %v5849
  %v6188 = vmul.f32 %v5605, %v5849
  %v6189 = vmul.f32 %v5606, %v5849
  %v6190 = vmul.f32 %v5607, %v5849
  %v6191 = vmul.f32 %v5608, %v5849
  %v6192 = vmul.f32 %v5609, %v5849
  %v6193 = vmul.f32 %v5610, %v5849
  %v6194 = vmul.f32 %v5611, %v5849
  %v6195 = vmul.f32 %v5612, %v5849
  %v6196 = vmul.f32 %v5613, %v5849
  %v6197 = vmul.f32 %v5614, %v5849
  %v6198 = vmul.f32 %v5615, %v5849
  %v6199 = vmul.f32 %v5616, %v5849
  %v6200 = vmul.f32 %v5617, %v5849
  %v6201 = vmul.f32 %v5618, %v5849
  %v6202 = vmul.f32 %v5619, %v5849
  %v6203 = vmul.f32 %v5620, %v5849
  %v6204 = vmul.f32 %v5621, %v5849
  %v6205 = vmul.f32 %v5622, %v5849
  %v6206 = vmul.f32 %v5623, %v5849
  %v6207 = vmul.f32 %v5624, %v5849
  %v6208 = vmul.f32 %v5625, %v5849
  %v6209 = vmul.f32 %v5626, %v5849
  %v6210 = vmul.f32 %v5627, %v5849
  %v6211 = vmul.f32 %v5628, %v5849
  %v6212 = vmul.f32 %v5629, %v5849
  %v6213 = vmul.f32 %v5630, %v5849
  %v6214 = vmul.f32 %v5631, %v5849
  %v6215 = vmul.f32 %v5632, %v5849
  %v6216 = vmul.f32 %v5633, %v5849
  %v6217 = vmul.f32 %v5634, %v5849
  %v6218 = vmul.f32 %v5635, %v5849
  %v6219 = vmul.f32 %v5636, %v5849
  %v6220 = vmul.f32 %v5637, %v5849
  %v6221 = vmul.f32 %v5638, %v5849
  %v6222 = vmul.f32 %v5639, %v5849
  %v6223 = vmul.f32 %v5640, %v5849
  %v6224 = vmul.f32 %v5641, %v5849
  %v6225 = vmul.f32 %v5642, %v5849
  %v6226 = vmul.f32 %v5643, %v5849
  %v6227 = vmul.f32 %v5644, %v5849
  %v6228 = vmul.f32 %v5645, %v5849
  %v6229 = vmul.f32 %v5646, %v5849
  %v6230 = vmul.f32 %v5647, %v5849
  %v6231 = vmul.f32 %v5648, %v5849
  %v6232 = vmul.f32 %v5649, %v5849
  %v6233 = vmul.f32 %v5650, %v5849
  %v6234 = vmul.f32 %v5651, %v5849
  %v6235 = vmul.f32 %v5652, %v5849
  %v6236 = vmul.f32 %v5653, %v5849
  %v6237 = vmul.f32 %v5654, %v5849
  %v6238 = vmul.f32 %v5655, %v5849
  %v6239 = vmul.f32 %v5656, %v5849
  %v6240 = vmul.f32 %v5657, %v5849
  %v6241 = vmul.f32 %v5658, %v5849
  %v6242 = vmul.f32 %v5659, %v5849
  %v6243 = vmul.f32 %v5660, %v5849
  %v6244 = vmul.f32 %v5661, %v5849
  %v6245 = vmul.f32 %v5662, %v5849
  %v6246 = vmul.f32 %v5663, %v5849
  %v6247 = vmul.f32 %v5664, %v5849
  %v6248 = vmul.f32 %v5665, %v5849
  %v6249 = vmul.f32 %v5666, %v5849
  %v6250 = vmul.f32 %v5667, %v5849
  %v6251 = vmul.f32 %v5668, %v5849
  %v6252 = vmul.f32 %v5669, %v5849
  %v6253 = vmul.f32 %v5670, %v5849
  %v6254 = vmul.f32 %v5671, %v5849
  %v6255 = vmul.f32 %v5672, %v5849
  %v6256 = vmul.f32 %v5673, %v5849
  %v6257 = vmul.f32 %v5674, %v5849
  %v6258 = vmul.f32 %v5675, %v5849
  %v6259 = vmul.f32 %v5676, %v5849
  %v6260 = vmul.f32 %v5677, %v5849
  %v6261 = vmul.f32 %v5678, %v5849
  %v6262 = vmul.f32 %v5679, %v5849
  %v6263 = vmul.f32 %v5680, %v5849
  %v6264 = vmul.f32 %v5681, %v5849
  %v6265 = vmul.f32 %v5682, %v5849
  %v6266 = vmul.f32 %v5683, %v5849
  %v6267 = vmul.f32 %v5684, %v5849
  %v6268 = vmul.f32 %v5685, %v5849
  %v6269 = vmul.f32 %v5686, %v5849
  %v6270 = vmul.f32 %v5687, %v5849
  %v6271 = vmul.f32 %v5688, %v5849
  %v6272 = vmul.f32 %v5689, %v5849
  %v6273 = vmul.f32 %v5690, %v5849
  %v6274 = vmul.f32 %v5691, %v5849
  %v6275 = vmul.f32 %v5692, %v5849
  %v6276 = vmul.f32 %v5693, %v5849
  %v6277 = vmul.f32 %v5694, %v5849
  %v6278 = vmul.f32 %v5695, %v5849
  %v6279 = vmul.f32 %v5696, %v5849
  %v6280 = vmul.f32 %v5697, %v5849
  %v6281 = vmul.f32 %v5698, %v5849
  %v6282 = vmul.f32 %v5699, %v5849
  %v6283 = vmul.f32 %v5700, %v5849
  %v6284 = vmul.f32 %v5701, %v5849
  %v6285 = vmul.f32 %v5702, %v5849
  %v6286 = vmul.f32 %v5703, %v5849
  %v6287 = vmul.f32 %v5704, %v5849
  %v6288 = vmul.f32 %v5705, %v5849
  %v6289 = vmul.f32 %v5706, %v5849
  %v6290 = vmul.f32 %v5707, %v5849
  %v6291 = vmul.f32 %v5708, %v5849
  %v6292 = vmul.f32 %v5709, %v5849
  %v6293 = vmul.f32 %v5710, %v5849
  %v6294 = vmul.f32 %v5711, %v5849
  %v6295 = vmul.f32 %v5712, %v5849
  %v6296 = vmul.f32 %v5713, %v5849
  %v6297 = vmul.f32 %v5714, %v5849
  %v6298 = vmul.f32 %v5715, %v5849
  %v6299 = vmul.f32 %v5716, %v5849
  %v6300 = vmul.f32 %v5717, %v5849
  %v6301 = vmul.f32 %v5718, %v5849
  %v6302 = vmul.f32 %v5719, %v5849
  %v6303 = vmul.f32 %v5720, %v5849
  %v6304 = vmul.f32 %v5721, %v5849
  %v6305 = vmul.f32 %v5722, %v5849
  %v6306 = vmul.f32 %v5723, %v5849
  %v6307 = vmul.f32 %v5724, %v5849
  %v6308 = vmul.f32 %v5725, %v5849
  %v6309 = vmul.f32 %v5726, %v5849
  %v6310 = vmul.f32 %v5727, %v5849
  %v6311 = vmul.f32 %v5728, %v5849
  %v6312 = vmul.f32 %v5729, %v5849
  %v6313 = vmul.f32 %v5730, %v5849
  %v6314 = vmul.f32 %v5731, %v5849
  %v6315 = vmul.f32 %v5732, %v5849
  %v6316 = vmul.f32 %v5733, %v5849
  %v6317 = vmul.f32 %v5734, %v5849
  %v6318 = vmul.f32 %v5735, %v5849
  %v6319 = vmul.f32 %v5736, %v5849
  %v6320 = vmul.f32 %v5737, %v5849
  %v6321 = vmul.f32 %v5738, %v5849
  %v6322 = vmul.f32 %v5739, %v5849
  %v6323 = vmul.f32 %v5740, %v5849
  %v6324 = vmul.f32 %v5741, %v5849
  %v6325 = vmul.f32 %v5742, %v5849
  %v6326 = vmul.f32 %v5743, %v5849
  %v6327 = vmul.f32 %v5744, %v5849
  %v6328 = vmul.f32 %v5745, %v5849
  %v6329 = vmul.f32 %v5746, %v5849
  %v6330 = vmul.f32 %v5747, %v5849
  %v6331 = vmul.f32 %v5748, %v5849
  %v6332 = vmul.f32 %v5749, %v5849
  %v6333 = vmul.f32 %v5750, %v5849
  %v6334 = vmul.f32 %v5751, %v5849
  %v6335 = vmul.f32 %v5752, %v5849
  %v6336 = vmul.f32 %v5753, %v5849
  %v6337 = vmul.f32 %v5754, %v5849
  %v6338 = vmul.f32 %v5755, %v5849
  %v6339 = vmul.f32 %v5756, %v5849
  %v6340 = vmul.f32 %v5757, %v5849
  %v6341 = vmul.f32 %v5758, %v5849
  %v6342 = vmul.f32 %v5759, %v5849
  %v6343 = vmul.f32 %v5760, %v5849
  %v6344 = vmul.f32 %v5761, %v5849
  %v6345 = vmul.f32 %v5762, %v5849
  %v6346 = vmul.f32 %v5763, %v5849
  %v6347 = vmul.f32 %v5764, %v5849
  %v6348 = vmul.f32 %v5765, %v5849
  %v6349 = vmul.f32 %v5766, %v5849
  %v6350 = vmul.f32 %v5767, %v5849
  %v6351 = vmul.f32 %v5768, %v5849
  %v6352 = vmul.f32 %v5769, %v5849
  %v6353 = vmul.f32 %v5770, %v5849
  %v6354 = vmul.f32 %v5771, %v5849
  %v6355 = vmul.f32 %v5772, %v5849
  %v6356 = vmul.f32 %v5773, %v5849
  %v6357 = vmul.f32 %v5774, %v5849
  %v6358 = vmul.f32 %v5775, %v5849
  %v6359 = vmul.f32 %v5776, %v5849
  %v6360 = vmul.f32 %v5777, %v5849
  %v6361 = vmul.f32 %v5778, %v5849
  %v6362 = vmul.f32 %v5779, %v5849
  %v6363 = vmul.f32 %v5780, %v5849
  %v6364 = vmul.f32 %v5781, %v5849
  %v6365 = vmul.f32 %v5782, %v5849
  %v6366 = vmul.f32 %v5783, %v5849
  %v6367 = vmul.f32 %v5784, %v5849
  %v6368 = vmul.f32 %v5785, %v5849
  %v6369 = vmul.f32 %v5786, %v5849
  %v6370 = vmul.f32 %v5787, %v5849
  %v6371 = vmul.f32 %v5788, %v5849
  %v6372 = vmul.f32 %v5789, %v5849
  %v6373 = vmul.f32 %v5790, %v5849
  %v6374 = vmul.f32 %v5791, %v5849
  %v6375 = vmul.f32 %v5792, %v5849
  %v6376 = vmul.f32 %v5793, %v5849
  %v6377 = vmul.f32 %v5794, %v5849
  %v6378 = vmul.f32 %v5795, %v5849
  %v6379 = vmul.f32 %v5796, %v5849
  %v6380 = vmul.f32 %v5797, %v5849
  %v6381 = vmul.f32 %v5798, %v5849
  %v6382 = vmul.f32 %v5799, %v5849
  %v6383 = vmul.f32 %v5800, %v5849
  %v6384 = vmul.f32 %v5801, %v5849
  %v6385 = vmul.f32 %v5802, %v5849
  %v6386 = vmul.f32 %v5803, %v5849
  %v6387 = vmul.f32 %v5804, %v5849
  %v6388 = vmul.f32 %v5805, %v5849
  %v6389 = vmul.f32 %v5806, %v5849
  %v6390 = vmul.f32 %v5807, %v5849
  %v6391 = vmul.f32 %v5808, %v5849
  %v6392 = vmul.f32 %v5809, %v5849
  %v6393 = vmul.f32 %v5810, %v5849
  %v6394 = vmul.f32 %v5811, %v5849
  %v6395 = vmul.f32 %v5812, %v5849
  %v6396 = vmul.f32 %v5813, %v5849
  %v6397 = vmul.f32 %v5814, %v5849
  %v6398 = vmul.f32 %v5815, %v5849
  %v6399 = vmul.f32 %v5816, %v5849
  %v6400 = vmul.f32 %v5817, %v5849
  %v6401 = vmul.f32 %v5818, %v5849
  %v6402 = vmul.f32 %v5819, %v5849
  %v6403 = vmul.f32 %v5820, %v5849
  %v6404 = vmul.f32 %v5821, %v5849
  %v6405 = vmul.f32 %v5822, %v5849
  %v6406 = vmul.f32 %v5823, %v5849
  %v6407 = vmul.f32 %v5824, %v5849
  %v6408 = vmul.f32 %v5825, %v5849
  %v6409 = vmul.f32 %v5826, %v5849
  %v6410 = vmul.f32 %v5827, %v5849
  %v6411 = vmul.f32 %v5828, %v5849
  %v6412 = vmul.f32 %v5829, %v5849
  %v6413 = vmul.f32 %v5830, %v5849
  %v6414 = vmul.f32 %v5831, %v5849
  %v6415 = vmul.f32 %v5832, %v5849
  %v6416 = vmul.f32 %v5833, %v5849
  %v6417 = vmul.f32 %v5834, %v5849
  %v6418 = vmul.f32 %v5835, %v5849
  %v6419 = vmul.f32 %v5836, %v5849
  %v6420 = vmul.f32 %v5837, %v5849
  %v6421 = vmul.f32 %v5838, %v5849
  %v6422 = vmul.f32 %v5839, %v5849
  %v6423 = vmul.f32 %v5840, %v5849
  %v6424 = vmul.f32 %v5841, %v5849
  %v6425 = vmul.f32 %v5842, %v5849
  %v6426 = vmul.f32 %v5843, %v5849
  %v6427 = vld [vmem:[%s4] sm:$0x1]
  %v6429 = vlaneseq
  %v6430 = vshrl.u32 %v6429, 7
  %v6431 = vsub.s32 0, %v6430
  %v6432 = vrot.slane %v6427, %v6431
  %v6434 = vadd.f32 %v5851, %v6432
  %v6435 = vadd.f32 %v5852, %v6432
  %v6436 = vadd.f32 %v5853, %v6432
  %v6437 = vadd.f32 %v5854, %v6432
  %v6438 = vadd.f32 %v5855, %v6432
  %v6439 = vadd.f32 %v5856, %v6432
  %v6440 = vadd.f32 %v5857, %v6432
  %v6441 = vadd.f32 %v5858, %v6432
  %v6442 = vadd.f32 %v5859, %v6432
  %v6443 = vadd.f32 %v5860, %v6432
  %v6444 = vadd.f32 %v5861, %v6432
  %v6445 = vadd.f32 %v5862, %v6432
  %v6446 = vadd.f32 %v5863, %v6432
  %v6447 = vadd.f32 %v5864, %v6432
  %v6448 = vadd.f32 %v5865, %v6432
  %v6449 = vadd.f32 %v5866, %v6432
  %v6450 = vadd.f32 %v5867, %v6432
  %v6451 = vadd.f32 %v5868, %v6432
  %v6452 = vadd.f32 %v5869, %v6432
  %v6453 = vadd.f32 %v5870, %v6432
  %v6454 = vadd.f32 %v5871, %v6432
  %v6455 = vadd.f32 %v5872, %v6432
  %v6456 = vadd.f32 %v5873, %v6432
  %v6457 = vadd.f32 %v5874, %v6432
  %v6458 = vadd.f32 %v5875, %v6432
  %v6459 = vadd.f32 %v5876, %v6432
  %v6460 = vadd.f32 %v5877, %v6432
  %v6461 = vadd.f32 %v5878, %v6432
  %v6462 = vadd.f32 %v5879, %v6432
  %v6463 = vadd.f32 %v5880, %v6432
  %v6464 = vadd.f32 %v5881, %v6432
  %v6465 = vadd.f32 %v5882, %v6432
  %v6466 = vadd.f32 %v5883, %v6432
  %v6467 = vadd.f32 %v5884, %v6432
  %v6468 = vadd.f32 %v5885, %v6432
  %v6469 = vadd.f32 %v5886, %v6432
  %v6470 = vadd.f32 %v5887, %v6432
  %v6471 = vadd.f32 %v5888, %v6432
  %v6472 = vadd.f32 %v5889, %v6432
  %v6473 = vadd.f32 %v5890, %v6432
  %v6474 = vadd.f32 %v5891, %v6432
  %v6475 = vadd.f32 %v5892, %v6432
  %v6476 = vadd.f32 %v5893, %v6432
  %v6477 = vadd.f32 %v5894, %v6432
  %v6478 = vadd.f32 %v5895, %v6432
  %v6479 = vadd.f32 %v5896, %v6432
  %v6480 = vadd.f32 %v5897, %v6432
  %v6481 = vadd.f32 %v5898, %v6432
  %v6482 = vadd.f32 %v5899, %v6432
  %v6483 = vadd.f32 %v5900, %v6432
  %v6484 = vadd.f32 %v5901, %v6432
  %v6485 = vadd.f32 %v5902, %v6432
  %v6486 = vadd.f32 %v5903, %v6432
  %v6487 = vadd.f32 %v5904, %v6432
  %v6488 = vadd.f32 %v5905, %v6432
  %v6489 = vadd.f32 %v5906, %v6432
  %v6490 = vadd.f32 %v5907, %v6432
  %v6491 = vadd.f32 %v5908, %v6432
  %v6492 = vadd.f32 %v5909, %v6432
  %v6493 = vadd.f32 %v5910, %v6432
  %v6494 = vadd.f32 %v5911, %v6432
  %v6495 = vadd.f32 %v5912, %v6432
  %v6496 = vadd.f32 %v5913, %v6432
  %v6497 = vadd.f32 %v5914, %v6432
  %v6498 = vadd.f32 %v5915, %v6432
  %v6499 = vadd.f32 %v5916, %v6432
  %v6500 = vadd.f32 %v5917, %v6432
  %v6501 = vadd.f32 %v5918, %v6432
  %v6502 = vadd.f32 %v5919, %v6432
  %v6503 = vadd.f32 %v5920, %v6432
  %v6504 = vadd.f32 %v5921, %v6432
  %v6505 = vadd.f32 %v5922, %v6432
  %v6506 = vadd.f32 %v5923, %v6432
  %v6507 = vadd.f32 %v5924, %v6432
  %v6508 = vadd.f32 %v5925, %v6432
  %v6509 = vadd.f32 %v5926, %v6432
  %v6510 = vadd.f32 %v5927, %v6432
  %v6511 = vadd.f32 %v5928, %v6432
  %v6512 = vadd.f32 %v5929, %v6432
  %v6513 = vadd.f32 %v5930, %v6432
  %v6514 = vadd.f32 %v5931, %v6432
  %v6515 = vadd.f32 %v5932, %v6432
  %v6516 = vadd.f32 %v5933, %v6432
  %v6517 = vadd.f32 %v5934, %v6432
  %v6518 = vadd.f32 %v5935, %v6432
  %v6519 = vadd.f32 %v5936, %v6432
  %v6520 = vadd.f32 %v5937, %v6432
  %v6521 = vadd.f32 %v5938, %v6432
  %v6522 = vadd.f32 %v5939, %v6432
  %v6523 = vadd.f32 %v5940, %v6432
  %v6524 = vadd.f32 %v5941, %v6432
  %v6525 = vadd.f32 %v5942, %v6432
  %v6526 = vadd.f32 %v5943, %v6432
  %v6527 = vadd.f32 %v5944, %v6432
  %v6528 = vadd.f32 %v5945, %v6432
  %v6529 = vadd.f32 %v5946, %v6432
  %v6530 = vadd.f32 %v5947, %v6432
  %v6531 = vadd.f32 %v5948, %v6432
  %v6532 = vadd.f32 %v5949, %v6432
  %v6533 = vadd.f32 %v5950, %v6432
  %v6534 = vadd.f32 %v5951, %v6432
  %v6535 = vadd.f32 %v5952, %v6432
  %v6536 = vadd.f32 %v5953, %v6432
  %v6537 = vadd.f32 %v5954, %v6432
  %v6538 = vadd.f32 %v5955, %v6432
  %v6539 = vadd.f32 %v5956, %v6432
  %v6540 = vadd.f32 %v5957, %v6432
  %v6541 = vadd.f32 %v5958, %v6432
  %v6542 = vadd.f32 %v5959, %v6432
  %v6543 = vadd.f32 %v5960, %v6432
  %v6544 = vadd.f32 %v5961, %v6432
  %v6545 = vadd.f32 %v5962, %v6432
  %v6546 = vadd.f32 %v5963, %v6432
  %v6547 = vadd.f32 %v5964, %v6432
  %v6548 = vadd.f32 %v5965, %v6432
  %v6549 = vadd.f32 %v5966, %v6432
  %v6550 = vadd.f32 %v5967, %v6432
  %v6551 = vadd.f32 %v5968, %v6432
  %v6552 = vadd.f32 %v5969, %v6432
  %v6553 = vadd.f32 %v5970, %v6432
  %v6554 = vadd.f32 %v5971, %v6432
  %v6555 = vadd.f32 %v5972, %v6432
  %v6556 = vadd.f32 %v5973, %v6432
  %v6557 = vadd.f32 %v5974, %v6432
  %v6558 = vadd.f32 %v5975, %v6432
  %v6559 = vadd.f32 %v5976, %v6432
  %v6560 = vadd.f32 %v5977, %v6432
  %v6561 = vadd.f32 %v5978, %v6432
  %v6562 = vadd.f32 %v5979, %v6432
  %v6563 = vadd.f32 %v5980, %v6432
  %v6564 = vadd.f32 %v5981, %v6432
  %v6565 = vadd.f32 %v5982, %v6432
  %v6566 = vadd.f32 %v5983, %v6432
  %v6567 = vadd.f32 %v5984, %v6432
  %v6568 = vadd.f32 %v5985, %v6432
  %v6569 = vadd.f32 %v5986, %v6432
  %v6570 = vadd.f32 %v5987, %v6432
  %v6571 = vadd.f32 %v5988, %v6432
  %v6572 = vadd.f32 %v5989, %v6432
  %v6573 = vadd.f32 %v5990, %v6432
  %v6574 = vadd.f32 %v5991, %v6432
  %v6575 = vadd.f32 %v5992, %v6432
  %v6576 = vadd.f32 %v5993, %v6432
  %v6577 = vadd.f32 %v5994, %v6432
  %v6578 = vadd.f32 %v5995, %v6432
  %v6579 = vadd.f32 %v5996, %v6432
  %v6580 = vadd.f32 %v5997, %v6432
  %v6581 = vadd.f32 %v5998, %v6432
  %v6582 = vadd.f32 %v5999, %v6432
  %v6583 = vadd.f32 %v6000, %v6432
  %v6584 = vadd.f32 %v6001, %v6432
  %v6585 = vadd.f32 %v6002, %v6432
  %v6586 = vadd.f32 %v6003, %v6432
  %v6587 = vadd.f32 %v6004, %v6432
  %v6588 = vadd.f32 %v6005, %v6432
  %v6589 = vadd.f32 %v6006, %v6432
  %v6590 = vadd.f32 %v6007, %v6432
  %v6591 = vadd.f32 %v6008, %v6432
  %v6592 = vadd.f32 %v6009, %v6432
  %v6593 = vadd.f32 %v6010, %v6432
  %v6594 = vadd.f32 %v6011, %v6432
  %v6595 = vadd.f32 %v6012, %v6432
  %v6596 = vadd.f32 %v6013, %v6432
  %v6597 = vadd.f32 %v6014, %v6432
  %v6598 = vadd.f32 %v6015, %v6432
  %v6599 = vadd.f32 %v6016, %v6432
  %v6600 = vadd.f32 %v6017, %v6432
  %v6601 = vadd.f32 %v6018, %v6432
  %v6602 = vadd.f32 %v6019, %v6432
  %v6603 = vadd.f32 %v6020, %v6432
  %v6604 = vadd.f32 %v6021, %v6432
  %v6605 = vadd.f32 %v6022, %v6432
  %v6606 = vadd.f32 %v6023, %v6432
  %v6607 = vadd.f32 %v6024, %v6432
  %v6608 = vadd.f32 %v6025, %v6432
  %v6609 = vadd.f32 %v6026, %v6432
  %v6610 = vadd.f32 %v6027, %v6432
  %v6611 = vadd.f32 %v6028, %v6432
  %v6612 = vadd.f32 %v6029, %v6432
  %v6613 = vadd.f32 %v6030, %v6432
  %v6614 = vadd.f32 %v6031, %v6432
  %v6615 = vadd.f32 %v6032, %v6432
  %v6616 = vadd.f32 %v6033, %v6432
  %v6617 = vadd.f32 %v6034, %v6432
  %v6618 = vadd.f32 %v6035, %v6432
  %v6619 = vadd.f32 %v6036, %v6432
  %v6620 = vadd.f32 %v6037, %v6432
  %v6621 = vadd.f32 %v6038, %v6432
  %v6622 = vadd.f32 %v6039, %v6432
  %v6623 = vadd.f32 %v6040, %v6432
  %v6624 = vadd.f32 %v6041, %v6432
  %v6625 = vadd.f32 %v6042, %v6432
  %v6626 = vadd.f32 %v6043, %v6432
  %v6627 = vadd.f32 %v6044, %v6432
  %v6628 = vadd.f32 %v6045, %v6432
  %v6629 = vadd.f32 %v6046, %v6432
  %v6630 = vadd.f32 %v6047, %v6432
  %v6631 = vadd.f32 %v6048, %v6432
  %v6632 = vadd.f32 %v6049, %v6432
  %v6633 = vadd.f32 %v6050, %v6432
  %v6634 = vadd.f32 %v6051, %v6432
  %v6635 = vadd.f32 %v6052, %v6432
  %v6636 = vadd.f32 %v6053, %v6432
  %v6637 = vadd.f32 %v6054, %v6432
  %v6638 = vadd.f32 %v6055, %v6432
  %v6639 = vadd.f32 %v6056, %v6432
  %v6640 = vadd.f32 %v6057, %v6432
  %v6641 = vadd.f32 %v6058, %v6432
  %v6642 = vadd.f32 %v6059, %v6432
  %v6643 = vadd.f32 %v6060, %v6432
  %v6644 = vadd.f32 %v6061, %v6432
  %v6645 = vadd.f32 %v6062, %v6432
  %v6646 = vadd.f32 %v6063, %v6432
  %v6647 = vadd.f32 %v6064, %v6432
  %v6648 = vadd.f32 %v6065, %v6432
  %v6649 = vadd.f32 %v6066, %v6432
  %v6650 = vadd.f32 %v6067, %v6432
  %v6651 = vadd.f32 %v6068, %v6432
  %v6652 = vadd.f32 %v6069, %v6432
  %v6653 = vadd.f32 %v6070, %v6432
  %v6654 = vadd.f32 %v6071, %v6432
  %v6655 = vadd.f32 %v6072, %v6432
  %v6656 = vadd.f32 %v6073, %v6432
  %v6657 = vadd.f32 %v6074, %v6432
  %v6658 = vadd.f32 %v6075, %v6432
  %v6659 = vadd.f32 %v6076, %v6432
  %v6660 = vadd.f32 %v6077, %v6432
  %v6661 = vadd.f32 %v6078, %v6432
  %v6662 = vadd.f32 %v6079, %v6432
  %v6663 = vadd.f32 %v6080, %v6432
  %v6664 = vadd.f32 %v6081, %v6432
  %v6665 = vadd.f32 %v6082, %v6432
  %v6666 = vadd.f32 %v6083, %v6432
  %v6667 = vadd.f32 %v6084, %v6432
  %v6668 = vadd.f32 %v6085, %v6432
  %v6669 = vadd.f32 %v6086, %v6432
  %v6670 = vadd.f32 %v6087, %v6432
  %v6671 = vadd.f32 %v6088, %v6432
  %v6672 = vadd.f32 %v6089, %v6432
  %v6673 = vadd.f32 %v6090, %v6432
  %v6674 = vadd.f32 %v6091, %v6432
  %v6675 = vadd.f32 %v6092, %v6432
  %v6676 = vadd.f32 %v6093, %v6432
  %v6677 = vadd.f32 %v6094, %v6432
  %v6678 = vadd.f32 %v6095, %v6432
  %v6679 = vadd.f32 %v6096, %v6432
  %v6680 = vadd.f32 %v6097, %v6432
  %v6681 = vadd.f32 %v6098, %v6432
  %v6682 = vadd.f32 %v6099, %v6432
  %v6683 = vadd.f32 %v6100, %v6432
  %v6684 = vadd.f32 %v6101, %v6432
  %v6685 = vadd.f32 %v6102, %v6432
  %v6686 = vadd.f32 %v6103, %v6432
  %v6687 = vadd.f32 %v6104, %v6432
  %v6688 = vadd.f32 %v6105, %v6432
  %v6689 = vadd.f32 %v6106, %v6432
  %v6690 = vadd.f32 %v6107, %v6432
  %v6691 = vadd.f32 %v6108, %v6432
  %v6692 = vadd.f32 %v6109, %v6432
  %v6693 = vadd.f32 %v6110, %v6432
  %v6694 = vadd.f32 %v6111, %v6432
  %v6695 = vadd.f32 %v6112, %v6432
  %v6696 = vadd.f32 %v6113, %v6432
  %v6697 = vadd.f32 %v6114, %v6432
  %v6698 = vadd.f32 %v6115, %v6432
  %v6699 = vadd.f32 %v6116, %v6432
  %v6700 = vadd.f32 %v6117, %v6432
  %v6701 = vadd.f32 %v6118, %v6432
  %v6702 = vadd.f32 %v6119, %v6432
  %v6703 = vadd.f32 %v6120, %v6432
  %v6704 = vadd.f32 %v6121, %v6432
  %v6705 = vadd.f32 %v6122, %v6432
  %v6706 = vadd.f32 %v6123, %v6432
  %v6707 = vadd.f32 %v6124, %v6432
  %v6708 = vadd.f32 %v6125, %v6432
  %v6709 = vadd.f32 %v6126, %v6432
  %v6710 = vadd.f32 %v6127, %v6432
  %v6711 = vadd.f32 %v6128, %v6432
  %v6712 = vadd.f32 %v6129, %v6432
  %v6713 = vadd.f32 %v6130, %v6432
  %v6714 = vadd.f32 %v6131, %v6432
  %v6715 = vadd.f32 %v6132, %v6432
  %v6716 = vadd.f32 %v6133, %v6432
  %v6717 = vadd.f32 %v6134, %v6432
  %v6718 = vadd.f32 %v6135, %v6432
  %v6719 = vadd.f32 %v6136, %v6432
  %v6720 = vadd.f32 %v6137, %v6432
  %v6721 = vadd.f32 %v6138, %v6432
  %v6722 = vadd.f32 %v6139, %v6432
  %v6723 = vadd.f32 %v6140, %v6432
  %v6724 = vadd.f32 %v6141, %v6432
  %v6725 = vadd.f32 %v6142, %v6432
  %v6726 = vadd.f32 %v6143, %v6432
  %v6727 = vadd.f32 %v6144, %v6432
  %v6728 = vadd.f32 %v6145, %v6432
  %v6729 = vadd.f32 %v6146, %v6432
  %v6730 = vadd.f32 %v6147, %v6432
  %v6731 = vadd.f32 %v6148, %v6432
  %v6732 = vadd.f32 %v6149, %v6432
  %v6733 = vadd.f32 %v6150, %v6432
  %v6734 = vadd.f32 %v6151, %v6432
  %v6735 = vadd.f32 %v6152, %v6432
  %v6736 = vadd.f32 %v6153, %v6432
  %v6737 = vadd.f32 %v6154, %v6432
  %v6738 = vadd.f32 %v6155, %v6432
  %v6739 = vadd.f32 %v6156, %v6432
  %v6740 = vadd.f32 %v6157, %v6432
  %v6741 = vadd.f32 %v6158, %v6432
  %v6742 = vadd.f32 %v6159, %v6432
  %v6743 = vadd.f32 %v6160, %v6432
  %v6744 = vadd.f32 %v6161, %v6432
  %v6745 = vadd.f32 %v6162, %v6432
  %v6746 = vadd.f32 %v6163, %v6432
  %v6747 = vadd.f32 %v6164, %v6432
  %v6748 = vadd.f32 %v6165, %v6432
  %v6749 = vadd.f32 %v6166, %v6432
  %v6750 = vadd.f32 %v6167, %v6432
  %v6751 = vadd.f32 %v6168, %v6432
  %v6752 = vadd.f32 %v6169, %v6432
  %v6753 = vadd.f32 %v6170, %v6432
  %v6754 = vadd.f32 %v6171, %v6432
  %v6755 = vadd.f32 %v6172, %v6432
  %v6756 = vadd.f32 %v6173, %v6432
  %v6757 = vadd.f32 %v6174, %v6432
  %v6758 = vadd.f32 %v6175, %v6432
  %v6759 = vadd.f32 %v6176, %v6432
  %v6760 = vadd.f32 %v6177, %v6432
  %v6761 = vadd.f32 %v6178, %v6432
  %v6762 = vadd.f32 %v6179, %v6432
  %v6763 = vadd.f32 %v6180, %v6432
  %v6764 = vadd.f32 %v6181, %v6432
  %v6765 = vadd.f32 %v6182, %v6432
  %v6766 = vadd.f32 %v6183, %v6432
  %v6767 = vadd.f32 %v6184, %v6432
  %v6768 = vadd.f32 %v6185, %v6432
  %v6769 = vadd.f32 %v6186, %v6432
  %v6770 = vadd.f32 %v6187, %v6432
  %v6771 = vadd.f32 %v6188, %v6432
  %v6772 = vadd.f32 %v6189, %v6432
  %v6773 = vadd.f32 %v6190, %v6432
  %v6774 = vadd.f32 %v6191, %v6432
  %v6775 = vadd.f32 %v6192, %v6432
  %v6776 = vadd.f32 %v6193, %v6432
  %v6777 = vadd.f32 %v6194, %v6432
  %v6778 = vadd.f32 %v6195, %v6432
  %v6779 = vadd.f32 %v6196, %v6432
  %v6780 = vadd.f32 %v6197, %v6432
  %v6781 = vadd.f32 %v6198, %v6432
  %v6782 = vadd.f32 %v6199, %v6432
  %v6783 = vadd.f32 %v6200, %v6432
  %v6784 = vadd.f32 %v6201, %v6432
  %v6785 = vadd.f32 %v6202, %v6432
  %v6786 = vadd.f32 %v6203, %v6432
  %v6787 = vadd.f32 %v6204, %v6432
  %v6788 = vadd.f32 %v6205, %v6432
  %v6789 = vadd.f32 %v6206, %v6432
  %v6790 = vadd.f32 %v6207, %v6432
  %v6791 = vadd.f32 %v6208, %v6432
  %v6792 = vadd.f32 %v6209, %v6432
  %v6793 = vadd.f32 %v6210, %v6432
  %v6794 = vadd.f32 %v6211, %v6432
  %v6795 = vadd.f32 %v6212, %v6432
  %v6796 = vadd.f32 %v6213, %v6432
  %v6797 = vadd.f32 %v6214, %v6432
  %v6798 = vadd.f32 %v6215, %v6432
  %v6799 = vadd.f32 %v6216, %v6432
  %v6800 = vadd.f32 %v6217, %v6432
  %v6801 = vadd.f32 %v6218, %v6432
  %v6802 = vadd.f32 %v6219, %v6432
  %v6803 = vadd.f32 %v6220, %v6432
  %v6804 = vadd.f32 %v6221, %v6432
  %v6805 = vadd.f32 %v6222, %v6432
  %v6806 = vadd.f32 %v6223, %v6432
  %v6807 = vadd.f32 %v6224, %v6432
  %v6808 = vadd.f32 %v6225, %v6432
  %v6809 = vadd.f32 %v6226, %v6432
  %v6810 = vadd.f32 %v6227, %v6432
  %v6811 = vadd.f32 %v6228, %v6432
  %v6812 = vadd.f32 %v6229, %v6432
  %v6813 = vadd.f32 %v6230, %v6432
  %v6814 = vadd.f32 %v6231, %v6432
  %v6815 = vadd.f32 %v6232, %v6432
  %v6816 = vadd.f32 %v6233, %v6432
  %v6817 = vadd.f32 %v6234, %v6432
  %v6818 = vadd.f32 %v6235, %v6432
  %v6819 = vadd.f32 %v6236, %v6432
  %v6820 = vadd.f32 %v6237, %v6432
  %v6821 = vadd.f32 %v6238, %v6432
  %v6822 = vadd.f32 %v6239, %v6432
  %v6823 = vadd.f32 %v6240, %v6432
  %v6824 = vadd.f32 %v6241, %v6432
  %v6825 = vadd.f32 %v6242, %v6432
  %v6826 = vadd.f32 %v6243, %v6432
  %v6827 = vadd.f32 %v6244, %v6432
  %v6828 = vadd.f32 %v6245, %v6432
  %v6829 = vadd.f32 %v6246, %v6432
  %v6830 = vadd.f32 %v6247, %v6432
  %v6831 = vadd.f32 %v6248, %v6432
  %v6832 = vadd.f32 %v6249, %v6432
  %v6833 = vadd.f32 %v6250, %v6432
  %v6834 = vadd.f32 %v6251, %v6432
  %v6835 = vadd.f32 %v6252, %v6432
  %v6836 = vadd.f32 %v6253, %v6432
  %v6837 = vadd.f32 %v6254, %v6432
  %v6838 = vadd.f32 %v6255, %v6432
  %v6839 = vadd.f32 %v6256, %v6432
  %v6840 = vadd.f32 %v6257, %v6432
  %v6841 = vadd.f32 %v6258, %v6432
  %v6842 = vadd.f32 %v6259, %v6432
  %v6843 = vadd.f32 %v6260, %v6432
  %v6844 = vadd.f32 %v6261, %v6432
  %v6845 = vadd.f32 %v6262, %v6432
  %v6846 = vadd.f32 %v6263, %v6432
  %v6847 = vadd.f32 %v6264, %v6432
  %v6848 = vadd.f32 %v6265, %v6432
  %v6849 = vadd.f32 %v6266, %v6432
  %v6850 = vadd.f32 %v6267, %v6432
  %v6851 = vadd.f32 %v6268, %v6432
  %v6852 = vadd.f32 %v6269, %v6432
  %v6853 = vadd.f32 %v6270, %v6432
  %v6854 = vadd.f32 %v6271, %v6432
  %v6855 = vadd.f32 %v6272, %v6432
  %v6856 = vadd.f32 %v6273, %v6432
  %v6857 = vadd.f32 %v6274, %v6432
  %v6858 = vadd.f32 %v6275, %v6432
  %v6859 = vadd.f32 %v6276, %v6432
  %v6860 = vadd.f32 %v6277, %v6432
  %v6861 = vadd.f32 %v6278, %v6432
  %v6862 = vadd.f32 %v6279, %v6432
  %v6863 = vadd.f32 %v6280, %v6432
  %v6864 = vadd.f32 %v6281, %v6432
  %v6865 = vadd.f32 %v6282, %v6432
  %v6866 = vadd.f32 %v6283, %v6432
  %v6867 = vadd.f32 %v6284, %v6432
  %v6868 = vadd.f32 %v6285, %v6432
  %v6869 = vadd.f32 %v6286, %v6432
  %v6870 = vadd.f32 %v6287, %v6432
  %v6871 = vadd.f32 %v6288, %v6432
  %v6872 = vadd.f32 %v6289, %v6432
  %v6873 = vadd.f32 %v6290, %v6432
  %v6874 = vadd.f32 %v6291, %v6432
  %v6875 = vadd.f32 %v6292, %v6432
  %v6876 = vadd.f32 %v6293, %v6432
  %v6877 = vadd.f32 %v6294, %v6432
  %v6878 = vadd.f32 %v6295, %v6432
  %v6879 = vadd.f32 %v6296, %v6432
  %v6880 = vadd.f32 %v6297, %v6432
  %v6881 = vadd.f32 %v6298, %v6432
  %v6882 = vadd.f32 %v6299, %v6432
  %v6883 = vadd.f32 %v6300, %v6432
  %v6884 = vadd.f32 %v6301, %v6432
  %v6885 = vadd.f32 %v6302, %v6432
  %v6886 = vadd.f32 %v6303, %v6432
  %v6887 = vadd.f32 %v6304, %v6432
  %v6888 = vadd.f32 %v6305, %v6432
  %v6889 = vadd.f32 %v6306, %v6432
  %v6890 = vadd.f32 %v6307, %v6432
  %v6891 = vadd.f32 %v6308, %v6432
  %v6892 = vadd.f32 %v6309, %v6432
  %v6893 = vadd.f32 %v6310, %v6432
  %v6894 = vadd.f32 %v6311, %v6432
  %v6895 = vadd.f32 %v6312, %v6432
  %v6896 = vadd.f32 %v6313, %v6432
  %v6897 = vadd.f32 %v6314, %v6432
  %v6898 = vadd.f32 %v6315, %v6432
  %v6899 = vadd.f32 %v6316, %v6432
  %v6900 = vadd.f32 %v6317, %v6432
  %v6901 = vadd.f32 %v6318, %v6432
  %v6902 = vadd.f32 %v6319, %v6432
  %v6903 = vadd.f32 %v6320, %v6432
  %v6904 = vadd.f32 %v6321, %v6432
  %v6905 = vadd.f32 %v6322, %v6432
  %v6906 = vadd.f32 %v6323, %v6432
  %v6907 = vadd.f32 %v6324, %v6432
  %v6908 = vadd.f32 %v6325, %v6432
  %v6909 = vadd.f32 %v6326, %v6432
  %v6910 = vadd.f32 %v6327, %v6432
  %v6911 = vadd.f32 %v6328, %v6432
  %v6912 = vadd.f32 %v6329, %v6432
  %v6913 = vadd.f32 %v6330, %v6432
  %v6914 = vadd.f32 %v6331, %v6432
  %v6915 = vadd.f32 %v6332, %v6432
  %v6916 = vadd.f32 %v6333, %v6432
  %v6917 = vadd.f32 %v6334, %v6432
  %v6918 = vadd.f32 %v6335, %v6432
  %v6919 = vadd.f32 %v6336, %v6432
  %v6920 = vadd.f32 %v6337, %v6432
  %v6921 = vadd.f32 %v6338, %v6432
  %v6922 = vadd.f32 %v6339, %v6432
  %v6923 = vadd.f32 %v6340, %v6432
  %v6924 = vadd.f32 %v6341, %v6432
  %v6925 = vadd.f32 %v6342, %v6432
  %v6926 = vadd.f32 %v6343, %v6432
  %v6927 = vadd.f32 %v6344, %v6432
  %v6928 = vadd.f32 %v6345, %v6432
  %v6929 = vadd.f32 %v6346, %v6432
  %v6930 = vadd.f32 %v6347, %v6432
  %v6931 = vadd.f32 %v6348, %v6432
  %v6932 = vadd.f32 %v6349, %v6432
  %v6933 = vadd.f32 %v6350, %v6432
  %v6934 = vadd.f32 %v6351, %v6432
  %v6935 = vadd.f32 %v6352, %v6432
  %v6936 = vadd.f32 %v6353, %v6432
  %v6937 = vadd.f32 %v6354, %v6432
  %v6938 = vadd.f32 %v6355, %v6432
  %v6939 = vadd.f32 %v6356, %v6432
  %v6940 = vadd.f32 %v6357, %v6432
  %v6941 = vadd.f32 %v6358, %v6432
  %v6942 = vadd.f32 %v6359, %v6432
  %v6943 = vadd.f32 %v6360, %v6432
  %v6944 = vadd.f32 %v6361, %v6432
  %v6945 = vadd.f32 %v6362, %v6432
  %v6946 = vadd.f32 %v6363, %v6432
  %v6947 = vadd.f32 %v6364, %v6432
  %v6948 = vadd.f32 %v6365, %v6432
  %v6949 = vadd.f32 %v6366, %v6432
  %v6950 = vadd.f32 %v6367, %v6432
  %v6951 = vadd.f32 %v6368, %v6432
  %v6952 = vadd.f32 %v6369, %v6432
  %v6953 = vadd.f32 %v6370, %v6432
  %v6954 = vadd.f32 %v6371, %v6432
  %v6955 = vadd.f32 %v6372, %v6432
  %v6956 = vadd.f32 %v6373, %v6432
  %v6957 = vadd.f32 %v6374, %v6432
  %v6958 = vadd.f32 %v6375, %v6432
  %v6959 = vadd.f32 %v6376, %v6432
  %v6960 = vadd.f32 %v6377, %v6432
  %v6961 = vadd.f32 %v6378, %v6432
  %v6962 = vadd.f32 %v6379, %v6432
  %v6963 = vadd.f32 %v6380, %v6432
  %v6964 = vadd.f32 %v6381, %v6432
  %v6965 = vadd.f32 %v6382, %v6432
  %v6966 = vadd.f32 %v6383, %v6432
  %v6967 = vadd.f32 %v6384, %v6432
  %v6968 = vadd.f32 %v6385, %v6432
  %v6969 = vadd.f32 %v6386, %v6432
  %v6970 = vadd.f32 %v6387, %v6432
  %v6971 = vadd.f32 %v6388, %v6432
  %v6972 = vadd.f32 %v6389, %v6432
  %v6973 = vadd.f32 %v6390, %v6432
  %v6974 = vadd.f32 %v6391, %v6432
  %v6975 = vadd.f32 %v6392, %v6432
  %v6976 = vadd.f32 %v6393, %v6432
  %v6977 = vadd.f32 %v6394, %v6432
  %v6978 = vadd.f32 %v6395, %v6432
  %v6979 = vadd.f32 %v6396, %v6432
  %v6980 = vadd.f32 %v6397, %v6432
  %v6981 = vadd.f32 %v6398, %v6432
  %v6982 = vadd.f32 %v6399, %v6432
  %v6983 = vadd.f32 %v6400, %v6432
  %v6984 = vadd.f32 %v6401, %v6432
  %v6985 = vadd.f32 %v6402, %v6432
  %v6986 = vadd.f32 %v6403, %v6432
  %v6987 = vadd.f32 %v6404, %v6432
  %v6988 = vadd.f32 %v6405, %v6432
  %v6989 = vadd.f32 %v6406, %v6432
  %v6990 = vadd.f32 %v6407, %v6432
  %v6991 = vadd.f32 %v6408, %v6432
  %v6992 = vadd.f32 %v6409, %v6432
  %v6993 = vadd.f32 %v6410, %v6432
  %v6994 = vadd.f32 %v6411, %v6432
  %v6995 = vadd.f32 %v6412, %v6432
  %v6996 = vadd.f32 %v6413, %v6432
  %v6997 = vadd.f32 %v6414, %v6432
  %v6998 = vadd.f32 %v6415, %v6432
  %v6999 = vadd.f32 %v6416, %v6432
  %v7000 = vadd.f32 %v6417, %v6432
  %v7001 = vadd.f32 %v6418, %v6432
  %v7002 = vadd.f32 %v6419, %v6432
  %v7003 = vadd.f32 %v6420, %v6432
  %v7004 = vadd.f32 %v6421, %v6432
  %v7005 = vadd.f32 %v6422, %v6432
  %v7006 = vadd.f32 %v6423, %v6432
  %v7007 = vadd.f32 %v6424, %v6432
  %v7008 = vadd.f32 %v6425, %v6432
  %v7009 = vadd.f32 %v6426, %v6432
  %v7010 = vmax.f32 %v6434, %v6452
  %v7011 = vmax.f32 %v6435, %v6453
  %v7012 = vmax.f32 %v6436, %v6454
  %v7013 = vmax.f32 %v6437, %v6455
  %v7014 = vmax.f32 %v6438, %v6456
  %v7015 = vmax.f32 %v6439, %v6457
  %v7016 = vmax.f32 %v6440, %v6458
  %v7017 = vmax.f32 %v6441, %v6459
  %v7018 = vmax.f32 %v6442, %v6460
  %v7019 = vmax.f32 %v6443, %v6461
  %v7020 = vmax.f32 %v6444, %v6462
  %v7021 = vmax.f32 %v6445, %v6463
  %v7022 = vmax.f32 %v6446, %v6464
  %v7023 = vmax.f32 %v6447, %v6465
  %v7024 = vmax.f32 %v6448, %v6466
  %v7025 = vmax.f32 %v6449, %v6467
  %v7026 = vmax.f32 %v6450, %v6468
  %v7027 = vmax.f32 %v6451, %v6469
  %v7028 = vmax.f32 %v6506, %v6524
  %v7029 = vmax.f32 %v6507, %v6525
  %v7030 = vmax.f32 %v6508, %v6526
  %v7031 = vmax.f32 %v6509, %v6527
  %v7032 = vmax.f32 %v6510, %v6528
  %v7033 = vmax.f32 %v6511, %v6529
  %v7034 = vmax.f32 %v6512, %v6530
  %v7035 = vmax.f32 %v6513, %v6531
  %v7036 = vmax.f32 %v6514, %v6532
  %v7037 = vmax.f32 %v6515, %v6533
  %v7038 = vmax.f32 %v6516, %v6534
  %v7039 = vmax.f32 %v6517, %v6535
  %v7040 = vmax.f32 %v6518, %v6536
  %v7041 = vmax.f32 %v6519, %v6537
  %v7042 = vmax.f32 %v6520, %v6538
  %v7043 = vmax.f32 %v6521, %v6539
  %v7044 = vmax.f32 %v6522, %v6540
  %v7045 = vmax.f32 %v6523, %v6541
  %v7046 = vmax.f32 %v6578, %v6596
  %v7047 = vmax.f32 %v6579, %v6597
  %v7048 = vmax.f32 %v6580, %v6598
  %v7049 = vmax.f32 %v6581, %v6599
  %v7050 = vmax.f32 %v6582, %v6600
  %v7051 = vmax.f32 %v6583, %v6601
  %v7052 = vmax.f32 %v6584, %v6602
  %v7053 = vmax.f32 %v6585, %v6603
  %v7054 = vmax.f32 %v6586, %v6604
  %v7055 = vmax.f32 %v6587, %v6605
  %v7056 = vmax.f32 %v6588, %v6606
  %v7057 = vmax.f32 %v6589, %v6607
  %v7058 = vmax.f32 %v6590, %v6608
  %v7059 = vmax.f32 %v6591, %v6609
  %v7060 = vmax.f32 %v6592, %v6610
  %v7061 = vmax.f32 %v6593, %v6611
  %v7062 = vmax.f32 %v6594, %v6612
  %v7063 = vmax.f32 %v6595, %v6613
  %v7064 = vmax.f32 %v6650, %v6668
  %v7065 = vmax.f32 %v6651, %v6669
  %v7066 = vmax.f32 %v6652, %v6670
  %v7067 = vmax.f32 %v6653, %v6671
  %v7068 = vmax.f32 %v6654, %v6672
  %v7069 = vmax.f32 %v6655, %v6673
  %v7070 = vmax.f32 %v6656, %v6674
  %v7071 = vmax.f32 %v6657, %v6675
  %v7072 = vmax.f32 %v6658, %v6676
  %v7073 = vmax.f32 %v6659, %v6677
  %v7074 = vmax.f32 %v6660, %v6678
  %v7075 = vmax.f32 %v6661, %v6679
  %v7076 = vmax.f32 %v6662, %v6680
  %v7077 = vmax.f32 %v6663, %v6681
  %v7078 = vmax.f32 %v6664, %v6682
  %v7079 = vmax.f32 %v6665, %v6683
  %v7080 = vmax.f32 %v6666, %v6684
  %v7081 = vmax.f32 %v6667, %v6685
  %v7082 = vmax.f32 %v6722, %v6740
  %v7083 = vmax.f32 %v6723, %v6741
  %v7084 = vmax.f32 %v6724, %v6742
  %v7085 = vmax.f32 %v6725, %v6743
  %v7086 = vmax.f32 %v6726, %v6744
  %v7087 = vmax.f32 %v6727, %v6745
  %v7088 = vmax.f32 %v6728, %v6746
  %v7089 = vmax.f32 %v6729, %v6747
  %v7090 = vmax.f32 %v6730, %v6748
  %v7091 = vmax.f32 %v6731, %v6749
  %v7092 = vmax.f32 %v6732, %v6750
  %v7093 = vmax.f32 %v6733, %v6751
  %v7094 = vmax.f32 %v6734, %v6752
  %v7095 = vmax.f32 %v6735, %v6753
  %v7096 = vmax.f32 %v6736, %v6754
  %v7097 = vmax.f32 %v6737, %v6755
  %v7098 = vmax.f32 %v6738, %v6756
  %v7099 = vmax.f32 %v6739, %v6757
  %v7100 = vmax.f32 %v6794, %v6812
  %v7101 = vmax.f32 %v6795, %v6813
  %v7102 = vmax.f32 %v6796, %v6814
  %v7103 = vmax.f32 %v6797, %v6815
  %v7104 = vmax.f32 %v6798, %v6816
  %v7105 = vmax.f32 %v6799, %v6817
  %v7106 = vmax.f32 %v6800, %v6818
  %v7107 = vmax.f32 %v6801, %v6819
  %v7108 = vmax.f32 %v6802, %v6820
  %v7109 = vmax.f32 %v6803, %v6821
  %v7110 = vmax.f32 %v6804, %v6822
  %v7111 = vmax.f32 %v6805, %v6823
  %v7112 = vmax.f32 %v6806, %v6824
  %v7113 = vmax.f32 %v6807, %v6825
  %v7114 = vmax.f32 %v6808, %v6826
  %v7115 = vmax.f32 %v6809, %v6827
  %v7116 = vmax.f32 %v6810, %v6828
  %v7117 = vmax.f32 %v6811, %v6829
  %v7118 = vmax.f32 %v6866, %v6884
  %v7119 = vmax.f32 %v6867, %v6885
  %v7120 = vmax.f32 %v6868, %v6886
  %v7121 = vmax.f32 %v6869, %v6887
  %v7122 = vmax.f32 %v6870, %v6888
  %v7123 = vmax.f32 %v6871, %v6889
  %v7124 = vmax.f32 %v6872, %v6890
  %v7125 = vmax.f32 %v6873, %v6891
  %v7126 = vmax.f32 %v6874, %v6892
  %v7127 = vmax.f32 %v6875, %v6893
  %v7128 = vmax.f32 %v6876, %v6894
  %v7129 = vmax.f32 %v6877, %v6895
  %v7130 = vmax.f32 %v6878, %v6896
  %v7131 = vmax.f32 %v6879, %v6897
  %v7132 = vmax.f32 %v6880, %v6898
  %v7133 = vmax.f32 %v6881, %v6899
  %v7134 = vmax.f32 %v6882, %v6900
  %v7135 = vmax.f32 %v6883, %v6901
  %v7136 = vmax.f32 %v6938, %v6956
  %v7137 = vmax.f32 %v6939, %v6957
  %v7138 = vmax.f32 %v6940, %v6958
  %v7139 = vmax.f32 %v6941, %v6959
  %v7140 = vmax.f32 %v6942, %v6960
  %v7141 = vmax.f32 %v6943, %v6961
  %v7142 = vmax.f32 %v6944, %v6962
  %v7143 = vmax.f32 %v6945, %v6963
  %v7144 = vmax.f32 %v6946, %v6964
  %v7145 = vmax.f32 %v6947, %v6965
  %v7146 = vmax.f32 %v6948, %v6966
  %v7147 = vmax.f32 %v6949, %v6967
  %v7148 = vmax.f32 %v6950, %v6968
  %v7149 = vmax.f32 %v6951, %v6969
  %v7150 = vmax.f32 %v6952, %v6970
  %v7151 = vmax.f32 %v6953, %v6971
  %v7152 = vmax.f32 %v6954, %v6972
  %v7153 = vmax.f32 %v6955, %v6973
  %v7154 = vmax.f32 %v6470, %v6488
  %v7155 = vmax.f32 %v6471, %v6489
  %v7156 = vmax.f32 %v6472, %v6490
  %v7157 = vmax.f32 %v6473, %v6491
  %v7158 = vmax.f32 %v6474, %v6492
  %v7159 = vmax.f32 %v6475, %v6493
  %v7160 = vmax.f32 %v6476, %v6494
  %v7161 = vmax.f32 %v6477, %v6495
  %v7162 = vmax.f32 %v6478, %v6496
  %v7163 = vmax.f32 %v6479, %v6497
  %v7164 = vmax.f32 %v6480, %v6498
  %v7165 = vmax.f32 %v6481, %v6499
  %v7166 = vmax.f32 %v6482, %v6500
  %v7167 = vmax.f32 %v6483, %v6501
  %v7168 = vmax.f32 %v6484, %v6502
  %v7169 = vmax.f32 %v6485, %v6503
  %v7170 = vmax.f32 %v6486, %v6504
  %v7171 = vmax.f32 %v6487, %v6505
  %v7172 = vmax.f32 %v6542, %v6560
  %v7173 = vmax.f32 %v6543, %v6561
  %v7174 = vmax.f32 %v6544, %v6562
  %v7175 = vmax.f32 %v6545, %v6563
  %v7176 = vmax.f32 %v6546, %v6564
  %v7177 = vmax.f32 %v6547, %v6565
  %v7178 = vmax.f32 %v6548, %v6566
  %v7179 = vmax.f32 %v6549, %v6567
  %v7180 = vmax.f32 %v6550, %v6568
  %v7181 = vmax.f32 %v6551, %v6569
  %v7182 = vmax.f32 %v6552, %v6570
  %v7183 = vmax.f32 %v6553, %v6571
  %v7184 = vmax.f32 %v6554, %v6572
  %v7185 = vmax.f32 %v6555, %v6573
  %v7186 = vmax.f32 %v6556, %v6574
  %v7187 = vmax.f32 %v6557, %v6575
  %v7188 = vmax.f32 %v6558, %v6576
  %v7189 = vmax.f32 %v6559, %v6577
  %v7190 = vmax.f32 %v6614, %v6632
  %v7191 = vmax.f32 %v6615, %v6633
  %v7192 = vmax.f32 %v6616, %v6634
  %v7193 = vmax.f32 %v6617, %v6635
  %v7194 = vmax.f32 %v6618, %v6636
  %v7195 = vmax.f32 %v6619, %v6637
  %v7196 = vmax.f32 %v6620, %v6638
  %v7197 = vmax.f32 %v6621, %v6639
  %v7198 = vmax.f32 %v6622, %v6640
  %v7199 = vmax.f32 %v6623, %v6641
  %v7200 = vmax.f32 %v6624, %v6642
  %v7201 = vmax.f32 %v6625, %v6643
  %v7202 = vmax.f32 %v6626, %v6644
  %v7203 = vmax.f32 %v6627, %v6645
  %v7204 = vmax.f32 %v6628, %v6646
  %v7205 = vmax.f32 %v6629, %v6647
  %v7206 = vmax.f32 %v6630, %v6648
  %v7207 = vmax.f32 %v6631, %v6649
  %v7208 = vmax.f32 %v6686, %v6704
  %v7209 = vmax.f32 %v6687, %v6705
  %v7210 = vmax.f32 %v6688, %v6706
  %v7211 = vmax.f32 %v6689, %v6707
  %v7212 = vmax.f32 %v6690, %v6708
  %v7213 = vmax.f32 %v6691, %v6709
  %v7214 = vmax.f32 %v6692, %v6710
  %v7215 = vmax.f32 %v6693, %v6711
  %v7216 = vmax.f32 %v6694, %v6712
  %v7217 = vmax.f32 %v6695, %v6713
  %v7218 = vmax.f32 %v6696, %v6714
  %v7219 = vmax.f32 %v6697, %v6715
  %v7220 = vmax.f32 %v6698, %v6716
  %v7221 = vmax.f32 %v6699, %v6717
  %v7222 = vmax.f32 %v6700, %v6718
  %v7223 = vmax.f32 %v6701, %v6719
  %v7224 = vmax.f32 %v6702, %v6720
  %v7225 = vmax.f32 %v6703, %v6721
  %v7226 = vmax.f32 %v6758, %v6776
  %v7227 = vmax.f32 %v6759, %v6777
  %v7228 = vmax.f32 %v6760, %v6778
  %v7229 = vmax.f32 %v6761, %v6779
  %v7230 = vmax.f32 %v6762, %v6780
  %v7231 = vmax.f32 %v6763, %v6781
  %v7232 = vmax.f32 %v6764, %v6782
  %v7233 = vmax.f32 %v6765, %v6783
  %v7234 = vmax.f32 %v6766, %v6784
  %v7235 = vmax.f32 %v6767, %v6785
  %v7236 = vmax.f32 %v6768, %v6786
  %v7237 = vmax.f32 %v6769, %v6787
  %v7238 = vmax.f32 %v6770, %v6788
  %v7239 = vmax.f32 %v6771, %v6789
  %v7240 = vmax.f32 %v6772, %v6790
  %v7241 = vmax.f32 %v6773, %v6791
  %v7242 = vmax.f32 %v6774, %v6792
  %v7243 = vmax.f32 %v6775, %v6793
  %v7244 = vmax.f32 %v6830, %v6848
  %v7245 = vmax.f32 %v6831, %v6849
  %v7246 = vmax.f32 %v6832, %v6850
  %v7247 = vmax.f32 %v6833, %v6851
  %v7248 = vmax.f32 %v6834, %v6852
  %v7249 = vmax.f32 %v6835, %v6853
  %v7250 = vmax.f32 %v6836, %v6854
  %v7251 = vmax.f32 %v6837, %v6855
  %v7252 = vmax.f32 %v6838, %v6856
  %v7253 = vmax.f32 %v6839, %v6857
  %v7254 = vmax.f32 %v6840, %v6858
  %v7255 = vmax.f32 %v6841, %v6859
  %v7256 = vmax.f32 %v6842, %v6860
  %v7257 = vmax.f32 %v6843, %v6861
  %v7258 = vmax.f32 %v6844, %v6862
  %v7259 = vmax.f32 %v6845, %v6863
  %v7260 = vmax.f32 %v6846, %v6864
  %v7261 = vmax.f32 %v6847, %v6865
  %v7262 = vmax.f32 %v6902, %v6920
  %v7263 = vmax.f32 %v6903, %v6921
  %v7264 = vmax.f32 %v6904, %v6922
  %v7265 = vmax.f32 %v6905, %v6923
  %v7266 = vmax.f32 %v6906, %v6924
  %v7267 = vmax.f32 %v6907, %v6925
  %v7268 = vmax.f32 %v6908, %v6926
  %v7269 = vmax.f32 %v6909, %v6927
  %v7270 = vmax.f32 %v6910, %v6928
  %v7271 = vmax.f32 %v6911, %v6929
  %v7272 = vmax.f32 %v6912, %v6930
  %v7273 = vmax.f32 %v6913, %v6931
  %v7274 = vmax.f32 %v6914, %v6932
  %v7275 = vmax.f32 %v6915, %v6933
  %v7276 = vmax.f32 %v6916, %v6934
  %v7277 = vmax.f32 %v6917, %v6935
  %v7278 = vmax.f32 %v6918, %v6936
  %v7279 = vmax.f32 %v6919, %v6937
  %v7280 = vmax.f32 %v6974, %v6992
  %v7281 = vmax.f32 %v6975, %v6993
  %v7282 = vmax.f32 %v6976, %v6994
  %v7283 = vmax.f32 %v6977, %v6995
  %v7284 = vmax.f32 %v6978, %v6996
  %v7285 = vmax.f32 %v6979, %v6997
  %v7286 = vmax.f32 %v6980, %v6998
  %v7287 = vmax.f32 %v6981, %v6999
  %v7288 = vmax.f32 %v6982, %v7000
  %v7289 = vmax.f32 %v6983, %v7001
  %v7290 = vmax.f32 %v6984, %v7002
  %v7291 = vmax.f32 %v6985, %v7003
  %v7292 = vmax.f32 %v6986, %v7004
  %v7293 = vmax.f32 %v6987, %v7005
  %v7294 = vmax.f32 %v6988, %v7006
  %v7295 = vmax.f32 %v6989, %v7007
  %v7296 = vmax.f32 %v6990, %v7008
  %v7297 = vmax.f32 %v6991, %v7009
  %v7298 = vmax.f32 %v7010, %v7154
  %v7299 = vmax.f32 %v7011, %v7155
  %v7300 = vmax.f32 %v7012, %v7156
  %v7301 = vmax.f32 %v7013, %v7157
  %v7302 = vmax.f32 %v7014, %v7158
  %v7303 = vmax.f32 %v7015, %v7159
  %v7304 = vmax.f32 %v7016, %v7160
  %v7305 = vmax.f32 %v7017, %v7161
  %v7306 = vmax.f32 %v7018, %v7162
  %v7307 = vmax.f32 %v7019, %v7163
  %v7308 = vmax.f32 %v7020, %v7164
  %v7309 = vmax.f32 %v7021, %v7165
  %v7310 = vmax.f32 %v7022, %v7166
  %v7311 = vmax.f32 %v7023, %v7167
  %v7312 = vmax.f32 %v7024, %v7168
  %v7313 = vmax.f32 %v7025, %v7169
  %v7314 = vmax.f32 %v7026, %v7170
  %v7315 = vmax.f32 %v7027, %v7171
  %v7316 = vmax.f32 %v7028, %v7172
  %v7317 = vmax.f32 %v7029, %v7173
  %v7318 = vmax.f32 %v7030, %v7174
  %v7319 = vmax.f32 %v7031, %v7175
  %v7320 = vmax.f32 %v7032, %v7176
  %v7321 = vmax.f32 %v7033, %v7177
  %v7322 = vmax.f32 %v7034, %v7178
  %v7323 = vmax.f32 %v7035, %v7179
  %v7324 = vmax.f32 %v7036, %v7180
  %v7325 = vmax.f32 %v7037, %v7181
  %v7326 = vmax.f32 %v7038, %v7182
  %v7327 = vmax.f32 %v7039, %v7183
  %v7328 = vmax.f32 %v7040, %v7184
  %v7329 = vmax.f32 %v7041, %v7185
  %v7330 = vmax.f32 %v7042, %v7186
  %v7331 = vmax.f32 %v7043, %v7187
  %v7332 = vmax.f32 %v7044, %v7188
  %v7333 = vmax.f32 %v7045, %v7189
  %v7334 = vmax.f32 %v7046, %v7190
  %v7335 = vmax.f32 %v7047, %v7191
  %v7336 = vmax.f32 %v7048, %v7192
  %v7337 = vmax.f32 %v7049, %v7193
  %v7338 = vmax.f32 %v7050, %v7194
  %v7339 = vmax.f32 %v7051, %v7195
  %v7340 = vmax.f32 %v7052, %v7196
  %v7341 = vmax.f32 %v7053, %v7197
  %v7342 = vmax.f32 %v7054, %v7198
  %v7343 = vmax.f32 %v7055, %v7199
  %v7344 = vmax.f32 %v7056, %v7200
  %v7345 = vmax.f32 %v7057, %v7201
  %v7346 = vmax.f32 %v7058, %v7202
  %v7347 = vmax.f32 %v7059, %v7203
  %v7348 = vmax.f32 %v7060, %v7204
  %v7349 = vmax.f32 %v7061, %v7205
  %v7350 = vmax.f32 %v7062, %v7206
  %v7351 = vmax.f32 %v7063, %v7207
  %v7352 = vmax.f32 %v7064, %v7208
  %v7353 = vmax.f32 %v7065, %v7209
  %v7354 = vmax.f32 %v7066, %v7210
  %v7355 = vmax.f32 %v7067, %v7211
  %v7356 = vmax.f32 %v7068, %v7212
  %v7357 = vmax.f32 %v7069, %v7213
  %v7358 = vmax.f32 %v7070, %v7214
  %v7359 = vmax.f32 %v7071, %v7215
  %v7360 = vmax.f32 %v7072, %v7216
  %v7361 = vmax.f32 %v7073, %v7217
  %v7362 = vmax.f32 %v7074, %v7218
  %v7363 = vmax.f32 %v7075, %v7219
  %v7364 = vmax.f32 %v7076, %v7220
  %v7365 = vmax.f32 %v7077, %v7221
  %v7366 = vmax.f32 %v7078, %v7222
  %v7367 = vmax.f32 %v7079, %v7223
  %v7368 = vmax.f32 %v7080, %v7224
  %v7369 = vmax.f32 %v7081, %v7225
  %v7370 = vmax.f32 %v7082, %v7226
  %v7371 = vmax.f32 %v7083, %v7227
  %v7372 = vmax.f32 %v7084, %v7228
  %v7373 = vmax.f32 %v7085, %v7229
  %v7374 = vmax.f32 %v7086, %v7230
  %v7375 = vmax.f32 %v7087, %v7231
  %v7376 = vmax.f32 %v7088, %v7232
  %v7377 = vmax.f32 %v7089, %v7233
  %v7378 = vmax.f32 %v7090, %v7234
  %v7379 = vmax.f32 %v7091, %v7235
  %v7380 = vmax.f32 %v7092, %v7236
  %v7381 = vmax.f32 %v7093, %v7237
  %v7382 = vmax.f32 %v7094, %v7238
  %v7383 = vmax.f32 %v7095, %v7239
  %v7384 = vmax.f32 %v7096, %v7240
  %v7385 = vmax.f32 %v7097, %v7241
  %v7386 = vmax.f32 %v7098, %v7242
  %v7387 = vmax.f32 %v7099, %v7243
  %v7388 = vmax.f32 %v7100, %v7244
  %v7389 = vmax.f32 %v7101, %v7245
  %v7390 = vmax.f32 %v7102, %v7246
  %v7391 = vmax.f32 %v7103, %v7247
  %v7392 = vmax.f32 %v7104, %v7248
  %v7393 = vmax.f32 %v7105, %v7249
  %v7394 = vmax.f32 %v7106, %v7250
  %v7395 = vmax.f32 %v7107, %v7251
  %v7396 = vmax.f32 %v7108, %v7252
  %v7397 = vmax.f32 %v7109, %v7253
  %v7398 = vmax.f32 %v7110, %v7254
  %v7399 = vmax.f32 %v7111, %v7255
  %v7400 = vmax.f32 %v7112, %v7256
  %v7401 = vmax.f32 %v7113, %v7257
  %v7402 = vmax.f32 %v7114, %v7258
  %v7403 = vmax.f32 %v7115, %v7259
  %v7404 = vmax.f32 %v7116, %v7260
  %v7405 = vmax.f32 %v7117, %v7261
  %v7406 = vmax.f32 %v7118, %v7262
  %v7407 = vmax.f32 %v7119, %v7263
  %v7408 = vmax.f32 %v7120, %v7264
  %v7409 = vmax.f32 %v7121, %v7265
  %v7410 = vmax.f32 %v7122, %v7266
  %v7411 = vmax.f32 %v7123, %v7267
  %v7412 = vmax.f32 %v7124, %v7268
  %v7413 = vmax.f32 %v7125, %v7269
  %v7414 = vmax.f32 %v7126, %v7270
  %v7415 = vmax.f32 %v7127, %v7271
  %v7416 = vmax.f32 %v7128, %v7272
  %v7417 = vmax.f32 %v7129, %v7273
  %v7418 = vmax.f32 %v7130, %v7274
  %v7419 = vmax.f32 %v7131, %v7275
  %v7420 = vmax.f32 %v7132, %v7276
  %v7421 = vmax.f32 %v7133, %v7277
  %v7422 = vmax.f32 %v7134, %v7278
  %v7423 = vmax.f32 %v7135, %v7279
  %v7424 = vmax.f32 %v7136, %v7280
  %v7425 = vmax.f32 %v7137, %v7281
  %v7426 = vmax.f32 %v7138, %v7282
  %v7427 = vmax.f32 %v7139, %v7283
  %v7428 = vmax.f32 %v7140, %v7284
  %v7429 = vmax.f32 %v7141, %v7285
  %v7430 = vmax.f32 %v7142, %v7286
  %v7431 = vmax.f32 %v7143, %v7287
  %v7432 = vmax.f32 %v7144, %v7288
  %v7433 = vmax.f32 %v7145, %v7289
  %v7434 = vmax.f32 %v7146, %v7290
  %v7435 = vmax.f32 %v7147, %v7291
  %v7436 = vmax.f32 %v7148, %v7292
  %v7437 = vmax.f32 %v7149, %v7293
  %v7438 = vmax.f32 %v7150, %v7294
  %v7439 = vmax.f32 %v7151, %v7295
  %v7440 = vmax.f32 %v7152, %v7296
  %v7441 = vmax.f32 %v7153, %v7297
  %v7442 = vpack.c.bf16 %v7299, %v7298
  %v7443 = vpack.c.bf16 %v7301, %v7300
  %v7444 = vpack.c.bf16 %v7303, %v7302
  %v7445 = vpack.c.bf16 %v7305, %v7304
  %v7446 = vpack.c.bf16 %v7307, %v7306
  %v7447 = vpack.c.bf16 %v7309, %v7308
  %v7448 = vpack.c.bf16 %v7311, %v7310
  %v7449 = vpack.c.bf16 %v7313, %v7312
  %v7450 = vpack.c.bf16 %v7315, %v7314
  %v7451 = vpack.c.bf16 %v7317, %v7316
  %v7452 = vpack.c.bf16 %v7319, %v7318
  %v7453 = vpack.c.bf16 %v7321, %v7320
  %v7454 = vpack.c.bf16 %v7323, %v7322
  %v7455 = vpack.c.bf16 %v7325, %v7324
  %v7456 = vpack.c.bf16 %v7327, %v7326
  %v7457 = vpack.c.bf16 %v7329, %v7328
  %v7458 = vpack.c.bf16 %v7331, %v7330
  %v7459 = vpack.c.bf16 %v7333, %v7332
  %v7460 = vpack.c.bf16 %v7335, %v7334
  %v7461 = vpack.c.bf16 %v7337, %v7336
  %v7462 = vpack.c.bf16 %v7339, %v7338
  %v7463 = vpack.c.bf16 %v7341, %v7340
  %v7464 = vpack.c.bf16 %v7343, %v7342
  %v7465 = vpack.c.bf16 %v7345, %v7344
  %v7466 = vpack.c.bf16 %v7347, %v7346
  %v7467 = vpack.c.bf16 %v7349, %v7348
  %v7468 = vpack.c.bf16 %v7351, %v7350
  %v7469 = vpack.c.bf16 %v7353, %v7352
  %v7470 = vpack.c.bf16 %v7355, %v7354
  %v7471 = vpack.c.bf16 %v7357, %v7356
  %v7472 = vpack.c.bf16 %v7359, %v7358
  %v7473 = vpack.c.bf16 %v7361, %v7360
  %v7474 = vpack.c.bf16 %v7363, %v7362
  %v7475 = vpack.c.bf16 %v7365, %v7364
  %v7476 = vpack.c.bf16 %v7367, %v7366
  %v7477 = vpack.c.bf16 %v7369, %v7368
  %v7478 = vpack.c.bf16 %v7371, %v7370
  %v7479 = vpack.c.bf16 %v7373, %v7372
  %v7480 = vpack.c.bf16 %v7375, %v7374
  %v7481 = vpack.c.bf16 %v7377, %v7376
  %v7482 = vpack.c.bf16 %v7379, %v7378
  %v7483 = vpack.c.bf16 %v7381, %v7380
  %v7484 = vpack.c.bf16 %v7383, %v7382
  %v7485 = vpack.c.bf16 %v7385, %v7384
  %v7486 = vpack.c.bf16 %v7387, %v7386
  %v7487 = vpack.c.bf16 %v7389, %v7388
  %v7488 = vpack.c.bf16 %v7391, %v7390
  %v7489 = vpack.c.bf16 %v7393, %v7392
  %v7490 = vpack.c.bf16 %v7395, %v7394
  %v7491 = vpack.c.bf16 %v7397, %v7396
  %v7492 = vpack.c.bf16 %v7399, %v7398
  %v7493 = vpack.c.bf16 %v7401, %v7400
  %v7494 = vpack.c.bf16 %v7403, %v7402
  %v7495 = vpack.c.bf16 %v7405, %v7404
  %v7496 = vpack.c.bf16 %v7407, %v7406
  %v7497 = vpack.c.bf16 %v7409, %v7408
  %v7498 = vpack.c.bf16 %v7411, %v7410
  %v7499 = vpack.c.bf16 %v7413, %v7412
  %v7500 = vpack.c.bf16 %v7415, %v7414
  %v7501 = vpack.c.bf16 %v7417, %v7416
  %v7502 = vpack.c.bf16 %v7419, %v7418
  %v7503 = vpack.c.bf16 %v7421, %v7420
  %v7504 = vpack.c.bf16 %v7423, %v7422
  %v7505 = vpack.c.bf16 %v7425, %v7424
  %v7506 = vpack.c.bf16 %v7427, %v7426
  %v7507 = vpack.c.bf16 %v7429, %v7428
  %v7508 = vpack.c.bf16 %v7431, %v7430
  %v7509 = vpack.c.bf16 %v7433, %v7432
  %v7510 = vpack.c.bf16 %v7435, %v7434
  %v7511 = vpack.c.bf16 %v7437, %v7436
  %v7512 = vpack.c.bf16 %v7439, %v7438
  %v7513 = vpack.c.bf16 %v7441, %v7440
  %v7586 = vunpack.c.l.b16 %v7442
  %v7587 = vunpack.c.h.b16 %v7442
  %v7588 = vunpack.c.l.b16 %v7443
  %v7589 = vunpack.c.h.b16 %v7443
  %v7590 = vunpack.c.l.b16 %v7444
  %v7591 = vunpack.c.h.b16 %v7444
  %v7592 = vunpack.c.l.b16 %v7445
  %v7593 = vunpack.c.h.b16 %v7445
  %v7594 = vunpack.c.l.b16 %v7446
  %v7595 = vunpack.c.h.b16 %v7446
  %v7596 = vunpack.c.l.b16 %v7447
  %v7597 = vunpack.c.h.b16 %v7447
  %v7598 = vunpack.c.l.b16 %v7448
  %v7599 = vunpack.c.h.b16 %v7448
  %v7600 = vunpack.c.l.b16 %v7449
  %v7601 = vunpack.c.h.b16 %v7449
  %v7602 = vunpack.c.l.b16 %v7450
  %v7603 = vunpack.c.h.b16 %v7450
  %v7604 = vunpack.c.l.b16 %v7451
  %v7605 = vunpack.c.h.b16 %v7451
  %v7606 = vunpack.c.l.b16 %v7452
  %v7607 = vunpack.c.h.b16 %v7452
  %v7608 = vunpack.c.l.b16 %v7453
  %v7609 = vunpack.c.h.b16 %v7453
  %v7610 = vunpack.c.l.b16 %v7454
  %v7611 = vunpack.c.h.b16 %v7454
  %v7612 = vunpack.c.l.b16 %v7455
  %v7613 = vunpack.c.h.b16 %v7455
  %v7614 = vunpack.c.l.b16 %v7456
  %v7615 = vunpack.c.h.b16 %v7456
  %v7616 = vunpack.c.l.b16 %v7457
  %v7617 = vunpack.c.h.b16 %v7457
  %v7618 = vunpack.c.l.b16 %v7458
  %v7619 = vunpack.c.h.b16 %v7458
  %v7620 = vunpack.c.l.b16 %v7459
  %v7621 = vunpack.c.h.b16 %v7459
  %v7622 = vunpack.c.l.b16 %v7460
  %v7623 = vunpack.c.h.b16 %v7460
  %v7624 = vunpack.c.l.b16 %v7461
  %v7625 = vunpack.c.h.b16 %v7461
  %v7626 = vunpack.c.l.b16 %v7462
  %v7627 = vunpack.c.h.b16 %v7462
  %v7628 = vunpack.c.l.b16 %v7463
  %v7629 = vunpack.c.h.b16 %v7463
  %v7630 = vunpack.c.l.b16 %v7464
  %v7631 = vunpack.c.h.b16 %v7464
  %v7632 = vunpack.c.l.b16 %v7465
  %v7633 = vunpack.c.h.b16 %v7465
  %v7634 = vunpack.c.l.b16 %v7466
  %v7635 = vunpack.c.h.b16 %v7466
  %v7636 = vunpack.c.l.b16 %v7467
  %v7637 = vunpack.c.h.b16 %v7467
  %v7638 = vunpack.c.l.b16 %v7468
  %v7639 = vunpack.c.h.b16 %v7468
  %v7640 = vunpack.c.l.b16 %v7469
  %v7641 = vunpack.c.h.b16 %v7469
  %v7642 = vunpack.c.l.b16 %v7470
  %v7643 = vunpack.c.h.b16 %v7470
  %v7644 = vunpack.c.l.b16 %v7471
  %v7645 = vunpack.c.h.b16 %v7471
  %v7646 = vunpack.c.l.b16 %v7472
  %v7647 = vunpack.c.h.b16 %v7472
  %v7648 = vunpack.c.l.b16 %v7473
  %v7649 = vunpack.c.h.b16 %v7473
  %v7650 = vunpack.c.l.b16 %v7474
  %v7651 = vunpack.c.h.b16 %v7474
  %v7652 = vunpack.c.l.b16 %v7475
  %v7653 = vunpack.c.h.b16 %v7475
  %v7654 = vunpack.c.l.b16 %v7476
  %v7655 = vunpack.c.h.b16 %v7476
  %v7656 = vunpack.c.l.b16 %v7477
  %v7657 = vunpack.c.h.b16 %v7477
  %v7658 = vunpack.c.l.b16 %v7478
  %v7659 = vunpack.c.h.b16 %v7478
  %v7660 = vunpack.c.l.b16 %v7479
  %v7661 = vunpack.c.h.b16 %v7479
  %v7662 = vunpack.c.l.b16 %v7480
  %v7663 = vunpack.c.h.b16 %v7480
  %v7664 = vunpack.c.l.b16 %v7481
  %v7665 = vunpack.c.h.b16 %v7481
  %v7666 = vunpack.c.l.b16 %v7482
  %v7667 = vunpack.c.h.b16 %v7482
  %v7668 = vunpack.c.l.b16 %v7483
  %v7669 = vunpack.c.h.b16 %v7483
  %v7670 = vunpack.c.l.b16 %v7484
  %v7671 = vunpack.c.h.b16 %v7484
  %v7672 = vunpack.c.l.b16 %v7485
  %v7673 = vunpack.c.h.b16 %v7485
  %v7674 = vunpack.c.l.b16 %v7486
  %v7675 = vunpack.c.h.b16 %v7486
  %v7676 = vunpack.c.l.b16 %v7487
  %v7677 = vunpack.c.h.b16 %v7487
  %v7678 = vunpack.c.l.b16 %v7488
  %v7679 = vunpack.c.h.b16 %v7488
  %v7680 = vunpack.c.l.b16 %v7489
  %v7681 = vunpack.c.h.b16 %v7489
  %v7682 = vunpack.c.l.b16 %v7490
  %v7683 = vunpack.c.h.b16 %v7490
  %v7684 = vunpack.c.l.b16 %v7491
  %v7685 = vunpack.c.h.b16 %v7491
  %v7686 = vunpack.c.l.b16 %v7492
  %v7687 = vunpack.c.h.b16 %v7492
  %v7688 = vunpack.c.l.b16 %v7493
  %v7689 = vunpack.c.h.b16 %v7493
  %v7690 = vunpack.c.l.b16 %v7494
  %v7691 = vunpack.c.h.b16 %v7494
  %v7692 = vunpack.c.l.b16 %v7495
  %v7693 = vunpack.c.h.b16 %v7495
  %v7694 = vunpack.c.l.b16 %v7496
  %v7695 = vunpack.c.h.b16 %v7496
  %v7696 = vunpack.c.l.b16 %v7497
  %v7697 = vunpack.c.h.b16 %v7497
  %v7698 = vunpack.c.l.b16 %v7498
  %v7699 = vunpack.c.h.b16 %v7498
  %v7700 = vunpack.c.l.b16 %v7499
  %v7701 = vunpack.c.h.b16 %v7499
  %v7702 = vunpack.c.l.b16 %v7500
  %v7703 = vunpack.c.h.b16 %v7500
  %v7704 = vunpack.c.l.b16 %v7501
  %v7705 = vunpack.c.h.b16 %v7501
  %v7706 = vunpack.c.l.b16 %v7502
  %v7707 = vunpack.c.h.b16 %v7502
  %v7708 = vunpack.c.l.b16 %v7503
  %v7709 = vunpack.c.h.b16 %v7503
  %v7710 = vunpack.c.l.b16 %v7504
  %v7711 = vunpack.c.h.b16 %v7504
  %v7712 = vunpack.c.l.b16 %v7505
  %v7713 = vunpack.c.h.b16 %v7505
  %v7714 = vunpack.c.l.b16 %v7506
  %v7715 = vunpack.c.h.b16 %v7506
  %v7716 = vunpack.c.l.b16 %v7507
  %v7717 = vunpack.c.h.b16 %v7507
  %v7718 = vunpack.c.l.b16 %v7508
  %v7719 = vunpack.c.h.b16 %v7508
  %v7720 = vunpack.c.l.b16 %v7509
  %v7721 = vunpack.c.h.b16 %v7509
  %v7722 = vunpack.c.l.b16 %v7510
  %v7723 = vunpack.c.h.b16 %v7510
  %v7724 = vunpack.c.l.b16 %v7511
  %v7725 = vunpack.c.h.b16 %v7511
  %v7726 = vunpack.c.l.b16 %v7512
  %v7727 = vunpack.c.h.b16 %v7512
  %v7728 = vunpack.c.l.b16 %v7513
  %v7729 = vunpack.c.h.b16 %v7513
  %v7730 = vpack.c.b16 %v7586, %v7586
  %v7731 = vpack.c.b16 %v7587, %v7587
  %v7732 = vpack.c.b16 %v7588, %v7588
  %v7733 = vpack.c.b16 %v7589, %v7589
  %v7734 = vpack.c.b16 %v7590, %v7590
  %v7735 = vpack.c.b16 %v7591, %v7591
  %v7736 = vpack.c.b16 %v7592, %v7592
  %v7737 = vpack.c.b16 %v7593, %v7593
  %v7738 = vpack.c.b16 %v7594, %v7594
  %v7739 = vpack.c.b16 %v7595, %v7595
  %v7740 = vpack.c.b16 %v7596, %v7596
  %v7741 = vpack.c.b16 %v7597, %v7597
  %v7742 = vpack.c.b16 %v7598, %v7598
  %v7743 = vpack.c.b16 %v7599, %v7599
  %v7744 = vpack.c.b16 %v7600, %v7600
  %v7745 = vpack.c.b16 %v7601, %v7601
  %v7746 = vpack.c.b16 %v7602, %v7602
  %v7747 = vpack.c.b16 %v7603, %v7603
  %v7748 = vpack.c.b16 %v7604, %v7604
  %v7749 = vpack.c.b16 %v7605, %v7605
  %v7750 = vpack.c.b16 %v7606, %v7606
  %v7751 = vpack.c.b16 %v7607, %v7607
  %v7752 = vpack.c.b16 %v7608, %v7608
  %v7753 = vpack.c.b16 %v7609, %v7609
  %v7754 = vpack.c.b16 %v7610, %v7610
  %v7755 = vpack.c.b16 %v7611, %v7611
  %v7756 = vpack.c.b16 %v7612, %v7612
  %v7757 = vpack.c.b16 %v7613, %v7613
  %v7758 = vpack.c.b16 %v7614, %v7614
  %v7759 = vpack.c.b16 %v7615, %v7615
  %v7760 = vpack.c.b16 %v7616, %v7616
  %v7761 = vpack.c.b16 %v7617, %v7617
  %v7762 = vpack.c.b16 %v7618, %v7618
  %v7763 = vpack.c.b16 %v7619, %v7619
  %v7764 = vpack.c.b16 %v7620, %v7620
  %v7765 = vpack.c.b16 %v7621, %v7621
  %v7766 = vpack.c.b16 %v7622, %v7622
  %v7767 = vpack.c.b16 %v7623, %v7623
  %v7768 = vpack.c.b16 %v7624, %v7624
  %v7769 = vpack.c.b16 %v7625, %v7625
  %v7770 = vpack.c.b16 %v7626, %v7626
  %v7771 = vpack.c.b16 %v7627, %v7627
  %v7772 = vpack.c.b16 %v7628, %v7628
  %v7773 = vpack.c.b16 %v7629, %v7629
  %v7774 = vpack.c.b16 %v7630, %v7630
  %v7775 = vpack.c.b16 %v7631, %v7631
  %v7776 = vpack.c.b16 %v7632, %v7632
  %v7777 = vpack.c.b16 %v7633, %v7633
  %v7778 = vpack.c.b16 %v7634, %v7634
  %v7779 = vpack.c.b16 %v7635, %v7635
  %v7780 = vpack.c.b16 %v7636, %v7636
  %v7781 = vpack.c.b16 %v7637, %v7637
  %v7782 = vpack.c.b16 %v7638, %v7638
  %v7783 = vpack.c.b16 %v7639, %v7639
  %v7784 = vpack.c.b16 %v7640, %v7640
  %v7785 = vpack.c.b16 %v7641, %v7641
  %v7786 = vpack.c.b16 %v7642, %v7642
  %v7787 = vpack.c.b16 %v7643, %v7643
  %v7788 = vpack.c.b16 %v7644, %v7644
  %v7789 = vpack.c.b16 %v7645, %v7645
  %v7790 = vpack.c.b16 %v7646, %v7646
  %v7791 = vpack.c.b16 %v7647, %v7647
  %v7792 = vpack.c.b16 %v7648, %v7648
  %v7793 = vpack.c.b16 %v7649, %v7649
  %v7794 = vpack.c.b16 %v7650, %v7650
  %v7795 = vpack.c.b16 %v7651, %v7651
  %v7796 = vpack.c.b16 %v7652, %v7652
  %v7797 = vpack.c.b16 %v7653, %v7653
  %v7798 = vpack.c.b16 %v7654, %v7654
  %v7799 = vpack.c.b16 %v7655, %v7655
  %v7800 = vpack.c.b16 %v7656, %v7656
  %v7801 = vpack.c.b16 %v7657, %v7657
  %v7802 = vpack.c.b16 %v7658, %v7658
  %v7803 = vpack.c.b16 %v7659, %v7659
  %v7804 = vpack.c.b16 %v7660, %v7660
  %v7805 = vpack.c.b16 %v7661, %v7661
  %v7806 = vpack.c.b16 %v7662, %v7662
  %v7807 = vpack.c.b16 %v7663, %v7663
  %v7808 = vpack.c.b16 %v7664, %v7664
  %v7809 = vpack.c.b16 %v7665, %v7665
  %v7810 = vpack.c.b16 %v7666, %v7666
  %v7811 = vpack.c.b16 %v7667, %v7667
  %v7812 = vpack.c.b16 %v7668, %v7668
  %v7813 = vpack.c.b16 %v7669, %v7669
  %v7814 = vpack.c.b16 %v7670, %v7670
  %v7815 = vpack.c.b16 %v7671, %v7671
  %v7816 = vpack.c.b16 %v7672, %v7672
  %v7817 = vpack.c.b16 %v7673, %v7673
  %v7818 = vpack.c.b16 %v7674, %v7674
  %v7819 = vpack.c.b16 %v7675, %v7675
  %v7820 = vpack.c.b16 %v7676, %v7676
  %v7821 = vpack.c.b16 %v7677, %v7677
  %v7822 = vpack.c.b16 %v7678, %v7678
  %v7823 = vpack.c.b16 %v7679, %v7679
  %v7824 = vpack.c.b16 %v7680, %v7680
  %v7825 = vpack.c.b16 %v7681, %v7681
  %v7826 = vpack.c.b16 %v7682, %v7682
  %v7827 = vpack.c.b16 %v7683, %v7683
  %v7828 = vpack.c.b16 %v7684, %v7684
  %v7829 = vpack.c.b16 %v7685, %v7685
  %v7830 = vpack.c.b16 %v7686, %v7686
  %v7831 = vpack.c.b16 %v7687, %v7687
  %v7832 = vpack.c.b16 %v7688, %v7688
  %v7833 = vpack.c.b16 %v7689, %v7689
  %v7834 = vpack.c.b16 %v7690, %v7690
  %v7835 = vpack.c.b16 %v7691, %v7691
  %v7836 = vpack.c.b16 %v7692, %v7692
  %v7837 = vpack.c.b16 %v7693, %v7693
  %v7838 = vpack.c.b16 %v7694, %v7694
  %v7839 = vpack.c.b16 %v7695, %v7695
  %v7840 = vpack.c.b16 %v7696, %v7696
  %v7841 = vpack.c.b16 %v7697, %v7697
  %v7842 = vpack.c.b16 %v7698, %v7698
  %v7843 = vpack.c.b16 %v7699, %v7699
  %v7844 = vpack.c.b16 %v7700, %v7700
  %v7845 = vpack.c.b16 %v7701, %v7701
  %v7846 = vpack.c.b16 %v7702, %v7702
  %v7847 = vpack.c.b16 %v7703, %v7703
  %v7848 = vpack.c.b16 %v7704, %v7704
  %v7849 = vpack.c.b16 %v7705, %v7705
  %v7850 = vpack.c.b16 %v7706, %v7706
  %v7851 = vpack.c.b16 %v7707, %v7707
  %v7852 = vpack.c.b16 %v7708, %v7708
  %v7853 = vpack.c.b16 %v7709, %v7709
  %v7854 = vpack.c.b16 %v7710, %v7710
  %v7855 = vpack.c.b16 %v7711, %v7711
  %v7856 = vpack.c.b16 %v7712, %v7712
  %v7857 = vpack.c.b16 %v7713, %v7713
  %v7858 = vpack.c.b16 %v7714, %v7714
  %v7859 = vpack.c.b16 %v7715, %v7715
  %v7860 = vpack.c.b16 %v7716, %v7716
  %v7861 = vpack.c.b16 %v7717, %v7717
  %v7862 = vpack.c.b16 %v7718, %v7718
  %v7863 = vpack.c.b16 %v7719, %v7719
  %v7864 = vpack.c.b16 %v7720, %v7720
  %v7865 = vpack.c.b16 %v7721, %v7721
  %v7866 = vpack.c.b16 %v7722, %v7722
  %v7867 = vpack.c.b16 %v7723, %v7723
  %v7868 = vpack.c.b16 %v7724, %v7724
  %v7869 = vpack.c.b16 %v7725, %v7725
  %v7870 = vpack.c.b16 %v7726, %v7726
  %v7871 = vpack.c.b16 %v7727, %v7727
  %v7872 = vpack.c.b16 %v7728, %v7728
  %v7873 = vpack.c.b16 %v7729, %v7729
  %vm8018 = vcmask 76800
  %8019 = vst.msk [vmem:[%s5] sm:$0xf] %vm8018, %v7730
  %8020 = vst.msk [vmem:[%s5 + $0x4] sm:$0xf] %vm8018, %v7731
  %8021 = vst.msk [vmem:[%s5 + $0x8] sm:$0xf] %vm8018, %v7732
  %8022 = vst.msk [vmem:[%s5 + $0xc] sm:$0xf] %vm8018, %v7733
  %8023 = vst.msk [vmem:[%s5 + $0x10] sm:$0xf] %vm8018, %v7734
  %8024 = vst.msk [vmem:[%s5 + $0x14] sm:$0xf] %vm8018, %v7735
  %8025 = vst.msk [vmem:[%s5 + $0x18] sm:$0xf] %vm8018, %v7736
  %8026 = vst.msk [vmem:[%s5 + $0x1c] sm:$0xf] %vm8018, %v7737
  %8027 = vst.msk [vmem:[%s5 + $0x20] sm:$0xf] %vm8018, %v7738
  %8028 = vst.msk [vmem:[%s5 + $0x24] sm:$0xf] %vm8018, %v7739
  %8029 = vst.msk [vmem:[%s5 + $0x28] sm:$0xf] %vm8018, %v7740
  %8030 = vst.msk [vmem:[%s5 + $0x2c] sm:$0xf] %vm8018, %v7741
  %8031 = vst.msk [vmem:[%s5 + $0x30] sm:$0xf] %vm8018, %v7742
  %8032 = vst.msk [vmem:[%s5 + $0x34] sm:$0xf] %vm8018, %v7743
  %8033 = vst.msk [vmem:[%s5 + $0x38] sm:$0xf] %vm8018, %v7744
  %8034 = vst.msk [vmem:[%s5 + $0x3c] sm:$0xf] %vm8018, %v7745
  %8035 = vst.msk [vmem:[%s5 + $0x40] sm:$0xf] %vm8018, %v7746
  %8036 = vst.msk [vmem:[%s5 + $0x44] sm:$0xf] %vm8018, %v7747
  %8037 = vst.msk [vmem:[%s5 + $0x48] sm:$0xf] %vm8018, %v7748
  %8038 = vst.msk [vmem:[%s5 + $0x4c] sm:$0xf] %vm8018, %v7749
  %8039 = vst.msk [vmem:[%s5 + $0x50] sm:$0xf] %vm8018, %v7750
  %8040 = vst.msk [vmem:[%s5 + $0x54] sm:$0xf] %vm8018, %v7751
  %8041 = vst.msk [vmem:[%s5 + $0x58] sm:$0xf] %vm8018, %v7752
  %8042 = vst.msk [vmem:[%s5 + $0x5c] sm:$0xf] %vm8018, %v7753
  %8043 = vst.msk [vmem:[%s5 + $0x60] sm:$0xf] %vm8018, %v7754
  %8044 = vst.msk [vmem:[%s5 + $0x64] sm:$0xf] %vm8018, %v7755
  %8045 = vst.msk [vmem:[%s5 + $0x68] sm:$0xf] %vm8018, %v7756
  %8046 = vst.msk [vmem:[%s5 + $0x6c] sm:$0xf] %vm8018, %v7757
  %8047 = vst.msk [vmem:[%s5 + $0x70] sm:$0xf] %vm8018, %v7758
  %8048 = vst.msk [vmem:[%s5 + $0x74] sm:$0xf] %vm8018, %v7759
  %8049 = vst.msk [vmem:[%s5 + $0x78] sm:$0xf] %vm8018, %v7760
  %8050 = vst.msk [vmem:[%s5 + $0x7c] sm:$0xf] %vm8018, %v7761
  %8051 = vst.msk [vmem:[%s5 + $0x80] sm:$0xf] %vm8018, %v7762
  %8052 = vst.msk [vmem:[%s5 + $0x84] sm:$0xf] %vm8018, %v7763
  %8053 = vst.msk [vmem:[%s5 + $0x88] sm:$0xf] %vm8018, %v7764
  %8054 = vst.msk [vmem:[%s5 + $0x8c] sm:$0xf] %vm8018, %v7765
  %8055 = vst.msk [vmem:[%s5 + $0x90] sm:$0xf] %vm8018, %v7766
  %8056 = vst.msk [vmem:[%s5 + $0x94] sm:$0xf] %vm8018, %v7767
  %8057 = vst.msk [vmem:[%s5 + $0x98] sm:$0xf] %vm8018, %v7768
  %8058 = vst.msk [vmem:[%s5 + $0x9c] sm:$0xf] %vm8018, %v7769
  %8059 = vst.msk [vmem:[%s5 + $0xa0] sm:$0xf] %vm8018, %v7770
  %8060 = vst.msk [vmem:[%s5 + $0xa4] sm:$0xf] %vm8018, %v7771
  %8061 = vst.msk [vmem:[%s5 + $0xa8] sm:$0xf] %vm8018, %v7772
  %8062 = vst.msk [vmem:[%s5 + $0xac] sm:$0xf] %vm8018, %v7773
  %8063 = vst.msk [vmem:[%s5 + $0xb0] sm:$0xf] %vm8018, %v7774
  %8064 = vst.msk [vmem:[%s5 + $0xb4] sm:$0xf] %vm8018, %v7775
  %8065 = vst.msk [vmem:[%s5 + $0xb8] sm:$0xf] %vm8018, %v7776
  %8066 = vst.msk [vmem:[%s5 + $0xbc] sm:$0xf] %vm8018, %v7777
  %8067 = vst.msk [vmem:[%s5 + $0xc0] sm:$0xf] %vm8018, %v7778
  %8068 = vst.msk [vmem:[%s5 + $0xc4] sm:$0xf] %vm8018, %v7779
  %8069 = vst.msk [vmem:[%s5 + $0xc8] sm:$0xf] %vm8018, %v7780
  %8070 = vst.msk [vmem:[%s5 + $0xcc] sm:$0xf] %vm8018, %v7781
  %8071 = vst.msk [vmem:[%s5 + $0xd0] sm:$0xf] %vm8018, %v7782
  %8072 = vst.msk [vmem:[%s5 + $0xd4] sm:$0xf] %vm8018, %v7783
  %8073 = vst.msk [vmem:[%s5 + $0xd8] sm:$0xf] %vm8018, %v7784
  %8074 = vst.msk [vmem:[%s5 + $0xdc] sm:$0xf] %vm8018, %v7785
  %8075 = vst.msk [vmem:[%s5 + $0xe0] sm:$0xf] %vm8018, %v7786
  %8076 = vst.msk [vmem:[%s5 + $0xe4] sm:$0xf] %vm8018, %v7787
  %8077 = vst.msk [vmem:[%s5 + $0xe8] sm:$0xf] %vm8018, %v7788
  %8078 = vst.msk [vmem:[%s5 + $0xec] sm:$0xf] %vm8018, %v7789
  %8079 = vst.msk [vmem:[%s5 + $0xf0] sm:$0xf] %vm8018, %v7790
  %8080 = vst.msk [vmem:[%s5 + $0xf4] sm:$0xf] %vm8018, %v7791
  %8081 = vst.msk [vmem:[%s5 + $0xf8] sm:$0xf] %vm8018, %v7792
  %8082 = vst.msk [vmem:[%s5 + $0xfc] sm:$0xf] %vm8018, %v7793
  %8083 = vst.msk [vmem:[%s5 + $0x100] sm:$0xf] %vm8018, %v7794
  %8084 = vst.msk [vmem:[%s5 + $0x104] sm:$0xf] %vm8018, %v7795
  %8085 = vst.msk [vmem:[%s5 + $0x108] sm:$0xf] %vm8018, %v7796
  %8086 = vst.msk [vmem:[%s5 + $0x10c] sm:$0xf] %vm8018, %v7797
  %8087 = vst.msk [vmem:[%s5 + $0x110] sm:$0xf] %vm8018, %v7798
  %8088 = vst.msk [vmem:[%s5 + $0x114] sm:$0xf] %vm8018, %v7799
  %8089 = vst.msk [vmem:[%s5 + $0x118] sm:$0xf] %vm8018, %v7800
  %8090 = vst.msk [vmem:[%s5 + $0x11c] sm:$0xf] %vm8018, %v7801
  %8091 = vst.msk [vmem:[%s5 + $0x120] sm:$0xf] %vm8018, %v7802
  %8092 = vst.msk [vmem:[%s5 + $0x124] sm:$0xf] %vm8018, %v7803
  %8093 = vst.msk [vmem:[%s5 + $0x128] sm:$0xf] %vm8018, %v7804
  %8094 = vst.msk [vmem:[%s5 + $0x12c] sm:$0xf] %vm8018, %v7805
  %8095 = vst.msk [vmem:[%s5 + $0x130] sm:$0xf] %vm8018, %v7806
  %8096 = vst.msk [vmem:[%s5 + $0x134] sm:$0xf] %vm8018, %v7807
  %8097 = vst.msk [vmem:[%s5 + $0x138] sm:$0xf] %vm8018, %v7808
  %8098 = vst.msk [vmem:[%s5 + $0x13c] sm:$0xf] %vm8018, %v7809
  %8099 = vst.msk [vmem:[%s5 + $0x140] sm:$0xf] %vm8018, %v7810
  %8100 = vst.msk [vmem:[%s5 + $0x144] sm:$0xf] %vm8018, %v7811
  %8101 = vst.msk [vmem:[%s5 + $0x148] sm:$0xf] %vm8018, %v7812
  %8102 = vst.msk [vmem:[%s5 + $0x14c] sm:$0xf] %vm8018, %v7813
  %8103 = vst.msk [vmem:[%s5 + $0x150] sm:$0xf] %vm8018, %v7814
  %8104 = vst.msk [vmem:[%s5 + $0x154] sm:$0xf] %vm8018, %v7815
  %8105 = vst.msk [vmem:[%s5 + $0x158] sm:$0xf] %vm8018, %v7816
  %8106 = vst.msk [vmem:[%s5 + $0x15c] sm:$0xf] %vm8018, %v7817
  %8107 = vst.msk [vmem:[%s5 + $0x160] sm:$0xf] %vm8018, %v7818
  %8108 = vst.msk [vmem:[%s5 + $0x164] sm:$0xf] %vm8018, %v7819
  %8109 = vst.msk [vmem:[%s5 + $0x168] sm:$0xf] %vm8018, %v7820
  %8110 = vst.msk [vmem:[%s5 + $0x16c] sm:$0xf] %vm8018, %v7821
  %8111 = vst.msk [vmem:[%s5 + $0x170] sm:$0xf] %vm8018, %v7822
  %8112 = vst.msk [vmem:[%s5 + $0x174] sm:$0xf] %vm8018, %v7823
  %8113 = vst.msk [vmem:[%s5 + $0x178] sm:$0xf] %vm8018, %v7824
  %8114 = vst.msk [vmem:[%s5 + $0x17c] sm:$0xf] %vm8018, %v7825
  %8115 = vst.msk [vmem:[%s5 + $0x180] sm:$0xf] %vm8018, %v7826
  %8116 = vst.msk [vmem:[%s5 + $0x184] sm:$0xf] %vm8018, %v7827
  %8117 = vst.msk [vmem:[%s5 + $0x188] sm:$0xf] %vm8018, %v7828
  %8118 = vst.msk [vmem:[%s5 + $0x18c] sm:$0xf] %vm8018, %v7829
  %8119 = vst.msk [vmem:[%s5 + $0x190] sm:$0xf] %vm8018, %v7830
  %8120 = vst.msk [vmem:[%s5 + $0x194] sm:$0xf] %vm8018, %v7831
  %8121 = vst.msk [vmem:[%s5 + $0x198] sm:$0xf] %vm8018, %v7832
  %8122 = vst.msk [vmem:[%s5 + $0x19c] sm:$0xf] %vm8018, %v7833
  %8123 = vst.msk [vmem:[%s5 + $0x1a0] sm:$0xf] %vm8018, %v7834
  %8124 = vst.msk [vmem:[%s5 + $0x1a4] sm:$0xf] %vm8018, %v7835
  %8125 = vst.msk [vmem:[%s5 + $0x1a8] sm:$0xf] %vm8018, %v7836
  %8126 = vst.msk [vmem:[%s5 + $0x1ac] sm:$0xf] %vm8018, %v7837
  %8127 = vst.msk [vmem:[%s5 + $0x1b0] sm:$0xf] %vm8018, %v7838
  %8128 = vst.msk [vmem:[%s5 + $0x1b4] sm:$0xf] %vm8018, %v7839
  %8129 = vst.msk [vmem:[%s5 + $0x1b8] sm:$0xf] %vm8018, %v7840
  %8130 = vst.msk [vmem:[%s5 + $0x1bc] sm:$0xf] %vm8018, %v7841
  %8131 = vst.msk [vmem:[%s5 + $0x1c0] sm:$0xf] %vm8018, %v7842
  %8132 = vst.msk [vmem:[%s5 + $0x1c4] sm:$0xf] %vm8018, %v7843
  %8133 = vst.msk [vmem:[%s5 + $0x1c8] sm:$0xf] %vm8018, %v7844
  %8134 = vst.msk [vmem:[%s5 + $0x1cc] sm:$0xf] %vm8018, %v7845
  %8135 = vst.msk [vmem:[%s5 + $0x1d0] sm:$0xf] %vm8018, %v7846
  %8136 = vst.msk [vmem:[%s5 + $0x1d4] sm:$0xf] %vm8018, %v7847
  %8137 = vst.msk [vmem:[%s5 + $0x1d8] sm:$0xf] %vm8018, %v7848
  %8138 = vst.msk [vmem:[%s5 + $0x1dc] sm:$0xf] %vm8018, %v7849
  %8139 = vst.msk [vmem:[%s5 + $0x1e0] sm:$0xf] %vm8018, %v7850
  %8140 = vst.msk [vmem:[%s5 + $0x1e4] sm:$0xf] %vm8018, %v7851
  %8141 = vst.msk [vmem:[%s5 + $0x1e8] sm:$0xf] %vm8018, %v7852
  %8142 = vst.msk [vmem:[%s5 + $0x1ec] sm:$0xf] %vm8018, %v7853
  %8143 = vst.msk [vmem:[%s5 + $0x1f0] sm:$0xf] %vm8018, %v7854
  %8144 = vst.msk [vmem:[%s5 + $0x1f4] sm:$0xf] %vm8018, %v7855
  %8145 = vst.msk [vmem:[%s5 + $0x1f8] sm:$0xf] %vm8018, %v7856
  %8146 = vst.msk [vmem:[%s5 + $0x1fc] sm:$0xf] %vm8018, %v7857
  %8147 = vst.msk [vmem:[%s5 + $0x200] sm:$0xf] %vm8018, %v7858
  %8148 = vst.msk [vmem:[%s5 + $0x204] sm:$0xf] %vm8018, %v7859
  %8149 = vst.msk [vmem:[%s5 + $0x208] sm:$0xf] %vm8018, %v7860
  %8150 = vst.msk [vmem:[%s5 + $0x20c] sm:$0xf] %vm8018, %v7861
  %8151 = vst.msk [vmem:[%s5 + $0x210] sm:$0xf] %vm8018, %v7862
  %8152 = vst.msk [vmem:[%s5 + $0x214] sm:$0xf] %vm8018, %v7863
  %8153 = vst.msk [vmem:[%s5 + $0x218] sm:$0xf] %vm8018, %v7864
  %8154 = vst.msk [vmem:[%s5 + $0x21c] sm:$0xf] %vm8018, %v7865
  %8155 = vst.msk [vmem:[%s5 + $0x220] sm:$0xf] %vm8018, %v7866
  %8156 = vst.msk [vmem:[%s5 + $0x224] sm:$0xf] %vm8018, %v7867
  %8157 = vst.msk [vmem:[%s5 + $0x228] sm:$0xf] %vm8018, %v7868
  %8158 = vst.msk [vmem:[%s5 + $0x22c] sm:$0xf] %vm8018, %v7869
  %8159 = vst.msk [vmem:[%s5 + $0x230] sm:$0xf] %vm8018, %v7870
  %8160 = vst.msk [vmem:[%s5 + $0x234] sm:$0xf] %vm8018, %v7871
  %8161 = vst.msk [vmem:[%s5 + $0x238] sm:$0xf] %vm8018, %v7872
  %8162 = vst.msk [vmem:[%s5 + $0x23c] sm:$0xf] %vm8018, %v7873
  // Predicated region
  $region22: #{custom_cnn_forward.3} parent=0 // pred_check
    _
  $region23: #{custom_cnn_forward.3} parent=0 // pred_check_branch
    %8164 = sbr.rel (0) target = $region25
  $region24: #{custom_cnn_forward.3} parent=0 // pred_region
    _
  $region25: #{custom_cnn_forward.3} parent=0 // pred_fallthru
    _
  // Predicated region
  $region26: #{custom_cnn_forward.3} parent=0 // pred_check
    _
  $region27: #{custom_cnn_forward.3} parent=0 // pred_check_branch
    %8166 = sbr.rel (0) target = $region29
  $region28: #{custom_cnn_forward.3} parent=0 // pred_region
    _
  $region29: #{custom_cnn_forward.3} parent=0 // pred_fallthru
    _

// kernel: custom_cnn_forward.4
$region0: #{custom_cnn_forward.4}
  #allocation0 [shape = 'u32[]', space=smem, size = 0x4, offset = 0x4, fixed_abs, tag = 'smem constant byte address 0x4 - core index']
  #allocation1 [shape = 'u32[144,128]{1,0:T(1,128)}', space=vmem, size = 0x12000, scoped, tag = 'internal scratch']
  %s0 = inlined_call_operand.vmem [shape: bf16[8,4,16,250], index: 0, kind: input, shape index: {}]
  %s1 = inlined_call_operand.vmem [shape: bf16[250,20], index: 1, kind: input, shape index: {}]
  %s2 = inlined_call_operand.vmem [shape: f32[1,20], index: 2, kind: input, shape index: {}]
  %s3 = inlined_call_operand.vmem [shape: f32[1,20], index: 3, kind: input, shape index: {}]
  %s4 = inlined_call_operand.vmem [shape: f32[1,20], index: 4, kind: input, shape index: {}]
  %s5 = inlined_call_operand.vmem [shape: f32[8,16,20], index: 5, kind: output, shape index: {}]
  %s6 = sld [smem:[#allocation0]]
  $region30: #{custom_cnn_forward.4} parent=0
    _
  %s8 = ssub.s32 1, %s6
  %s9 = scalar_select 0, %s8, %s6
  // Predicated region
  $region2: #{custom_cnn_forward.4} parent=0 // pred_check
    _
  $region3: #{custom_cnn_forward.4} parent=0 // pred_check_branch
    %11 = sbr.rel (0) target = $region5
  $region4: #{custom_cnn_forward.4} parent=0 // pred_region
    _
  $region5: #{custom_cnn_forward.4} parent=0 // pred_fallthru
    _
  // Predicated region
  $region6: #{custom_cnn_forward.4} parent=0 // pred_check
    _
  $region7: #{custom_cnn_forward.4} parent=0 // pred_check_branch
    %13 = sbr.rel (0) target = $region9
  $region8: #{custom_cnn_forward.4} parent=0 // pred_region
    _
  $region9: #{custom_cnn_forward.4} parent=0 // pred_fallthru
    _
  // Predicated region
  $region10: #{custom_cnn_forward.4} parent=0 // pred_check
    _
  $region11: #{custom_cnn_forward.4} parent=0 // pred_check_branch
    %15 = sbr.rel (0) target = $region13
  $region12: #{custom_cnn_forward.4} parent=0 // pred_region
    _
  $region13: #{custom_cnn_forward.4} parent=0 // pred_fallthru
    _
  // Predicated region
  $region14: #{custom_cnn_forward.4} parent=0 // pred_check
    _
  $region15: #{custom_cnn_forward.4} parent=0 // pred_check_branch
    %17 = sbr.rel (0) target = $region17
  $region16: #{custom_cnn_forward.4} parent=0 // pred_region
    _
  $region17: #{custom_cnn_forward.4} parent=0 // pred_fallthru
    _
  // Predicated region
  $region18: #{custom_cnn_forward.4} parent=0 // pred_check
    _
  $region19: #{custom_cnn_forward.4} parent=0 // pred_check_branch
    %19 = sbr.rel (0) target = $region21
  $region20: #{custom_cnn_forward.4} parent=0 // pred_region
    _
  $region21: #{custom_cnn_forward.4} parent=0 // pred_fallthru
    _
  %v21 = vld [vmem:[%s0] sm:$0xff]
  %v22 = vld [vmem:[%s0 + $0x8] sm:$0xff]
  %v23 = vld [vmem:[%s0 + $0x10] sm:$0xff]
  %v24 = vld [vmem:[%s0 + $0x18] sm:$0xff]
  %v25 = vld [vmem:[%s0 + $0x20] sm:$0xff]
  %v26 = vld [vmem:[%s0 + $0x28] sm:$0xff]
  %v27 = vld [vmem:[%s0 + $0x30] sm:$0xff]
  %v28 = vld [vmem:[%s0 + $0x38] sm:$0xff]
  %v29 = vld [vmem:[%s0 + $0x40] sm:$0xff]
  %v30 = vld [vmem:[%s0 + $0x48] sm:$0xff]
  %v31 = vld [vmem:[%s0 + $0x50] sm:$0xff]
  %v32 = vld [vmem:[%s0 + $0x58] sm:$0xff]
  %v33 = vld [vmem:[%s0 + $0x60] sm:$0xff]
  %v34 = vld [vmem:[%s0 + $0x68] sm:$0xff]
  %v35 = vld [vmem:[%s0 + $0x70] sm:$0xff]
  %v36 = vld [vmem:[%s0 + $0x78] sm:$0xff]
  %v37 = vld [vmem:[%s0 + $0x80] sm:$0xff]
  %v38 = vld [vmem:[%s0 + $0x88] sm:$0xff]
  %v39 = vld [vmem:[%s0 + $0x90] sm:$0xff]
  %v40 = vld [vmem:[%s0 + $0x98] sm:$0xff]
  %v41 = vld [vmem:[%s0 + $0xa0] sm:$0xff]
  %v42 = vld [vmem:[%s0 + $0xa8] sm:$0xff]
  %v43 = vld [vmem:[%s0 + $0xb0] sm:$0xff]
  %v44 = vld [vmem:[%s0 + $0xb8] sm:$0xff]
  %v45 = vld [vmem:[%s0 + $0xc0] sm:$0xff]
  %v46 = vld [vmem:[%s0 + $0xc8] sm:$0xff]
  %v47 = vld [vmem:[%s0 + $0xd0] sm:$0xff]
  %v48 = vld [vmem:[%s0 + $0xd8] sm:$0xff]
  %v49 = vld [vmem:[%s0 + $0xe0] sm:$0xff]
  %v50 = vld [vmem:[%s0 + $0xe8] sm:$0xff]
  %v51 = vld [vmem:[%s0 + $0xf0] sm:$0xff]
  %v52 = vld [vmem:[%s0 + $0xf8] sm:$0xff]
  %v53 = vld [vmem:[%s0 + $0x100] sm:$0xff]
  %v54 = vld [vmem:[%s0 + $0x108] sm:$0xff]
  %v55 = vld [vmem:[%s0 + $0x110] sm:$0xff]
  %v56 = vld [vmem:[%s0 + $0x118] sm:$0xff]
  %v57 = vld [vmem:[%s0 + $0x120] sm:$0xff]
  %v58 = vld [vmem:[%s0 + $0x128] sm:$0xff]
  %v59 = vld [vmem:[%s0 + $0x130] sm:$0xff]
  %v60 = vld [vmem:[%s0 + $0x138] sm:$0xff]
  %v61 = vld [vmem:[%s0 + $0x140] sm:$0xff]
  %v62 = vld [vmem:[%s0 + $0x148] sm:$0xff]
  %v63 = vld [vmem:[%s0 + $0x150] sm:$0xff]
  %v64 = vld [vmem:[%s0 + $0x158] sm:$0xff]
  %v65 = vld [vmem:[%s0 + $0x160] sm:$0xff]
  %v66 = vld [vmem:[%s0 + $0x168] sm:$0xff]
  %v67 = vld [vmem:[%s0 + $0x170] sm:$0xff]
  %v68 = vld [vmem:[%s0 + $0x178] sm:$0xff]
  %v69 = vld [vmem:[%s0 + $0x180] sm:$0xff]
  %v70 = vld [vmem:[%s0 + $0x188] sm:$0xff]
  %v71 = vld [vmem:[%s0 + $0x190] sm:$0xff]
  %v72 = vld [vmem:[%s0 + $0x198] sm:$0xff]
  %v73 = vld [vmem:[%s0 + $0x1a0] sm:$0xff]
  %v74 = vld [vmem:[%s0 + $0x1a8] sm:$0xff]
  %v75 = vld [vmem:[%s0 + $0x1b0] sm:$0xff]
  %v76 = vld [vmem:[%s0 + $0x1b8] sm:$0xff]
  %v77 = vld [vmem:[%s0 + $0x1c0] sm:$0xff]
  %v78 = vld [vmem:[%s0 + $0x1c8] sm:$0xff]
  %v79 = vld [vmem:[%s0 + $0x1d0] sm:$0xff]
  %v80 = vld [vmem:[%s0 + $0x1d8] sm:$0xff]
  %v81 = vld [vmem:[%s0 + $0x1e0] sm:$0xff]
  %v82 = vld [vmem:[%s0 + $0x1e8] sm:$0xff]
  %v83 = vld [vmem:[%s0 + $0x1f0] sm:$0xff]
  %v84 = vld [vmem:[%s0 + $0x1f8] sm:$0xff]
  %v85 = vld [vmem:[%s1] sm:$0xf]
  %v86 = vld [vmem:[%s1 + $0x4] sm:$0xf]
  %v87 = vld [vmem:[%s1 + $0x8] sm:$0xf]
  %v88 = vld [vmem:[%s1 + $0xc] sm:$0xf]
  %v89 = vld [vmem:[%s1 + $0x10] sm:$0xf]
  %v90 = vld [vmem:[%s1 + $0x14] sm:$0xf]
  %v91 = vld [vmem:[%s1 + $0x18] sm:$0xf]
  %v92 = vld [vmem:[%s1 + $0x1c] sm:$0xf]
  %v93 = vld [vmem:[%s1 + $0x20] sm:$0xf]
  %v94 = vld [vmem:[%s1 + $0x24] sm:$0xf]
  %v95 = vld [vmem:[%s1 + $0x28] sm:$0xf]
  %v96 = vld [vmem:[%s1 + $0x2c] sm:$0xf]
  %v97 = vld [vmem:[%s1 + $0x30] sm:$0xf]
  %v98 = vld [vmem:[%s1 + $0x34] sm:$0xf]
  %v99 = vld [vmem:[%s1 + $0x38] sm:$0xf]
  %v100 = vld [vmem:[%s1 + $0x3c] sm:$0xf]
  %v101 = vld [vmem:[%s1 + $0x40] sm:$0xf]
  %v102 = vld [vmem:[%s1 + $0x44] sm:$0xf]
  %v103 = vld [vmem:[%s1 + $0x48] sm:$0xf]
  %v104 = vld [vmem:[%s1 + $0x4c] sm:$0xf]
  %v105 = vld [vmem:[%s1 + $0x50] sm:$0xf]
  %v106 = vld [vmem:[%s1 + $0x54] sm:$0xf]
  %v107 = vld [vmem:[%s1 + $0x58] sm:$0xf]
  %v108 = vld [vmem:[%s1 + $0x5c] sm:$0xf]
  %v109 = vld [vmem:[%s1 + $0x60] sm:$0xf]
  %v110 = vld [vmem:[%s1 + $0x64] sm:$0xf]
  %v111 = vld [vmem:[%s1 + $0x68] sm:$0xf]
  %v112 = vld [vmem:[%s1 + $0x6c] sm:$0xf]
  %v113 = vld [vmem:[%s1 + $0x70] sm:$0xf]
  %v114 = vld [vmem:[%s1 + $0x74] sm:$0xf]
  %v115 = vld [vmem:[%s1 + $0x78] sm:$0xf]
  %v116 = vld [vmem:[%s1 + $0x7c] sm:$0x1]
  %v117 = vld [vmem:[%s2] sm:$0x1]
  %v119 = vlaneseq
  %v120 = vshrl.u32 %v119, 7
  %v121 = vsub.s32 0, %v120
  %v122 = vrot.slane %v117, %v121
  %v188 = vunpack.c.l.b16 %v21
  %v189 = vunpack.c.h.b16 %v21
  %v190 = vunpack.c.l.b16 %v22
  %v191 = vunpack.c.h.b16 %v22
  %v192 = vunpack.c.l.b16 %v23
  %v193 = vunpack.c.h.b16 %v23
  %v194 = vunpack.c.l.b16 %v24
  %v195 = vunpack.c.h.b16 %v24
  %v196 = vunpack.c.l.b16 %v25
  %v197 = vunpack.c.h.b16 %v25
  %v198 = vunpack.c.l.b16 %v26
  %v199 = vunpack.c.h.b16 %v26
  %v200 = vunpack.c.l.b16 %v27
  %v201 = vunpack.c.h.b16 %v27
  %v202 = vunpack.c.l.b16 %v28
  %v203 = vunpack.c.h.b16 %v28
  %v204 = vunpack.c.l.b16 %v29
  %v205 = vunpack.c.h.b16 %v29
  %v206 = vunpack.c.l.b16 %v30
  %v207 = vunpack.c.h.b16 %v30
  %v208 = vunpack.c.l.b16 %v31
  %v209 = vunpack.c.h.b16 %v31
  %v210 = vunpack.c.l.b16 %v32
  %v211 = vunpack.c.h.b16 %v32
  %v212 = vunpack.c.l.b16 %v33
  %v213 = vunpack.c.h.b16 %v33
  %v214 = vunpack.c.l.b16 %v34
  %v215 = vunpack.c.h.b16 %v34
  %v216 = vunpack.c.l.b16 %v35
  %v217 = vunpack.c.h.b16 %v35
  %v218 = vunpack.c.l.b16 %v36
  %v219 = vunpack.c.h.b16 %v36
  %v220 = vunpack.c.l.b16 %v37
  %v221 = vunpack.c.h.b16 %v37
  %v222 = vunpack.c.l.b16 %v38
  %v223 = vunpack.c.h.b16 %v38
  %v224 = vunpack.c.l.b16 %v39
  %v225 = vunpack.c.h.b16 %v39
  %v226 = vunpack.c.l.b16 %v40
  %v227 = vunpack.c.h.b16 %v40
  %v228 = vunpack.c.l.b16 %v41
  %v229 = vunpack.c.h.b16 %v41
  %v230 = vunpack.c.l.b16 %v42
  %v231 = vunpack.c.h.b16 %v42
  %v232 = vunpack.c.l.b16 %v43
  %v233 = vunpack.c.h.b16 %v43
  %v234 = vunpack.c.l.b16 %v44
  %v235 = vunpack.c.h.b16 %v44
  %v236 = vunpack.c.l.b16 %v45
  %v237 = vunpack.c.h.b16 %v45
  %v238 = vunpack.c.l.b16 %v46
  %v239 = vunpack.c.h.b16 %v46
  %v240 = vunpack.c.l.b16 %v47
  %v241 = vunpack.c.h.b16 %v47
  %v242 = vunpack.c.l.b16 %v48
  %v243 = vunpack.c.h.b16 %v48
  %v244 = vunpack.c.l.b16 %v49
  %v245 = vunpack.c.h.b16 %v49
  %v246 = vunpack.c.l.b16 %v50
  %v247 = vunpack.c.h.b16 %v50
  %v248 = vunpack.c.l.b16 %v51
  %v249 = vunpack.c.h.b16 %v51
  %v250 = vunpack.c.l.b16 %v52
  %v251 = vunpack.c.h.b16 %v52
  %v252 = vunpack.c.l.b16 %v53
  %v253 = vunpack.c.h.b16 %v53
  %v254 = vunpack.c.l.b16 %v54
  %v255 = vunpack.c.h.b16 %v54
  %v256 = vunpack.c.l.b16 %v55
  %v257 = vunpack.c.h.b16 %v55
  %v258 = vunpack.c.l.b16 %v56
  %v259 = vunpack.c.h.b16 %v56
  %v260 = vunpack.c.l.b16 %v57
  %v261 = vunpack.c.h.b16 %v57
  %v262 = vunpack.c.l.b16 %v58
  %v263 = vunpack.c.h.b16 %v58
  %v264 = vunpack.c.l.b16 %v59
  %v265 = vunpack.c.h.b16 %v59
  %v266 = vunpack.c.l.b16 %v60
  %v267 = vunpack.c.h.b16 %v60
  %v268 = vunpack.c.l.b16 %v61
  %v269 = vunpack.c.h.b16 %v61
  %v270 = vunpack.c.l.b16 %v62
  %v271 = vunpack.c.h.b16 %v62
  %v272 = vunpack.c.l.b16 %v63
  %v273 = vunpack.c.h.b16 %v63
  %v274 = vunpack.c.l.b16 %v64
  %v275 = vunpack.c.h.b16 %v64
  %v276 = vunpack.c.l.b16 %v65
  %v277 = vunpack.c.h.b16 %v65
  %v278 = vunpack.c.l.b16 %v66
  %v279 = vunpack.c.h.b16 %v66
  %v280 = vunpack.c.l.b16 %v67
  %v281 = vunpack.c.h.b16 %v67
  %v282 = vunpack.c.l.b16 %v68
  %v283 = vunpack.c.h.b16 %v68
  %v284 = vunpack.c.l.b16 %v69
  %v285 = vunpack.c.h.b16 %v69
  %v286 = vunpack.c.l.b16 %v70
  %v287 = vunpack.c.h.b16 %v70
  %v288 = vunpack.c.l.b16 %v71
  %v289 = vunpack.c.h.b16 %v71
  %v290 = vunpack.c.l.b16 %v72
  %v291 = vunpack.c.h.b16 %v72
  %v292 = vunpack.c.l.b16 %v73
  %v293 = vunpack.c.h.b16 %v73
  %v294 = vunpack.c.l.b16 %v74
  %v295 = vunpack.c.h.b16 %v74
  %v296 = vunpack.c.l.b16 %v75
  %v297 = vunpack.c.h.b16 %v75
  %v298 = vunpack.c.l.b16 %v76
  %v299 = vunpack.c.h.b16 %v76
  %v300 = vunpack.c.l.b16 %v77
  %v301 = vunpack.c.h.b16 %v77
  %v302 = vunpack.c.l.b16 %v78
  %v303 = vunpack.c.h.b16 %v78
  %v304 = vunpack.c.l.b16 %v79
  %v305 = vunpack.c.h.b16 %v79
  %v306 = vunpack.c.l.b16 %v80
  %v307 = vunpack.c.h.b16 %v80
  %v308 = vunpack.c.l.b16 %v81
  %v309 = vunpack.c.h.b16 %v81
  %v310 = vunpack.c.l.b16 %v82
  %v311 = vunpack.c.h.b16 %v82
  %v312 = vunpack.c.l.b16 %v83
  %v313 = vunpack.c.h.b16 %v83
  %v314 = vunpack.c.l.b16 %v84
  %v315 = vunpack.c.h.b16 %v84
  %v316 = vpack.c.b16 %v190, %v188
  %v317 = vpack.c.b16 %v191, %v189
  %v318 = vpack.c.b16 %v194, %v192
  %v319 = vpack.c.b16 %v195, %v193
  %v320 = vpack.c.b16 %v198, %v196
  %v321 = vpack.c.b16 %v199, %v197
  %v322 = vpack.c.b16 %v202, %v200
  %v323 = vpack.c.b16 %v203, %v201
  %v324 = vpack.c.b16 %v206, %v204
  %v325 = vpack.c.b16 %v207, %v205
  %v326 = vpack.c.b16 %v210, %v208
  %v327 = vpack.c.b16 %v211, %v209
  %v328 = vpack.c.b16 %v214, %v212
  %v329 = vpack.c.b16 %v215, %v213
  %v330 = vpack.c.b16 %v218, %v216
  %v331 = vpack.c.b16 %v219, %v217
  %v332 = vpack.c.b16 %v222, %v220
  %v333 = vpack.c.b16 %v223, %v221
  %v334 = vpack.c.b16 %v226, %v224
  %v335 = vpack.c.b16 %v227, %v225
  %v336 = vpack.c.b16 %v230, %v228
  %v337 = vpack.c.b16 %v231, %v229
  %v338 = vpack.c.b16 %v234, %v232
  %v339 = vpack.c.b16 %v235, %v233
  %v340 = vpack.c.b16 %v238, %v236
  %v341 = vpack.c.b16 %v239, %v237
  %v342 = vpack.c.b16 %v242, %v240
  %v343 = vpack.c.b16 %v243, %v241
  %v344 = vpack.c.b16 %v246, %v244
  %v345 = vpack.c.b16 %v247, %v245
  %v346 = vpack.c.b16 %v250, %v248
  %v347 = vpack.c.b16 %v251, %v249
  %v348 = vpack.c.b16 %v254, %v252
  %v349 = vpack.c.b16 %v255, %v253
  %v350 = vpack.c.b16 %v258, %v256
  %v351 = vpack.c.b16 %v259, %v257
  %v352 = vpack.c.b16 %v262, %v260
  %v353 = vpack.c.b16 %v263, %v261
  %v354 = vpack.c.b16 %v266, %v264
  %v355 = vpack.c.b16 %v267, %v265
  %v356 = vpack.c.b16 %v270, %v268
  %v357 = vpack.c.b16 %v271, %v269
  %v358 = vpack.c.b16 %v274, %v272
  %v359 = vpack.c.b16 %v275, %v273
  %v360 = vpack.c.b16 %v278, %v276
  %v361 = vpack.c.b16 %v279, %v277
  %v362 = vpack.c.b16 %v282, %v280
  %v363 = vpack.c.b16 %v283, %v281
  %v364 = vpack.c.b16 %v286, %v284
  %v365 = vpack.c.b16 %v287, %v285
  %v366 = vpack.c.b16 %v290, %v288
  %v367 = vpack.c.b16 %v291, %v289
  %v368 = vpack.c.b16 %v294, %v292
  %v369 = vpack.c.b16 %v295, %v293
  %v370 = vpack.c.b16 %v298, %v296
  %v371 = vpack.c.b16 %v299, %v297
  %v372 = vpack.c.b16 %v302, %v300
  %v373 = vpack.c.b16 %v303, %v301
  %v374 = vpack.c.b16 %v306, %v304
  %v375 = vpack.c.b16 %v307, %v305
  %v376 = vpack.c.b16 %v310, %v308
  %v377 = vpack.c.b16 %v311, %v309
  %v378 = vpack.c.b16 %v314, %v312
  %v379 = vpack.c.b16 %v315, %v313
  %v444 = vunpack.c.l.b16 %v85
  %v445 = vunpack.c.l.b16 %v86
  %v446 = vunpack.c.l.b16 %v87
  %v447 = vunpack.c.l.b16 %v88
  %v448 = vunpack.c.l.b16 %v89
  %v449 = vunpack.c.l.b16 %v90
  %v450 = vunpack.c.l.b16 %v91
  %v451 = vunpack.c.l.b16 %v92
  %v452 = vunpack.c.l.b16 %v93
  %v453 = vunpack.c.l.b16 %v94
  %v454 = vunpack.c.l.b16 %v95
  %v455 = vunpack.c.l.b16 %v96
  %v456 = vunpack.c.l.b16 %v97
  %v457 = vunpack.c.l.b16 %v98
  %v458 = vunpack.c.l.b16 %v99
  %v459 = vunpack.c.l.b16 %v100
  %v460 = vunpack.c.l.b16 %v101
  %v461 = vunpack.c.l.b16 %v102
  %v462 = vunpack.c.l.b16 %v103
  %v463 = vunpack.c.l.b16 %v104
  %v464 = vunpack.c.l.b16 %v105
  %v465 = vunpack.c.l.b16 %v106
  %v466 = vunpack.c.l.b16 %v107
  %v467 = vunpack.c.l.b16 %v108
  %v468 = vunpack.c.l.b16 %v109
  %v469 = vunpack.c.l.b16 %v110
  %v470 = vunpack.c.l.b16 %v111
  %v471 = vunpack.c.l.b16 %v112
  %v472 = vunpack.c.l.b16 %v113
  %v473 = vunpack.c.l.b16 %v114
  %v474 = vunpack.c.l.b16 %v115
  %v475 = vunpack.c.l.b16 %v116
  %v476 = vpack.c.b16 %v445, %v444
  %v477 = vpack.c.b16 %v447, %v446
  %v478 = vpack.c.b16 %v449, %v448
  %v479 = vpack.c.b16 %v451, %v450
  %v480 = vpack.c.b16 %v453, %v452
  %v481 = vpack.c.b16 %v455, %v454
  %v482 = vpack.c.b16 %v457, %v456
  %v483 = vpack.c.b16 %v459, %v458
  %v484 = vpack.c.b16 %v461, %v460
  %v485 = vpack.c.b16 %v463, %v462
  %v486 = vpack.c.b16 %v465, %v464
  %v487 = vpack.c.b16 %v467, %v466
  %v488 = vpack.c.b16 %v469, %v468
  %v489 = vpack.c.b16 %v471, %v470
  %v490 = vpack.c.b16 %v473, %v472
  %v491 = vpack.c.b16 %v475, %v474
  %vm507 = vcmask 998400
  %v509 = vsel %vm507, %v317, 0
  %v512 = vsel %vm507, %v319, 0
  %v515 = vsel %vm507, %v321, 0
  %v518 = vsel %vm507, %v323, 0
  %v521 = vsel %vm507, %v325, 0
  %v524 = vsel %vm507, %v327, 0
  %v527 = vsel %vm507, %v329, 0
  %v530 = vsel %vm507, %v331, 0
  %v533 = vsel %vm507, %v333, 0
  %v536 = vsel %vm507, %v335, 0
  %v539 = vsel %vm507, %v337, 0
  %v542 = vsel %vm507, %v339, 0
  %v545 = vsel %vm507, %v341, 0
  %v548 = vsel %vm507, %v343, 0
  %v551 = vsel %vm507, %v345, 0
  %v554 = vsel %vm507, %v347, 0
  %v557 = vsel %vm507, %v349, 0
  %v560 = vsel %vm507, %v351, 0
  %v563 = vsel %vm507, %v353, 0
  %v566 = vsel %vm507, %v355, 0
  %v569 = vsel %vm507, %v357, 0
  %v572 = vsel %vm507, %v359, 0
  %v575 = vsel %vm507, %v361, 0
  %v578 = vsel %vm507, %v363, 0
  %v581 = vsel %vm507, %v365, 0
  %v584 = vsel %vm507, %v367, 0
  %v587 = vsel %vm507, %v369, 0
  %v590 = vsel %vm507, %v371, 0
  %v593 = vsel %vm507, %v373, 0
  %v596 = vsel %vm507, %v375, 0
  %v599 = vsel %vm507, %v377, 0
  %v602 = vsel %vm507, %v379, 0
  %vm604 = vcmask 1044480
  %v606 = vsel %vm604, %v491, 0
  %608 = vmatprep.subr.bf16.mxu0 0
  %609 = vmatpush1.bf16.msra.mxu0 %v476
  %610 = vmatprep.subr.bf16.mxu0 0
  %611 = vmatpush1.bf16.msra.mxu0 %v477
  %612 = vmatprep.subr.bf16.mxu0 0
  %613 = vmatpush1.bf16.msra.mxu0 %v478
  %614 = vmatprep.subr.bf16.mxu0 0
  %615 = vmatpush1.bf16.msra.mxu0 %v479
  %616 = vmatprep.subr.bf16.mxu0 0
  %617 = vmatpush1.bf16.msra.mxu0 %v480
  %618 = vmatprep.subr.bf16.mxu0 0
  %619 = vmatpush1.bf16.msra.mxu0 %v481
  %620 = vmatprep.subr.bf16.mxu0 0
  %621 = vmatpush1.bf16.msra.mxu0 %v482
  %622 = vmatprep.subr.bf16.mxu0 0
  %623 = vmatpush1.bf16.msra.mxu0 %v483
  %624 = vmatprep.subr.bf16.mxu0 0
  %625 = vmatpush1.bf16.msra.mxu0 %v484
  %626 = vmatprep.subr.bf16.mxu0 0
  %627 = vmatpush1.bf16.msra.mxu0 %v485
  %628 = vmatprep.subr.bf16.mxu0 0
  %629 = vmatpush1.bf16.msra.mxu0 %v486
  %630 = vmatprep.subr.bf16.mxu0 0
  %631 = vmatpush1.bf16.msra.mxu0 %v487
  %632 = vmatprep.subr.bf16.mxu0 0
  %633 = vmatpush1.bf16.msra.mxu0 %v488
  %634 = vmatprep.subr.bf16.mxu0 0
  %635 = vmatpush1.bf16.msra.mxu0 %v489
  %636 = vmatprep.subr.bf16.mxu0 0
  %637 = vmatpush1.bf16.msra.mxu0 %v490
  %638 = vmatprep.subr.bf16.mxu0 0
  %639 = vmatpush1.bf16.msra.mxu0 %v606
  %640 = vmatprep.mubr.bf16.mxu0 %v509
  %641 = vmatmul.mubr.bf16.gmra.mrb[0].mxu0 %v316
  %v642 = vpop.f32.mrb[0].mxu0
  %v643 = vadd.f32 %v122, %v642
  %v644 = vpop.f32.mrb[0].mxu0
  %v645 = vpop.f32.mrb[0].mxu0
  %v646 = vadd.f32 %v122, %v645
  %v647 = vpop.f32.mrb[0].mxu0
  %648 = vmatprep.mubr.bf16.mxu0 %v512
  %649 = vmatmul.mubr.bf16.gmra.mrb[0].mxu0 %v318
  %v650 = vpop.f32.mrb[0].mxu0
  %v651 = vadd.f32 %v122, %v650
  %v652 = vpop.f32.mrb[0].mxu0
  %v653 = vpop.f32.mrb[0].mxu0
  %v654 = vadd.f32 %v122, %v653
  %v655 = vpop.f32.mrb[0].mxu0
  %656 = vmatprep.mubr.bf16.mxu0 %v515
  %657 = vmatmul.mubr.bf16.gmra.mrb[0].mxu0 %v320
  %v658 = vpop.f32.mrb[0].mxu0
  %v659 = vadd.f32 %v122, %v658
  %v660 = vpop.f32.mrb[0].mxu0
  %v661 = vpop.f32.mrb[0].mxu0
  %v662 = vadd.f32 %v122, %v661
  %v663 = vpop.f32.mrb[0].mxu0
  %664 = vmatprep.mubr.bf16.mxu0 %v518
  %665 = vmatmul.mubr.bf16.gmra.mrb[0].mxu0 %v322
  %v666 = vpop.f32.mrb[0].mxu0
  %v667 = vadd.f32 %v122, %v666
  %v668 = vpop.f32.mrb[0].mxu0
  %v669 = vpop.f32.mrb[0].mxu0
  %v670 = vadd.f32 %v122, %v669
  %v671 = vpop.f32.mrb[0].mxu0
  %672 = vmatprep.mubr.bf16.mxu0 %v521
  %673 = vmatmul.mubr.bf16.gmra.mrb[0].mxu0 %v324
  %v674 = vpop.f32.mrb[0].mxu0
  %v675 = vadd.f32 %v122, %v674
  %v676 = vpop.f32.mrb[0].mxu0
  %v677 = vpop.f32.mrb[0].mxu0
  %v678 = vadd.f32 %v122, %v677
  %v679 = vpop.f32.mrb[0].mxu0
  %680 = vmatprep.mubr.bf16.mxu0 %v524
  %681 = vmatmul.mubr.bf16.gmra.mrb[0].mxu0 %v326
  %v682 = vpop.f32.mrb[0].mxu0
  %v683 = vadd.f32 %v122, %v682
  %v684 = vpop.f32.mrb[0].mxu0
  %v685 = vpop.f32.mrb[0].mxu0
  %v686 = vadd.f32 %v122, %v685
  %v687 = vpop.f32.mrb[0].mxu0
  %688 = vmatprep.mubr.bf16.mxu0 %v527
  %689 = vmatmul.mubr.bf16.gmra.mrb[0].mxu0 %v328
  %v690 = vpop.f32.mrb[0].mxu0
  %v691 = vadd.f32 %v122, %v690
  %v692 = vpop.f32.mrb[0].mxu0
  %v693 = vpop.f32.mrb[0].mxu0
  %v694 = vadd.f32 %v122, %v693
  %v695 = vpop.f32.mrb[0].mxu0
  %696 = vmatprep.mubr.bf16.mxu0 %v530
  %697 = vmatmul.mubr.bf16.gmra.mrb[0].mxu0 %v330
  %v698 = vpop.f32.mrb[0].mxu0
  %v699 = vadd.f32 %v122, %v698
  %v700 = vpop.f32.mrb[0].mxu0
  %v701 = vpop.f32.mrb[0].mxu0
  %v702 = vadd.f32 %v122, %v701
  %v703 = vpop.f32.mrb[0].mxu0
  %704 = vmatprep.mubr.bf16.mxu0 %v533
  %705 = vmatmul.mubr.bf16.gmra.mrb[0].mxu0 %v332
  %v706 = vpop.f32.mrb[0].mxu0
  %v707 = vadd.f32 %v122, %v706
  %v708 = vpop.f32.mrb[0].mxu0
  %v709 = vpop.f32.mrb[0].mxu0
  %v710 = vadd.f32 %v122, %v709
  %v711 = vpop.f32.mrb[0].mxu0
  %712 = vmatprep.mubr.bf16.mxu0 %v536
  %713 = vmatmul.mubr.bf16.gmra.mrb[0].mxu0 %v334
  %v714 = vpop.f32.mrb[0].mxu0
  %v715 = vadd.f32 %v122, %v714
  %v716 = vpop.f32.mrb[0].mxu0
  %v717 = vpop.f32.mrb[0].mxu0
  %v718 = vadd.f32 %v122, %v717
  %v719 = vpop.f32.mrb[0].mxu0
  %720 = vmatprep.mubr.bf16.mxu0 %v539
  %721 = vmatmul.mubr.bf16.gmra.mrb[0].mxu0 %v336
  %v722 = vpop.f32.mrb[0].mxu0
  %v723 = vadd.f32 %v122, %v722
  %v724 = vpop.f32.mrb[0].mxu0
  %v725 = vpop.f32.mrb[0].mxu0
  %v726 = vadd.f32 %v122, %v725
  %v727 = vpop.f32.mrb[0].mxu0
  %728 = vmatprep.mubr.bf16.mxu0 %v542
  %729 = vmatmul.mubr.bf16.gmra.mrb[0].mxu0 %v338
  %v730 = vpop.f32.mrb[0].mxu0
  %v731 = vadd.f32 %v122, %v730
  %v732 = vpop.f32.mrb[0].mxu0
  %v733 = vpop.f32.mrb[0].mxu0
  %v734 = vadd.f32 %v122, %v733
  %v735 = vpop.f32.mrb[0].mxu0
  %736 = vmatprep.mubr.bf16.mxu0 %v545
  %737 = vmatmul.mubr.bf16.gmra.mrb[0].mxu0 %v340
  %v738 = vpop.f32.mrb[0].mxu0
  %v739 = vadd.f32 %v122, %v738
  %v740 = vpop.f32.mrb[0].mxu0
  %v741 = vpop.f32.mrb[0].mxu0
  %v742 = vadd.f32 %v122, %v741
  %v743 = vpop.f32.mrb[0].mxu0
  %744 = vmatprep.mubr.bf16.mxu0 %v548
  %745 = vmatmul.mubr.bf16.gmra.mrb[0].mxu0 %v342
  %v746 = vpop.f32.mrb[0].mxu0
  %v747 = vadd.f32 %v122, %v746
  %v748 = vpop.f32.mrb[0].mxu0
  %v749 = vpop.f32.mrb[0].mxu0
  %v750 = vadd.f32 %v122, %v749
  %v751 = vpop.f32.mrb[0].mxu0
  %752 = vmatprep.mubr.bf16.mxu0 %v551
  %753 = vmatmul.mubr.bf16.gmra.mrb[0].mxu0 %v344
  %v754 = vpop.f32.mrb[0].mxu0
  %v755 = vadd.f32 %v122, %v754
  %v756 = vpop.f32.mrb[0].mxu0
  %v757 = vpop.f32.mrb[0].mxu0
  %v758 = vadd.f32 %v122, %v757
  %v759 = vpop.f32.mrb[0].mxu0
  %760 = vmatprep.mubr.bf16.mxu0 %v554
  %761 = vmatmul.mubr.bf16.gmra.mrb[0].mxu0 %v346
  %v762 = vpop.f32.mrb[0].mxu0
  %v763 = vadd.f32 %v122, %v762
  %v764 = vpop.f32.mrb[0].mxu0
  %v765 = vpop.f32.mrb[0].mxu0
  %v766 = vadd.f32 %v122, %v765
  %v767 = vpop.f32.mrb[0].mxu0
  %768 = vmatprep.mubr.bf16.mxu0 %v557
  %769 = vmatmul.mubr.bf16.gmra.mrb[0].mxu0 %v348
  %v770 = vpop.f32.mrb[0].mxu0
  %v771 = vadd.f32 %v122, %v770
  %v772 = vpop.f32.mrb[0].mxu0
  %v773 = vpop.f32.mrb[0].mxu0
  %v774 = vadd.f32 %v122, %v773
  %v775 = vpop.f32.mrb[0].mxu0
  %776 = vmatprep.mubr.bf16.mxu0 %v560
  %777 = vmatmul.mubr.bf16.gmra.mrb[0].mxu0 %v350
  %v778 = vpop.f32.mrb[0].mxu0
  %v779 = vadd.f32 %v122, %v778
  %v780 = vpop.f32.mrb[0].mxu0
  %v781 = vpop.f32.mrb[0].mxu0
  %v782 = vadd.f32 %v122, %v781
  %v783 = vpop.f32.mrb[0].mxu0
  %784 = vmatprep.mubr.bf16.mxu0 %v563
  %785 = vmatmul.mubr.bf16.gmra.mrb[0].mxu0 %v352
  %v786 = vpop.f32.mrb[0].mxu0
  %v787 = vadd.f32 %v122, %v786
  %v788 = vpop.f32.mrb[0].mxu0
  %v789 = vpop.f32.mrb[0].mxu0
  %v790 = vadd.f32 %v122, %v789
  %v791 = vpop.f32.mrb[0].mxu0
  %792 = vmatprep.mubr.bf16.mxu0 %v566
  %793 = vmatmul.mubr.bf16.gmra.mrb[0].mxu0 %v354
  %v794 = vpop.f32.mrb[0].mxu0
  %v795 = vadd.f32 %v122, %v794
  %v796 = vpop.f32.mrb[0].mxu0
  %v797 = vpop.f32.mrb[0].mxu0
  %v798 = vadd.f32 %v122, %v797
  %v799 = vpop.f32.mrb[0].mxu0
  %800 = vmatprep.mubr.bf16.mxu0 %v569
  %801 = vmatmul.mubr.bf16.gmra.mrb[0].mxu0 %v356
  %v802 = vpop.f32.mrb[0].mxu0
  %v803 = vadd.f32 %v122, %v802
  %v804 = vpop.f32.mrb[0].mxu0
  %v805 = vpop.f32.mrb[0].mxu0
  %v806 = vadd.f32 %v122, %v805
  %v807 = vpop.f32.mrb[0].mxu0
  %808 = vmatprep.mubr.bf16.mxu0 %v572
  %809 = vmatmul.mubr.bf16.gmra.mrb[0].mxu0 %v358
  %v810 = vpop.f32.mrb[0].mxu0
  %v811 = vadd.f32 %v122, %v810
  %v812 = vpop.f32.mrb[0].mxu0
  %v813 = vpop.f32.mrb[0].mxu0
  %v814 = vadd.f32 %v122, %v813
  %v815 = vpop.f32.mrb[0].mxu0
  %816 = vmatprep.mubr.bf16.mxu0 %v575
  %817 = vmatmul.mubr.bf16.gmra.mrb[0].mxu0 %v360
  %v818 = vpop.f32.mrb[0].mxu0
  %v819 = vadd.f32 %v122, %v818
  %v820 = vpop.f32.mrb[0].mxu0
  %v821 = vpop.f32.mrb[0].mxu0
  %v822 = vadd.f32 %v122, %v821
  %v823 = vpop.f32.mrb[0].mxu0
  %824 = vmatprep.mubr.bf16.mxu0 %v578
  %825 = vmatmul.mubr.bf16.gmra.mrb[0].mxu0 %v362
  %v826 = vpop.f32.mrb[0].mxu0
  %v827 = vadd.f32 %v122, %v826
  %v828 = vpop.f32.mrb[0].mxu0
  %v829 = vpop.f32.mrb[0].mxu0
  %v830 = vadd.f32 %v122, %v829
  %v831 = vpop.f32.mrb[0].mxu0
  %832 = vmatprep.mubr.bf16.mxu0 %v581
  %833 = vmatmul.mubr.bf16.gmra.mrb[0].mxu0 %v364
  %v834 = vpop.f32.mrb[0].mxu0
  %v835 = vadd.f32 %v122, %v834
  %v836 = vpop.f32.mrb[0].mxu0
  %v837 = vpop.f32.mrb[0].mxu0
  %v838 = vadd.f32 %v122, %v837
  %v839 = vpop.f32.mrb[0].mxu0
  %840 = vmatprep.mubr.bf16.mxu0 %v584
  %841 = vmatmul.mubr.bf16.gmra.mrb[0].mxu0 %v366
  %v842 = vpop.f32.mrb[0].mxu0
  %v843 = vadd.f32 %v122, %v842
  %v844 = vpop.f32.mrb[0].mxu0
  %v845 = vpop.f32.mrb[0].mxu0
  %v846 = vadd.f32 %v122, %v845
  %v847 = vpop.f32.mrb[0].mxu0
  %848 = vmatprep.mubr.bf16.mxu0 %v587
  %849 = vmatmul.mubr.bf16.gmra.mrb[0].mxu0 %v368
  %v850 = vpop.f32.mrb[0].mxu0
  %v851 = vadd.f32 %v122, %v850
  %v852 = vpop.f32.mrb[0].mxu0
  %v853 = vpop.f32.mrb[0].mxu0
  %v854 = vadd.f32 %v122, %v853
  %v855 = vpop.f32.mrb[0].mxu0
  %856 = vmatprep.mubr.bf16.mxu0 %v590
  %857 = vmatmul.mubr.bf16.gmra.mrb[0].mxu0 %v370
  %v858 = vpop.f32.mrb[0].mxu0
  %v859 = vadd.f32 %v122, %v858
  %v860 = vpop.f32.mrb[0].mxu0
  %v861 = vpop.f32.mrb[0].mxu0
  %v862 = vadd.f32 %v122, %v861
  %v863 = vpop.f32.mrb[0].mxu0
  %864 = vmatprep.mubr.bf16.mxu0 %v593
  %865 = vmatmul.mubr.bf16.gmra.mrb[0].mxu0 %v372
  %v866 = vpop.f32.mrb[0].mxu0
  %v867 = vadd.f32 %v122, %v866
  %v868 = vpop.f32.mrb[0].mxu0
  %v869 = vpop.f32.mrb[0].mxu0
  %v870 = vadd.f32 %v122, %v869
  %v871 = vpop.f32.mrb[0].mxu0
  %872 = vmatprep.mubr.bf16.mxu0 %v596
  %873 = vmatmul.mubr.bf16.gmra.mrb[0].mxu0 %v374
  %v874 = vpop.f32.mrb[0].mxu0
  %v875 = vadd.f32 %v122, %v874
  %v876 = vpop.f32.mrb[0].mxu0
  %v877 = vpop.f32.mrb[0].mxu0
  %v878 = vadd.f32 %v122, %v877
  %v879 = vpop.f32.mrb[0].mxu0
  %880 = vmatprep.mubr.bf16.mxu0 %v599
  %881 = vmatmul.mubr.bf16.gmra.mrb[0].mxu0 %v376
  %v882 = vpop.f32.mrb[0].mxu0
  %v883 = vadd.f32 %v122, %v882
  %v884 = vpop.f32.mrb[0].mxu0
  %v885 = vpop.f32.mrb[0].mxu0
  %v886 = vadd.f32 %v122, %v885
  %v887 = vpop.f32.mrb[0].mxu0
  %888 = vmatprep.mubr.bf16.mxu0 %v602
  %889 = vmatmul.mubr.bf16.gmra.mrb[0].mxu0 %v378
  %v890 = vpop.f32.mrb[0].mxu0
  %v891 = vadd.f32 %v122, %v890
  %v892 = vpop.f32.mrb[0].mxu0
  %v893 = vpop.f32.mrb[0].mxu0
  %v894 = vadd.f32 %v122, %v893
  %v895 = vpop.f32.mrb[0].mxu0
  %896 = vdwg.mxu0
  %v897 = vmax.f32 %v643, 0.0
  %v898 = vmax.f32 %v646, 0.0
  %v899 = vmax.f32 %v651, 0.0
  %v900 = vmax.f32 %v654, 0.0
  %v901 = vmax.f32 %v659, 0.0
  %v902 = vmax.f32 %v662, 0.0
  %v903 = vmax.f32 %v667, 0.0
  %v904 = vmax.f32 %v670, 0.0
  %v905 = vmax.f32 %v675, 0.0
  %v906 = vmax.f32 %v678, 0.0
  %v907 = vmax.f32 %v683, 0.0
  %v908 = vmax.f32 %v686, 0.0
  %v909 = vmax.f32 %v691, 0.0
  %v910 = vmax.f32 %v694, 0.0
  %v911 = vmax.f32 %v699, 0.0
  %v912 = vmax.f32 %v702, 0.0
  %v913 = vmax.f32 %v707, 0.0
  %v914 = vmax.f32 %v710, 0.0
  %v915 = vmax.f32 %v715, 0.0
  %v916 = vmax.f32 %v718, 0.0
  %v917 = vmax.f32 %v723, 0.0
  %v918 = vmax.f32 %v726, 0.0
  %v919 = vmax.f32 %v731, 0.0
  %v920 = vmax.f32 %v734, 0.0
  %v921 = vmax.f32 %v739, 0.0
  %v922 = vmax.f32 %v742, 0.0
  %v923 = vmax.f32 %v747, 0.0
  %v924 = vmax.f32 %v750, 0.0
  %v925 = vmax.f32 %v755, 0.0
  %v926 = vmax.f32 %v758, 0.0
  %v927 = vmax.f32 %v763, 0.0
  %v928 = vmax.f32 %v766, 0.0
  %v929 = vmax.f32 %v771, 0.0
  %v930 = vmax.f32 %v774, 0.0
  %v931 = vmax.f32 %v779, 0.0
  %v932 = vmax.f32 %v782, 0.0
  %v933 = vmax.f32 %v787, 0.0
  %v934 = vmax.f32 %v790, 0.0
  %v935 = vmax.f32 %v795, 0.0
  %v936 = vmax.f32 %v798, 0.0
  %v937 = vmax.f32 %v803, 0.0
  %v938 = vmax.f32 %v806, 0.0
  %v939 = vmax.f32 %v811, 0.0
  %v940 = vmax.f32 %v814, 0.0
  %v941 = vmax.f32 %v819, 0.0
  %v942 = vmax.f32 %v822, 0.0
  %v943 = vmax.f32 %v827, 0.0
  %v944 = vmax.f32 %v830, 0.0
  %v945 = vmax.f32 %v835, 0.0
  %v946 = vmax.f32 %v838, 0.0
  %v947 = vmax.f32 %v843, 0.0
  %v948 = vmax.f32 %v846, 0.0
  %v949 = vmax.f32 %v851, 0.0
  %v950 = vmax.f32 %v854, 0.0
  %v951 = vmax.f32 %v859, 0.0
  %v952 = vmax.f32 %v862, 0.0
  %v953 = vmax.f32 %v867, 0.0
  %v954 = vmax.f32 %v870, 0.0
  %v955 = vmax.f32 %v875, 0.0
  %v956 = vmax.f32 %v878, 0.0
  %v957 = vmax.f32 %v883, 0.0
  %v958 = vmax.f32 %v886, 0.0
  %v959 = vmax.f32 %v891, 0.0
  %v960 = vmax.f32 %v894, 0.0
  %v961 = vld [vmem:[%s3] sm:$0x1]
  %v963 = vlaneseq
  %v964 = vshrl.u32 %v963, 7
  %v965 = vsub.s32 0, %v964
  %v966 = vrot.slane %v961, %v965
  %v968 = vmul.f32 %v897, %v966
  %v969 = vmul.f32 %v898, %v966
  %v970 = vmul.f32 %v899, %v966
  %v971 = vmul.f32 %v900, %v966
  %v972 = vmul.f32 %v901, %v966
  %v973 = vmul.f32 %v902, %v966
  %v974 = vmul.f32 %v903, %v966
  %v975 = vmul.f32 %v904, %v966
  %v976 = vmul.f32 %v905, %v966
  %v977 = vmul.f32 %v906, %v966
  %v978 = vmul.f32 %v907, %v966
  %v979 = vmul.f32 %v908, %v966
  %v980 = vmul.f32 %v909, %v966
  %v981 = vmul.f32 %v910, %v966
  %v982 = vmul.f32 %v911, %v966
  %v983 = vmul.f32 %v912, %v966
  %v984 = vmul.f32 %v913, %v966
  %v985 = vmul.f32 %v914, %v966
  %v986 = vmul.f32 %v915, %v966
  %v987 = vmul.f32 %v916, %v966
  %v988 = vmul.f32 %v917, %v966
  %v989 = vmul.f32 %v918, %v966
  %v990 = vmul.f32 %v919, %v966
  %v991 = vmul.f32 %v920, %v966
  %v992 = vmul.f32 %v921, %v966
  %v993 = vmul.f32 %v922, %v966
  %v994 = vmul.f32 %v923, %v966
  %v995 = vmul.f32 %v924, %v966
  %v996 = vmul.f32 %v925, %v966
  %v997 = vmul.f32 %v926, %v966
  %v998 = vmul.f32 %v927, %v966
  %v999 = vmul.f32 %v928, %v966
  %v1000 = vmul.f32 %v929, %v966
  %v1001 = vmul.f32 %v930, %v966
  %v1002 = vmul.f32 %v931, %v966
  %v1003 = vmul.f32 %v932, %v966
  %v1004 = vmul.f32 %v933, %v966
  %v1005 = vmul.f32 %v934, %v966
  %v1006 = vmul.f32 %v935, %v966
  %v1007 = vmul.f32 %v936, %v966
  %v1008 = vmul.f32 %v937, %v966
  %v1009 = vmul.f32 %v938, %v966
  %v1010 = vmul.f32 %v939, %v966
  %v1011 = vmul.f32 %v940, %v966
  %v1012 = vmul.f32 %v941, %v966
  %v1013 = vmul.f32 %v942, %v966
  %v1014 = vmul.f32 %v943, %v966
  %v1015 = vmul.f32 %v944, %v966
  %v1016 = vmul.f32 %v945, %v966
  %v1017 = vmul.f32 %v946, %v966
  %v1018 = vmul.f32 %v947, %v966
  %v1019 = vmul.f32 %v948, %v966
  %v1020 = vmul.f32 %v949, %v966
  %v1021 = vmul.f32 %v950, %v966
  %v1022 = vmul.f32 %v951, %v966
  %v1023 = vmul.f32 %v952, %v966
  %v1024 = vmul.f32 %v953, %v966
  %v1025 = vmul.f32 %v954, %v966
  %v1026 = vmul.f32 %v955, %v966
  %v1027 = vmul.f32 %v956, %v966
  %v1028 = vmul.f32 %v957, %v966
  %v1029 = vmul.f32 %v958, %v966
  %v1030 = vmul.f32 %v959, %v966
  %v1031 = vmul.f32 %v960, %v966
  %v1032 = vld [vmem:[%s4] sm:$0x1]
  %v1034 = vlaneseq
  %v1035 = vshrl.u32 %v1034, 7
  %v1036 = vsub.s32 0, %v1035
  %v1037 = vrot.slane %v1032, %v1036
  %v1039 = vadd.f32 %v968, %v1037
  %v1040 = vadd.f32 %v969, %v1037
  %v1041 = vadd.f32 %v970, %v1037
  %v1042 = vadd.f32 %v971, %v1037
  %v1043 = vadd.f32 %v972, %v1037
  %v1044 = vadd.f32 %v973, %v1037
  %v1045 = vadd.f32 %v974, %v1037
  %v1046 = vadd.f32 %v975, %v1037
  %v1047 = vadd.f32 %v976, %v1037
  %v1048 = vadd.f32 %v977, %v1037
  %v1049 = vadd.f32 %v978, %v1037
  %v1050 = vadd.f32 %v979, %v1037
  %v1051 = vadd.f32 %v980, %v1037
  %v1052 = vadd.f32 %v981, %v1037
  %v1053 = vadd.f32 %v982, %v1037
  %v1054 = vadd.f32 %v983, %v1037
  %v1055 = vadd.f32 %v984, %v1037
  %v1056 = vadd.f32 %v985, %v1037
  %v1057 = vadd.f32 %v986, %v1037
  %v1058 = vadd.f32 %v987, %v1037
  %v1059 = vadd.f32 %v988, %v1037
  %v1060 = vadd.f32 %v989, %v1037
  %v1061 = vadd.f32 %v990, %v1037
  %v1062 = vadd.f32 %v991, %v1037
  %v1063 = vadd.f32 %v992, %v1037
  %v1064 = vadd.f32 %v993, %v1037
  %v1065 = vadd.f32 %v994, %v1037
  %v1066 = vadd.f32 %v995, %v1037
  %v1067 = vadd.f32 %v996, %v1037
  %v1068 = vadd.f32 %v997, %v1037
  %v1069 = vadd.f32 %v998, %v1037
  %v1070 = vadd.f32 %v999, %v1037
  %v1071 = vadd.f32 %v1000, %v1037
  %v1072 = vadd.f32 %v1001, %v1037
  %v1073 = vadd.f32 %v1002, %v1037
  %v1074 = vadd.f32 %v1003, %v1037
  %v1075 = vadd.f32 %v1004, %v1037
  %v1076 = vadd.f32 %v1005, %v1037
  %v1077 = vadd.f32 %v1006, %v1037
  %v1078 = vadd.f32 %v1007, %v1037
  %v1079 = vadd.f32 %v1008, %v1037
  %v1080 = vadd.f32 %v1009, %v1037
  %v1081 = vadd.f32 %v1010, %v1037
  %v1082 = vadd.f32 %v1011, %v1037
  %v1083 = vadd.f32 %v1012, %v1037
  %v1084 = vadd.f32 %v1013, %v1037
  %v1085 = vadd.f32 %v1014, %v1037
  %v1086 = vadd.f32 %v1015, %v1037
  %v1087 = vadd.f32 %v1016, %v1037
  %v1088 = vadd.f32 %v1017, %v1037
  %v1089 = vadd.f32 %v1018, %v1037
  %v1090 = vadd.f32 %v1019, %v1037
  %v1091 = vadd.f32 %v1020, %v1037
  %v1092 = vadd.f32 %v1021, %v1037
  %v1093 = vadd.f32 %v1022, %v1037
  %v1094 = vadd.f32 %v1023, %v1037
  %v1095 = vadd.f32 %v1024, %v1037
  %v1096 = vadd.f32 %v1025, %v1037
  %v1097 = vadd.f32 %v1026, %v1037
  %v1098 = vadd.f32 %v1027, %v1037
  %v1099 = vadd.f32 %v1028, %v1037
  %v1100 = vadd.f32 %v1029, %v1037
  %v1101 = vadd.f32 %v1030, %v1037
  %v1102 = vadd.f32 %v1031, %v1037
  %v1103 = vmax.f32 %v1039, %v1041
  %v1104 = vmax.f32 %v1040, %v1042
  %v1105 = vmax.f32 %v1047, %v1049
  %v1106 = vmax.f32 %v1048, %v1050
  %v1107 = vmax.f32 %v1055, %v1057
  %v1108 = vmax.f32 %v1056, %v1058
  %v1109 = vmax.f32 %v1063, %v1065
  %v1110 = vmax.f32 %v1064, %v1066
  %v1111 = vmax.f32 %v1071, %v1073
  %v1112 = vmax.f32 %v1072, %v1074
  %v1113 = vmax.f32 %v1079, %v1081
  %v1114 = vmax.f32 %v1080, %v1082
  %v1115 = vmax.f32 %v1087, %v1089
  %v1116 = vmax.f32 %v1088, %v1090
  %v1117 = vmax.f32 %v1095, %v1097
  %v1118 = vmax.f32 %v1096, %v1098
  %v1119 = vmax.f32 %v1043, %v1045
  %v1120 = vmax.f32 %v1044, %v1046
  %v1121 = vmax.f32 %v1051, %v1053
  %v1122 = vmax.f32 %v1052, %v1054
  %v1123 = vmax.f32 %v1059, %v1061
  %v1124 = vmax.f32 %v1060, %v1062
  %v1125 = vmax.f32 %v1067, %v1069
  %v1126 = vmax.f32 %v1068, %v1070
  %v1127 = vmax.f32 %v1075, %v1077
  %v1128 = vmax.f32 %v1076, %v1078
  %v1129 = vmax.f32 %v1083, %v1085
  %v1130 = vmax.f32 %v1084, %v1086
  %v1131 = vmax.f32 %v1091, %v1093
  %v1132 = vmax.f32 %v1092, %v1094
  %v1133 = vmax.f32 %v1099, %v1101
  %v1134 = vmax.f32 %v1100, %v1102
  %v1135 = vmax.f32 %v1103, %v1119
  %v1136 = vmax.f32 %v1104, %v1120
  %v1137 = vmax.f32 %v1105, %v1121
  %v1138 = vmax.f32 %v1106, %v1122
  %v1139 = vmax.f32 %v1107, %v1123
  %v1140 = vmax.f32 %v1108, %v1124
  %v1141 = vmax.f32 %v1109, %v1125
  %v1142 = vmax.f32 %v1110, %v1126
  %v1143 = vmax.f32 %v1111, %v1127
  %v1144 = vmax.f32 %v1112, %v1128
  %v1145 = vmax.f32 %v1113, %v1129
  %v1146 = vmax.f32 %v1114, %v1130
  %v1147 = vmax.f32 %v1115, %v1131
  %v1148 = vmax.f32 %v1116, %v1132
  %v1149 = vmax.f32 %v1117, %v1133
  %v1150 = vmax.f32 %v1118, %v1134
  %vm1151 = vcmask 162816
  %1152 = vst.msk [vmem:[%s5] sm:$0xff] %vm1151, %v1135
  %1153 = vst.msk [vmem:[%s5 + $0x8] sm:$0xff] %vm1151, %v1136
  %1154 = vst.msk [vmem:[%s5 + $0x10] sm:$0xff] %vm1151, %v1137
  %1155 = vst.msk [vmem:[%s5 + $0x18] sm:$0xff] %vm1151, %v1138
  %1156 = vst.msk [vmem:[%s5 + $0x20] sm:$0xff] %vm1151, %v1139
  %1157 = vst.msk [vmem:[%s5 + $0x28] sm:$0xff] %vm1151, %v1140
  %1158 = vst.msk [vmem:[%s5 + $0x30] sm:$0xff] %vm1151, %v1141
  %1159 = vst.msk [vmem:[%s5 + $0x38] sm:$0xff] %vm1151, %v1142
  %1160 = vst.msk [vmem:[%s5 + $0x40] sm:$0xff] %vm1151, %v1143
  %1161 = vst.msk [vmem:[%s5 + $0x48] sm:$0xff] %vm1151, %v1144
  %1162 = vst.msk [vmem:[%s5 + $0x50] sm:$0xff] %vm1151, %v1145
  %1163 = vst.msk [vmem:[%s5 + $0x58] sm:$0xff] %vm1151, %v1146
  %1164 = vst.msk [vmem:[%s5 + $0x60] sm:$0xff] %vm1151, %v1147
  %1165 = vst.msk [vmem:[%s5 + $0x68] sm:$0xff] %vm1151, %v1148
  %1166 = vst.msk [vmem:[%s5 + $0x70] sm:$0xff] %vm1151, %v1149
  %1167 = vst.msk [vmem:[%s5 + $0x78] sm:$0xff] %vm1151, %v1150
  // Predicated region
  $region22: #{custom_cnn_forward.4} parent=0 // pred_check
    _
  $region23: #{custom_cnn_forward.4} parent=0 // pred_check_branch
    %1169 = sbr.rel (0) target = $region25
  $region24: #{custom_cnn_forward.4} parent=0 // pred_region
    _
  $region25: #{custom_cnn_forward.4} parent=0 // pred_fallthru
    _
  // Predicated region
  $region26: #{custom_cnn_forward.4} parent=0 // pred_check
    _
  $region27: #{custom_cnn_forward.4} parent=0 // pred_check_branch
    %1171 = sbr.rel (0) target = $region29
  $region28: #{custom_cnn_forward.4} parent=0 // pred_region
    _
  $region29: #{custom_cnn_forward.4} parent=0 // pred_fallthru
    _

// kernel: custom_cnn_forward.5
$region0: #{custom_cnn_forward.5}
  #allocation0 [shape = 'u32[]', space=smem, size = 0x4, offset = 0x4, fixed_abs, tag = 'smem constant byte address 0x4 - core index']
  #allocation1 [shape = 'u32[144,128]{1,0:T(1,128)}', space=vmem, size = 0x12000, scoped, tag = 'internal scratch']
  %s0 = inlined_call_operand.vmem [shape: f32[8,320], index: 0, kind: input, shape index: {}]
  %s1 = inlined_call_operand.vmem [shape: bf16[320,120], index: 1, kind: input, shape index: {}]
  %s2 = inlined_call_operand.vmem [shape: f32[1,120], index: 2, kind: input, shape index: {}]
  %s3 = inlined_call_operand.vmem [shape: bf16[120,60], index: 3, kind: input, shape index: {}]
  %s4 = inlined_call_operand.vmem [shape: f32[1,60], index: 4, kind: input, shape index: {}]
  %s5 = inlined_call_operand.vmem [shape: bf16[60,10], index: 5, kind: input, shape index: {}]
  %s6 = inlined_call_operand.vmem [shape: f32[1,10], index: 6, kind: input, shape index: {}]
  %s7 = inlined_call_operand.vmem [shape: f32[8,10], index: 7, kind: output, shape index: {}]
  %s8 = sld [smem:[#allocation0]]
  $region38: #{custom_cnn_forward.5} parent=0
    _
  %s10 = ssub.s32 1, %s8
  %s11 = scalar_select 0, %s10, %s8
  // Predicated region
  $region2: #{custom_cnn_forward.5} parent=0 // pred_check
    _
  $region3: #{custom_cnn_forward.5} parent=0 // pred_check_branch
    %13 = sbr.rel (0) target = $region5
  $region4: #{custom_cnn_forward.5} parent=0 // pred_region
    _
  $region5: #{custom_cnn_forward.5} parent=0 // pred_fallthru
    _
  // Predicated region
  $region6: #{custom_cnn_forward.5} parent=0 // pred_check
    _
  $region7: #{custom_cnn_forward.5} parent=0 // pred_check_branch
    %15 = sbr.rel (0) target = $region9
  $region8: #{custom_cnn_forward.5} parent=0 // pred_region
    _
  $region9: #{custom_cnn_forward.5} parent=0 // pred_fallthru
    _
  // Predicated region
  $region10: #{custom_cnn_forward.5} parent=0 // pred_check
    _
  $region11: #{custom_cnn_forward.5} parent=0 // pred_check_branch
    %17 = sbr.rel (0) target = $region13
  $region12: #{custom_cnn_forward.5} parent=0 // pred_region
    _
  $region13: #{custom_cnn_forward.5} parent=0 // pred_fallthru
    _
  // Predicated region
  $region14: #{custom_cnn_forward.5} parent=0 // pred_check
    _
  $region15: #{custom_cnn_forward.5} parent=0 // pred_check_branch
    %19 = sbr.rel (0) target = $region17
  $region16: #{custom_cnn_forward.5} parent=0 // pred_region
    _
  $region17: #{custom_cnn_forward.5} parent=0 // pred_fallthru
    _
  // Predicated region
  $region18: #{custom_cnn_forward.5} parent=0 // pred_check
    _
  $region19: #{custom_cnn_forward.5} parent=0 // pred_check_branch
    %21 = sbr.rel (0) target = $region21
  $region20: #{custom_cnn_forward.5} parent=0 // pred_region
    _
  $region21: #{custom_cnn_forward.5} parent=0 // pred_fallthru
    _
  // Predicated region
  $region22: #{custom_cnn_forward.5} parent=0 // pred_check
    _
  $region23: #{custom_cnn_forward.5} parent=0 // pred_check_branch
    %23 = sbr.rel (0) target = $region25
  $region24: #{custom_cnn_forward.5} parent=0 // pred_region
    _
  $region25: #{custom_cnn_forward.5} parent=0 // pred_fallthru
    _
  // Predicated region
  $region26: #{custom_cnn_forward.5} parent=0 // pred_check
    _
  $region27: #{custom_cnn_forward.5} parent=0 // pred_check_branch
    %25 = sbr.rel (0) target = $region29
  $region28: #{custom_cnn_forward.5} parent=0 // pred_region
    _
  $region29: #{custom_cnn_forward.5} parent=0 // pred_fallthru
    _
  %v27 = vld [vmem:[%s0] sm:$0xff]
  %v28 = vld [vmem:[%s0 + $0x8] sm:$0xff]
  %v29 = vld [vmem:[%s0 + $0x10] sm:$0xff]
  %v30 = vpack.c.bf16 %v27, %v27
  %v31 = vpack.c.bf16 %v28, %v28
  %v32 = vpack.c.bf16 %v29, %v29
  %v33 = vld [vmem:[%s1] sm:$0xf]
  %v34 = vld [vmem:[%s1 + $0x4] sm:$0xf]
  %v35 = vld [vmem:[%s1 + $0x8] sm:$0xf]
  %v36 = vld [vmem:[%s1 + $0xc] sm:$0xf]
  %v37 = vld [vmem:[%s1 + $0x10] sm:$0xf]
  %v38 = vld [vmem:[%s1 + $0x14] sm:$0xf]
  %v39 = vld [vmem:[%s1 + $0x18] sm:$0xf]
  %v40 = vld [vmem:[%s1 + $0x1c] sm:$0xf]
  %v41 = vld [vmem:[%s1 + $0x20] sm:$0xf]
  %v42 = vld [vmem:[%s1 + $0x24] sm:$0xf]
  %v43 = vld [vmem:[%s1 + $0x28] sm:$0xf]
  %v44 = vld [vmem:[%s1 + $0x2c] sm:$0xf]
  %v45 = vld [vmem:[%s1 + $0x30] sm:$0xf]
  %v46 = vld [vmem:[%s1 + $0x34] sm:$0xf]
  %v47 = vld [vmem:[%s1 + $0x38] sm:$0xf]
  %v48 = vld [vmem:[%s1 + $0x3c] sm:$0xf]
  %v49 = vld [vmem:[%s1 + $0x40] sm:$0xf]
  %v50 = vld [vmem:[%s1 + $0x44] sm:$0xf]
  %v51 = vld [vmem:[%s1 + $0x48] sm:$0xf]
  %v52 = vld [vmem:[%s1 + $0x4c] sm:$0xf]
  %v53 = vld [vmem:[%s1 + $0x50] sm:$0xf]
  %v54 = vld [vmem:[%s1 + $0x54] sm:$0xf]
  %v55 = vld [vmem:[%s1 + $0x58] sm:$0xf]
  %v56 = vld [vmem:[%s1 + $0x5c] sm:$0xf]
  %v57 = vld [vmem:[%s1 + $0x60] sm:$0xf]
  %v58 = vld [vmem:[%s1 + $0x64] sm:$0xf]
  %v59 = vld [vmem:[%s1 + $0x68] sm:$0xf]
  %v60 = vld [vmem:[%s1 + $0x6c] sm:$0xf]
  %v61 = vld [vmem:[%s1 + $0x70] sm:$0xf]
  %v62 = vld [vmem:[%s1 + $0x74] sm:$0xf]
  %v63 = vld [vmem:[%s1 + $0x78] sm:$0xf]
  %v64 = vld [vmem:[%s1 + $0x7c] sm:$0xf]
  %v65 = vld [vmem:[%s1 + $0x80] sm:$0xf]
  %v66 = vld [vmem:[%s1 + $0x84] sm:$0xf]
  %v67 = vld [vmem:[%s1 + $0x88] sm:$0xf]
  %v68 = vld [vmem:[%s1 + $0x8c] sm:$0xf]
  %v69 = vld [vmem:[%s1 + $0x90] sm:$0xf]
  %v70 = vld [vmem:[%s1 + $0x94] sm:$0xf]
  %v71 = vld [vmem:[%s1 + $0x98] sm:$0xf]
  %v72 = vld [vmem:[%s1 + $0x9c] sm:$0xf]
  %v73 = vld [vmem:[%s2] sm:$0x1]
  %v75 = vlaneseq
  %v76 = vshrl.u32 %v75, 7
  %v77 = vsub.s32 0, %v76
  %v78 = vrot.slane %v73, %v77
  %v120 = vunpack.c.l.b16 %v33
  %v121 = vunpack.c.l.b16 %v34
  %v122 = vunpack.c.l.b16 %v35
  %v123 = vunpack.c.l.b16 %v36
  %v124 = vunpack.c.l.b16 %v37
  %v125 = vunpack.c.l.b16 %v38
  %v126 = vunpack.c.l.b16 %v39
  %v127 = vunpack.c.l.b16 %v40
  %v128 = vunpack.c.l.b16 %v41
  %v129 = vunpack.c.l.b16 %v42
  %v130 = vunpack.c.l.b16 %v43
  %v131 = vunpack.c.l.b16 %v44
  %v132 = vunpack.c.l.b16 %v45
  %v133 = vunpack.c.l.b16 %v46
  %v134 = vunpack.c.l.b16 %v47
  %v135 = vunpack.c.l.b16 %v48
  %v136 = vunpack.c.l.b16 %v49
  %v137 = vunpack.c.l.b16 %v50
  %v138 = vunpack.c.l.b16 %v51
  %v139 = vunpack.c.l.b16 %v52
  %v140 = vunpack.c.l.b16 %v53
  %v141 = vunpack.c.l.b16 %v54
  %v142 = vunpack.c.l.b16 %v55
  %v143 = vunpack.c.l.b16 %v56
  %v144 = vunpack.c.l.b16 %v57
  %v145 = vunpack.c.l.b16 %v58
  %v146 = vunpack.c.l.b16 %v59
  %v147 = vunpack.c.l.b16 %v60
  %v148 = vunpack.c.l.b16 %v61
  %v149 = vunpack.c.l.b16 %v62
  %v150 = vunpack.c.l.b16 %v63
  %v151 = vunpack.c.l.b16 %v64
  %v152 = vunpack.c.l.b16 %v65
  %v153 = vunpack.c.l.b16 %v66
  %v154 = vunpack.c.l.b16 %v67
  %v155 = vunpack.c.l.b16 %v68
  %v156 = vunpack.c.l.b16 %v69
  %v157 = vunpack.c.l.b16 %v70
  %v158 = vunpack.c.l.b16 %v71
  %v159 = vunpack.c.l.b16 %v72
  %v160 = vpack.c.b16 %v121, %v120
  %v161 = vpack.c.b16 %v123, %v122
  %v162 = vpack.c.b16 %v125, %v124
  %v163 = vpack.c.b16 %v127, %v126
  %v164 = vpack.c.b16 %v129, %v128
  %v165 = vpack.c.b16 %v131, %v130
  %v166 = vpack.c.b16 %v133, %v132
  %v167 = vpack.c.b16 %v135, %v134
  %v168 = vpack.c.b16 %v137, %v136
  %v169 = vpack.c.b16 %v139, %v138
  %v170 = vpack.c.b16 %v141, %v140
  %v171 = vpack.c.b16 %v143, %v142
  %v172 = vpack.c.b16 %v145, %v144
  %v173 = vpack.c.b16 %v147, %v146
  %v174 = vpack.c.b16 %v149, %v148
  %v175 = vpack.c.b16 %v151, %v150
  %v176 = vpack.c.b16 %v153, %v152
  %v177 = vpack.c.b16 %v155, %v154
  %v178 = vpack.c.b16 %v157, %v156
  %v179 = vpack.c.b16 %v159, %v158
  %vm200 = vcmask 523264
  %v202 = vsel %vm200, %v32, 0
  %204 = vmatprep.subr.bf16.mxu0 0
  %205 = vmatpush1.bf16.msra.mxu0 %v160
  %206 = vmatprep.subr.bf16.mxu0 0
  %207 = vmatpush1.bf16.msra.mxu0 %v161
  %208 = vmatprep.subr.bf16.mxu0 0
  %209 = vmatpush1.bf16.msra.mxu0 %v162
  %210 = vmatprep.subr.bf16.mxu0 0
  %211 = vmatpush1.bf16.msra.mxu0 %v163
  %212 = vmatprep.subr.bf16.mxu0 0
  %213 = vmatpush1.bf16.msra.mxu0 %v164
  %214 = vmatprep.subr.bf16.mxu0 0
  %215 = vmatpush1.bf16.msra.mxu0 %v165
  %216 = vmatprep.subr.bf16.mxu0 0
  %217 = vmatpush1.bf16.msra.mxu0 %v166
  %218 = vmatprep.subr.bf16.mxu0 0
  %219 = vmatpush1.bf16.msra.mxu0 %v167
  %220 = vmatprep.subr.bf16.mxu0 0
  %221 = vmatpush1.bf16.msra.mxu0 %v168
  %222 = vmatprep.subr.bf16.mxu0 0
  %223 = vmatpush1.bf16.msra.mxu0 %v169
  %224 = vmatprep.subr.bf16.mxu0 0
  %225 = vmatpush1.bf16.msra.mxu0 %v170
  %226 = vmatprep.subr.bf16.mxu0 0
  %227 = vmatpush1.bf16.msra.mxu0 %v171
  %228 = vmatprep.subr.bf16.mxu0 0
  %229 = vmatpush1.bf16.msra.mxu0 %v172
  %230 = vmatprep.subr.bf16.mxu0 0
  %231 = vmatpush1.bf16.msra.mxu0 %v173
  %232 = vmatprep.subr.bf16.mxu0 0
  %233 = vmatpush1.bf16.msra.mxu0 %v174
  %234 = vmatprep.subr.bf16.mxu0 0
  %235 = vmatpush1.bf16.msra.mxu0 %v175
  %236 = vmatprep.mubr.bf16.mxu0 %v31
  %237 = vmatmul.mubr.bf16.gmra.mrb[0].mxu0 %v30
  %v238 = vpop.f32.mrb[0].mxu0
  %v239 = vadd.f32 %v78, %v238
  %v240 = vpop.f32.mrb[0].mxu0
  %v241 = vpop.f32.mrb[0].mxu0
  %v242 = vpop.f32.mrb[0].mxu0
  %243 = vdwg.mxu0
  %244 = vmatprep.subr.bf16.mxu0 0
  %245 = vmatpush1.bf16.msra.mxu0 %v176
  %246 = vmatprep.subr.bf16.mxu0 0
  %247 = vmatpush1.bf16.msra.mxu0 %v177
  %248 = vmatprep.subr.bf16.mxu0 0
  %249 = vmatpush1.bf16.msra.mxu0 %v178
  %250 = vmatprep.subr.bf16.mxu0 0
  %251 = vmatpush1.bf16.msra.mxu0 %v179
  %252 = vmatprep.subr.bf16.mxu0 0
  %253 = vmatpush1.bf16.msra.mxu0 0
  %254 = vmatprep.subr.bf16.mxu0 0
  %255 = vmatpush1.bf16.msra.mxu0 0
  %256 = vmatprep.subr.bf16.mxu0 0
  %257 = vmatpush1.bf16.msra.mxu0 0
  %258 = vmatprep.subr.bf16.mxu0 0
  %259 = vmatpush1.bf16.msra.mxu0 0
  %260 = vmatprep.subr.bf16.mxu0 0
  %261 = vmatpush1.bf16.msra.mxu0 0
  %262 = vmatprep.subr.bf16.mxu0 0
  %263 = vmatpush1.bf16.msra.mxu0 0
  %264 = vmatprep.subr.bf16.mxu0 0
  %265 = vmatpush1.bf16.msra.mxu0 0
  %266 = vmatprep.subr.bf16.mxu0 0
  %267 = vmatpush1.bf16.msra.mxu0 0
  %268 = vmatprep.subr.bf16.mxu0 0
  %269 = vmatpush1.bf16.msra.mxu0 0
  %270 = vmatprep.subr.bf16.mxu0 0
  %271 = vmatpush1.bf16.msra.mxu0 0
  %272 = vmatprep.subr.bf16.mxu0 0
  %273 = vmatpush1.bf16.msra.mxu0 0
  %274 = vmatprep.subr.bf16.mxu0 0
  %275 = vmatpush1.bf16.msra.mxu0 0
  %276 = vmatprep.mubr.bf16.mxu0 0
  %277 = vmatmul.mubr.bf16.gmra.mrb[0].mxu0 %v202
  %v278 = vpop.f32.mrb[0].mxu0
  %v279 = vadd.f32 %v239, %v278
  %v280 = vpop.f32.mrb[0].mxu0
  %v281 = vpop.f32.mrb[0].mxu0
  %v282 = vpop.f32.mrb[0].mxu0
  %283 = vdwg.mxu0
  %v284 = vmax.f32 %v279, 0.0
  %v285 = vpack.c.bf16 %v284, %v284
  %v286 = vld [vmem:[%s3] sm:$0xf]
  %v287 = vld [vmem:[%s3 + $0x4] sm:$0xf]
  %v288 = vld [vmem:[%s3 + $0x8] sm:$0xf]
  %v289 = vld [vmem:[%s3 + $0xc] sm:$0xf]
  %v290 = vld [vmem:[%s3 + $0x10] sm:$0xf]
  %v291 = vld [vmem:[%s3 + $0x14] sm:$0xf]
  %v292 = vld [vmem:[%s3 + $0x18] sm:$0xf]
  %v293 = vld [vmem:[%s3 + $0x1c] sm:$0xf]
  %v294 = vld [vmem:[%s3 + $0x20] sm:$0xf]
  %v295 = vld [vmem:[%s3 + $0x24] sm:$0xf]
  %v296 = vld [vmem:[%s3 + $0x28] sm:$0xf]
  %v297 = vld [vmem:[%s3 + $0x2c] sm:$0xf]
  %v298 = vld [vmem:[%s3 + $0x30] sm:$0xf]
  %v299 = vld [vmem:[%s3 + $0x34] sm:$0xf]
  %v300 = vld [vmem:[%s3 + $0x38] sm:$0xf]
  %v301 = vld [vmem:[%s4] sm:$0x1]
  %v303 = vlaneseq
  %v304 = vshrl.u32 %v303, 7
  %v305 = vsub.s32 0, %v304
  %v306 = vrot.slane %v301, %v305
  %v323 = vunpack.c.l.b16 %v286
  %v324 = vunpack.c.l.b16 %v287
  %v325 = vunpack.c.l.b16 %v288
  %v326 = vunpack.c.l.b16 %v289
  %v327 = vunpack.c.l.b16 %v290
  %v328 = vunpack.c.l.b16 %v291
  %v329 = vunpack.c.l.b16 %v292
  %v330 = vunpack.c.l.b16 %v293
  %v331 = vunpack.c.l.b16 %v294
  %v332 = vunpack.c.l.b16 %v295
  %v333 = vunpack.c.l.b16 %v296
  %v334 = vunpack.c.l.b16 %v297
  %v335 = vunpack.c.l.b16 %v298
  %v336 = vunpack.c.l.b16 %v299
  %v337 = vunpack.c.l.b16 %v300
  %v338 = vpack.c.b16 %v324, %v323
  %v339 = vpack.c.b16 %v326, %v325
  %v340 = vpack.c.b16 %v328, %v327
  %v341 = vpack.c.b16 %v330, %v329
  %v342 = vpack.c.b16 %v332, %v331
  %v343 = vpack.c.b16 %v334, %v333
  %v344 = vpack.c.b16 %v336, %v335
  %v345 = vpack.c.b16 %v337, %v337
  %vm353 = vcmask 982016
  %v355 = vsel %vm353, %v285, 0
  %vm357 = vcmask 1043456
  %v359 = vsel %vm357, %v345, 0
  %361 = vmatprep.subr.bf16.mxu0 0
  %362 = vmatpush1.bf16.msra.mxu0 %v338
  %363 = vmatprep.subr.bf16.mxu0 0
  %364 = vmatpush1.bf16.msra.mxu0 %v339
  %365 = vmatprep.subr.bf16.mxu0 0
  %366 = vmatpush1.bf16.msra.mxu0 %v340
  %367 = vmatprep.subr.bf16.mxu0 0
  %368 = vmatpush1.bf16.msra.mxu0 %v341
  %369 = vmatprep.subr.bf16.mxu0 0
  %370 = vmatpush1.bf16.msra.mxu0 %v342
  %371 = vmatprep.subr.bf16.mxu0 0
  %372 = vmatpush1.bf16.msra.mxu0 %v343
  %373 = vmatprep.subr.bf16.mxu0 0
  %374 = vmatpush1.bf16.msra.mxu0 %v344
  %375 = vmatprep.subr.bf16.mxu0 0
  %376 = vmatpush1.bf16.msra.mxu0 %v359
  %377 = vmatprep.subr.bf16.mxu0 0
  %378 = vmatpush1.bf16.msra.mxu0 0
  %379 = vmatprep.subr.bf16.mxu0 0
  %380 = vmatpush1.bf16.msra.mxu0 0
  %381 = vmatprep.subr.bf16.mxu0 0
  %382 = vmatpush1.bf16.msra.mxu0 0
  %383 = vmatprep.subr.bf16.mxu0 0
  %384 = vmatpush1.bf16.msra.mxu0 0
  %385 = vmatprep.subr.bf16.mxu0 0
  %386 = vmatpush1.bf16.msra.mxu0 0
  %387 = vmatprep.subr.bf16.mxu0 0
  %388 = vmatpush1.bf16.msra.mxu0 0
  %389 = vmatprep.subr.bf16.mxu0 0
  %390 = vmatpush1.bf16.msra.mxu0 0
  %391 = vmatprep.subr.bf16.mxu0 0
  %392 = vmatpush1.bf16.msra.mxu0 0
  %393 = vmatprep.mubr.bf16.mxu0 0
  %394 = vmatmul.mubr.bf16.gmra.mrb[0].mxu0 %v355
  %v395 = vpop.f32.mrb[0].mxu0
  %v396 = vadd.f32 %v306, %v395
  %v397 = vpop.f32.mrb[0].mxu0
  %v398 = vpop.f32.mrb[0].mxu0
  %v399 = vpop.f32.mrb[0].mxu0
  %400 = vdwg.mxu0
  %v401 = vmax.f32 %v396, 0.0
  %v402 = vpack.c.bf16 %v401, %v401
  %v403 = vld [vmem:[%s5] sm:$0xf]
  %v404 = vld [vmem:[%s5 + $0x4] sm:$0xf]
  %v405 = vld [vmem:[%s5 + $0x8] sm:$0xf]
  %v406 = vld [vmem:[%s5 + $0xc] sm:$0xf]
  %v407 = vld [vmem:[%s5 + $0x10] sm:$0xf]
  %v408 = vld [vmem:[%s5 + $0x14] sm:$0xf]
  %v409 = vld [vmem:[%s5 + $0x18] sm:$0xf]
  %v410 = vld [vmem:[%s5 + $0x1c] sm:$0x3]
  %v411 = vld [vmem:[%s6] sm:$0x1]
  %v413 = vlaneseq
  %v414 = vshrl.u32 %v413, 7
  %v415 = vsub.s32 0, %v414
  %v416 = vrot.slane %v411, %v415
  %v426 = vunpack.c.l.b16 %v403
  %v427 = vunpack.c.l.b16 %v404
  %v428 = vunpack.c.l.b16 %v405
  %v429 = vunpack.c.l.b16 %v406
  %v430 = vunpack.c.l.b16 %v407
  %v431 = vunpack.c.l.b16 %v408
  %v432 = vunpack.c.l.b16 %v409
  %v433 = vunpack.c.l.b16 %v410
  %v434 = vpack.c.b16 %v427, %v426
  %v435 = vpack.c.b16 %v429, %v428
  %v436 = vpack.c.b16 %v431, %v430
  %v437 = vpack.c.b16 %v433, %v432
  %vm441 = vcmask 490496
  %v443 = vsel %vm441, %v402, 0
  %vm445 = vcmask 1045504
  %v447 = vsel %vm445, %v437, 0
  %449 = vmatprep.subr.bf16.mxu0 0
  %450 = vmatpush1.bf16.msra.mxu0 %v434
  %451 = vmatprep.subr.bf16.mxu0 0
  %452 = vmatpush1.bf16.msra.mxu0 %v435
  %453 = vmatprep.subr.bf16.mxu0 0
  %454 = vmatpush1.bf16.msra.mxu0 %v436
  %455 = vmatprep.subr.bf16.mxu0 0
  %456 = vmatpush1.bf16.msra.mxu0 %v447
  %457 = vmatprep.subr.bf16.mxu0 0
  %458 = vmatpush1.bf16.msra.mxu0 0
  %459 = vmatprep.subr.bf16.mxu0 0
  %460 = vmatpush1.bf16.msra.mxu0 0
  %461 = vmatprep.subr.bf16.mxu0 0
  %462 = vmatpush1.bf16.msra.mxu0 0
  %463 = vmatprep.subr.bf16.mxu0 0
  %464 = vmatpush1.bf16.msra.mxu0 0
  %465 = vmatprep.subr.bf16.mxu0 0
  %466 = vmatpush1.bf16.msra.mxu0 0
  %467 = vmatprep.subr.bf16.mxu0 0
  %468 = vmatpush1.bf16.msra.mxu0 0
  %469 = vmatprep.subr.bf16.mxu0 0
  %470 = vmatpush1.bf16.msra.mxu0 0
  %471 = vmatprep.subr.bf16.mxu0 0
  %472 = vmatpush1.bf16.msra.mxu0 0
  %473 = vmatprep.subr.bf16.mxu0 0
  %474 = vmatpush1.bf16.msra.mxu0 0
  %475 = vmatprep.subr.bf16.mxu0 0
  %476 = vmatpush1.bf16.msra.mxu0 0
  %477 = vmatprep.subr.bf16.mxu0 0
  %478 = vmatpush1.bf16.msra.mxu0 0
  %479 = vmatprep.subr.bf16.mxu0 0
  %480 = vmatpush1.bf16.msra.mxu0 0
  %481 = vmatprep.mubr.bf16.mxu0 0
  %482 = vmatmul.mubr.bf16.gmra.mrb[0].mxu0 %v443
  %v483 = vpop.f32.mrb[0].mxu0
  %v484 = vadd.f32 %v416, %v483
  %v485 = vpop.f32.mrb[0].mxu0
  %v486 = vpop.f32.mrb[0].mxu0
  %v487 = vpop.f32.mrb[0].mxu0
  %488 = vdwg.mxu0
  %vm489 = vcmask 80896
  %v490 = vsel %vm489, %v484, -inf
  %491 = vmax.xlane.f32.xlu0 %v490
  %v492 = vpop.xlane.xlu0 %491
  %v493 = vsub.f32 %v484, %v492
  %v494 = vmul.f32 %v493, 1.442695
  %v495 = vpow.pop %v494
  %v496 = vsel %vm489, %v495, 0.0
  %497 = vadd.xlane.f32.xlu0 %v496
  %v498 = vpop.xlane.xlu0 %497
  %v499 = vlog2.pop %v498
  %v500 = vmul.f32 %v499, 0.6931472
  %v501 = vsub.f32 %v493, %v500
  %502 = vst.msk [vmem:[%s7] sm:$0xff] %vm489, %v501
  // Predicated region
  $region30: #{custom_cnn_forward.5} parent=0 // pred_check
    _
  $region31: #{custom_cnn_forward.5} parent=0 // pred_check_branch
    %504 = sbr.rel (0) target = $region33
  $region32: #{custom_cnn_forward.5} parent=0 // pred_region
    _
  $region33: #{custom_cnn_forward.5} parent=0 // pred_fallthru
    _
  // Predicated region
  $region34: #{custom_cnn_forward.5} parent=0 // pred_check
    _
  $region35: #{custom_cnn_forward.5} parent=0 // pred_check_branch
    %506 = sbr.rel (0) target = $region37
  $region36: #{custom_cnn_forward.5} parent=0 // pred_region
    _
  $region37: #{custom_cnn_forward.5} parent=0 // pred_fallthru
    _

</llo_original>
